<compile_context>
chip_gen: v7x
topology: tpu7x:2x2x1
jax: 0.10.0
libtpu: 0.0.40
codegen_flags: <defaults>
</compile_context>

<pallas_src>
import jax
import jax.numpy as jnp
from jax.experimental import pallas as pl
from jax.experimental.pallas import tpu as pltpu

EPS = 1e-5
_VMEM = pl.BlockSpec(memory_space=pltpu.MemorySpace.VMEM)


# ----------------------------- in-kernel helpers -----------------------------

def _bn_train(y, gamma, beta):
    """Training-mode BatchNorm over axis 0 (biased variance, like torch)."""
    inv_m = 1.0 / y.shape[0]
    mean = jnp.sum(y, axis=0, keepdims=True) * inv_m
    var = jnp.sum(y * y, axis=0, keepdims=True) * inv_m - mean * mean
    var = jnp.maximum(var, 0.0)                       # guard f32 cancellation
    return (y - mean) * jax.lax.rsqrt(var + EPS) * gamma + beta


def _corner_max(y):
    """2x2 max-pool: max over the 4 pool-corner row blocks, (4R, C) -> (R, C)."""
    r = y.shape[0] // 4
    return jnp.maximum(jnp.maximum(y[0:r], y[r:2 * r]),
                       jnp.maximum(y[2 * r:3 * r], y[3 * r:4 * r]))


# ------------------------------ Pallas kernels -------------------------------

def _conv1_kernel(cols_ref, w_ref, b_ref, g_ref, bt_ref, o_ref):
    # cols_ref: (4 * 2*N*64, 25) bf16, rows ordered (corner, branch, n, h, w)
    # o_ref:    (2*N*64, 16)     bf16, rows ordered (branch, n, h, w)
    y = jnp.dot(cols_ref[...], w_ref[...], preferred_element_type=jnp.float32)
    y = _corner_max(y)                                 # max-pool
    y = jnp.maximum(y + b_ref[...], 0.0)               # bias + ReLU (post-pool OK)
    half = o_ref.shape[0] // 2                         # rows per branch
    o_ref[:half] = _bn_train(y[:half], g_ref[...], bt_ref[...]).astype(o_ref.dtype)
    o_ref[half:] = _bn_train(y[half:], g_ref[...], bt_ref[...]).astype(o_ref.dtype)


def conv1_stage(cols1, p):
    rows_out = cols1.shape[0] // 4
    return pl.pallas_call(
        _conv1_kernel,
        out_shape=jax.ShapeDtypeStruct((rows_out, 16), jnp.bfloat16),
        in_specs=[_VMEM] * 5,
        out_specs=_VMEM,
    )(cols1, p["c1_w"], p["c1_b"], p["bn1_g"], p["bn1_b"])


def _tail_kernel(cols2_ref, w2_ref, b2_ref, g2_ref, bt2_ref,
                 w1_ref, b1_ref, g3_ref, bt3_ref,
                 wf2_ref, bf2_ref, w3a_ref, w3b_ref, b3_ref,
                 g4_ref, bt4_ref, w4_ref, b4_ref,
                 aux_ref, out_ref, feat_ref):
    # cols2_ref: (4 * 2*25*N, 144) bf16, rows ordered (corner, branch, spatial, n)
    # feat_ref : (2*N, 800) f32 VMEM scratch = fc1 input rows in (h, w, c) column
    #            order (fc1 weight columns were pre-permuted to match).
    n = aux_ref.shape[1]

    # conv2: one GEMM over all pool corners & both branches, then pool/bias/ReLU
    y = jnp.dot(cols2_ref[...], w2_ref[...], preferred_element_type=jnp.float32)
    y = _corner_max(y)
    y = jnp.maximum(y + b2_ref[...], 0.0)
    half = y.shape[0] // 2                             # 25*N rows per branch
    h_br = (_bn_train(y[:half], g2_ref[...], bt2_ref[...]),
            _bn_train(y[half:], g2_ref[...], bt2_ref[...]))

    # In-VMEM "flatten": scatter (branch, spatial, n) row blocks into per-sample
    # 800-wide fc1 input rows.  No HBM round trip, no in-kernel reshape.
    for b in range(2):
        for s in range(25):
            feat_ref[b * n:(b + 1) * n, s * 32:(s + 1) * 32] = \
                h_br[b][s * n:(s + 1) * n, :]

    feats = feat_ref[...].astype(jnp.bfloat16)          # (2N, 800)
    f = jnp.dot(feats, w1_ref[...], preferred_element_type=jnp.float32) + b1_ref[...]
    f = jnp.maximum(f, 0.0)
    f0 = _bn_train(f[:n], g3_ref[...], bt3_ref[...])     # per-branch BN3
    f1 = _bn_train(f[n:], g3_ref[...], bt3_ref[...])

    # fc2 auxiliary heads (one per branch)
    o0 = jnp.dot(f0, wf2_ref[...], preferred_element_type=jnp.float32) + bf2_ref[...]
    o1 = jnp.dot(f1, wf2_ref[...], preferred_element_type=jnp.float32) + bf2_ref[...]
    aux_ref[0] = o0
    aux_ref[1] = o1

    # fc3(concat([o0, o1], dim=1)) == o0 @ W3[:10] + o1 @ W3[10:]
    h = (jnp.dot(o0, w3a_ref[...], preferred_element_type=jnp.float32)
         + jnp.dot(o1, w3b_ref[...], preferred_element_type=jnp.float32)
         + b3_ref[...])
    h = jnp.maximum(h, 0.0)
    h = _bn_train(h, g4_ref[...], bt4_ref[...])
    out_ref[...] = jnp.dot(h, w4_ref[...], preferred_element_type=jnp.float32) + b4_ref[...]


def tail_stage(cols2, p, n):
    aux, out = pl.pallas_call(
        _tail_kernel,
        out_shape=(jax.ShapeDtypeStruct((2, n, 10), jnp.float32),
                   jax.ShapeDtypeStruct((n, 2), jnp.float32)),
        in_specs=[_VMEM] * 18,
        out_specs=(_VMEM, _VMEM),
        scratch_shapes=[pltpu.VMEM((2 * n, 800), jnp.float32)],
    )(cols2, p["c2_w"], p["c2_b"], p["bn2_g"], p["bn2_b"],
      p["fc1_w"], p["fc1_b"], p["bn3_g"], p["bn3_b"],
      p["fc2_w"], p["fc2_b"], p["fc3_wa"], p["fc3_wb"], p["fc3_b"],
      p["bn4_g"], p["bn4_b"], p["fc4_w"], p["fc4_b"])
    return out, aux


# ----------------------------- conv im2col glue ------------------------------

def _pool_corner_cols(x, kh, kw, pad, sample_major):
    """x: (B, N, H, W, C) NHWC (B = 2 weight-sharing branches).
    Returns (4*B*M, C*kh*kw) im2col patches for the 4 corners of the 2x2
    max-pool window after a padded conv.  Max over the 4 corner row-blocks
    inside the kernel == max_pool2d(conv(x), 2).
    Row order: (corner, branch, n, h, w) if sample_major else
               (corner, branch, spatial, n).
    Column order: (i, j, c), matching (kh, kw, cin, cout)-flattened weights."""
    B, Nb, H, W, C = x.shape
    xp = jnp.pad(x, ((0, 0), (0, 0), (pad, pad), (pad, pad), (0, 0)))
    Ho = H + 2 * pad - kh + 1
    Wo = W + 2 * pad - kw + 1
    Hop, Wop = Ho // 2, Wo // 2
    K = C * kh * kw
    corners = []
    for dh in range(2):
        for dw in range(2):
            taps = []
            for i in range(kh):
                for j in range(kw):
                    taps.append(xp[:, :, dh + i: dh + i + 2 * Hop: 2,
                                   dw + j: dw + j + 2 * Wop: 2, :])
            t = jnp.concatenate(taps, axis=-1)          # (B, N, Hop, Wop, K)
            if sample_major:
                t = t.reshape(B * Nb * Hop * Wop, K)    # rows (b, n, h, w)
            else:
                t = jnp.transpose(t, (0, 2, 3, 1, 4)).reshape(B * Hop * Wop * Nb, K)
            corners.append(t)
    return jnp.concatenate(corners, axis=0)             # rows (corner, ...)


# -------------------------------- parameters ---------------------------------

def init_params(key):
    """Torch-layout parameters with the nn.Module default init convention."""
    ks = jax.random.split(key, 12)

    def u(k, shape, fan_in):
        bound = 1.0 / float(fan_in) ** 0.5
        return jax.random.uniform(k, shape, jnp.float32, -bound, bound)

    p = {
        "conv1_w": u(ks[0], (16, 1, 5, 5), 25),
        "conv1_b": u(ks[1], (16,), 25),
        "conv2_w": u(ks[2], (32, 16, 3, 3), 16 * 9),
        "conv2_b": u(ks[3], (32,), 16 * 9),
        "fc1_w": u(ks[4], (100, 800), 800),
        "fc1_b": u(ks[5], (100,), 800),
        "fc2_w": u(ks[6], (10, 100), 100),
        "fc2_b": u(ks[7], (10,), 100),
        "fc3_w": u(ks[8], (100, 20), 20),
        "fc3_b": u(ks[9], (100,), 20),
        "fc4_w": u(ks[10], (2, 100), 100),
        "fc4_b": u(ks[11], (2,), 100),
    }
    for i, c in [(1, 16), (2, 32), (3, 100), (4, 100)]:
        p[f"bn{i}_g"] = jnp.ones((c,), jnp.float32)
        p[f"bn{i}_b"] = jnp.zeros((c,), jnp.float32)
    return p


def prepare_params(p):
    """One-time weight re-layout, outside jit: conv weights -> (kh*kw*cin, cout)
    GEMM layout; fc1 columns permuted from torch (C,H,W) flatten order to the
    kernel's (H,W,C) order; bf16 for the big GEMMs; biases / BN params (1, C)."""
    bf16, f32 = jnp.bfloat16, jnp.float32
    q = {}
    q["c1_w"] = p["conv1_w"].transpose(2, 3, 1, 0).reshape(25, 16).astype(bf16)
    q["c1_b"] = p["conv1_b"].reshape(1, 16).astype(f32)
    q["c2_w"] = p["conv2_w"].transpose(2, 3, 1, 0).reshape(144, 32).astype(bf16)
    q["c2_b"] = p["conv2_b"].reshape(1, 32).astype(f32)
    w1 = p["fc1_w"].reshape(100, 32, 5, 5).transpose(0, 2, 3, 1).reshape(100, 800)
    q["fc1_w"] = w1.T.astype(bf16)                                   # (800, 100)
    q["fc1_b"] = p["fc1_b"].reshape(1, 100).astype(f32)
    q["fc2_w"] = p["fc2_w"].T.astype(f32)                            # (100, 10)
    q["fc2_b"] = p["fc2_b"].reshape(1, 10).astype(f32)
    w3 = p["fc3_w"].T.astype(f32)                                    # (20, 100)
    q["fc3_wa"], q["fc3_wb"] = w3[:10], w3[10:]                      # concat-free fc3
    q["fc3_b"] = p["fc3_b"].reshape(1, 100).astype(f32)
    q["fc4_w"] = p["fc4_w"].T.astype(f32)                            # (100, 2)
    q["fc4_b"] = p["fc4_b"].reshape(1, 2).astype(f32)
    for i, c in [(1, 16), (2, 32), (3, 100), (4, 100)]:
        q[f"bn{i}_g"] = p[f"bn{i}_g"].reshape(1, c).astype(f32)
        q[f"bn{i}_b"] = p[f"bn{i}_b"].reshape(1, c).astype(f32)
    return q


# ---------------------------------- forward ----------------------------------

def forward(p, data_in):
    # data_in: (N, 2, 14, 14) f32
    n = data_in.shape[0]
    x = jnp.transpose(data_in, (1, 0, 2, 3))[..., None]              # (2, N, 14, 14, 1)

    # conv1 stage: im2col on the raw input (JAX glue) + fused GEMM/pool/ReLU/BN1
    cols1 = _pool_corner_cols(x, 5, 5, 3, sample_major=True).astype(jnp.bfloat16)
    h1 = conv1_stage(cols1, p)                                       # (2*N*64, 16) bf16
    h1 = h1.reshape(2, n, 8, 8, 16)                                  # NHWC, metadata only

    # conv2 + fc1 + fc2 (aux) + fc3 + BN4 + fc4, all fused in one kernel
    cols2 = _pool_corner_cols(h1, 3, 3, 2, sample_major=False)       # (4*2*25*N, 144) bf16
    out, aux = tail_stage(cols2, p, n)
    return out, [aux[0], aux[1]]


# ------------------------------------ main ------------------------------------

if __name__ == "__main__":
    key = jax.random.PRNGKey(0)
    pkey, xkey = jax.random.split(key)
    params = prepare_params(init_params(pkey))       # re-layout once, outside jit
    batch = 8                                        # multiple of 8 -> aligned row blocks
    data_in = jax.random.normal(xkey, (batch, 2, 14, 14), dtype=jnp.float32)

    fwd = jax.jit(forward)
    x, aux = fwd(params, data_in)
    jax.block_until_ready((x, aux))

    assert x.shape == (batch, 2) and x.dtype == jnp.float32
    assert aux[0].shape == (batch, 10) and aux[1].shape == (batch, 10)
    print("KERNEL_OK")
</pallas_src>

<mosaic_0001>
module attributes {stable_mosaic.version = 11 : i64} {
  func.func @_conv1_kernel(%arg0: memref<4096x25xbf16, #tpu.memory_space<vmem>>, %arg1: memref<25x16xbf16, #tpu.memory_space<vmem>>, %arg2: memref<1x16xf32, #tpu.memory_space<vmem>>, %arg3: memref<1x16xf32, #tpu.memory_space<vmem>>, %arg4: memref<1x16xf32, #tpu.memory_space<vmem>>, %arg5: memref<1024x16xbf16, #tpu.memory_space<vmem>>) attributes {dimension_semantics = [], scalar_prefetch = 0 : i64, scratch_operands = 0 : i64, tpu.core_type = #tpu.core_type<tc>} {
    %c0 = arith.constant 0 : index
    %c0_0 = arith.constant 0 : index
    %0 = vector.load %arg0[%c0, %c0_0] : memref<4096x25xbf16, #tpu.memory_space<vmem>>, vector<4096x25xbf16>
    %c0_1 = arith.constant 0 : index
    %c0_2 = arith.constant 0 : index
    %1 = vector.load %arg1[%c0_1, %c0_2] : memref<25x16xbf16, #tpu.memory_space<vmem>>, vector<25x16xbf16>
    %cst = arith.constant dense<0.000000e+00> : vector<4096x16xf32>
    %2 = tpu.matmul %0, %1, %cst {dimension_numbers = #tpu.dot_dimension_numbers<[1], [0], [0], [1], [0, 0, 1, 1], [], []>} : vector<4096x25xbf16>, vector<25x16xbf16>, vector<4096x16xf32> -> vector<4096x16xf32>
    %3 = vector.extract_strided_slice %2 {offsets = [0, 0], sizes = [1024, 16], strides = [1, 1]} : vector<4096x16xf32> to vector<1024x16xf32>
    %4 = vector.extract_strided_slice %2 {offsets = [1024, 0], sizes = [1024, 16], strides = [1, 1]} : vector<4096x16xf32> to vector<1024x16xf32>
    %5 = arith.maximumf %3, %4 : vector<1024x16xf32>
    %6 = vector.extract_strided_slice %2 {offsets = [2048, 0], sizes = [1024, 16], strides = [1, 1]} : vector<4096x16xf32> to vector<1024x16xf32>
    %7 = vector.extract_strided_slice %2 {offsets = [3072, 0], sizes = [1024, 16], strides = [1, 1]} : vector<4096x16xf32> to vector<1024x16xf32>
    %8 = arith.maximumf %6, %7 : vector<1024x16xf32>
    %9 = arith.maximumf %5, %8 : vector<1024x16xf32>
    %c0_3 = arith.constant 0 : index
    %c0_4 = arith.constant 0 : index
    %10 = vector.load %arg2[%c0_3, %c0_4] : memref<1x16xf32, #tpu.memory_space<vmem>>, vector<1x16xf32>
    %11 = vector.broadcast %10 : vector<1x16xf32> to vector<1024x16xf32>
    %12 = arith.addf %9, %11 : vector<1024x16xf32>
    %cst_5 = arith.constant 0.000000e+00 : f32
    %13 = vector.broadcast %cst_5 : f32 to vector<1024x16xf32>
    %14 = arith.maximumf %12, %13 : vector<1024x16xf32>
    %15 = vector.extract_strided_slice %14 {offsets = [0, 0], sizes = [512, 16], strides = [1, 1]} : vector<1024x16xf32> to vector<512x16xf32>
    %c0_6 = arith.constant 0 : index
    %c0_7 = arith.constant 0 : index
    %16 = vector.load %arg3[%c0_6, %c0_7] : memref<1x16xf32, #tpu.memory_space<vmem>>, vector<1x16xf32>
    %c0_8 = arith.constant 0 : index
    %c0_9 = arith.constant 0 : index
    %17 = vector.load %arg4[%c0_8, %c0_9] : memref<1x16xf32, #tpu.memory_space<vmem>>, vector<1x16xf32>
    %cst_10 = arith.constant dense<0.000000e+00> : vector<16xf32>
    %18 = vector.multi_reduction <add>, %15, %cst_10 [0] : vector<512x16xf32> to vector<16xf32>
    %19 = vector.shape_cast %18 : vector<16xf32> to vector<1x16xf32>
    %cst_11 = arith.constant 0.001953125 : f32
    %20 = vector.broadcast %cst_11 : f32 to vector<1x16xf32>
    %21 = arith.mulf %19, %20 : vector<1x16xf32>
    %22 = arith.mulf %15, %15 : vector<512x16xf32>
    %cst_12 = arith.constant dense<0.000000e+00> : vector<16xf32>
    %23 = vector.multi_reduction <add>, %22, %cst_12 [0] : vector<512x16xf32> to vector<16xf32>
    %24 = vector.shape_cast %23 : vector<16xf32> to vector<1x16xf32>
    %cst_13 = arith.constant 0.001953125 : f32
    %25 = vector.broadcast %cst_13 : f32 to vector<1x16xf32>
    %26 = arith.mulf %24, %25 : vector<1x16xf32>
    %27 = arith.mulf %21, %21 : vector<1x16xf32>
    %28 = arith.subf %26, %27 : vector<1x16xf32>
    %cst_14 = arith.constant 0.000000e+00 : f32
    %29 = vector.broadcast %cst_14 : f32 to vector<1x16xf32>
    %30 = arith.maximumf %28, %29 : vector<1x16xf32>
    %31 = vector.broadcast %21 : vector<1x16xf32> to vector<512x16xf32>
    %32 = arith.subf %15, %31 : vector<512x16xf32>
    %cst_15 = arith.constant 9.99999974E-6 : f32
    %33 = vector.broadcast %cst_15 : f32 to vector<1x16xf32>
    %34 = arith.addf %30, %33 : vector<1x16xf32>
    %35 = math.rsqrt %34 : vector<1x16xf32>
    %36 = vector.broadcast %35 : vector<1x16xf32> to vector<512x16xf32>
    %37 = arith.mulf %32, %36 : vector<512x16xf32>
    %38 = vector.broadcast %16 : vector<1x16xf32> to vector<512x16xf32>
    %39 = arith.mulf %37, %38 : vector<512x16xf32>
    %40 = vector.broadcast %17 : vector<1x16xf32> to vector<512x16xf32>
    %41 = arith.addf %39, %40 : vector<512x16xf32>
    %42 = arith.truncf %41 : vector<512x16xf32> to vector<512x16xbf16>
    %c0_16 = arith.constant 0 : index
    %c0_17 = arith.constant 0 : index
    %43 = vector.load %arg5[%c0_16, %c0_17] : memref<1024x16xbf16, #tpu.memory_space<vmem>>, vector<512x16xbf16>
    tpu.vector_store %arg5[%c0_16, %c0_17], %42 {strides = array<i32>} : memref<1024x16xbf16, #tpu.memory_space<vmem>>, vector<512x16xbf16>,
    %44 = vector.extract_strided_slice %14 {offsets = [512, 0], sizes = [512, 16], strides = [1, 1]} : vector<1024x16xf32> to vector<512x16xf32>
    %c0_18 = arith.constant 0 : index
    %c0_19 = arith.constant 0 : index
    %45 = vector.load %arg3[%c0_18, %c0_19] : memref<1x16xf32, #tpu.memory_space<vmem>>, vector<1x16xf32>
    %c0_20 = arith.constant 0 : index
    %c0_21 = arith.constant 0 : index
    %46 = vector.load %arg4[%c0_20, %c0_21] : memref<1x16xf32, #tpu.memory_space<vmem>>, vector<1x16xf32>
    %cst_22 = arith.constant dense<0.000000e+00> : vector<16xf32>
    %47 = vector.multi_reduction <add>, %44, %cst_22 [0] : vector<512x16xf32> to vector<16xf32>
    %48 = vector.shape_cast %47 : vector<16xf32> to vector<1x16xf32>
    %cst_23 = arith.constant 0.001953125 : f32
    %49 = vector.broadcast %cst_23 : f32 to vector<1x16xf32>
    %50 = arith.mulf %48, %49 : vector<1x16xf32>
    %51 = arith.mulf %44, %44 : vector<512x16xf32>
    %cst_24 = arith.constant dense<0.000000e+00> : vector<16xf32>
    %52 = vector.multi_reduction <add>, %51, %cst_24 [0] : vector<512x16xf32> to vector<16xf32>
    %53 = vector.shape_cast %52 : vector<16xf32> to vector<1x16xf32>
    %cst_25 = arith.constant 0.001953125 : f32
    %54 = vector.broadcast %cst_25 : f32 to vector<1x16xf32>
    %55 = arith.mulf %53, %54 : vector<1x16xf32>
    %56 = arith.mulf %50, %50 : vector<1x16xf32>
    %57 = arith.subf %55, %56 : vector<1x16xf32>
    %cst_26 = arith.constant 0.000000e+00 : f32
    %58 = vector.broadcast %cst_26 : f32 to vector<1x16xf32>
    %59 = arith.maximumf %57, %58 : vector<1x16xf32>
    %60 = vector.broadcast %50 : vector<1x16xf32> to vector<512x16xf32>
    %61 = arith.subf %44, %60 : vector<512x16xf32>
    %cst_27 = arith.constant 9.99999974E-6 : f32
    %62 = vector.broadcast %cst_27 : f32 to vector<1x16xf32>
    %63 = arith.addf %59, %62 : vector<1x16xf32>
    %64 = math.rsqrt %63 : vector<1x16xf32>
    %65 = vector.broadcast %64 : vector<1x16xf32> to vector<512x16xf32>
    %66 = arith.mulf %61, %65 : vector<512x16xf32>
    %67 = vector.broadcast %45 : vector<1x16xf32> to vector<512x16xf32>
    %68 = arith.mulf %66, %67 : vector<512x16xf32>
    %69 = vector.broadcast %46 : vector<1x16xf32> to vector<512x16xf32>
    %70 = arith.addf %68, %69 : vector<512x16xf32>
    %71 = arith.truncf %70 : vector<512x16xf32> to vector<512x16xbf16>
    %c512 = arith.constant 512 : index
    %c0_28 = arith.constant 0 : index
    %72 = vector.load %arg5[%c512, %c0_28] : memref<1024x16xbf16, #tpu.memory_space<vmem>>, vector<512x16xbf16>
    tpu.vector_store %arg5[%c512, %c0_28], %71 {strides = array<i32>} : memref<1024x16xbf16, #tpu.memory_space<vmem>>, vector<512x16xbf16>,
    return
  }
}

module attributes {stable_mosaic.version = 11 : i64} {
  func.func @_tail_kernel(%arg0: memref<1600x144xbf16, #tpu.memory_space<vmem>>, %arg1: memref<144x32xbf16, #tpu.memory_space<vmem>>, %arg2: memref<1x32xf32, #tpu.memory_space<vmem>>, %arg3: memref<1x32xf32, #tpu.memory_space<vmem>>, %arg4: memref<1x32xf32, #tpu.memory_space<vmem>>, %arg5: memref<800x100xbf16, #tpu.memory_space<vmem>>, %arg6: memref<1x100xf32, #tpu.memory_space<vmem>>, %arg7: memref<1x100xf32, #tpu.memory_space<vmem>>, %arg8: memref<1x100xf32, #tpu.memory_space<vmem>>, %arg9: memref<100x10xf32, #tpu.memory_space<vmem>>, %arg10: memref<1x10xf32, #tpu.memory_space<vmem>>, %arg11: memref<10x100xf32, #tpu.memory_space<vmem>>, %arg12: memref<10x100xf32, #tpu.memory_space<vmem>>, %arg13: memref<1x100xf32, #tpu.memory_space<vmem>>, %arg14: memref<1x100xf32, #tpu.memory_space<vmem>>, %arg15: memref<1x100xf32, #tpu.memory_space<vmem>>, %arg16: memref<100x2xf32, #tpu.memory_space<vmem>>, %arg17: memref<1x2xf32, #tpu.memory_space<vmem>>, %arg18: memref<2x8x10xf32, #tpu.memory_space<vmem>>, %arg19: memref<8x2xf32, #tpu.memory_space<vmem>>, %arg20: memref<16x800xf32, #tpu.memory_space<vmem>>) attributes {dimension_semantics = [], scalar_prefetch = 0 : i64, scratch_operands = 1 : i64, tpu.core_type = #tpu.core_type<tc>} {
    %c0 = arith.constant 0 : index
    %c0_0 = arith.constant 0 : index
    %0 = vector.load %arg0[%c0, %c0_0] : memref<1600x144xbf16, #tpu.memory_space<vmem>>, vector<1600x144xbf16>
    %c0_1 = arith.constant 0 : index
    %c0_2 = arith.constant 0 : index
    %1 = vector.load %arg1[%c0_1, %c0_2] : memref<144x32xbf16, #tpu.memory_space<vmem>>, vector<144x32xbf16>
    %cst = arith.constant dense<0.000000e+00> : vector<1600x32xf32>
    %2 = tpu.matmul %0, %1, %cst {dimension_numbers = #tpu.dot_dimension_numbers<[1], [0], [0], [1], [0, 0, 1, 1], [], []>} : vector<1600x144xbf16>, vector<144x32xbf16>, vector<1600x32xf32> -> vector<1600x32xf32>
    %3 = vector.extract_strided_slice %2 {offsets = [0, 0], sizes = [400, 32], strides = [1, 1]} : vector<1600x32xf32> to vector<400x32xf32>
    %4 = vector.extract_strided_slice %2 {offsets = [400, 0], sizes = [400, 32], strides = [1, 1]} : vector<1600x32xf32> to vector<400x32xf32>
    %5 = arith.maximumf %3, %4 : vector<400x32xf32>
    %6 = vector.extract_strided_slice %2 {offsets = [800, 0], sizes = [400, 32], strides = [1, 1]} : vector<1600x32xf32> to vector<400x32xf32>
    %7 = vector.extract_strided_slice %2 {offsets = [1200, 0], sizes = [400, 32], strides = [1, 1]} : vector<1600x32xf32> to vector<400x32xf32>
    %8 = arith.maximumf %6, %7 : vector<400x32xf32>
    %9 = arith.maximumf %5, %8 : vector<400x32xf32>
    %c0_3 = arith.constant 0 : index
    %c0_4 = arith.constant 0 : index
    %10 = vector.load %arg2[%c0_3, %c0_4] : memref<1x32xf32, #tpu.memory_space<vmem>>, vector<1x32xf32>
    %11 = vector.broadcast %10 : vector<1x32xf32> to vector<400x32xf32>
    %12 = arith.addf %9, %11 : vector<400x32xf32>
    %cst_5 = arith.constant 0.000000e+00 : f32
    %13 = vector.broadcast %cst_5 : f32 to vector<400x32xf32>
    %14 = arith.maximumf %12, %13 : vector<400x32xf32>
    %15 = vector.extract_strided_slice %14 {offsets = [0, 0], sizes = [200, 32], strides = [1, 1]} : vector<400x32xf32> to vector<200x32xf32>
    %c0_6 = arith.constant 0 : index
    %c0_7 = arith.constant 0 : index
    %16 = vector.load %arg3[%c0_6, %c0_7] : memref<1x32xf32, #tpu.memory_space<vmem>>, vector<1x32xf32>
    %c0_8 = arith.constant 0 : index
    %c0_9 = arith.constant 0 : index
    %17 = vector.load %arg4[%c0_8, %c0_9] : memref<1x32xf32, #tpu.memory_space<vmem>>, vector<1x32xf32>
    %cst_10 = arith.constant dense<0.000000e+00> : vector<32xf32>
    %18 = vector.multi_reduction <add>, %15, %cst_10 [0] : vector<200x32xf32> to vector<32xf32>
    %19 = vector.shape_cast %18 : vector<32xf32> to vector<1x32xf32>
    %cst_11 = arith.constant 5.000000e-03 : f32
    %20 = vector.broadcast %cst_11 : f32 to vector<1x32xf32>
    %21 = arith.mulf %19, %20 : vector<1x32xf32>
    %22 = arith.mulf %15, %15 : vector<200x32xf32>
    %cst_12 = arith.constant dense<0.000000e+00> : vector<32xf32>
    %23 = vector.multi_reduction <add>, %22, %cst_12 [0] : vector<200x32xf32> to vector<32xf32>
    %24 = vector.shape_cast %23 : vector<32xf32> to vector<1x32xf32>
    %cst_13 = arith.constant 5.000000e-03 : f32
    %25 = vector.broadcast %cst_13 : f32 to vector<1x32xf32>
    %26 = arith.mulf %24, %25 : vector<1x32xf32>
    %27 = arith.mulf %21, %21 : vector<1x32xf32>
    %28 = arith.subf %26, %27 : vector<1x32xf32>
    %cst_14 = arith.constant 0.000000e+00 : f32
    %29 = vector.broadcast %cst_14 : f32 to vector<1x32xf32>
    %30 = arith.maximumf %28, %29 : vector<1x32xf32>
    %31 = vector.broadcast %21 : vector<1x32xf32> to vector<200x32xf32>
    %32 = arith.subf %15, %31 : vector<200x32xf32>
    %cst_15 = arith.constant 9.99999974E-6 : f32
    %33 = vector.broadcast %cst_15 : f32 to vector<1x32xf32>
    %34 = arith.addf %30, %33 : vector<1x32xf32>
    %35 = math.rsqrt %34 : vector<1x32xf32>
    %36 = vector.broadcast %35 : vector<1x32xf32> to vector<200x32xf32>
    %37 = arith.mulf %32, %36 : vector<200x32xf32>
    %38 = vector.broadcast %16 : vector<1x32xf32> to vector<200x32xf32>
    %39 = arith.mulf %37, %38 : vector<200x32xf32>
    %40 = vector.broadcast %17 : vector<1x32xf32> to vector<200x32xf32>
    %41 = arith.addf %39, %40 : vector<200x32xf32>
    %42 = vector.extract_strided_slice %14 {offsets = [200, 0], sizes = [200, 32], strides = [1, 1]} : vector<400x32xf32> to vector<200x32xf32>
    %c0_16 = arith.constant 0 : index
    %c0_17 = arith.constant 0 : index
    %43 = vector.load %arg3[%c0_16, %c0_17] : memref<1x32xf32, #tpu.memory_space<vmem>>, vector<1x32xf32>
    %c0_18 = arith.constant 0 : index
    %c0_19 = arith.constant 0 : index
    %44 = vector.load %arg4[%c0_18, %c0_19] : memref<1x32xf32, #tpu.memory_space<vmem>>, vector<1x32xf32>
    %cst_20 = arith.constant dense<0.000000e+00> : vector<32xf32>
    %45 = vector.multi_reduction <add>, %42, %cst_20 [0] : vector<200x32xf32> to vector<32xf32>
    %46 = vector.shape_cast %45 : vector<32xf32> to vector<1x32xf32>
    %cst_21 = arith.constant 5.000000e-03 : f32
    %47 = vector.broadcast %cst_21 : f32 to vector<1x32xf32>
    %48 = arith.mulf %46, %47 : vector<1x32xf32>
    %49 = arith.mulf %42, %42 : vector<200x32xf32>
    %cst_22 = arith.constant dense<0.000000e+00> : vector<32xf32>
    %50 = vector.multi_reduction <add>, %49, %cst_22 [0] : vector<200x32xf32> to vector<32xf32>
    %51 = vector.shape_cast %50 : vector<32xf32> to vector<1x32xf32>
    %cst_23 = arith.constant 5.000000e-03 : f32
    %52 = vector.broadcast %cst_23 : f32 to vector<1x32xf32>
    %53 = arith.mulf %51, %52 : vector<1x32xf32>
    %54 = arith.mulf %48, %48 : vector<1x32xf32>
    %55 = arith.subf %53, %54 : vector<1x32xf32>
    %cst_24 = arith.constant 0.000000e+00 : f32
    %56 = vector.broadcast %cst_24 : f32 to vector<1x32xf32>
    %57 = arith.maximumf %55, %56 : vector<1x32xf32>
    %58 = vector.broadcast %48 : vector<1x32xf32> to vector<200x32xf32>
    %59 = arith.subf %42, %58 : vector<200x32xf32>
    %cst_25 = arith.constant 9.99999974E-6 : f32
    %60 = vector.broadcast %cst_25 : f32 to vector<1x32xf32>
    %61 = arith.addf %57, %60 : vector<1x32xf32>
    %62 = math.rsqrt %61 : vector<1x32xf32>
    %63 = vector.broadcast %62 : vector<1x32xf32> to vector<200x32xf32>
    %64 = arith.mulf %59, %63 : vector<200x32xf32>
    %65 = vector.broadcast %43 : vector<1x32xf32> to vector<200x32xf32>
    %66 = arith.mulf %64, %65 : vector<200x32xf32>
    %67 = vector.broadcast %44 : vector<1x32xf32> to vector<200x32xf32>
    %68 = arith.addf %66, %67 : vector<200x32xf32>
    %69 = vector.extract_strided_slice %41 {offsets = [0, 0], sizes = [8, 32], strides = [1, 1]} : vector<200x32xf32> to vector<8x32xf32>
    %c0_26 = arith.constant 0 : index
    %c0_27 = arith.constant 0 : index
    %70 = vector.load %arg20[%c0_26, %c0_27] : memref<16x800xf32, #tpu.memory_space<vmem>>, vector<8x32xf32>
    tpu.vector_store %arg20[%c0_26, %c0_27], %69 {strides = array<i32>} : memref<16x800xf32, #tpu.memory_space<vmem>>, vector<8x32xf32>,
    %71 = vector.extract_strided_slice %41 {offsets = [8, 0], sizes = [8, 32], strides = [1, 1]} : vector<200x32xf32> to vector<8x32xf32>
    %c0_28 = arith.constant 0 : index
    %c32 = arith.constant 32 : index
    %72 = vector.load %arg20[%c0_28, %c32] : memref<16x800xf32, #tpu.memory_space<vmem>>, vector<8x32xf32>
    tpu.vector_store %arg20[%c0_28, %c32], %71 {strides = array<i32>} : memref<16x800xf32, #tpu.memory_space<vmem>>, vector<8x32xf32>,
    %73 = vector.extract_strided_slice %41 {offsets = [16, 0], sizes = [8, 32], strides = [1, 1]} : vector<200x32xf32> to vector<8x32xf32>
    %c0_29 = arith.constant 0 : index
    %c64 = arith.constant 64 : index
    %74 = vector.load %arg20[%c0_29, %c64] : memref<16x800xf32, #tpu.memory_space<vmem>>, vector<8x32xf32>
    tpu.vector_store %arg20[%c0_29, %c64], %73 {strides = array<i32>} : memref<16x800xf32, #tpu.memory_space<vmem>>, vector<8x32xf32>,
    %75 = vector.extract_strided_slice %41 {offsets = [24, 0], sizes = [8, 32], strides = [1, 1]} : vector<200x32xf32> to vector<8x32xf32>
    %c0_30 = arith.constant 0 : index
    %c96 = arith.constant 96 : index
    %76 = vector.load %arg20[%c0_30, %c96] : memref<16x800xf32, #tpu.memory_space<vmem>>, vector<8x32xf32>
    tpu.vector_store %arg20[%c0_30, %c96], %75 {strides = array<i32>} : memref<16x800xf32, #tpu.memory_space<vmem>>, vector<8x32xf32>,
    %77 = vector.extract_strided_slice %41 {offsets = [32, 0], sizes = [8, 32], strides = [1, 1]} : vector<200x32xf32> to vector<8x32xf32>
    %c0_31 = arith.constant 0 : index
    %c128 = arith.constant 128 : index
    %78 = vector.load %arg20[%c0_31, %c128] : memref<16x800xf32, #tpu.memory_space<vmem>>, vector<8x32xf32>
    tpu.vector_store %arg20[%c0_31, %c128], %77 {strides = array<i32>} : memref<16x800xf32, #tpu.memory_space<vmem>>, vector<8x32xf32>,
    %79 = vector.extract_strided_slice %41 {offsets = [40, 0], sizes = [8, 32], strides = [1, 1]} : vector<200x32xf32> to vector<8x32xf32>
    %c0_32 = arith.constant 0 : index
    %c160 = arith.constant 160 : index
    %80 = vector.load %arg20[%c0_32, %c160] : memref<16x800xf32, #tpu.memory_space<vmem>>, vector<8x32xf32>
    tpu.vector_store %arg20[%c0_32, %c160], %79 {strides = array<i32>} : memref<16x800xf32, #tpu.memory_space<vmem>>, vector<8x32xf32>,
    %81 = vector.extract_strided_slice %41 {offsets = [48, 0], sizes = [8, 32], strides = [1, 1]} : vector<200x32xf32> to vector<8x32xf32>
    %c0_33 = arith.constant 0 : index
    %c192 = arith.constant 192 : index
    %82 = vector.load %arg20[%c0_33, %c192] : memref<16x800xf32, #tpu.memory_space<vmem>>, vector<8x32xf32>
    tpu.vector_store %arg20[%c0_33, %c192], %81 {strides = array<i32>} : memref<16x800xf32, #tpu.memory_space<vmem>>, vector<8x32xf32>,
    %83 = vector.extract_strided_slice %41 {offsets = [56, 0], sizes = [8, 32], strides = [1, 1]} : vector<200x32xf32> to vector<8x32xf32>
    %c0_34 = arith.constant 0 : index
    %c224 = arith.constant 224 : index
    %84 = vector.load %arg20[%c0_34, %c224] : memref<16x800xf32, #tpu.memory_space<vmem>>, vector<8x32xf32>
    tpu.vector_store %arg20[%c0_34, %c224], %83 {strides = array<i32>} : memref<16x800xf32, #tpu.memory_space<vmem>>, vector<8x32xf32>,
    %85 = vector.extract_strided_slice %41 {offsets = [64, 0], sizes = [8, 32], strides = [1, 1]} : vector<200x32xf32> to vector<8x32xf32>
    %c0_35 = arith.constant 0 : index
    %c256 = arith.constant 256 : index
    %86 = vector.load %arg20[%c0_35, %c256] : memref<16x800xf32, #tpu.memory_space<vmem>>, vector<8x32xf32>
    tpu.vector_store %arg20[%c0_35, %c256], %85 {strides = array<i32>} : memref<16x800xf32, #tpu.memory_space<vmem>>, vector<8x32xf32>,
    %87 = vector.extract_strided_slice %41 {offsets = [72, 0], sizes = [8, 32], strides = [1, 1]} : vector<200x32xf32> to vector<8x32xf32>
    %c0_36 = arith.constant 0 : index
    %c288 = arith.constant 288 : index
    %88 = vector.load %arg20[%c0_36, %c288] : memref<16x800xf32, #tpu.memory_space<vmem>>, vector<8x32xf32>
    tpu.vector_store %arg20[%c0_36, %c288], %87 {strides = array<i32>} : memref<16x800xf32, #tpu.memory_space<vmem>>, vector<8x32xf32>,
    %89 = vector.extract_strided_slice %41 {offsets = [80, 0], sizes = [8, 32], strides = [1, 1]} : vector<200x32xf32> to vector<8x32xf32>
    %c0_37 = arith.constant 0 : index
    %c320 = arith.constant 320 : index
    %90 = vector.load %arg20[%c0_37, %c320] : memref<16x800xf32, #tpu.memory_space<vmem>>, vector<8x32xf32>
    tpu.vector_store %arg20[%c0_37, %c320], %89 {strides = array<i32>} : memref<16x800xf32, #tpu.memory_space<vmem>>, vector<8x32xf32>,
    %91 = vector.extract_strided_slice %41 {offsets = [88, 0], sizes = [8, 32], strides = [1, 1]} : vector<200x32xf32> to vector<8x32xf32>
    %c0_38 = arith.constant 0 : index
    %c352 = arith.constant 352 : index
    %92 = vector.load %arg20[%c0_38, %c352] : memref<16x800xf32, #tpu.memory_space<vmem>>, vector<8x32xf32>
    tpu.vector_store %arg20[%c0_38, %c352], %91 {strides = array<i32>} : memref<16x800xf32, #tpu.memory_space<vmem>>, vector<8x32xf32>,
    %93 = vector.extract_strided_slice %41 {offsets = [96, 0], sizes = [8, 32], strides = [1, 1]} : vector<200x32xf32> to vector<8x32xf32>
    %c0_39 = arith.constant 0 : index
    %c384 = arith.constant 384 : index
    %94 = vector.load %arg20[%c0_39, %c384] : memref<16x800xf32, #tpu.memory_space<vmem>>, vector<8x32xf32>
    tpu.vector_store %arg20[%c0_39, %c384], %93 {strides = array<i32>} : memref<16x800xf32, #tpu.memory_space<vmem>>, vector<8x32xf32>,
    %95 = vector.extract_strided_slice %41 {offsets = [104, 0], sizes = [8, 32], strides = [1, 1]} : vector<200x32xf32> to vector<8x32xf32>
    %c0_40 = arith.constant 0 : index
    %c416 = arith.constant 416 : index
    %96 = vector.load %arg20[%c0_40, %c416] : memref<16x800xf32, #tpu.memory_space<vmem>>, vector<8x32xf32>
    tpu.vector_store %arg20[%c0_40, %c416], %95 {strides = array<i32>} : memref<16x800xf32, #tpu.memory_space<vmem>>, vector<8x32xf32>,
    %97 = vector.extract_strided_slice %41 {offsets = [112, 0], sizes = [8, 32], strides = [1, 1]} : vector<200x32xf32> to vector<8x32xf32>
    %c0_41 = arith.constant 0 : index
    %c448 = arith.constant 448 : index
    %98 = vector.load %arg20[%c0_41, %c448] : memref<16x800xf32, #tpu.memory_space<vmem>>, vector<8x32xf32>
    tpu.vector_store %arg20[%c0_41, %c448], %97 {strides = array<i32>} : memref<16x800xf32, #tpu.memory_space<vmem>>, vector<8x32xf32>,
    %99 = vector.extract_strided_slice %41 {offsets = [120, 0], sizes = [8, 32], strides = [1, 1]} : vector<200x32xf32> to vector<8x32xf32>
    %c0_42 = arith.constant 0 : index
    %c480 = arith.constant 480 : index
    %100 = vector.load %arg20[%c0_42, %c480] : memref<16x800xf32, #tpu.memory_space<vmem>>, vector<8x32xf32>
    tpu.vector_store %arg20[%c0_42, %c480], %99 {strides = array<i32>} : memref<16x800xf32, #tpu.memory_space<vmem>>, vector<8x32xf32>,
    %101 = vector.extract_strided_slice %41 {offsets = [128, 0], sizes = [8, 32], strides = [1, 1]} : vector<200x32xf32> to vector<8x32xf32>
    %c0_43 = arith.constant 0 : index
    %c512 = arith.constant 512 : index
    %102 = vector.load %arg20[%c0_43, %c512] : memref<16x800xf32, #tpu.memory_space<vmem>>, vector<8x32xf32>
    tpu.vector_store %arg20[%c0_43, %c512], %101 {strides = array<i32>} : memref<16x800xf32, #tpu.memory_space<vmem>>, vector<8x32xf32>,
    %103 = vector.extract_strided_slice %41 {offsets = [136, 0], sizes = [8, 32], strides = [1, 1]} : vector<200x32xf32> to vector<8x32xf32>
    %c0_44 = arith.constant 0 : index
    %c544 = arith.constant 544 : index
    %104 = vector.load %arg20[%c0_44, %c544] : memref<16x800xf32, #tpu.memory_space<vmem>>, vector<8x32xf32>
    tpu.vector_store %arg20[%c0_44, %c544], %103 {strides = array<i32>} : memref<16x800xf32, #tpu.memory_space<vmem>>, vector<8x32xf32>,
    %105 = vector.extract_strided_slice %41 {offsets = [144, 0], sizes = [8, 32], strides = [1, 1]} : vector<200x32xf32> to vector<8x32xf32>
    %c0_45 = arith.constant 0 : index
    %c576 = arith.constant 576 : index
    %106 = vector.load %arg20[%c0_45, %c576] : memref<16x800xf32, #tpu.memory_space<vmem>>, vector<8x32xf32>
    tpu.vector_store %arg20[%c0_45, %c576], %105 {strides = array<i32>} : memref<16x800xf32, #tpu.memory_space<vmem>>, vector<8x32xf32>,
    %107 = vector.extract_strided_slice %41 {offsets = [152, 0], sizes = [8, 32], strides = [1, 1]} : vector<200x32xf32> to vector<8x32xf32>
    %c0_46 = arith.constant 0 : index
    %c608 = arith.constant 608 : index
    %108 = vector.load %arg20[%c0_46, %c608] : memref<16x800xf32, #tpu.memory_space<vmem>>, vector<8x32xf32>
    tpu.vector_store %arg20[%c0_46, %c608], %107 {strides = array<i32>} : memref<16x800xf32, #tpu.memory_space<vmem>>, vector<8x32xf32>,
    %109 = vector.extract_strided_slice %41 {offsets = [160, 0], sizes = [8, 32], strides = [1, 1]} : vector<200x32xf32> to vector<8x32xf32>
    %c0_47 = arith.constant 0 : index
    %c640 = arith.constant 640 : index
    %110 = vector.load %arg20[%c0_47, %c640] : memref<16x800xf32, #tpu.memory_space<vmem>>, vector<8x32xf32>
    tpu.vector_store %arg20[%c0_47, %c640], %109 {strides = array<i32>} : memref<16x800xf32, #tpu.memory_space<vmem>>, vector<8x32xf32>,
    %111 = vector.extract_strided_slice %41 {offsets = [168, 0], sizes = [8, 32], strides = [1, 1]} : vector<200x32xf32> to vector<8x32xf32>
    %c0_48 = arith.constant 0 : index
    %c672 = arith.constant 672 : index
    %112 = vector.load %arg20[%c0_48, %c672] : memref<16x800xf32, #tpu.memory_space<vmem>>, vector<8x32xf32>
    tpu.vector_store %arg20[%c0_48, %c672], %111 {strides = array<i32>} : memref<16x800xf32, #tpu.memory_space<vmem>>, vector<8x32xf32>,
    %113 = vector.extract_strided_slice %41 {offsets = [176, 0], sizes = [8, 32], strides = [1, 1]} : vector<200x32xf32> to vector<8x32xf32>
    %c0_49 = arith.constant 0 : index
    %c704 = arith.constant 704 : index
    %114 = vector.load %arg20[%c0_49, %c704] : memref<16x800xf32, #tpu.memory_space<vmem>>, vector<8x32xf32>
    tpu.vector_store %arg20[%c0_49, %c704], %113 {strides = array<i32>} : memref<16x800xf32, #tpu.memory_space<vmem>>, vector<8x32xf32>,
    %115 = vector.extract_strided_slice %41 {offsets = [184, 0], sizes = [8, 32], strides = [1, 1]} : vector<200x32xf32> to vector<8x32xf32>
    %c0_50 = arith.constant 0 : index
    %c736 = arith.constant 736 : index
    %116 = vector.load %arg20[%c0_50, %c736] : memref<16x800xf32, #tpu.memory_space<vmem>>, vector<8x32xf32>
    tpu.vector_store %arg20[%c0_50, %c736], %115 {strides = array<i32>} : memref<16x800xf32, #tpu.memory_space<vmem>>, vector<8x32xf32>,
    %117 = vector.extract_strided_slice %41 {offsets = [192, 0], sizes = [8, 32], strides = [1, 1]} : vector<200x32xf32> to vector<8x32xf32>
    %c0_51 = arith.constant 0 : index
    %c768 = arith.constant 768 : index
    %118 = vector.load %arg20[%c0_51, %c768] : memref<16x800xf32, #tpu.memory_space<vmem>>, vector<8x32xf32>
    tpu.vector_store %arg20[%c0_51, %c768], %117 {strides = array<i32>} : memref<16x800xf32, #tpu.memory_space<vmem>>, vector<8x32xf32>,
    %119 = vector.extract_strided_slice %68 {offsets = [0, 0], sizes = [8, 32], strides = [1, 1]} : vector<200x32xf32> to vector<8x32xf32>
    %c8 = arith.constant 8 : index
    %c0_52 = arith.constant 0 : index
    %120 = vector.load %arg20[%c8, %c0_52] : memref<16x800xf32, #tpu.memory_space<vmem>>, vector<8x32xf32>
    tpu.vector_store %arg20[%c8, %c0_52], %119 {strides = array<i32>} : memref<16x800xf32, #tpu.memory_space<vmem>>, vector<8x32xf32>,
    %121 = vector.extract_strided_slice %68 {offsets = [8, 0], sizes = [8, 32], strides = [1, 1]} : vector<200x32xf32> to vector<8x32xf32>
    %c8_53 = arith.constant 8 : index
    %c32_54 = arith.constant 32 : index
    %122 = vector.load %arg20[%c8_53, %c32_54] : memref<16x800xf32, #tpu.memory_space<vmem>>, vector<8x32xf32>
    tpu.vector_store %arg20[%c8_53, %c32_54], %121 {strides = array<i32>} : memref<16x800xf32, #tpu.memory_space<vmem>>, vector<8x32xf32>,
    %123 = vector.extract_strided_slice %68 {offsets = [16, 0], sizes = [8, 32], strides = [1, 1]} : vector<200x32xf32> to vector<8x32xf32>
    %c8_55 = arith.constant 8 : index
    %c64_56 = arith.constant 64 : index
    %124 = vector.load %arg20[%c8_55, %c64_56] : memref<16x800xf32, #tpu.memory_space<vmem>>, vector<8x32xf32>
    tpu.vector_store %arg20[%c8_55, %c64_56], %123 {strides = array<i32>} : memref<16x800xf32, #tpu.memory_space<vmem>>, vector<8x32xf32>,
    %125 = vector.extract_strided_slice %68 {offsets = [24, 0], sizes = [8, 32], strides = [1, 1]} : vector<200x32xf32> to vector<8x32xf32>
    %c8_57 = arith.constant 8 : index
    %c96_58 = arith.constant 96 : index
    %126 = vector.load %arg20[%c8_57, %c96_58] : memref<16x800xf32, #tpu.memory_space<vmem>>, vector<8x32xf32>
    tpu.vector_store %arg20[%c8_57, %c96_58], %125 {strides = array<i32>} : memref<16x800xf32, #tpu.memory_space<vmem>>, vector<8x32xf32>,
    %127 = vector.extract_strided_slice %68 {offsets = [32, 0], sizes = [8, 32], strides = [1, 1]} : vector<200x32xf32> to vector<8x32xf32>
    %c8_59 = arith.constant 8 : index
    %c128_60 = arith.constant 128 : index
    %128 = vector.load %arg20[%c8_59, %c128_60] : memref<16x800xf32, #tpu.memory_space<vmem>>, vector<8x32xf32>
    tpu.vector_store %arg20[%c8_59, %c128_60], %127 {strides = array<i32>} : memref<16x800xf32, #tpu.memory_space<vmem>>, vector<8x32xf32>,
    %129 = vector.extract_strided_slice %68 {offsets = [40, 0], sizes = [8, 32], strides = [1, 1]} : vector<200x32xf32> to vector<8x32xf32>
    %c8_61 = arith.constant 8 : index
    %c160_62 = arith.constant 160 : index
    %130 = vector.load %arg20[%c8_61, %c160_62] : memref<16x800xf32, #tpu.memory_space<vmem>>, vector<8x32xf32>
    tpu.vector_store %arg20[%c8_61, %c160_62], %129 {strides = array<i32>} : memref<16x800xf32, #tpu.memory_space<vmem>>, vector<8x32xf32>,
    %131 = vector.extract_strided_slice %68 {offsets = [48, 0], sizes = [8, 32], strides = [1, 1]} : vector<200x32xf32> to vector<8x32xf32>
    %c8_63 = arith.constant 8 : index
    %c192_64 = arith.constant 192 : index
    %132 = vector.load %arg20[%c8_63, %c192_64] : memref<16x800xf32, #tpu.memory_space<vmem>>, vector<8x32xf32>
    tpu.vector_store %arg20[%c8_63, %c192_64], %131 {strides = array<i32>} : memref<16x800xf32, #tpu.memory_space<vmem>>, vector<8x32xf32>,
    %133 = vector.extract_strided_slice %68 {offsets = [56, 0], sizes = [8, 32], strides = [1, 1]} : vector<200x32xf32> to vector<8x32xf32>
    %c8_65 = arith.constant 8 : index
    %c224_66 = arith.constant 224 : index
    %134 = vector.load %arg20[%c8_65, %c224_66] : memref<16x800xf32, #tpu.memory_space<vmem>>, vector<8x32xf32>
    tpu.vector_store %arg20[%c8_65, %c224_66], %133 {strides = array<i32>} : memref<16x800xf32, #tpu.memory_space<vmem>>, vector<8x32xf32>,
    %135 = vector.extract_strided_slice %68 {offsets = [64, 0], sizes = [8, 32], strides = [1, 1]} : vector<200x32xf32> to vector<8x32xf32>
    %c8_67 = arith.constant 8 : index
    %c256_68 = arith.constant 256 : index
    %136 = vector.load %arg20[%c8_67, %c256_68] : memref<16x800xf32, #tpu.memory_space<vmem>>, vector<8x32xf32>
    tpu.vector_store %arg20[%c8_67, %c256_68], %135 {strides = array<i32>} : memref<16x800xf32, #tpu.memory_space<vmem>>, vector<8x32xf32>,
    %137 = vector.extract_strided_slice %68 {offsets = [72, 0], sizes = [8, 32], strides = [1, 1]} : vector<200x32xf32> to vector<8x32xf32>
    %c8_69 = arith.constant 8 : index
    %c288_70 = arith.constant 288 : index
    %138 = vector.load %arg20[%c8_69, %c288_70] : memref<16x800xf32, #tpu.memory_space<vmem>>, vector<8x32xf32>
    tpu.vector_store %arg20[%c8_69, %c288_70], %137 {strides = array<i32>} : memref<16x800xf32, #tpu.memory_space<vmem>>, vector<8x32xf32>,
    %139 = vector.extract_strided_slice %68 {offsets = [80, 0], sizes = [8, 32], strides = [1, 1]} : vector<200x32xf32> to vector<8x32xf32>
    %c8_71 = arith.constant 8 : index
    %c320_72 = arith.constant 320 : index
    %140 = vector.load %arg20[%c8_71, %c320_72] : memref<16x800xf32, #tpu.memory_space<vmem>>, vector<8x32xf32>
    tpu.vector_store %arg20[%c8_71, %c320_72], %139 {strides = array<i32>} : memref<16x800xf32, #tpu.memory_space<vmem>>, vector<8x32xf32>,
    %141 = vector.extract_strided_slice %68 {offsets = [88, 0], sizes = [8, 32], strides = [1, 1]} : vector<200x32xf32> to vector<8x32xf32>
    %c8_73 = arith.constant 8 : index
    %c352_74 = arith.constant 352 : index
    %142 = vector.load %arg20[%c8_73, %c352_74] : memref<16x800xf32, #tpu.memory_space<vmem>>, vector<8x32xf32>
    tpu.vector_store %arg20[%c8_73, %c352_74], %141 {strides = array<i32>} : memref<16x800xf32, #tpu.memory_space<vmem>>, vector<8x32xf32>,
    %143 = vector.extract_strided_slice %68 {offsets = [96, 0], sizes = [8, 32], strides = [1, 1]} : vector<200x32xf32> to vector<8x32xf32>
    %c8_75 = arith.constant 8 : index
    %c384_76 = arith.constant 384 : index
    %144 = vector.load %arg20[%c8_75, %c384_76] : memref<16x800xf32, #tpu.memory_space<vmem>>, vector<8x32xf32>
    tpu.vector_store %arg20[%c8_75, %c384_76], %143 {strides = array<i32>} : memref<16x800xf32, #tpu.memory_space<vmem>>, vector<8x32xf32>,
    %145 = vector.extract_strided_slice %68 {offsets = [104, 0], sizes = [8, 32], strides = [1, 1]} : vector<200x32xf32> to vector<8x32xf32>
    %c8_77 = arith.constant 8 : index
    %c416_78 = arith.constant 416 : index
    %146 = vector.load %arg20[%c8_77, %c416_78] : memref<16x800xf32, #tpu.memory_space<vmem>>, vector<8x32xf32>
    tpu.vector_store %arg20[%c8_77, %c416_78], %145 {strides = array<i32>} : memref<16x800xf32, #tpu.memory_space<vmem>>, vector<8x32xf32>,
    %147 = vector.extract_strided_slice %68 {offsets = [112, 0], sizes = [8, 32], strides = [1, 1]} : vector<200x32xf32> to vector<8x32xf32>
    %c8_79 = arith.constant 8 : index
    %c448_80 = arith.constant 448 : index
    %148 = vector.load %arg20[%c8_79, %c448_80] : memref<16x800xf32, #tpu.memory_space<vmem>>, vector<8x32xf32>
    tpu.vector_store %arg20[%c8_79, %c448_80], %147 {strides = array<i32>} : memref<16x800xf32, #tpu.memory_space<vmem>>, vector<8x32xf32>,
    %149 = vector.extract_strided_slice %68 {offsets = [120, 0], sizes = [8, 32], strides = [1, 1]} : vector<200x32xf32> to vector<8x32xf32>
    %c8_81 = arith.constant 8 : index
    %c480_82 = arith.constant 480 : index
    %150 = vector.load %arg20[%c8_81, %c480_82] : memref<16x800xf32, #tpu.memory_space<vmem>>, vector<8x32xf32>
    tpu.vector_store %arg20[%c8_81, %c480_82], %149 {strides = array<i32>} : memref<16x800xf32, #tpu.memory_space<vmem>>, vector<8x32xf32>,
    %151 = vector.extract_strided_slice %68 {offsets = [128, 0], sizes = [8, 32], strides = [1, 1]} : vector<200x32xf32> to vector<8x32xf32>
    %c8_83 = arith.constant 8 : index
    %c512_84 = arith.constant 512 : index
    %152 = vector.load %arg20[%c8_83, %c512_84] : memref<16x800xf32, #tpu.memory_space<vmem>>, vector<8x32xf32>
    tpu.vector_store %arg20[%c8_83, %c512_84], %151 {strides = array<i32>} : memref<16x800xf32, #tpu.memory_space<vmem>>, vector<8x32xf32>,
    %153 = vector.extract_strided_slice %68 {offsets = [136, 0], sizes = [8, 32], strides = [1, 1]} : vector<200x32xf32> to vector<8x32xf32>
    %c8_85 = arith.constant 8 : index
    %c544_86 = arith.constant 544 : index
    %154 = vector.load %arg20[%c8_85, %c544_86] : memref<16x800xf32, #tpu.memory_space<vmem>>, vector<8x32xf32>
    tpu.vector_store %arg20[%c8_85, %c544_86], %153 {strides = array<i32>} : memref<16x800xf32, #tpu.memory_space<vmem>>, vector<8x32xf32>,
    %155 = vector.extract_strided_slice %68 {offsets = [144, 0], sizes = [8, 32], strides = [1, 1]} : vector<200x32xf32> to vector<8x32xf32>
    %c8_87 = arith.constant 8 : index
    %c576_88 = arith.constant 576 : index
    %156 = vector.load %arg20[%c8_87, %c576_88] : memref<16x800xf32, #tpu.memory_space<vmem>>, vector<8x32xf32>
    tpu.vector_store %arg20[%c8_87, %c576_88], %155 {strides = array<i32>} : memref<16x800xf32, #tpu.memory_space<vmem>>, vector<8x32xf32>,
    %157 = vector.extract_strided_slice %68 {offsets = [152, 0], sizes = [8, 32], strides = [1, 1]} : vector<200x32xf32> to vector<8x32xf32>
    %c8_89 = arith.constant 8 : index
    %c608_90 = arith.constant 608 : index
    %158 = vector.load %arg20[%c8_89, %c608_90] : memref<16x800xf32, #tpu.memory_space<vmem>>, vector<8x32xf32>
    tpu.vector_store %arg20[%c8_89, %c608_90], %157 {strides = array<i32>} : memref<16x800xf32, #tpu.memory_space<vmem>>, vector<8x32xf32>,
    %159 = vector.extract_strided_slice %68 {offsets = [160, 0], sizes = [8, 32], strides = [1, 1]} : vector<200x32xf32> to vector<8x32xf32>
    %c8_91 = arith.constant 8 : index
    %c640_92 = arith.constant 640 : index
    %160 = vector.load %arg20[%c8_91, %c640_92] : memref<16x800xf32, #tpu.memory_space<vmem>>, vector<8x32xf32>
    tpu.vector_store %arg20[%c8_91, %c640_92], %159 {strides = array<i32>} : memref<16x800xf32, #tpu.memory_space<vmem>>, vector<8x32xf32>,
    %161 = vector.extract_strided_slice %68 {offsets = [168, 0], sizes = [8, 32], strides = [1, 1]} : vector<200x32xf32> to vector<8x32xf32>
    %c8_93 = arith.constant 8 : index
    %c672_94 = arith.constant 672 : index
    %162 = vector.load %arg20[%c8_93, %c672_94] : memref<16x800xf32, #tpu.memory_space<vmem>>, vector<8x32xf32>
    tpu.vector_store %arg20[%c8_93, %c672_94], %161 {strides = array<i32>} : memref<16x800xf32, #tpu.memory_space<vmem>>, vector<8x32xf32>,
    %163 = vector.extract_strided_slice %68 {offsets = [176, 0], sizes = [8, 32], strides = [1, 1]} : vector<200x32xf32> to vector<8x32xf32>
    %c8_95 = arith.constant 8 : index
    %c704_96 = arith.constant 704 : index
    %164 = vector.load %arg20[%c8_95, %c704_96] : memref<16x800xf32, #tpu.memory_space<vmem>>, vector<8x32xf32>
    tpu.vector_store %arg20[%c8_95, %c704_96], %163 {strides = array<i32>} : memref<16x800xf32, #tpu.memory_space<vmem>>, vector<8x32xf32>,
    %165 = vector.extract_strided_slice %68 {offsets = [184, 0], sizes = [8, 32], strides = [1, 1]} : vector<200x32xf32> to vector<8x32xf32>
    %c8_97 = arith.constant 8 : index
    %c736_98 = arith.constant 736 : index
    %166 = vector.load %arg20[%c8_97, %c736_98] : memref<16x800xf32, #tpu.memory_space<vmem>>, vector<8x32xf32>
    tpu.vector_store %arg20[%c8_97, %c736_98], %165 {strides = array<i32>} : memref<16x800xf32, #tpu.memory_space<vmem>>, vector<8x32xf32>,
    %167 = vector.extract_strided_slice %68 {offsets = [192, 0], sizes = [8, 32], strides = [1, 1]} : vector<200x32xf32> to vector<8x32xf32>
    %c8_99 = arith.constant 8 : index
    %c768_100 = arith.constant 768 : index
    %168 = vector.load %arg20[%c8_99, %c768_100] : memref<16x800xf32, #tpu.memory_space<vmem>>, vector<8x32xf32>
    tpu.vector_store %arg20[%c8_99, %c768_100], %167 {strides = array<i32>} : memref<16x800xf32, #tpu.memory_space<vmem>>, vector<8x32xf32>,
    %c0_101 = arith.constant 0 : index
    %c0_102 = arith.constant 0 : index
    %169 = vector.load %arg20[%c0_101, %c0_102] : memref<16x800xf32, #tpu.memory_space<vmem>>, vector<16x800xf32>
    %170 = arith.truncf %169 : vector<16x800xf32> to vector<16x800xbf16>
    %c0_103 = arith.constant 0 : index
    %c0_104 = arith.constant 0 : index
    %171 = vector.load %arg5[%c0_103, %c0_104] : memref<800x100xbf16, #tpu.memory_space<vmem>>, vector<800x100xbf16>
    %cst_105 = arith.constant dense<0.000000e+00> : vector<16x100xf32>
    %172 = tpu.matmul %170, %171, %cst_105 {dimension_numbers = #tpu.dot_dimension_numbers<[1], [0], [0], [1], [0, 0, 1, 1], [], []>} : vector<16x800xbf16>, vector<800x100xbf16>, vector<16x100xf32> -> vector<16x100xf32>
    %c0_106 = arith.constant 0 : index
    %c0_107 = arith.constant 0 : index
    %173 = vector.load %arg6[%c0_106, %c0_107] : memref<1x100xf32, #tpu.memory_space<vmem>>, vector<1x100xf32>
    %174 = vector.broadcast %173 : vector<1x100xf32> to vector<16x100xf32>
    %175 = arith.addf %172, %174 : vector<16x100xf32>
    %cst_108 = arith.constant 0.000000e+00 : f32
    %176 = vector.broadcast %cst_108 : f32 to vector<16x100xf32>
    %177 = arith.maximumf %175, %176 : vector<16x100xf32>
    %178 = vector.extract_strided_slice %177 {offsets = [0, 0], sizes = [8, 100], strides = [1, 1]} : vector<16x100xf32> to vector<8x100xf32>
    %c0_109 = arith.constant 0 : index
    %c0_110 = arith.constant 0 : index
    %179 = vector.load %arg7[%c0_109, %c0_110] : memref<1x100xf32, #tpu.memory_space<vmem>>, vector<1x100xf32>
    %c0_111 = arith.constant 0 : index
    %c0_112 = arith.constant 0 : index
    %180 = vector.load %arg8[%c0_111, %c0_112] : memref<1x100xf32, #tpu.memory_space<vmem>>, vector<1x100xf32>
    %cst_113 = arith.constant dense<0.000000e+00> : vector<100xf32>
    %181 = vector.multi_reduction <add>, %178, %cst_113 [0] : vector<8x100xf32> to vector<100xf32>
    %182 = vector.shape_cast %181 : vector<100xf32> to vector<1x100xf32>
    %cst_114 = arith.constant 1.250000e-01 : f32
    %183 = vector.broadcast %cst_114 : f32 to vector<1x100xf32>
    %184 = arith.mulf %182, %183 : vector<1x100xf32>
    %185 = arith.mulf %178, %178 : vector<8x100xf32>
    %cst_115 = arith.constant dense<0.000000e+00> : vector<100xf32>
    %186 = vector.multi_reduction <add>, %185, %cst_115 [0] : vector<8x100xf32> to vector<100xf32>
    %187 = vector.shape_cast %186 : vector<100xf32> to vector<1x100xf32>
    %cst_116 = arith.constant 1.250000e-01 : f32
    %188 = vector.broadcast %cst_116 : f32 to vector<1x100xf32>
    %189 = arith.mulf %187, %188 : vector<1x100xf32>
    %190 = arith.mulf %184, %184 : vector<1x100xf32>
    %191 = arith.subf %189, %190 : vector<1x100xf32>
    %cst_117 = arith.constant 0.000000e+00 : f32
    %192 = vector.broadcast %cst_117 : f32 to vector<1x100xf32>
    %193 = arith.maximumf %191, %192 : vector<1x100xf32>
    %194 = vector.broadcast %184 : vector<1x100xf32> to vector<8x100xf32>
    %195 = arith.subf %178, %194 : vector<8x100xf32>
    %cst_118 = arith.constant 9.99999974E-6 : f32
    %196 = vector.broadcast %cst_118 : f32 to vector<1x100xf32>
    %197 = arith.addf %193, %196 : vector<1x100xf32>
    %198 = math.rsqrt %197 : vector<1x100xf32>
    %199 = vector.broadcast %198 : vector<1x100xf32> to vector<8x100xf32>
    %200 = arith.mulf %195, %199 : vector<8x100xf32>
    %201 = vector.broadcast %179 : vector<1x100xf32> to vector<8x100xf32>
    %202 = arith.mulf %200, %201 : vector<8x100xf32>
    %203 = vector.broadcast %180 : vector<1x100xf32> to vector<8x100xf32>
    %204 = arith.addf %202, %203 : vector<8x100xf32>
    %205 = vector.extract_strided_slice %177 {offsets = [8, 0], sizes = [8, 100], strides = [1, 1]} : vector<16x100xf32> to vector<8x100xf32>
    %c0_119 = arith.constant 0 : index
    %c0_120 = arith.constant 0 : index
    %206 = vector.load %arg7[%c0_119, %c0_120] : memref<1x100xf32, #tpu.memory_space<vmem>>, vector<1x100xf32>
    %c0_121 = arith.constant 0 : index
    %c0_122 = arith.constant 0 : index
    %207 = vector.load %arg8[%c0_121, %c0_122] : memref<1x100xf32, #tpu.memory_space<vmem>>, vector<1x100xf32>
    %cst_123 = arith.constant dense<0.000000e+00> : vector<100xf32>
    %208 = vector.multi_reduction <add>, %205, %cst_123 [0] : vector<8x100xf32> to vector<100xf32>
    %209 = vector.shape_cast %208 : vector<100xf32> to vector<1x100xf32>
    %cst_124 = arith.constant 1.250000e-01 : f32
    %210 = vector.broadcast %cst_124 : f32 to vector<1x100xf32>
    %211 = arith.mulf %209, %210 : vector<1x100xf32>
    %212 = arith.mulf %205, %205 : vector<8x100xf32>
    %cst_125 = arith.constant dense<0.000000e+00> : vector<100xf32>
    %213 = vector.multi_reduction <add>, %212, %cst_125 [0] : vector<8x100xf32> to vector<100xf32>
    %214 = vector.shape_cast %213 : vector<100xf32> to vector<1x100xf32>
    %cst_126 = arith.constant 1.250000e-01 : f32
    %215 = vector.broadcast %cst_126 : f32 to vector<1x100xf32>
    %216 = arith.mulf %214, %215 : vector<1x100xf32>
    %217 = arith.mulf %211, %211 : vector<1x100xf32>
    %218 = arith.subf %216, %217 : vector<1x100xf32>
    %cst_127 = arith.constant 0.000000e+00 : f32
    %219 = vector.broadcast %cst_127 : f32 to vector<1x100xf32>
    %220 = arith.maximumf %218, %219 : vector<1x100xf32>
    %221 = vector.broadcast %211 : vector<1x100xf32> to vector<8x100xf32>
    %222 = arith.subf %205, %221 : vector<8x100xf32>
    %cst_128 = arith.constant 9.99999974E-6 : f32
    %223 = vector.broadcast %cst_128 : f32 to vector<1x100xf32>
    %224 = arith.addf %220, %223 : vector<1x100xf32>
    %225 = math.rsqrt %224 : vector<1x100xf32>
    %226 = vector.broadcast %225 : vector<1x100xf32> to vector<8x100xf32>
    %227 = arith.mulf %222, %226 : vector<8x100xf32>
    %228 = vector.broadcast %206 : vector<1x100xf32> to vector<8x100xf32>
    %229 = arith.mulf %227, %228 : vector<8x100xf32>
    %230 = vector.broadcast %207 : vector<1x100xf32> to vector<8x100xf32>
    %231 = arith.addf %229, %230 : vector<8x100xf32>
    %c0_129 = arith.constant 0 : index
    %c0_130 = arith.constant 0 : index
    %232 = vector.load %arg9[%c0_129, %c0_130] : memref<100x10xf32, #tpu.memory_space<vmem>>, vector<100x10xf32>
    %cst_131 = arith.constant dense<0.000000e+00> : vector<8x10xf32>
    %233 = tpu.matmul %204, %232, %cst_131 {dimension_numbers = #tpu.dot_dimension_numbers<[1], [0], [0], [1], [0, 0, 1, 1], [], []>} : vector<8x100xf32>, vector<100x10xf32>, vector<8x10xf32> -> vector<8x10xf32>
    %c0_132 = arith.constant 0 : index
    %c0_133 = arith.constant 0 : index
    %234 = vector.load %arg10[%c0_132, %c0_133] : memref<1x10xf32, #tpu.memory_space<vmem>>, vector<1x10xf32>
    %235 = vector.broadcast %234 : vector<1x10xf32> to vector<8x10xf32>
    %236 = arith.addf %233, %235 : vector<8x10xf32>
    %c0_134 = arith.constant 0 : index
    %c0_135 = arith.constant 0 : index
    %237 = vector.load %arg9[%c0_134, %c0_135] : memref<100x10xf32, #tpu.memory_space<vmem>>, vector<100x10xf32>
    %cst_136 = arith.constant dense<0.000000e+00> : vector<8x10xf32>
    %238 = tpu.matmul %231, %237, %cst_136 {dimension_numbers = #tpu.dot_dimension_numbers<[1], [0], [0], [1], [0, 0, 1, 1], [], []>} : vector<8x100xf32>, vector<100x10xf32>, vector<8x10xf32> -> vector<8x10xf32>
    %c0_137 = arith.constant 0 : index
    %c0_138 = arith.constant 0 : index
    %239 = vector.load %arg10[%c0_137, %c0_138] : memref<1x10xf32, #tpu.memory_space<vmem>>, vector<1x10xf32>
    %240 = vector.broadcast %239 : vector<1x10xf32> to vector<8x10xf32>
    %241 = arith.addf %238, %240 : vector<8x10xf32>
    %c0_139 = arith.constant 0 : index
    %c0_140 = arith.constant 0 : index
    %c0_141 = arith.constant 0 : index
    %242 = vector.load %arg18[%c0_139, %c0_140, %c0_141] : memref<2x8x10xf32, #tpu.memory_space<vmem>>, vector<1x8x10xf32>
    %243 = vector.shape_cast %242 : vector<1x8x10xf32> to vector<8x10xf32>
    %244 = vector.shape_cast %236 : vector<8x10xf32> to vector<1x8x10xf32>
    tpu.vector_store %arg18[%c0_139, %c0_140, %c0_141], %244 {strides = array<i32>} : memref<2x8x10xf32, #tpu.memory_space<vmem>>, vector<1x8x10xf32>,
    %c1 = arith.constant 1 : index
    %c0_142 = arith.constant 0 : index
    %c0_143 = arith.constant 0 : index
    %245 = vector.load %arg18[%c1, %c0_142, %c0_143] : memref<2x8x10xf32, #tpu.memory_space<vmem>>, vector<1x8x10xf32>
    %246 = vector.shape_cast %245 : vector<1x8x10xf32> to vector<8x10xf32>
    %247 = vector.shape_cast %241 : vector<8x10xf32> to vector<1x8x10xf32>
    tpu.vector_store %arg18[%c1, %c0_142, %c0_143], %247 {strides = array<i32>} : memref<2x8x10xf32, #tpu.memory_space<vmem>>, vector<1x8x10xf32>,
    %c0_144 = arith.constant 0 : index
    %c0_145 = arith.constant 0 : index
    %248 = vector.load %arg11[%c0_144, %c0_145] : memref<10x100xf32, #tpu.memory_space<vmem>>, vector<10x100xf32>
    %cst_146 = arith.constant dense<0.000000e+00> : vector<8x100xf32>
    %249 = tpu.matmul %236, %248, %cst_146 {dimension_numbers = #tpu.dot_dimension_numbers<[1], [0], [0], [1], [0, 0, 1, 1], [], []>} : vector<8x10xf32>, vector<10x100xf32>, vector<8x100xf32> -> vector<8x100xf32>
    %c0_147 = arith.constant 0 : index
    %c0_148 = arith.constant 0 : index
    %250 = vector.load %arg12[%c0_147, %c0_148] : memref<10x100xf32, #tpu.memory_space<vmem>>, vector<10x100xf32>
    %cst_149 = arith.constant dense<0.000000e+00> : vector<8x100xf32>
    %251 = tpu.matmul %241, %250, %cst_149 {dimension_numbers = #tpu.dot_dimension_numbers<[1], [0], [0], [1], [0, 0, 1, 1], [], []>} : vector<8x10xf32>, vector<10x100xf32>, vector<8x100xf32> -> vector<8x100xf32>
    %252 = arith.addf %249, %251 : vector<8x100xf32>
    %c0_150 = arith.constant 0 : index
    %c0_151 = arith.constant 0 : index
    %253 = vector.load %arg13[%c0_150, %c0_151] : memref<1x100xf32, #tpu.memory_space<vmem>>, vector<1x100xf32>
    %254 = vector.broadcast %253 : vector<1x100xf32> to vector<8x100xf32>
    %255 = arith.addf %252, %254 : vector<8x100xf32>
    %cst_152 = arith.constant 0.000000e+00 : f32
    %256 = vector.broadcast %cst_152 : f32 to vector<8x100xf32>
    %257 = arith.maximumf %255, %256 : vector<8x100xf32>
    %c0_153 = arith.constant 0 : index
    %c0_154 = arith.constant 0 : index
    %258 = vector.load %arg14[%c0_153, %c0_154] : memref<1x100xf32, #tpu.memory_space<vmem>>, vector<1x100xf32>
    %c0_155 = arith.constant 0 : index
    %c0_156 = arith.constant 0 : index
    %259 = vector.load %arg15[%c0_155, %c0_156] : memref<1x100xf32, #tpu.memory_space<vmem>>, vector<1x100xf32>
    %cst_157 = arith.constant dense<0.000000e+00> : vector<100xf32>
    %260 = vector.multi_reduction <add>, %257, %cst_157 [0] : vector<8x100xf32> to vector<100xf32>
    %261 = vector.shape_cast %260 : vector<100xf32> to vector<1x100xf32>
    %cst_158 = arith.constant 1.250000e-01 : f32
    %262 = vector.broadcast %cst_158 : f32 to vector<1x100xf32>
    %263 = arith.mulf %261, %262 : vector<1x100xf32>
    %264 = arith.mulf %257, %257 : vector<8x100xf32>
    %cst_159 = arith.constant dense<0.000000e+00> : vector<100xf32>
    %265 = vector.multi_reduction <add>, %264, %cst_159 [0] : vector<8x100xf32> to vector<100xf32>
    %266 = vector.shape_cast %265 : vector<100xf32> to vector<1x100xf32>
    %cst_160 = arith.constant 1.250000e-01 : f32
    %267 = vector.broadcast %cst_160 : f32 to vector<1x100xf32>
    %268 = arith.mulf %266, %267 : vector<1x100xf32>
    %269 = arith.mulf %263, %263 : vector<1x100xf32>
    %270 = arith.subf %268, %269 : vector<1x100xf32>
    %cst_161 = arith.constant 0.000000e+00 : f32
    %271 = vector.broadcast %cst_161 : f32 to vector<1x100xf32>
    %272 = arith.maximumf %270, %271 : vector<1x100xf32>
    %273 = vector.broadcast %263 : vector<1x100xf32> to vector<8x100xf32>
    %274 = arith.subf %257, %273 : vector<8x100xf32>
    %cst_162 = arith.constant 9.99999974E-6 : f32
    %275 = vector.broadcast %cst_162 : f32 to vector<1x100xf32>
    %276 = arith.addf %272, %275 : vector<1x100xf32>
    %277 = math.rsqrt %276 : vector<1x100xf32>
    %278 = vector.broadcast %277 : vector<1x100xf32> to vector<8x100xf32>
    %279 = arith.mulf %274, %278 : vector<8x100xf32>
    %280 = vector.broadcast %258 : vector<1x100xf32> to vector<8x100xf32>
    %281 = arith.mulf %279, %280 : vector<8x100xf32>
    %282 = vector.broadcast %259 : vector<1x100xf32> to vector<8x100xf32>
    %283 = arith.addf %281, %282 : vector<8x100xf32>
    %c0_163 = arith.constant 0 : index
    %c0_164 = arith.constant 0 : index
    %284 = vector.load %arg16[%c0_163, %c0_164] : memref<100x2xf32, #tpu.memory_space<vmem>>, vector<100x2xf32>
    %cst_165 = arith.constant dense<0.000000e+00> : vector<8x2xf32>
    %285 = tpu.matmul %283, %284, %cst_165 {dimension_numbers = #tpu.dot_dimension_numbers<[1], [0], [0], [1], [0, 0, 1, 1], [], []>} : vector<8x100xf32>, vector<100x2xf32>, vector<8x2xf32> -> vector<8x2xf32>
    %c0_166 = arith.constant 0 : index
    %c0_167 = arith.constant 0 : index
    %286 = vector.load %arg17[%c0_166, %c0_167] : memref<1x2xf32, #tpu.memory_space<vmem>>, vector<1x2xf32>
    %287 = vector.broadcast %286 : vector<1x2xf32> to vector<8x2xf32>
    %288 = arith.addf %285, %287 : vector<8x2xf32>
    %c0_168 = arith.constant 0 : index
    %c0_169 = arith.constant 0 : index
    %289 = vector.load %arg19[%c0_168, %c0_169] : memref<8x2xf32, #tpu.memory_space<vmem>>, vector<8x2xf32>
    tpu.vector_store %arg19[%c0_168, %c0_169], %288 {strides = array<i32>} : memref<8x2xf32, #tpu.memory_space<vmem>>, vector<8x2xf32>,
    return
  }
}

</mosaic_0001>

<llo_original>
// kernel: forward.2
$region0: #{forward.2}
  #allocation0 [shape = 'u32[]', space=smem, size = 0x4, offset = 0x4, fixed_abs, tag = 'smem constant byte address 0x4 - core index']
  #allocation1 [shape = 'u32[144,128]{1,0:T(1,128)}', space=vmem, size = 0x12000, scoped, tag = 'internal scratch']
  %s0 = inlined_call_operand.vmem [shape: bf16[4096,25], index: 0, kind: input, shape index: {}]
  %s1 = inlined_call_operand.vmem [shape: bf16[25,16], index: 1, kind: input, shape index: {}]
  %s2 = inlined_call_operand.vmem [shape: f32[1,16], index: 2, kind: input, shape index: {}]
  %s3 = inlined_call_operand.vmem [shape: f32[1,16], index: 3, kind: input, shape index: {}]
  %s4 = inlined_call_operand.vmem [shape: f32[1,16], index: 4, kind: input, shape index: {}]
  %s5 = inlined_call_operand.vmem [shape: bf16[1024,16], index: 5, kind: output, shape index: {}]
  %s6 = sld [smem:[#allocation0]]
  $region30: #{forward.2} parent=0
    _
  %s8 = ssub.s32 1, %s6
  %s9 = scalar_select 0, %s8, %s6
  // Predicated region
  $region2: #{forward.2} parent=0 // pred_check
    _
  $region3: #{forward.2} parent=0 // pred_check_branch
    %11 = sbr.rel (0) target = $region5
  $region4: #{forward.2} parent=0 // pred_region
    _
  $region5: #{forward.2} parent=0 // pred_fallthru
    _
  // Predicated region
  $region6: #{forward.2} parent=0 // pred_check
    _
  $region7: #{forward.2} parent=0 // pred_check_branch
    %13 = sbr.rel (0) target = $region9
  $region8: #{forward.2} parent=0 // pred_region
    _
  $region9: #{forward.2} parent=0 // pred_fallthru
    _
  // Predicated region
  $region10: #{forward.2} parent=0 // pred_check
    _
  $region11: #{forward.2} parent=0 // pred_check_branch
    %15 = sbr.rel (0) target = $region13
  $region12: #{forward.2} parent=0 // pred_region
    _
  $region13: #{forward.2} parent=0 // pred_fallthru
    _
  // Predicated region
  $region14: #{forward.2} parent=0 // pred_check
    _
  $region15: #{forward.2} parent=0 // pred_check_branch
    %17 = sbr.rel (0) target = $region17
  $region16: #{forward.2} parent=0 // pred_region
    _
  $region17: #{forward.2} parent=0 // pred_fallthru
    _
  // Predicated region
  $region18: #{forward.2} parent=0 // pred_check
    _
  $region19: #{forward.2} parent=0 // pred_check_branch
    %19 = sbr.rel (0) target = $region21
  $region20: #{forward.2} parent=0 // pred_region
    _
  $region21: #{forward.2} parent=0 // pred_fallthru
    _
  %v21 = vld [vmem:[%s0] sm:$0xf]
  %v22 = vld [vmem:[%s0 + $0x4] sm:$0xf]
  %v23 = vld [vmem:[%s0 + $0x8] sm:$0xf]
  %v24 = vld [vmem:[%s0 + $0xc] sm:$0xf]
  %v25 = vld [vmem:[%s0 + $0x10] sm:$0xf]
  %v26 = vld [vmem:[%s0 + $0x14] sm:$0xf]
  %v27 = vld [vmem:[%s0 + $0x18] sm:$0xf]
  %v28 = vld [vmem:[%s0 + $0x1c] sm:$0xf]
  %v29 = vld [vmem:[%s0 + $0x20] sm:$0xf]
  %v30 = vld [vmem:[%s0 + $0x24] sm:$0xf]
  %v31 = vld [vmem:[%s0 + $0x28] sm:$0xf]
  %v32 = vld [vmem:[%s0 + $0x2c] sm:$0xf]
  %v33 = vld [vmem:[%s0 + $0x30] sm:$0xf]
  %v34 = vld [vmem:[%s0 + $0x34] sm:$0xf]
  %v35 = vld [vmem:[%s0 + $0x38] sm:$0xf]
  %v36 = vld [vmem:[%s0 + $0x3c] sm:$0xf]
  %v37 = vld [vmem:[%s0 + $0x40] sm:$0xf]
  %v38 = vld [vmem:[%s0 + $0x44] sm:$0xf]
  %v39 = vld [vmem:[%s0 + $0x48] sm:$0xf]
  %v40 = vld [vmem:[%s0 + $0x4c] sm:$0xf]
  %v41 = vld [vmem:[%s0 + $0x50] sm:$0xf]
  %v42 = vld [vmem:[%s0 + $0x54] sm:$0xf]
  %v43 = vld [vmem:[%s0 + $0x58] sm:$0xf]
  %v44 = vld [vmem:[%s0 + $0x5c] sm:$0xf]
  %v45 = vld [vmem:[%s0 + $0x60] sm:$0xf]
  %v46 = vld [vmem:[%s0 + $0x64] sm:$0xf]
  %v47 = vld [vmem:[%s0 + $0x68] sm:$0xf]
  %v48 = vld [vmem:[%s0 + $0x6c] sm:$0xf]
  %v49 = vld [vmem:[%s0 + $0x70] sm:$0xf]
  %v50 = vld [vmem:[%s0 + $0x74] sm:$0xf]
  %v51 = vld [vmem:[%s0 + $0x78] sm:$0xf]
  %v52 = vld [vmem:[%s0 + $0x7c] sm:$0xf]
  %v53 = vld [vmem:[%s0 + $0x80] sm:$0xf]
  %v54 = vld [vmem:[%s0 + $0x84] sm:$0xf]
  %v55 = vld [vmem:[%s0 + $0x88] sm:$0xf]
  %v56 = vld [vmem:[%s0 + $0x8c] sm:$0xf]
  %v57 = vld [vmem:[%s0 + $0x90] sm:$0xf]
  %v58 = vld [vmem:[%s0 + $0x94] sm:$0xf]
  %v59 = vld [vmem:[%s0 + $0x98] sm:$0xf]
  %v60 = vld [vmem:[%s0 + $0x9c] sm:$0xf]
  %v61 = vld [vmem:[%s0 + $0xa0] sm:$0xf]
  %v62 = vld [vmem:[%s0 + $0xa4] sm:$0xf]
  %v63 = vld [vmem:[%s0 + $0xa8] sm:$0xf]
  %v64 = vld [vmem:[%s0 + $0xac] sm:$0xf]
  %v65 = vld [vmem:[%s0 + $0xb0] sm:$0xf]
  %v66 = vld [vmem:[%s0 + $0xb4] sm:$0xf]
  %v67 = vld [vmem:[%s0 + $0xb8] sm:$0xf]
  %v68 = vld [vmem:[%s0 + $0xbc] sm:$0xf]
  %v69 = vld [vmem:[%s0 + $0xc0] sm:$0xf]
  %v70 = vld [vmem:[%s0 + $0xc4] sm:$0xf]
  %v71 = vld [vmem:[%s0 + $0xc8] sm:$0xf]
  %v72 = vld [vmem:[%s0 + $0xcc] sm:$0xf]
  %v73 = vld [vmem:[%s0 + $0xd0] sm:$0xf]
  %v74 = vld [vmem:[%s0 + $0xd4] sm:$0xf]
  %v75 = vld [vmem:[%s0 + $0xd8] sm:$0xf]
  %v76 = vld [vmem:[%s0 + $0xdc] sm:$0xf]
  %v77 = vld [vmem:[%s0 + $0xe0] sm:$0xf]
  %v78 = vld [vmem:[%s0 + $0xe4] sm:$0xf]
  %v79 = vld [vmem:[%s0 + $0xe8] sm:$0xf]
  %v80 = vld [vmem:[%s0 + $0xec] sm:$0xf]
  %v81 = vld [vmem:[%s0 + $0xf0] sm:$0xf]
  %v82 = vld [vmem:[%s0 + $0xf4] sm:$0xf]
  %v83 = vld [vmem:[%s0 + $0xf8] sm:$0xf]
  %v84 = vld [vmem:[%s0 + $0xfc] sm:$0xf]
  %v85 = vld [vmem:[%s0 + $0x100] sm:$0xf]
  %v86 = vld [vmem:[%s0 + $0x104] sm:$0xf]
  %v87 = vld [vmem:[%s0 + $0x108] sm:$0xf]
  %v88 = vld [vmem:[%s0 + $0x10c] sm:$0xf]
  %v89 = vld [vmem:[%s0 + $0x110] sm:$0xf]
  %v90 = vld [vmem:[%s0 + $0x114] sm:$0xf]
  %v91 = vld [vmem:[%s0 + $0x118] sm:$0xf]
  %v92 = vld [vmem:[%s0 + $0x11c] sm:$0xf]
  %v93 = vld [vmem:[%s0 + $0x120] sm:$0xf]
  %v94 = vld [vmem:[%s0 + $0x124] sm:$0xf]
  %v95 = vld [vmem:[%s0 + $0x128] sm:$0xf]
  %v96 = vld [vmem:[%s0 + $0x12c] sm:$0xf]
  %v97 = vld [vmem:[%s0 + $0x130] sm:$0xf]
  %v98 = vld [vmem:[%s0 + $0x134] sm:$0xf]
  %v99 = vld [vmem:[%s0 + $0x138] sm:$0xf]
  %v100 = vld [vmem:[%s0 + $0x13c] sm:$0xf]
  %v101 = vld [vmem:[%s0 + $0x140] sm:$0xf]
  %v102 = vld [vmem:[%s0 + $0x144] sm:$0xf]
  %v103 = vld [vmem:[%s0 + $0x148] sm:$0xf]
  %v104 = vld [vmem:[%s0 + $0x14c] sm:$0xf]
  %v105 = vld [vmem:[%s0 + $0x150] sm:$0xf]
  %v106 = vld [vmem:[%s0 + $0x154] sm:$0xf]
  %v107 = vld [vmem:[%s0 + $0x158] sm:$0xf]
  %v108 = vld [vmem:[%s0 + $0x15c] sm:$0xf]
  %v109 = vld [vmem:[%s0 + $0x160] sm:$0xf]
  %v110 = vld [vmem:[%s0 + $0x164] sm:$0xf]
  %v111 = vld [vmem:[%s0 + $0x168] sm:$0xf]
  %v112 = vld [vmem:[%s0 + $0x16c] sm:$0xf]
  %v113 = vld [vmem:[%s0 + $0x170] sm:$0xf]
  %v114 = vld [vmem:[%s0 + $0x174] sm:$0xf]
  %v115 = vld [vmem:[%s0 + $0x178] sm:$0xf]
  %v116 = vld [vmem:[%s0 + $0x17c] sm:$0xf]
  %v117 = vld [vmem:[%s0 + $0x180] sm:$0xf]
  %v118 = vld [vmem:[%s0 + $0x184] sm:$0xf]
  %v119 = vld [vmem:[%s0 + $0x188] sm:$0xf]
  %v120 = vld [vmem:[%s0 + $0x18c] sm:$0xf]
  %v121 = vld [vmem:[%s0 + $0x190] sm:$0xf]
  %v122 = vld [vmem:[%s0 + $0x194] sm:$0xf]
  %v123 = vld [vmem:[%s0 + $0x198] sm:$0xf]
  %v124 = vld [vmem:[%s0 + $0x19c] sm:$0xf]
  %v125 = vld [vmem:[%s0 + $0x1a0] sm:$0xf]
  %v126 = vld [vmem:[%s0 + $0x1a4] sm:$0xf]
  %v127 = vld [vmem:[%s0 + $0x1a8] sm:$0xf]
  %v128 = vld [vmem:[%s0 + $0x1ac] sm:$0xf]
  %v129 = vld [vmem:[%s0 + $0x1b0] sm:$0xf]
  %v130 = vld [vmem:[%s0 + $0x1b4] sm:$0xf]
  %v131 = vld [vmem:[%s0 + $0x1b8] sm:$0xf]
  %v132 = vld [vmem:[%s0 + $0x1bc] sm:$0xf]
  %v133 = vld [vmem:[%s0 + $0x1c0] sm:$0xf]
  %v134 = vld [vmem:[%s0 + $0x1c4] sm:$0xf]
  %v135 = vld [vmem:[%s0 + $0x1c8] sm:$0xf]
  %v136 = vld [vmem:[%s0 + $0x1cc] sm:$0xf]
  %v137 = vld [vmem:[%s0 + $0x1d0] sm:$0xf]
  %v138 = vld [vmem:[%s0 + $0x1d4] sm:$0xf]
  %v139 = vld [vmem:[%s0 + $0x1d8] sm:$0xf]
  %v140 = vld [vmem:[%s0 + $0x1dc] sm:$0xf]
  %v141 = vld [vmem:[%s0 + $0x1e0] sm:$0xf]
  %v142 = vld [vmem:[%s0 + $0x1e4] sm:$0xf]
  %v143 = vld [vmem:[%s0 + $0x1e8] sm:$0xf]
  %v144 = vld [vmem:[%s0 + $0x1ec] sm:$0xf]
  %v145 = vld [vmem:[%s0 + $0x1f0] sm:$0xf]
  %v146 = vld [vmem:[%s0 + $0x1f4] sm:$0xf]
  %v147 = vld [vmem:[%s0 + $0x1f8] sm:$0xf]
  %v148 = vld [vmem:[%s0 + $0x1fc] sm:$0xf]
  %v149 = vld [vmem:[%s0 + $0x200] sm:$0xf]
  %v150 = vld [vmem:[%s0 + $0x204] sm:$0xf]
  %v151 = vld [vmem:[%s0 + $0x208] sm:$0xf]
  %v152 = vld [vmem:[%s0 + $0x20c] sm:$0xf]
  %v153 = vld [vmem:[%s0 + $0x210] sm:$0xf]
  %v154 = vld [vmem:[%s0 + $0x214] sm:$0xf]
  %v155 = vld [vmem:[%s0 + $0x218] sm:$0xf]
  %v156 = vld [vmem:[%s0 + $0x21c] sm:$0xf]
  %v157 = vld [vmem:[%s0 + $0x220] sm:$0xf]
  %v158 = vld [vmem:[%s0 + $0x224] sm:$0xf]
  %v159 = vld [vmem:[%s0 + $0x228] sm:$0xf]
  %v160 = vld [vmem:[%s0 + $0x22c] sm:$0xf]
  %v161 = vld [vmem:[%s0 + $0x230] sm:$0xf]
  %v162 = vld [vmem:[%s0 + $0x234] sm:$0xf]
  %v163 = vld [vmem:[%s0 + $0x238] sm:$0xf]
  %v164 = vld [vmem:[%s0 + $0x23c] sm:$0xf]
  %v165 = vld [vmem:[%s0 + $0x240] sm:$0xf]
  %v166 = vld [vmem:[%s0 + $0x244] sm:$0xf]
  %v167 = vld [vmem:[%s0 + $0x248] sm:$0xf]
  %v168 = vld [vmem:[%s0 + $0x24c] sm:$0xf]
  %v169 = vld [vmem:[%s0 + $0x250] sm:$0xf]
  %v170 = vld [vmem:[%s0 + $0x254] sm:$0xf]
  %v171 = vld [vmem:[%s0 + $0x258] sm:$0xf]
  %v172 = vld [vmem:[%s0 + $0x25c] sm:$0xf]
  %v173 = vld [vmem:[%s0 + $0x260] sm:$0xf]
  %v174 = vld [vmem:[%s0 + $0x264] sm:$0xf]
  %v175 = vld [vmem:[%s0 + $0x268] sm:$0xf]
  %v176 = vld [vmem:[%s0 + $0x26c] sm:$0xf]
  %v177 = vld [vmem:[%s0 + $0x270] sm:$0xf]
  %v178 = vld [vmem:[%s0 + $0x274] sm:$0xf]
  %v179 = vld [vmem:[%s0 + $0x278] sm:$0xf]
  %v180 = vld [vmem:[%s0 + $0x27c] sm:$0xf]
  %v181 = vld [vmem:[%s0 + $0x280] sm:$0xf]
  %v182 = vld [vmem:[%s0 + $0x284] sm:$0xf]
  %v183 = vld [vmem:[%s0 + $0x288] sm:$0xf]
  %v184 = vld [vmem:[%s0 + $0x28c] sm:$0xf]
  %v185 = vld [vmem:[%s0 + $0x290] sm:$0xf]
  %v186 = vld [vmem:[%s0 + $0x294] sm:$0xf]
  %v187 = vld [vmem:[%s0 + $0x298] sm:$0xf]
  %v188 = vld [vmem:[%s0 + $0x29c] sm:$0xf]
  %v189 = vld [vmem:[%s0 + $0x2a0] sm:$0xf]
  %v190 = vld [vmem:[%s0 + $0x2a4] sm:$0xf]
  %v191 = vld [vmem:[%s0 + $0x2a8] sm:$0xf]
  %v192 = vld [vmem:[%s0 + $0x2ac] sm:$0xf]
  %v193 = vld [vmem:[%s0 + $0x2b0] sm:$0xf]
  %v194 = vld [vmem:[%s0 + $0x2b4] sm:$0xf]
  %v195 = vld [vmem:[%s0 + $0x2b8] sm:$0xf]
  %v196 = vld [vmem:[%s0 + $0x2bc] sm:$0xf]
  %v197 = vld [vmem:[%s0 + $0x2c0] sm:$0xf]
  %v198 = vld [vmem:[%s0 + $0x2c4] sm:$0xf]
  %v199 = vld [vmem:[%s0 + $0x2c8] sm:$0xf]
  %v200 = vld [vmem:[%s0 + $0x2cc] sm:$0xf]
  %v201 = vld [vmem:[%s0 + $0x2d0] sm:$0xf]
  %v202 = vld [vmem:[%s0 + $0x2d4] sm:$0xf]
  %v203 = vld [vmem:[%s0 + $0x2d8] sm:$0xf]
  %v204 = vld [vmem:[%s0 + $0x2dc] sm:$0xf]
  %v205 = vld [vmem:[%s0 + $0x2e0] sm:$0xf]
  %v206 = vld [vmem:[%s0 + $0x2e4] sm:$0xf]
  %v207 = vld [vmem:[%s0 + $0x2e8] sm:$0xf]
  %v208 = vld [vmem:[%s0 + $0x2ec] sm:$0xf]
  %v209 = vld [vmem:[%s0 + $0x2f0] sm:$0xf]
  %v210 = vld [vmem:[%s0 + $0x2f4] sm:$0xf]
  %v211 = vld [vmem:[%s0 + $0x2f8] sm:$0xf]
  %v212 = vld [vmem:[%s0 + $0x2fc] sm:$0xf]
  %v213 = vld [vmem:[%s0 + $0x300] sm:$0xf]
  %v214 = vld [vmem:[%s0 + $0x304] sm:$0xf]
  %v215 = vld [vmem:[%s0 + $0x308] sm:$0xf]
  %v216 = vld [vmem:[%s0 + $0x30c] sm:$0xf]
  %v217 = vld [vmem:[%s0 + $0x310] sm:$0xf]
  %v218 = vld [vmem:[%s0 + $0x314] sm:$0xf]
  %v219 = vld [vmem:[%s0 + $0x318] sm:$0xf]
  %v220 = vld [vmem:[%s0 + $0x31c] sm:$0xf]
  %v221 = vld [vmem:[%s0 + $0x320] sm:$0xf]
  %v222 = vld [vmem:[%s0 + $0x324] sm:$0xf]
  %v223 = vld [vmem:[%s0 + $0x328] sm:$0xf]
  %v224 = vld [vmem:[%s0 + $0x32c] sm:$0xf]
  %v225 = vld [vmem:[%s0 + $0x330] sm:$0xf]
  %v226 = vld [vmem:[%s0 + $0x334] sm:$0xf]
  %v227 = vld [vmem:[%s0 + $0x338] sm:$0xf]
  %v228 = vld [vmem:[%s0 + $0x33c] sm:$0xf]
  %v229 = vld [vmem:[%s0 + $0x340] sm:$0xf]
  %v230 = vld [vmem:[%s0 + $0x344] sm:$0xf]
  %v231 = vld [vmem:[%s0 + $0x348] sm:$0xf]
  %v232 = vld [vmem:[%s0 + $0x34c] sm:$0xf]
  %v233 = vld [vmem:[%s0 + $0x350] sm:$0xf]
  %v234 = vld [vmem:[%s0 + $0x354] sm:$0xf]
  %v235 = vld [vmem:[%s0 + $0x358] sm:$0xf]
  %v236 = vld [vmem:[%s0 + $0x35c] sm:$0xf]
  %v237 = vld [vmem:[%s0 + $0x360] sm:$0xf]
  %v238 = vld [vmem:[%s0 + $0x364] sm:$0xf]
  %v239 = vld [vmem:[%s0 + $0x368] sm:$0xf]
  %v240 = vld [vmem:[%s0 + $0x36c] sm:$0xf]
  %v241 = vld [vmem:[%s0 + $0x370] sm:$0xf]
  %v242 = vld [vmem:[%s0 + $0x374] sm:$0xf]
  %v243 = vld [vmem:[%s0 + $0x378] sm:$0xf]
  %v244 = vld [vmem:[%s0 + $0x37c] sm:$0xf]
  %v245 = vld [vmem:[%s0 + $0x380] sm:$0xf]
  %v246 = vld [vmem:[%s0 + $0x384] sm:$0xf]
  %v247 = vld [vmem:[%s0 + $0x388] sm:$0xf]
  %v248 = vld [vmem:[%s0 + $0x38c] sm:$0xf]
  %v249 = vld [vmem:[%s0 + $0x390] sm:$0xf]
  %v250 = vld [vmem:[%s0 + $0x394] sm:$0xf]
  %v251 = vld [vmem:[%s0 + $0x398] sm:$0xf]
  %v252 = vld [vmem:[%s0 + $0x39c] sm:$0xf]
  %v253 = vld [vmem:[%s0 + $0x3a0] sm:$0xf]
  %v254 = vld [vmem:[%s0 + $0x3a4] sm:$0xf]
  %v255 = vld [vmem:[%s0 + $0x3a8] sm:$0xf]
  %v256 = vld [vmem:[%s0 + $0x3ac] sm:$0xf]
  %v257 = vld [vmem:[%s0 + $0x3b0] sm:$0xf]
  %v258 = vld [vmem:[%s0 + $0x3b4] sm:$0xf]
  %v259 = vld [vmem:[%s0 + $0x3b8] sm:$0xf]
  %v260 = vld [vmem:[%s0 + $0x3bc] sm:$0xf]
  %v261 = vld [vmem:[%s0 + $0x3c0] sm:$0xf]
  %v262 = vld [vmem:[%s0 + $0x3c4] sm:$0xf]
  %v263 = vld [vmem:[%s0 + $0x3c8] sm:$0xf]
  %v264 = vld [vmem:[%s0 + $0x3cc] sm:$0xf]
  %v265 = vld [vmem:[%s0 + $0x3d0] sm:$0xf]
  %v266 = vld [vmem:[%s0 + $0x3d4] sm:$0xf]
  %v267 = vld [vmem:[%s0 + $0x3d8] sm:$0xf]
  %v268 = vld [vmem:[%s0 + $0x3dc] sm:$0xf]
  %v269 = vld [vmem:[%s0 + $0x3e0] sm:$0xf]
  %v270 = vld [vmem:[%s0 + $0x3e4] sm:$0xf]
  %v271 = vld [vmem:[%s0 + $0x3e8] sm:$0xf]
  %v272 = vld [vmem:[%s0 + $0x3ec] sm:$0xf]
  %v273 = vld [vmem:[%s0 + $0x3f0] sm:$0xf]
  %v274 = vld [vmem:[%s0 + $0x3f4] sm:$0xf]
  %v275 = vld [vmem:[%s0 + $0x3f8] sm:$0xf]
  %v276 = vld [vmem:[%s0 + $0x3fc] sm:$0xf]
  %v277 = vld [vmem:[%s0 + $0x400] sm:$0xf]
  %v278 = vld [vmem:[%s0 + $0x404] sm:$0xf]
  %v279 = vld [vmem:[%s0 + $0x408] sm:$0xf]
  %v280 = vld [vmem:[%s0 + $0x40c] sm:$0xf]
  %v281 = vld [vmem:[%s0 + $0x410] sm:$0xf]
  %v282 = vld [vmem:[%s0 + $0x414] sm:$0xf]
  %v283 = vld [vmem:[%s0 + $0x418] sm:$0xf]
  %v284 = vld [vmem:[%s0 + $0x41c] sm:$0xf]
  %v285 = vld [vmem:[%s0 + $0x420] sm:$0xf]
  %v286 = vld [vmem:[%s0 + $0x424] sm:$0xf]
  %v287 = vld [vmem:[%s0 + $0x428] sm:$0xf]
  %v288 = vld [vmem:[%s0 + $0x42c] sm:$0xf]
  %v289 = vld [vmem:[%s0 + $0x430] sm:$0xf]
  %v290 = vld [vmem:[%s0 + $0x434] sm:$0xf]
  %v291 = vld [vmem:[%s0 + $0x438] sm:$0xf]
  %v292 = vld [vmem:[%s0 + $0x43c] sm:$0xf]
  %v293 = vld [vmem:[%s0 + $0x440] sm:$0xf]
  %v294 = vld [vmem:[%s0 + $0x444] sm:$0xf]
  %v295 = vld [vmem:[%s0 + $0x448] sm:$0xf]
  %v296 = vld [vmem:[%s0 + $0x44c] sm:$0xf]
  %v297 = vld [vmem:[%s0 + $0x450] sm:$0xf]
  %v298 = vld [vmem:[%s0 + $0x454] sm:$0xf]
  %v299 = vld [vmem:[%s0 + $0x458] sm:$0xf]
  %v300 = vld [vmem:[%s0 + $0x45c] sm:$0xf]
  %v301 = vld [vmem:[%s0 + $0x460] sm:$0xf]
  %v302 = vld [vmem:[%s0 + $0x464] sm:$0xf]
  %v303 = vld [vmem:[%s0 + $0x468] sm:$0xf]
  %v304 = vld [vmem:[%s0 + $0x46c] sm:$0xf]
  %v305 = vld [vmem:[%s0 + $0x470] sm:$0xf]
  %v306 = vld [vmem:[%s0 + $0x474] sm:$0xf]
  %v307 = vld [vmem:[%s0 + $0x478] sm:$0xf]
  %v308 = vld [vmem:[%s0 + $0x47c] sm:$0xf]
  %v309 = vld [vmem:[%s0 + $0x480] sm:$0xf]
  %v310 = vld [vmem:[%s0 + $0x484] sm:$0xf]
  %v311 = vld [vmem:[%s0 + $0x488] sm:$0xf]
  %v312 = vld [vmem:[%s0 + $0x48c] sm:$0xf]
  %v313 = vld [vmem:[%s0 + $0x490] sm:$0xf]
  %v314 = vld [vmem:[%s0 + $0x494] sm:$0xf]
  %v315 = vld [vmem:[%s0 + $0x498] sm:$0xf]
  %v316 = vld [vmem:[%s0 + $0x49c] sm:$0xf]
  %v317 = vld [vmem:[%s0 + $0x4a0] sm:$0xf]
  %v318 = vld [vmem:[%s0 + $0x4a4] sm:$0xf]
  %v319 = vld [vmem:[%s0 + $0x4a8] sm:$0xf]
  %v320 = vld [vmem:[%s0 + $0x4ac] sm:$0xf]
  %v321 = vld [vmem:[%s0 + $0x4b0] sm:$0xf]
  %v322 = vld [vmem:[%s0 + $0x4b4] sm:$0xf]
  %v323 = vld [vmem:[%s0 + $0x4b8] sm:$0xf]
  %v324 = vld [vmem:[%s0 + $0x4bc] sm:$0xf]
  %v325 = vld [vmem:[%s0 + $0x4c0] sm:$0xf]
  %v326 = vld [vmem:[%s0 + $0x4c4] sm:$0xf]
  %v327 = vld [vmem:[%s0 + $0x4c8] sm:$0xf]
  %v328 = vld [vmem:[%s0 + $0x4cc] sm:$0xf]
  %v329 = vld [vmem:[%s0 + $0x4d0] sm:$0xf]
  %v330 = vld [vmem:[%s0 + $0x4d4] sm:$0xf]
  %v331 = vld [vmem:[%s0 + $0x4d8] sm:$0xf]
  %v332 = vld [vmem:[%s0 + $0x4dc] sm:$0xf]
  %v333 = vld [vmem:[%s0 + $0x4e0] sm:$0xf]
  %v334 = vld [vmem:[%s0 + $0x4e4] sm:$0xf]
  %v335 = vld [vmem:[%s0 + $0x4e8] sm:$0xf]
  %v336 = vld [vmem:[%s0 + $0x4ec] sm:$0xf]
  %v337 = vld [vmem:[%s0 + $0x4f0] sm:$0xf]
  %v338 = vld [vmem:[%s0 + $0x4f4] sm:$0xf]
  %v339 = vld [vmem:[%s0 + $0x4f8] sm:$0xf]
  %v340 = vld [vmem:[%s0 + $0x4fc] sm:$0xf]
  %v341 = vld [vmem:[%s0 + $0x500] sm:$0xf]
  %v342 = vld [vmem:[%s0 + $0x504] sm:$0xf]
  %v343 = vld [vmem:[%s0 + $0x508] sm:$0xf]
  %v344 = vld [vmem:[%s0 + $0x50c] sm:$0xf]
  %v345 = vld [vmem:[%s0 + $0x510] sm:$0xf]
  %v346 = vld [vmem:[%s0 + $0x514] sm:$0xf]
  %v347 = vld [vmem:[%s0 + $0x518] sm:$0xf]
  %v348 = vld [vmem:[%s0 + $0x51c] sm:$0xf]
  %v349 = vld [vmem:[%s0 + $0x520] sm:$0xf]
  %v350 = vld [vmem:[%s0 + $0x524] sm:$0xf]
  %v351 = vld [vmem:[%s0 + $0x528] sm:$0xf]
  %v352 = vld [vmem:[%s0 + $0x52c] sm:$0xf]
  %v353 = vld [vmem:[%s0 + $0x530] sm:$0xf]
  %v354 = vld [vmem:[%s0 + $0x534] sm:$0xf]
  %v355 = vld [vmem:[%s0 + $0x538] sm:$0xf]
  %v356 = vld [vmem:[%s0 + $0x53c] sm:$0xf]
  %v357 = vld [vmem:[%s0 + $0x540] sm:$0xf]
  %v358 = vld [vmem:[%s0 + $0x544] sm:$0xf]
  %v359 = vld [vmem:[%s0 + $0x548] sm:$0xf]
  %v360 = vld [vmem:[%s0 + $0x54c] sm:$0xf]
  %v361 = vld [vmem:[%s0 + $0x550] sm:$0xf]
  %v362 = vld [vmem:[%s0 + $0x554] sm:$0xf]
  %v363 = vld [vmem:[%s0 + $0x558] sm:$0xf]
  %v364 = vld [vmem:[%s0 + $0x55c] sm:$0xf]
  %v365 = vld [vmem:[%s0 + $0x560] sm:$0xf]
  %v366 = vld [vmem:[%s0 + $0x564] sm:$0xf]
  %v367 = vld [vmem:[%s0 + $0x568] sm:$0xf]
  %v368 = vld [vmem:[%s0 + $0x56c] sm:$0xf]
  %v369 = vld [vmem:[%s0 + $0x570] sm:$0xf]
  %v370 = vld [vmem:[%s0 + $0x574] sm:$0xf]
  %v371 = vld [vmem:[%s0 + $0x578] sm:$0xf]
  %v372 = vld [vmem:[%s0 + $0x57c] sm:$0xf]
  %v373 = vld [vmem:[%s0 + $0x580] sm:$0xf]
  %v374 = vld [vmem:[%s0 + $0x584] sm:$0xf]
  %v375 = vld [vmem:[%s0 + $0x588] sm:$0xf]
  %v376 = vld [vmem:[%s0 + $0x58c] sm:$0xf]
  %v377 = vld [vmem:[%s0 + $0x590] sm:$0xf]
  %v378 = vld [vmem:[%s0 + $0x594] sm:$0xf]
  %v379 = vld [vmem:[%s0 + $0x598] sm:$0xf]
  %v380 = vld [vmem:[%s0 + $0x59c] sm:$0xf]
  %v381 = vld [vmem:[%s0 + $0x5a0] sm:$0xf]
  %v382 = vld [vmem:[%s0 + $0x5a4] sm:$0xf]
  %v383 = vld [vmem:[%s0 + $0x5a8] sm:$0xf]
  %v384 = vld [vmem:[%s0 + $0x5ac] sm:$0xf]
  %v385 = vld [vmem:[%s0 + $0x5b0] sm:$0xf]
  %v386 = vld [vmem:[%s0 + $0x5b4] sm:$0xf]
  %v387 = vld [vmem:[%s0 + $0x5b8] sm:$0xf]
  %v388 = vld [vmem:[%s0 + $0x5bc] sm:$0xf]
  %v389 = vld [vmem:[%s0 + $0x5c0] sm:$0xf]
  %v390 = vld [vmem:[%s0 + $0x5c4] sm:$0xf]
  %v391 = vld [vmem:[%s0 + $0x5c8] sm:$0xf]
  %v392 = vld [vmem:[%s0 + $0x5cc] sm:$0xf]
  %v393 = vld [vmem:[%s0 + $0x5d0] sm:$0xf]
  %v394 = vld [vmem:[%s0 + $0x5d4] sm:$0xf]
  %v395 = vld [vmem:[%s0 + $0x5d8] sm:$0xf]
  %v396 = vld [vmem:[%s0 + $0x5dc] sm:$0xf]
  %v397 = vld [vmem:[%s0 + $0x5e0] sm:$0xf]
  %v398 = vld [vmem:[%s0 + $0x5e4] sm:$0xf]
  %v399 = vld [vmem:[%s0 + $0x5e8] sm:$0xf]
  %v400 = vld [vmem:[%s0 + $0x5ec] sm:$0xf]
  %v401 = vld [vmem:[%s0 + $0x5f0] sm:$0xf]
  %v402 = vld [vmem:[%s0 + $0x5f4] sm:$0xf]
  %v403 = vld [vmem:[%s0 + $0x5f8] sm:$0xf]
  %v404 = vld [vmem:[%s0 + $0x5fc] sm:$0xf]
  %v405 = vld [vmem:[%s0 + $0x600] sm:$0xf]
  %v406 = vld [vmem:[%s0 + $0x604] sm:$0xf]
  %v407 = vld [vmem:[%s0 + $0x608] sm:$0xf]
  %v408 = vld [vmem:[%s0 + $0x60c] sm:$0xf]
  %v409 = vld [vmem:[%s0 + $0x610] sm:$0xf]
  %v410 = vld [vmem:[%s0 + $0x614] sm:$0xf]
  %v411 = vld [vmem:[%s0 + $0x618] sm:$0xf]
  %v412 = vld [vmem:[%s0 + $0x61c] sm:$0xf]
  %v413 = vld [vmem:[%s0 + $0x620] sm:$0xf]
  %v414 = vld [vmem:[%s0 + $0x624] sm:$0xf]
  %v415 = vld [vmem:[%s0 + $0x628] sm:$0xf]
  %v416 = vld [vmem:[%s0 + $0x62c] sm:$0xf]
  %v417 = vld [vmem:[%s0 + $0x630] sm:$0xf]
  %v418 = vld [vmem:[%s0 + $0x634] sm:$0xf]
  %v419 = vld [vmem:[%s0 + $0x638] sm:$0xf]
  %v420 = vld [vmem:[%s0 + $0x63c] sm:$0xf]
  %v421 = vld [vmem:[%s0 + $0x640] sm:$0xf]
  %v422 = vld [vmem:[%s0 + $0x644] sm:$0xf]
  %v423 = vld [vmem:[%s0 + $0x648] sm:$0xf]
  %v424 = vld [vmem:[%s0 + $0x64c] sm:$0xf]
  %v425 = vld [vmem:[%s0 + $0x650] sm:$0xf]
  %v426 = vld [vmem:[%s0 + $0x654] sm:$0xf]
  %v427 = vld [vmem:[%s0 + $0x658] sm:$0xf]
  %v428 = vld [vmem:[%s0 + $0x65c] sm:$0xf]
  %v429 = vld [vmem:[%s0 + $0x660] sm:$0xf]
  %v430 = vld [vmem:[%s0 + $0x664] sm:$0xf]
  %v431 = vld [vmem:[%s0 + $0x668] sm:$0xf]
  %v432 = vld [vmem:[%s0 + $0x66c] sm:$0xf]
  %v433 = vld [vmem:[%s0 + $0x670] sm:$0xf]
  %v434 = vld [vmem:[%s0 + $0x674] sm:$0xf]
  %v435 = vld [vmem:[%s0 + $0x678] sm:$0xf]
  %v436 = vld [vmem:[%s0 + $0x67c] sm:$0xf]
  %v437 = vld [vmem:[%s0 + $0x680] sm:$0xf]
  %v438 = vld [vmem:[%s0 + $0x684] sm:$0xf]
  %v439 = vld [vmem:[%s0 + $0x688] sm:$0xf]
  %v440 = vld [vmem:[%s0 + $0x68c] sm:$0xf]
  %v441 = vld [vmem:[%s0 + $0x690] sm:$0xf]
  %v442 = vld [vmem:[%s0 + $0x694] sm:$0xf]
  %v443 = vld [vmem:[%s0 + $0x698] sm:$0xf]
  %v444 = vld [vmem:[%s0 + $0x69c] sm:$0xf]
  %v445 = vld [vmem:[%s0 + $0x6a0] sm:$0xf]
  %v446 = vld [vmem:[%s0 + $0x6a4] sm:$0xf]
  %v447 = vld [vmem:[%s0 + $0x6a8] sm:$0xf]
  %v448 = vld [vmem:[%s0 + $0x6ac] sm:$0xf]
  %v449 = vld [vmem:[%s0 + $0x6b0] sm:$0xf]
  %v450 = vld [vmem:[%s0 + $0x6b4] sm:$0xf]
  %v451 = vld [vmem:[%s0 + $0x6b8] sm:$0xf]
  %v452 = vld [vmem:[%s0 + $0x6bc] sm:$0xf]
  %v453 = vld [vmem:[%s0 + $0x6c0] sm:$0xf]
  %v454 = vld [vmem:[%s0 + $0x6c4] sm:$0xf]
  %v455 = vld [vmem:[%s0 + $0x6c8] sm:$0xf]
  %v456 = vld [vmem:[%s0 + $0x6cc] sm:$0xf]
  %v457 = vld [vmem:[%s0 + $0x6d0] sm:$0xf]
  %v458 = vld [vmem:[%s0 + $0x6d4] sm:$0xf]
  %v459 = vld [vmem:[%s0 + $0x6d8] sm:$0xf]
  %v460 = vld [vmem:[%s0 + $0x6dc] sm:$0xf]
  %v461 = vld [vmem:[%s0 + $0x6e0] sm:$0xf]
  %v462 = vld [vmem:[%s0 + $0x6e4] sm:$0xf]
  %v463 = vld [vmem:[%s0 + $0x6e8] sm:$0xf]
  %v464 = vld [vmem:[%s0 + $0x6ec] sm:$0xf]
  %v465 = vld [vmem:[%s0 + $0x6f0] sm:$0xf]
  %v466 = vld [vmem:[%s0 + $0x6f4] sm:$0xf]
  %v467 = vld [vmem:[%s0 + $0x6f8] sm:$0xf]
  %v468 = vld [vmem:[%s0 + $0x6fc] sm:$0xf]
  %v469 = vld [vmem:[%s0 + $0x700] sm:$0xf]
  %v470 = vld [vmem:[%s0 + $0x704] sm:$0xf]
  %v471 = vld [vmem:[%s0 + $0x708] sm:$0xf]
  %v472 = vld [vmem:[%s0 + $0x70c] sm:$0xf]
  %v473 = vld [vmem:[%s0 + $0x710] sm:$0xf]
  %v474 = vld [vmem:[%s0 + $0x714] sm:$0xf]
  %v475 = vld [vmem:[%s0 + $0x718] sm:$0xf]
  %v476 = vld [vmem:[%s0 + $0x71c] sm:$0xf]
  %v477 = vld [vmem:[%s0 + $0x720] sm:$0xf]
  %v478 = vld [vmem:[%s0 + $0x724] sm:$0xf]
  %v479 = vld [vmem:[%s0 + $0x728] sm:$0xf]
  %v480 = vld [vmem:[%s0 + $0x72c] sm:$0xf]
  %v481 = vld [vmem:[%s0 + $0x730] sm:$0xf]
  %v482 = vld [vmem:[%s0 + $0x734] sm:$0xf]
  %v483 = vld [vmem:[%s0 + $0x738] sm:$0xf]
  %v484 = vld [vmem:[%s0 + $0x73c] sm:$0xf]
  %v485 = vld [vmem:[%s0 + $0x740] sm:$0xf]
  %v486 = vld [vmem:[%s0 + $0x744] sm:$0xf]
  %v487 = vld [vmem:[%s0 + $0x748] sm:$0xf]
  %v488 = vld [vmem:[%s0 + $0x74c] sm:$0xf]
  %v489 = vld [vmem:[%s0 + $0x750] sm:$0xf]
  %v490 = vld [vmem:[%s0 + $0x754] sm:$0xf]
  %v491 = vld [vmem:[%s0 + $0x758] sm:$0xf]
  %v492 = vld [vmem:[%s0 + $0x75c] sm:$0xf]
  %v493 = vld [vmem:[%s0 + $0x760] sm:$0xf]
  %v494 = vld [vmem:[%s0 + $0x764] sm:$0xf]
  %v495 = vld [vmem:[%s0 + $0x768] sm:$0xf]
  %v496 = vld [vmem:[%s0 + $0x76c] sm:$0xf]
  %v497 = vld [vmem:[%s0 + $0x770] sm:$0xf]
  %v498 = vld [vmem:[%s0 + $0x774] sm:$0xf]
  %v499 = vld [vmem:[%s0 + $0x778] sm:$0xf]
  %v500 = vld [vmem:[%s0 + $0x77c] sm:$0xf]
  %v501 = vld [vmem:[%s0 + $0x780] sm:$0xf]
  %v502 = vld [vmem:[%s0 + $0x784] sm:$0xf]
  %v503 = vld [vmem:[%s0 + $0x788] sm:$0xf]
  %v504 = vld [vmem:[%s0 + $0x78c] sm:$0xf]
  %v505 = vld [vmem:[%s0 + $0x790] sm:$0xf]
  %v506 = vld [vmem:[%s0 + $0x794] sm:$0xf]
  %v507 = vld [vmem:[%s0 + $0x798] sm:$0xf]
  %v508 = vld [vmem:[%s0 + $0x79c] sm:$0xf]
  %v509 = vld [vmem:[%s0 + $0x7a0] sm:$0xf]
  %v510 = vld [vmem:[%s0 + $0x7a4] sm:$0xf]
  %v511 = vld [vmem:[%s0 + $0x7a8] sm:$0xf]
  %v512 = vld [vmem:[%s0 + $0x7ac] sm:$0xf]
  %v513 = vld [vmem:[%s0 + $0x7b0] sm:$0xf]
  %v514 = vld [vmem:[%s0 + $0x7b4] sm:$0xf]
  %v515 = vld [vmem:[%s0 + $0x7b8] sm:$0xf]
  %v516 = vld [vmem:[%s0 + $0x7bc] sm:$0xf]
  %v517 = vld [vmem:[%s0 + $0x7c0] sm:$0xf]
  %v518 = vld [vmem:[%s0 + $0x7c4] sm:$0xf]
  %v519 = vld [vmem:[%s0 + $0x7c8] sm:$0xf]
  %v520 = vld [vmem:[%s0 + $0x7cc] sm:$0xf]
  %v521 = vld [vmem:[%s0 + $0x7d0] sm:$0xf]
  %v522 = vld [vmem:[%s0 + $0x7d4] sm:$0xf]
  %v523 = vld [vmem:[%s0 + $0x7d8] sm:$0xf]
  %v524 = vld [vmem:[%s0 + $0x7dc] sm:$0xf]
  %v525 = vld [vmem:[%s0 + $0x7e0] sm:$0xf]
  %v526 = vld [vmem:[%s0 + $0x7e4] sm:$0xf]
  %v527 = vld [vmem:[%s0 + $0x7e8] sm:$0xf]
  %v528 = vld [vmem:[%s0 + $0x7ec] sm:$0xf]
  %v529 = vld [vmem:[%s0 + $0x7f0] sm:$0xf]
  %v530 = vld [vmem:[%s0 + $0x7f4] sm:$0xf]
  %v531 = vld [vmem:[%s0 + $0x7f8] sm:$0xf]
  %v532 = vld [vmem:[%s0 + $0x7fc] sm:$0xf]
  %v533 = vld [vmem:[%s1] sm:$0xf]
  %v534 = vld [vmem:[%s1 + $0x4] sm:$0xf]
  %v535 = vld [vmem:[%s1 + $0x8] sm:$0xf]
  %v536 = vld [vmem:[%s1 + $0xc] sm:$0x1]
  %v1049 = vunpack.c.l.b16 %v21
  %v1050 = vunpack.c.l.b16 %v22
  %v1051 = vunpack.c.l.b16 %v23
  %v1052 = vunpack.c.l.b16 %v24
  %v1053 = vunpack.c.l.b16 %v25
  %v1054 = vunpack.c.l.b16 %v26
  %v1055 = vunpack.c.l.b16 %v27
  %v1056 = vunpack.c.l.b16 %v28
  %v1057 = vunpack.c.l.b16 %v29
  %v1058 = vunpack.c.l.b16 %v30
  %v1059 = vunpack.c.l.b16 %v31
  %v1060 = vunpack.c.l.b16 %v32
  %v1061 = vunpack.c.l.b16 %v33
  %v1062 = vunpack.c.l.b16 %v34
  %v1063 = vunpack.c.l.b16 %v35
  %v1064 = vunpack.c.l.b16 %v36
  %v1065 = vunpack.c.l.b16 %v37
  %v1066 = vunpack.c.l.b16 %v38
  %v1067 = vunpack.c.l.b16 %v39
  %v1068 = vunpack.c.l.b16 %v40
  %v1069 = vunpack.c.l.b16 %v41
  %v1070 = vunpack.c.l.b16 %v42
  %v1071 = vunpack.c.l.b16 %v43
  %v1072 = vunpack.c.l.b16 %v44
  %v1073 = vunpack.c.l.b16 %v45
  %v1074 = vunpack.c.l.b16 %v46
  %v1075 = vunpack.c.l.b16 %v47
  %v1076 = vunpack.c.l.b16 %v48
  %v1077 = vunpack.c.l.b16 %v49
  %v1078 = vunpack.c.l.b16 %v50
  %v1079 = vunpack.c.l.b16 %v51
  %v1080 = vunpack.c.l.b16 %v52
  %v1081 = vunpack.c.l.b16 %v53
  %v1082 = vunpack.c.l.b16 %v54
  %v1083 = vunpack.c.l.b16 %v55
  %v1084 = vunpack.c.l.b16 %v56
  %v1085 = vunpack.c.l.b16 %v57
  %v1086 = vunpack.c.l.b16 %v58
  %v1087 = vunpack.c.l.b16 %v59
  %v1088 = vunpack.c.l.b16 %v60
  %v1089 = vunpack.c.l.b16 %v61
  %v1090 = vunpack.c.l.b16 %v62
  %v1091 = vunpack.c.l.b16 %v63
  %v1092 = vunpack.c.l.b16 %v64
  %v1093 = vunpack.c.l.b16 %v65
  %v1094 = vunpack.c.l.b16 %v66
  %v1095 = vunpack.c.l.b16 %v67
  %v1096 = vunpack.c.l.b16 %v68
  %v1097 = vunpack.c.l.b16 %v69
  %v1098 = vunpack.c.l.b16 %v70
  %v1099 = vunpack.c.l.b16 %v71
  %v1100 = vunpack.c.l.b16 %v72
  %v1101 = vunpack.c.l.b16 %v73
  %v1102 = vunpack.c.l.b16 %v74
  %v1103 = vunpack.c.l.b16 %v75
  %v1104 = vunpack.c.l.b16 %v76
  %v1105 = vunpack.c.l.b16 %v77
  %v1106 = vunpack.c.l.b16 %v78
  %v1107 = vunpack.c.l.b16 %v79
  %v1108 = vunpack.c.l.b16 %v80
  %v1109 = vunpack.c.l.b16 %v81
  %v1110 = vunpack.c.l.b16 %v82
  %v1111 = vunpack.c.l.b16 %v83
  %v1112 = vunpack.c.l.b16 %v84
  %v1113 = vunpack.c.l.b16 %v85
  %v1114 = vunpack.c.l.b16 %v86
  %v1115 = vunpack.c.l.b16 %v87
  %v1116 = vunpack.c.l.b16 %v88
  %v1117 = vunpack.c.l.b16 %v89
  %v1118 = vunpack.c.l.b16 %v90
  %v1119 = vunpack.c.l.b16 %v91
  %v1120 = vunpack.c.l.b16 %v92
  %v1121 = vunpack.c.l.b16 %v93
  %v1122 = vunpack.c.l.b16 %v94
  %v1123 = vunpack.c.l.b16 %v95
  %v1124 = vunpack.c.l.b16 %v96
  %v1125 = vunpack.c.l.b16 %v97
  %v1126 = vunpack.c.l.b16 %v98
  %v1127 = vunpack.c.l.b16 %v99
  %v1128 = vunpack.c.l.b16 %v100
  %v1129 = vunpack.c.l.b16 %v101
  %v1130 = vunpack.c.l.b16 %v102
  %v1131 = vunpack.c.l.b16 %v103
  %v1132 = vunpack.c.l.b16 %v104
  %v1133 = vunpack.c.l.b16 %v105
  %v1134 = vunpack.c.l.b16 %v106
  %v1135 = vunpack.c.l.b16 %v107
  %v1136 = vunpack.c.l.b16 %v108
  %v1137 = vunpack.c.l.b16 %v109
  %v1138 = vunpack.c.l.b16 %v110
  %v1139 = vunpack.c.l.b16 %v111
  %v1140 = vunpack.c.l.b16 %v112
  %v1141 = vunpack.c.l.b16 %v113
  %v1142 = vunpack.c.l.b16 %v114
  %v1143 = vunpack.c.l.b16 %v115
  %v1144 = vunpack.c.l.b16 %v116
  %v1145 = vunpack.c.l.b16 %v117
  %v1146 = vunpack.c.l.b16 %v118
  %v1147 = vunpack.c.l.b16 %v119
  %v1148 = vunpack.c.l.b16 %v120
  %v1149 = vunpack.c.l.b16 %v121
  %v1150 = vunpack.c.l.b16 %v122
  %v1151 = vunpack.c.l.b16 %v123
  %v1152 = vunpack.c.l.b16 %v124
  %v1153 = vunpack.c.l.b16 %v125
  %v1154 = vunpack.c.l.b16 %v126
  %v1155 = vunpack.c.l.b16 %v127
  %v1156 = vunpack.c.l.b16 %v128
  %v1157 = vunpack.c.l.b16 %v129
  %v1158 = vunpack.c.l.b16 %v130
  %v1159 = vunpack.c.l.b16 %v131
  %v1160 = vunpack.c.l.b16 %v132
  %v1161 = vunpack.c.l.b16 %v133
  %v1162 = vunpack.c.l.b16 %v134
  %v1163 = vunpack.c.l.b16 %v135
  %v1164 = vunpack.c.l.b16 %v136
  %v1165 = vunpack.c.l.b16 %v137
  %v1166 = vunpack.c.l.b16 %v138
  %v1167 = vunpack.c.l.b16 %v139
  %v1168 = vunpack.c.l.b16 %v140
  %v1169 = vunpack.c.l.b16 %v141
  %v1170 = vunpack.c.l.b16 %v142
  %v1171 = vunpack.c.l.b16 %v143
  %v1172 = vunpack.c.l.b16 %v144
  %v1173 = vunpack.c.l.b16 %v145
  %v1174 = vunpack.c.l.b16 %v146
  %v1175 = vunpack.c.l.b16 %v147
  %v1176 = vunpack.c.l.b16 %v148
  %v1177 = vunpack.c.l.b16 %v149
  %v1178 = vunpack.c.l.b16 %v150
  %v1179 = vunpack.c.l.b16 %v151
  %v1180 = vunpack.c.l.b16 %v152
  %v1181 = vunpack.c.l.b16 %v153
  %v1182 = vunpack.c.l.b16 %v154
  %v1183 = vunpack.c.l.b16 %v155
  %v1184 = vunpack.c.l.b16 %v156
  %v1185 = vunpack.c.l.b16 %v157
  %v1186 = vunpack.c.l.b16 %v158
  %v1187 = vunpack.c.l.b16 %v159
  %v1188 = vunpack.c.l.b16 %v160
  %v1189 = vunpack.c.l.b16 %v161
  %v1190 = vunpack.c.l.b16 %v162
  %v1191 = vunpack.c.l.b16 %v163
  %v1192 = vunpack.c.l.b16 %v164
  %v1193 = vunpack.c.l.b16 %v165
  %v1194 = vunpack.c.l.b16 %v166
  %v1195 = vunpack.c.l.b16 %v167
  %v1196 = vunpack.c.l.b16 %v168
  %v1197 = vunpack.c.l.b16 %v169
  %v1198 = vunpack.c.l.b16 %v170
  %v1199 = vunpack.c.l.b16 %v171
  %v1200 = vunpack.c.l.b16 %v172
  %v1201 = vunpack.c.l.b16 %v173
  %v1202 = vunpack.c.l.b16 %v174
  %v1203 = vunpack.c.l.b16 %v175
  %v1204 = vunpack.c.l.b16 %v176
  %v1205 = vunpack.c.l.b16 %v177
  %v1206 = vunpack.c.l.b16 %v178
  %v1207 = vunpack.c.l.b16 %v179
  %v1208 = vunpack.c.l.b16 %v180
  %v1209 = vunpack.c.l.b16 %v181
  %v1210 = vunpack.c.l.b16 %v182
  %v1211 = vunpack.c.l.b16 %v183
  %v1212 = vunpack.c.l.b16 %v184
  %v1213 = vunpack.c.l.b16 %v185
  %v1214 = vunpack.c.l.b16 %v186
  %v1215 = vunpack.c.l.b16 %v187
  %v1216 = vunpack.c.l.b16 %v188
  %v1217 = vunpack.c.l.b16 %v189
  %v1218 = vunpack.c.l.b16 %v190
  %v1219 = vunpack.c.l.b16 %v191
  %v1220 = vunpack.c.l.b16 %v192
  %v1221 = vunpack.c.l.b16 %v193
  %v1222 = vunpack.c.l.b16 %v194
  %v1223 = vunpack.c.l.b16 %v195
  %v1224 = vunpack.c.l.b16 %v196
  %v1225 = vunpack.c.l.b16 %v197
  %v1226 = vunpack.c.l.b16 %v198
  %v1227 = vunpack.c.l.b16 %v199
  %v1228 = vunpack.c.l.b16 %v200
  %v1229 = vunpack.c.l.b16 %v201
  %v1230 = vunpack.c.l.b16 %v202
  %v1231 = vunpack.c.l.b16 %v203
  %v1232 = vunpack.c.l.b16 %v204
  %v1233 = vunpack.c.l.b16 %v205
  %v1234 = vunpack.c.l.b16 %v206
  %v1235 = vunpack.c.l.b16 %v207
  %v1236 = vunpack.c.l.b16 %v208
  %v1237 = vunpack.c.l.b16 %v209
  %v1238 = vunpack.c.l.b16 %v210
  %v1239 = vunpack.c.l.b16 %v211
  %v1240 = vunpack.c.l.b16 %v212
  %v1241 = vunpack.c.l.b16 %v213
  %v1242 = vunpack.c.l.b16 %v214
  %v1243 = vunpack.c.l.b16 %v215
  %v1244 = vunpack.c.l.b16 %v216
  %v1245 = vunpack.c.l.b16 %v217
  %v1246 = vunpack.c.l.b16 %v218
  %v1247 = vunpack.c.l.b16 %v219
  %v1248 = vunpack.c.l.b16 %v220
  %v1249 = vunpack.c.l.b16 %v221
  %v1250 = vunpack.c.l.b16 %v222
  %v1251 = vunpack.c.l.b16 %v223
  %v1252 = vunpack.c.l.b16 %v224
  %v1253 = vunpack.c.l.b16 %v225
  %v1254 = vunpack.c.l.b16 %v226
  %v1255 = vunpack.c.l.b16 %v227
  %v1256 = vunpack.c.l.b16 %v228
  %v1257 = vunpack.c.l.b16 %v229
  %v1258 = vunpack.c.l.b16 %v230
  %v1259 = vunpack.c.l.b16 %v231
  %v1260 = vunpack.c.l.b16 %v232
  %v1261 = vunpack.c.l.b16 %v233
  %v1262 = vunpack.c.l.b16 %v234
  %v1263 = vunpack.c.l.b16 %v235
  %v1264 = vunpack.c.l.b16 %v236
  %v1265 = vunpack.c.l.b16 %v237
  %v1266 = vunpack.c.l.b16 %v238
  %v1267 = vunpack.c.l.b16 %v239
  %v1268 = vunpack.c.l.b16 %v240
  %v1269 = vunpack.c.l.b16 %v241
  %v1270 = vunpack.c.l.b16 %v242
  %v1271 = vunpack.c.l.b16 %v243
  %v1272 = vunpack.c.l.b16 %v244
  %v1273 = vunpack.c.l.b16 %v245
  %v1274 = vunpack.c.l.b16 %v246
  %v1275 = vunpack.c.l.b16 %v247
  %v1276 = vunpack.c.l.b16 %v248
  %v1277 = vunpack.c.l.b16 %v249
  %v1278 = vunpack.c.l.b16 %v250
  %v1279 = vunpack.c.l.b16 %v251
  %v1280 = vunpack.c.l.b16 %v252
  %v1281 = vunpack.c.l.b16 %v253
  %v1282 = vunpack.c.l.b16 %v254
  %v1283 = vunpack.c.l.b16 %v255
  %v1284 = vunpack.c.l.b16 %v256
  %v1285 = vunpack.c.l.b16 %v257
  %v1286 = vunpack.c.l.b16 %v258
  %v1287 = vunpack.c.l.b16 %v259
  %v1288 = vunpack.c.l.b16 %v260
  %v1289 = vunpack.c.l.b16 %v261
  %v1290 = vunpack.c.l.b16 %v262
  %v1291 = vunpack.c.l.b16 %v263
  %v1292 = vunpack.c.l.b16 %v264
  %v1293 = vunpack.c.l.b16 %v265
  %v1294 = vunpack.c.l.b16 %v266
  %v1295 = vunpack.c.l.b16 %v267
  %v1296 = vunpack.c.l.b16 %v268
  %v1297 = vunpack.c.l.b16 %v269
  %v1298 = vunpack.c.l.b16 %v270
  %v1299 = vunpack.c.l.b16 %v271
  %v1300 = vunpack.c.l.b16 %v272
  %v1301 = vunpack.c.l.b16 %v273
  %v1302 = vunpack.c.l.b16 %v274
  %v1303 = vunpack.c.l.b16 %v275
  %v1304 = vunpack.c.l.b16 %v276
  %v1305 = vunpack.c.l.b16 %v277
  %v1306 = vunpack.c.l.b16 %v278
  %v1307 = vunpack.c.l.b16 %v279
  %v1308 = vunpack.c.l.b16 %v280
  %v1309 = vunpack.c.l.b16 %v281
  %v1310 = vunpack.c.l.b16 %v282
  %v1311 = vunpack.c.l.b16 %v283
  %v1312 = vunpack.c.l.b16 %v284
  %v1313 = vunpack.c.l.b16 %v285
  %v1314 = vunpack.c.l.b16 %v286
  %v1315 = vunpack.c.l.b16 %v287
  %v1316 = vunpack.c.l.b16 %v288
  %v1317 = vunpack.c.l.b16 %v289
  %v1318 = vunpack.c.l.b16 %v290
  %v1319 = vunpack.c.l.b16 %v291
  %v1320 = vunpack.c.l.b16 %v292
  %v1321 = vunpack.c.l.b16 %v293
  %v1322 = vunpack.c.l.b16 %v294
  %v1323 = vunpack.c.l.b16 %v295
  %v1324 = vunpack.c.l.b16 %v296
  %v1325 = vunpack.c.l.b16 %v297
  %v1326 = vunpack.c.l.b16 %v298
  %v1327 = vunpack.c.l.b16 %v299
  %v1328 = vunpack.c.l.b16 %v300
  %v1329 = vunpack.c.l.b16 %v301
  %v1330 = vunpack.c.l.b16 %v302
  %v1331 = vunpack.c.l.b16 %v303
  %v1332 = vunpack.c.l.b16 %v304
  %v1333 = vunpack.c.l.b16 %v305
  %v1334 = vunpack.c.l.b16 %v306
  %v1335 = vunpack.c.l.b16 %v307
  %v1336 = vunpack.c.l.b16 %v308
  %v1337 = vunpack.c.l.b16 %v309
  %v1338 = vunpack.c.l.b16 %v310
  %v1339 = vunpack.c.l.b16 %v311
  %v1340 = vunpack.c.l.b16 %v312
  %v1341 = vunpack.c.l.b16 %v313
  %v1342 = vunpack.c.l.b16 %v314
  %v1343 = vunpack.c.l.b16 %v315
  %v1344 = vunpack.c.l.b16 %v316
  %v1345 = vunpack.c.l.b16 %v317
  %v1346 = vunpack.c.l.b16 %v318
  %v1347 = vunpack.c.l.b16 %v319
  %v1348 = vunpack.c.l.b16 %v320
  %v1349 = vunpack.c.l.b16 %v321
  %v1350 = vunpack.c.l.b16 %v322
  %v1351 = vunpack.c.l.b16 %v323
  %v1352 = vunpack.c.l.b16 %v324
  %v1353 = vunpack.c.l.b16 %v325
  %v1354 = vunpack.c.l.b16 %v326
  %v1355 = vunpack.c.l.b16 %v327
  %v1356 = vunpack.c.l.b16 %v328
  %v1357 = vunpack.c.l.b16 %v329
  %v1358 = vunpack.c.l.b16 %v330
  %v1359 = vunpack.c.l.b16 %v331
  %v1360 = vunpack.c.l.b16 %v332
  %v1361 = vunpack.c.l.b16 %v333
  %v1362 = vunpack.c.l.b16 %v334
  %v1363 = vunpack.c.l.b16 %v335
  %v1364 = vunpack.c.l.b16 %v336
  %v1365 = vunpack.c.l.b16 %v337
  %v1366 = vunpack.c.l.b16 %v338
  %v1367 = vunpack.c.l.b16 %v339
  %v1368 = vunpack.c.l.b16 %v340
  %v1369 = vunpack.c.l.b16 %v341
  %v1370 = vunpack.c.l.b16 %v342
  %v1371 = vunpack.c.l.b16 %v343
  %v1372 = vunpack.c.l.b16 %v344
  %v1373 = vunpack.c.l.b16 %v345
  %v1374 = vunpack.c.l.b16 %v346
  %v1375 = vunpack.c.l.b16 %v347
  %v1376 = vunpack.c.l.b16 %v348
  %v1377 = vunpack.c.l.b16 %v349
  %v1378 = vunpack.c.l.b16 %v350
  %v1379 = vunpack.c.l.b16 %v351
  %v1380 = vunpack.c.l.b16 %v352
  %v1381 = vunpack.c.l.b16 %v353
  %v1382 = vunpack.c.l.b16 %v354
  %v1383 = vunpack.c.l.b16 %v355
  %v1384 = vunpack.c.l.b16 %v356
  %v1385 = vunpack.c.l.b16 %v357
  %v1386 = vunpack.c.l.b16 %v358
  %v1387 = vunpack.c.l.b16 %v359
  %v1388 = vunpack.c.l.b16 %v360
  %v1389 = vunpack.c.l.b16 %v361
  %v1390 = vunpack.c.l.b16 %v362
  %v1391 = vunpack.c.l.b16 %v363
  %v1392 = vunpack.c.l.b16 %v364
  %v1393 = vunpack.c.l.b16 %v365
  %v1394 = vunpack.c.l.b16 %v366
  %v1395 = vunpack.c.l.b16 %v367
  %v1396 = vunpack.c.l.b16 %v368
  %v1397 = vunpack.c.l.b16 %v369
  %v1398 = vunpack.c.l.b16 %v370
  %v1399 = vunpack.c.l.b16 %v371
  %v1400 = vunpack.c.l.b16 %v372
  %v1401 = vunpack.c.l.b16 %v373
  %v1402 = vunpack.c.l.b16 %v374
  %v1403 = vunpack.c.l.b16 %v375
  %v1404 = vunpack.c.l.b16 %v376
  %v1405 = vunpack.c.l.b16 %v377
  %v1406 = vunpack.c.l.b16 %v378
  %v1407 = vunpack.c.l.b16 %v379
  %v1408 = vunpack.c.l.b16 %v380
  %v1409 = vunpack.c.l.b16 %v381
  %v1410 = vunpack.c.l.b16 %v382
  %v1411 = vunpack.c.l.b16 %v383
  %v1412 = vunpack.c.l.b16 %v384
  %v1413 = vunpack.c.l.b16 %v385
  %v1414 = vunpack.c.l.b16 %v386
  %v1415 = vunpack.c.l.b16 %v387
  %v1416 = vunpack.c.l.b16 %v388
  %v1417 = vunpack.c.l.b16 %v389
  %v1418 = vunpack.c.l.b16 %v390
  %v1419 = vunpack.c.l.b16 %v391
  %v1420 = vunpack.c.l.b16 %v392
  %v1421 = vunpack.c.l.b16 %v393
  %v1422 = vunpack.c.l.b16 %v394
  %v1423 = vunpack.c.l.b16 %v395
  %v1424 = vunpack.c.l.b16 %v396
  %v1425 = vunpack.c.l.b16 %v397
  %v1426 = vunpack.c.l.b16 %v398
  %v1427 = vunpack.c.l.b16 %v399
  %v1428 = vunpack.c.l.b16 %v400
  %v1429 = vunpack.c.l.b16 %v401
  %v1430 = vunpack.c.l.b16 %v402
  %v1431 = vunpack.c.l.b16 %v403
  %v1432 = vunpack.c.l.b16 %v404
  %v1433 = vunpack.c.l.b16 %v405
  %v1434 = vunpack.c.l.b16 %v406
  %v1435 = vunpack.c.l.b16 %v407
  %v1436 = vunpack.c.l.b16 %v408
  %v1437 = vunpack.c.l.b16 %v409
  %v1438 = vunpack.c.l.b16 %v410
  %v1439 = vunpack.c.l.b16 %v411
  %v1440 = vunpack.c.l.b16 %v412
  %v1441 = vunpack.c.l.b16 %v413
  %v1442 = vunpack.c.l.b16 %v414
  %v1443 = vunpack.c.l.b16 %v415
  %v1444 = vunpack.c.l.b16 %v416
  %v1445 = vunpack.c.l.b16 %v417
  %v1446 = vunpack.c.l.b16 %v418
  %v1447 = vunpack.c.l.b16 %v419
  %v1448 = vunpack.c.l.b16 %v420
  %v1449 = vunpack.c.l.b16 %v421
  %v1450 = vunpack.c.l.b16 %v422
  %v1451 = vunpack.c.l.b16 %v423
  %v1452 = vunpack.c.l.b16 %v424
  %v1453 = vunpack.c.l.b16 %v425
  %v1454 = vunpack.c.l.b16 %v426
  %v1455 = vunpack.c.l.b16 %v427
  %v1456 = vunpack.c.l.b16 %v428
  %v1457 = vunpack.c.l.b16 %v429
  %v1458 = vunpack.c.l.b16 %v430
  %v1459 = vunpack.c.l.b16 %v431
  %v1460 = vunpack.c.l.b16 %v432
  %v1461 = vunpack.c.l.b16 %v433
  %v1462 = vunpack.c.l.b16 %v434
  %v1463 = vunpack.c.l.b16 %v435
  %v1464 = vunpack.c.l.b16 %v436
  %v1465 = vunpack.c.l.b16 %v437
  %v1466 = vunpack.c.l.b16 %v438
  %v1467 = vunpack.c.l.b16 %v439
  %v1468 = vunpack.c.l.b16 %v440
  %v1469 = vunpack.c.l.b16 %v441
  %v1470 = vunpack.c.l.b16 %v442
  %v1471 = vunpack.c.l.b16 %v443
  %v1472 = vunpack.c.l.b16 %v444
  %v1473 = vunpack.c.l.b16 %v445
  %v1474 = vunpack.c.l.b16 %v446
  %v1475 = vunpack.c.l.b16 %v447
  %v1476 = vunpack.c.l.b16 %v448
  %v1477 = vunpack.c.l.b16 %v449
  %v1478 = vunpack.c.l.b16 %v450
  %v1479 = vunpack.c.l.b16 %v451
  %v1480 = vunpack.c.l.b16 %v452
  %v1481 = vunpack.c.l.b16 %v453
  %v1482 = vunpack.c.l.b16 %v454
  %v1483 = vunpack.c.l.b16 %v455
  %v1484 = vunpack.c.l.b16 %v456
  %v1485 = vunpack.c.l.b16 %v457
  %v1486 = vunpack.c.l.b16 %v458
  %v1487 = vunpack.c.l.b16 %v459
  %v1488 = vunpack.c.l.b16 %v460
  %v1489 = vunpack.c.l.b16 %v461
  %v1490 = vunpack.c.l.b16 %v462
  %v1491 = vunpack.c.l.b16 %v463
  %v1492 = vunpack.c.l.b16 %v464
  %v1493 = vunpack.c.l.b16 %v465
  %v1494 = vunpack.c.l.b16 %v466
  %v1495 = vunpack.c.l.b16 %v467
  %v1496 = vunpack.c.l.b16 %v468
  %v1497 = vunpack.c.l.b16 %v469
  %v1498 = vunpack.c.l.b16 %v470
  %v1499 = vunpack.c.l.b16 %v471
  %v1500 = vunpack.c.l.b16 %v472
  %v1501 = vunpack.c.l.b16 %v473
  %v1502 = vunpack.c.l.b16 %v474
  %v1503 = vunpack.c.l.b16 %v475
  %v1504 = vunpack.c.l.b16 %v476
  %v1505 = vunpack.c.l.b16 %v477
  %v1506 = vunpack.c.l.b16 %v478
  %v1507 = vunpack.c.l.b16 %v479
  %v1508 = vunpack.c.l.b16 %v480
  %v1509 = vunpack.c.l.b16 %v481
  %v1510 = vunpack.c.l.b16 %v482
  %v1511 = vunpack.c.l.b16 %v483
  %v1512 = vunpack.c.l.b16 %v484
  %v1513 = vunpack.c.l.b16 %v485
  %v1514 = vunpack.c.l.b16 %v486
  %v1515 = vunpack.c.l.b16 %v487
  %v1516 = vunpack.c.l.b16 %v488
  %v1517 = vunpack.c.l.b16 %v489
  %v1518 = vunpack.c.l.b16 %v490
  %v1519 = vunpack.c.l.b16 %v491
  %v1520 = vunpack.c.l.b16 %v492
  %v1521 = vunpack.c.l.b16 %v493
  %v1522 = vunpack.c.l.b16 %v494
  %v1523 = vunpack.c.l.b16 %v495
  %v1524 = vunpack.c.l.b16 %v496
  %v1525 = vunpack.c.l.b16 %v497
  %v1526 = vunpack.c.l.b16 %v498
  %v1527 = vunpack.c.l.b16 %v499
  %v1528 = vunpack.c.l.b16 %v500
  %v1529 = vunpack.c.l.b16 %v501
  %v1530 = vunpack.c.l.b16 %v502
  %v1531 = vunpack.c.l.b16 %v503
  %v1532 = vunpack.c.l.b16 %v504
  %v1533 = vunpack.c.l.b16 %v505
  %v1534 = vunpack.c.l.b16 %v506
  %v1535 = vunpack.c.l.b16 %v507
  %v1536 = vunpack.c.l.b16 %v508
  %v1537 = vunpack.c.l.b16 %v509
  %v1538 = vunpack.c.l.b16 %v510
  %v1539 = vunpack.c.l.b16 %v511
  %v1540 = vunpack.c.l.b16 %v512
  %v1541 = vunpack.c.l.b16 %v513
  %v1542 = vunpack.c.l.b16 %v514
  %v1543 = vunpack.c.l.b16 %v515
  %v1544 = vunpack.c.l.b16 %v516
  %v1545 = vunpack.c.l.b16 %v517
  %v1546 = vunpack.c.l.b16 %v518
  %v1547 = vunpack.c.l.b16 %v519
  %v1548 = vunpack.c.l.b16 %v520
  %v1549 = vunpack.c.l.b16 %v521
  %v1550 = vunpack.c.l.b16 %v522
  %v1551 = vunpack.c.l.b16 %v523
  %v1552 = vunpack.c.l.b16 %v524
  %v1553 = vunpack.c.l.b16 %v525
  %v1554 = vunpack.c.l.b16 %v526
  %v1555 = vunpack.c.l.b16 %v527
  %v1556 = vunpack.c.l.b16 %v528
  %v1557 = vunpack.c.l.b16 %v529
  %v1558 = vunpack.c.l.b16 %v530
  %v1559 = vunpack.c.l.b16 %v531
  %v1560 = vunpack.c.l.b16 %v532
  %v1561 = vpack.c.b16 %v1050, %v1049
  %v1562 = vpack.c.b16 %v1052, %v1051
  %v1563 = vpack.c.b16 %v1054, %v1053
  %v1564 = vpack.c.b16 %v1056, %v1055
  %v1565 = vpack.c.b16 %v1058, %v1057
  %v1566 = vpack.c.b16 %v1060, %v1059
  %v1567 = vpack.c.b16 %v1062, %v1061
  %v1568 = vpack.c.b16 %v1064, %v1063
  %v1569 = vpack.c.b16 %v1066, %v1065
  %v1570 = vpack.c.b16 %v1068, %v1067
  %v1571 = vpack.c.b16 %v1070, %v1069
  %v1572 = vpack.c.b16 %v1072, %v1071
  %v1573 = vpack.c.b16 %v1074, %v1073
  %v1574 = vpack.c.b16 %v1076, %v1075
  %v1575 = vpack.c.b16 %v1078, %v1077
  %v1576 = vpack.c.b16 %v1080, %v1079
  %v1577 = vpack.c.b16 %v1082, %v1081
  %v1578 = vpack.c.b16 %v1084, %v1083
  %v1579 = vpack.c.b16 %v1086, %v1085
  %v1580 = vpack.c.b16 %v1088, %v1087
  %v1581 = vpack.c.b16 %v1090, %v1089
  %v1582 = vpack.c.b16 %v1092, %v1091
  %v1583 = vpack.c.b16 %v1094, %v1093
  %v1584 = vpack.c.b16 %v1096, %v1095
  %v1585 = vpack.c.b16 %v1098, %v1097
  %v1586 = vpack.c.b16 %v1100, %v1099
  %v1587 = vpack.c.b16 %v1102, %v1101
  %v1588 = vpack.c.b16 %v1104, %v1103
  %v1589 = vpack.c.b16 %v1106, %v1105
  %v1590 = vpack.c.b16 %v1108, %v1107
  %v1591 = vpack.c.b16 %v1110, %v1109
  %v1592 = vpack.c.b16 %v1112, %v1111
  %v1593 = vpack.c.b16 %v1114, %v1113
  %v1594 = vpack.c.b16 %v1116, %v1115
  %v1595 = vpack.c.b16 %v1118, %v1117
  %v1596 = vpack.c.b16 %v1120, %v1119
  %v1597 = vpack.c.b16 %v1122, %v1121
  %v1598 = vpack.c.b16 %v1124, %v1123
  %v1599 = vpack.c.b16 %v1126, %v1125
  %v1600 = vpack.c.b16 %v1128, %v1127
  %v1601 = vpack.c.b16 %v1130, %v1129
  %v1602 = vpack.c.b16 %v1132, %v1131
  %v1603 = vpack.c.b16 %v1134, %v1133
  %v1604 = vpack.c.b16 %v1136, %v1135
  %v1605 = vpack.c.b16 %v1138, %v1137
  %v1606 = vpack.c.b16 %v1140, %v1139
  %v1607 = vpack.c.b16 %v1142, %v1141
  %v1608 = vpack.c.b16 %v1144, %v1143
  %v1609 = vpack.c.b16 %v1146, %v1145
  %v1610 = vpack.c.b16 %v1148, %v1147
  %v1611 = vpack.c.b16 %v1150, %v1149
  %v1612 = vpack.c.b16 %v1152, %v1151
  %v1613 = vpack.c.b16 %v1154, %v1153
  %v1614 = vpack.c.b16 %v1156, %v1155
  %v1615 = vpack.c.b16 %v1158, %v1157
  %v1616 = vpack.c.b16 %v1160, %v1159
  %v1617 = vpack.c.b16 %v1162, %v1161
  %v1618 = vpack.c.b16 %v1164, %v1163
  %v1619 = vpack.c.b16 %v1166, %v1165
  %v1620 = vpack.c.b16 %v1168, %v1167
  %v1621 = vpack.c.b16 %v1170, %v1169
  %v1622 = vpack.c.b16 %v1172, %v1171
  %v1623 = vpack.c.b16 %v1174, %v1173
  %v1624 = vpack.c.b16 %v1176, %v1175
  %v1625 = vpack.c.b16 %v1178, %v1177
  %v1626 = vpack.c.b16 %v1180, %v1179
  %v1627 = vpack.c.b16 %v1182, %v1181
  %v1628 = vpack.c.b16 %v1184, %v1183
  %v1629 = vpack.c.b16 %v1186, %v1185
  %v1630 = vpack.c.b16 %v1188, %v1187
  %v1631 = vpack.c.b16 %v1190, %v1189
  %v1632 = vpack.c.b16 %v1192, %v1191
  %v1633 = vpack.c.b16 %v1194, %v1193
  %v1634 = vpack.c.b16 %v1196, %v1195
  %v1635 = vpack.c.b16 %v1198, %v1197
  %v1636 = vpack.c.b16 %v1200, %v1199
  %v1637 = vpack.c.b16 %v1202, %v1201
  %v1638 = vpack.c.b16 %v1204, %v1203
  %v1639 = vpack.c.b16 %v1206, %v1205
  %v1640 = vpack.c.b16 %v1208, %v1207
  %v1641 = vpack.c.b16 %v1210, %v1209
  %v1642 = vpack.c.b16 %v1212, %v1211
  %v1643 = vpack.c.b16 %v1214, %v1213
  %v1644 = vpack.c.b16 %v1216, %v1215
  %v1645 = vpack.c.b16 %v1218, %v1217
  %v1646 = vpack.c.b16 %v1220, %v1219
  %v1647 = vpack.c.b16 %v1222, %v1221
  %v1648 = vpack.c.b16 %v1224, %v1223
  %v1649 = vpack.c.b16 %v1226, %v1225
  %v1650 = vpack.c.b16 %v1228, %v1227
  %v1651 = vpack.c.b16 %v1230, %v1229
  %v1652 = vpack.c.b16 %v1232, %v1231
  %v1653 = vpack.c.b16 %v1234, %v1233
  %v1654 = vpack.c.b16 %v1236, %v1235
  %v1655 = vpack.c.b16 %v1238, %v1237
  %v1656 = vpack.c.b16 %v1240, %v1239
  %v1657 = vpack.c.b16 %v1242, %v1241
  %v1658 = vpack.c.b16 %v1244, %v1243
  %v1659 = vpack.c.b16 %v1246, %v1245
  %v1660 = vpack.c.b16 %v1248, %v1247
  %v1661 = vpack.c.b16 %v1250, %v1249
  %v1662 = vpack.c.b16 %v1252, %v1251
  %v1663 = vpack.c.b16 %v1254, %v1253
  %v1664 = vpack.c.b16 %v1256, %v1255
  %v1665 = vpack.c.b16 %v1258, %v1257
  %v1666 = vpack.c.b16 %v1260, %v1259
  %v1667 = vpack.c.b16 %v1262, %v1261
  %v1668 = vpack.c.b16 %v1264, %v1263
  %v1669 = vpack.c.b16 %v1266, %v1265
  %v1670 = vpack.c.b16 %v1268, %v1267
  %v1671 = vpack.c.b16 %v1270, %v1269
  %v1672 = vpack.c.b16 %v1272, %v1271
  %v1673 = vpack.c.b16 %v1274, %v1273
  %v1674 = vpack.c.b16 %v1276, %v1275
  %v1675 = vpack.c.b16 %v1278, %v1277
  %v1676 = vpack.c.b16 %v1280, %v1279
  %v1677 = vpack.c.b16 %v1282, %v1281
  %v1678 = vpack.c.b16 %v1284, %v1283
  %v1679 = vpack.c.b16 %v1286, %v1285
  %v1680 = vpack.c.b16 %v1288, %v1287
  %v1681 = vpack.c.b16 %v1290, %v1289
  %v1682 = vpack.c.b16 %v1292, %v1291
  %v1683 = vpack.c.b16 %v1294, %v1293
  %v1684 = vpack.c.b16 %v1296, %v1295
  %v1685 = vpack.c.b16 %v1298, %v1297
  %v1686 = vpack.c.b16 %v1300, %v1299
  %v1687 = vpack.c.b16 %v1302, %v1301
  %v1688 = vpack.c.b16 %v1304, %v1303
  %v1689 = vpack.c.b16 %v1306, %v1305
  %v1690 = vpack.c.b16 %v1308, %v1307
  %v1691 = vpack.c.b16 %v1310, %v1309
  %v1692 = vpack.c.b16 %v1312, %v1311
  %v1693 = vpack.c.b16 %v1314, %v1313
  %v1694 = vpack.c.b16 %v1316, %v1315
  %v1695 = vpack.c.b16 %v1318, %v1317
  %v1696 = vpack.c.b16 %v1320, %v1319
  %v1697 = vpack.c.b16 %v1322, %v1321
  %v1698 = vpack.c.b16 %v1324, %v1323
  %v1699 = vpack.c.b16 %v1326, %v1325
  %v1700 = vpack.c.b16 %v1328, %v1327
  %v1701 = vpack.c.b16 %v1330, %v1329
  %v1702 = vpack.c.b16 %v1332, %v1331
  %v1703 = vpack.c.b16 %v1334, %v1333
  %v1704 = vpack.c.b16 %v1336, %v1335
  %v1705 = vpack.c.b16 %v1338, %v1337
  %v1706 = vpack.c.b16 %v1340, %v1339
  %v1707 = vpack.c.b16 %v1342, %v1341
  %v1708 = vpack.c.b16 %v1344, %v1343
  %v1709 = vpack.c.b16 %v1346, %v1345
  %v1710 = vpack.c.b16 %v1348, %v1347
  %v1711 = vpack.c.b16 %v1350, %v1349
  %v1712 = vpack.c.b16 %v1352, %v1351
  %v1713 = vpack.c.b16 %v1354, %v1353
  %v1714 = vpack.c.b16 %v1356, %v1355
  %v1715 = vpack.c.b16 %v1358, %v1357
  %v1716 = vpack.c.b16 %v1360, %v1359
  %v1717 = vpack.c.b16 %v1362, %v1361
  %v1718 = vpack.c.b16 %v1364, %v1363
  %v1719 = vpack.c.b16 %v1366, %v1365
  %v1720 = vpack.c.b16 %v1368, %v1367
  %v1721 = vpack.c.b16 %v1370, %v1369
  %v1722 = vpack.c.b16 %v1372, %v1371
  %v1723 = vpack.c.b16 %v1374, %v1373
  %v1724 = vpack.c.b16 %v1376, %v1375
  %v1725 = vpack.c.b16 %v1378, %v1377
  %v1726 = vpack.c.b16 %v1380, %v1379
  %v1727 = vpack.c.b16 %v1382, %v1381
  %v1728 = vpack.c.b16 %v1384, %v1383
  %v1729 = vpack.c.b16 %v1386, %v1385
  %v1730 = vpack.c.b16 %v1388, %v1387
  %v1731 = vpack.c.b16 %v1390, %v1389
  %v1732 = vpack.c.b16 %v1392, %v1391
  %v1733 = vpack.c.b16 %v1394, %v1393
  %v1734 = vpack.c.b16 %v1396, %v1395
  %v1735 = vpack.c.b16 %v1398, %v1397
  %v1736 = vpack.c.b16 %v1400, %v1399
  %v1737 = vpack.c.b16 %v1402, %v1401
  %v1738 = vpack.c.b16 %v1404, %v1403
  %v1739 = vpack.c.b16 %v1406, %v1405
  %v1740 = vpack.c.b16 %v1408, %v1407
  %v1741 = vpack.c.b16 %v1410, %v1409
  %v1742 = vpack.c.b16 %v1412, %v1411
  %v1743 = vpack.c.b16 %v1414, %v1413
  %v1744 = vpack.c.b16 %v1416, %v1415
  %v1745 = vpack.c.b16 %v1418, %v1417
  %v1746 = vpack.c.b16 %v1420, %v1419
  %v1747 = vpack.c.b16 %v1422, %v1421
  %v1748 = vpack.c.b16 %v1424, %v1423
  %v1749 = vpack.c.b16 %v1426, %v1425
  %v1750 = vpack.c.b16 %v1428, %v1427
  %v1751 = vpack.c.b16 %v1430, %v1429
  %v1752 = vpack.c.b16 %v1432, %v1431
  %v1753 = vpack.c.b16 %v1434, %v1433
  %v1754 = vpack.c.b16 %v1436, %v1435
  %v1755 = vpack.c.b16 %v1438, %v1437
  %v1756 = vpack.c.b16 %v1440, %v1439
  %v1757 = vpack.c.b16 %v1442, %v1441
  %v1758 = vpack.c.b16 %v1444, %v1443
  %v1759 = vpack.c.b16 %v1446, %v1445
  %v1760 = vpack.c.b16 %v1448, %v1447
  %v1761 = vpack.c.b16 %v1450, %v1449
  %v1762 = vpack.c.b16 %v1452, %v1451
  %v1763 = vpack.c.b16 %v1454, %v1453
  %v1764 = vpack.c.b16 %v1456, %v1455
  %v1765 = vpack.c.b16 %v1458, %v1457
  %v1766 = vpack.c.b16 %v1460, %v1459
  %v1767 = vpack.c.b16 %v1462, %v1461
  %v1768 = vpack.c.b16 %v1464, %v1463
  %v1769 = vpack.c.b16 %v1466, %v1465
  %v1770 = vpack.c.b16 %v1468, %v1467
  %v1771 = vpack.c.b16 %v1470, %v1469
  %v1772 = vpack.c.b16 %v1472, %v1471
  %v1773 = vpack.c.b16 %v1474, %v1473
  %v1774 = vpack.c.b16 %v1476, %v1475
  %v1775 = vpack.c.b16 %v1478, %v1477
  %v1776 = vpack.c.b16 %v1480, %v1479
  %v1777 = vpack.c.b16 %v1482, %v1481
  %v1778 = vpack.c.b16 %v1484, %v1483
  %v1779 = vpack.c.b16 %v1486, %v1485
  %v1780 = vpack.c.b16 %v1488, %v1487
  %v1781 = vpack.c.b16 %v1490, %v1489
  %v1782 = vpack.c.b16 %v1492, %v1491
  %v1783 = vpack.c.b16 %v1494, %v1493
  %v1784 = vpack.c.b16 %v1496, %v1495
  %v1785 = vpack.c.b16 %v1498, %v1497
  %v1786 = vpack.c.b16 %v1500, %v1499
  %v1787 = vpack.c.b16 %v1502, %v1501
  %v1788 = vpack.c.b16 %v1504, %v1503
  %v1789 = vpack.c.b16 %v1506, %v1505
  %v1790 = vpack.c.b16 %v1508, %v1507
  %v1791 = vpack.c.b16 %v1510, %v1509
  %v1792 = vpack.c.b16 %v1512, %v1511
  %v1793 = vpack.c.b16 %v1514, %v1513
  %v1794 = vpack.c.b16 %v1516, %v1515
  %v1795 = vpack.c.b16 %v1518, %v1517
  %v1796 = vpack.c.b16 %v1520, %v1519
  %v1797 = vpack.c.b16 %v1522, %v1521
  %v1798 = vpack.c.b16 %v1524, %v1523
  %v1799 = vpack.c.b16 %v1526, %v1525
  %v1800 = vpack.c.b16 %v1528, %v1527
  %v1801 = vpack.c.b16 %v1530, %v1529
  %v1802 = vpack.c.b16 %v1532, %v1531
  %v1803 = vpack.c.b16 %v1534, %v1533
  %v1804 = vpack.c.b16 %v1536, %v1535
  %v1805 = vpack.c.b16 %v1538, %v1537
  %v1806 = vpack.c.b16 %v1540, %v1539
  %v1807 = vpack.c.b16 %v1542, %v1541
  %v1808 = vpack.c.b16 %v1544, %v1543
  %v1809 = vpack.c.b16 %v1546, %v1545
  %v1810 = vpack.c.b16 %v1548, %v1547
  %v1811 = vpack.c.b16 %v1550, %v1549
  %v1812 = vpack.c.b16 %v1552, %v1551
  %v1813 = vpack.c.b16 %v1554, %v1553
  %v1814 = vpack.c.b16 %v1556, %v1555
  %v1815 = vpack.c.b16 %v1558, %v1557
  %v1816 = vpack.c.b16 %v1560, %v1559
  %v1821 = vunpack.c.l.b16 %v533
  %v1822 = vunpack.c.l.b16 %v534
  %v1823 = vunpack.c.l.b16 %v535
  %v1824 = vunpack.c.l.b16 %v536
  %v1825 = vpack.c.b16 %v1822, %v1821
  %v1826 = vpack.c.b16 %v1824, %v1823
  %vm1828 = vcmask 203776
  %v1830 = vsel %vm1828, %v1561, 0
  %v1833 = vsel %vm1828, %v1562, 0
  %v1836 = vsel %vm1828, %v1563, 0
  %v1839 = vsel %vm1828, %v1564, 0
  %v1842 = vsel %vm1828, %v1565, 0
  %v1845 = vsel %vm1828, %v1566, 0
  %v1848 = vsel %vm1828, %v1567, 0
  %v1851 = vsel %vm1828, %v1568, 0
  %v1854 = vsel %vm1828, %v1569, 0
  %v1857 = vsel %vm1828, %v1570, 0
  %v1860 = vsel %vm1828, %v1571, 0
  %v1863 = vsel %vm1828, %v1572, 0
  %v1866 = vsel %vm1828, %v1573, 0
  %v1869 = vsel %vm1828, %v1574, 0
  %v1872 = vsel %vm1828, %v1575, 0
  %v1875 = vsel %vm1828, %v1576, 0
  %v1878 = vsel %vm1828, %v1577, 0
  %v1881 = vsel %vm1828, %v1578, 0
  %v1884 = vsel %vm1828, %v1579, 0
  %v1887 = vsel %vm1828, %v1580, 0
  %v1890 = vsel %vm1828, %v1581, 0
  %v1893 = vsel %vm1828, %v1582, 0
  %v1896 = vsel %vm1828, %v1583, 0
  %v1899 = vsel %vm1828, %v1584, 0
  %v1902 = vsel %vm1828, %v1585, 0
  %v1905 = vsel %vm1828, %v1586, 0
  %v1908 = vsel %vm1828, %v1587, 0
  %v1911 = vsel %vm1828, %v1588, 0
  %v1914 = vsel %vm1828, %v1589, 0
  %v1917 = vsel %vm1828, %v1590, 0
  %v1920 = vsel %vm1828, %v1591, 0
  %v1923 = vsel %vm1828, %v1592, 0
  %v1926 = vsel %vm1828, %v1593, 0
  %v1929 = vsel %vm1828, %v1594, 0
  %v1932 = vsel %vm1828, %v1595, 0
  %v1935 = vsel %vm1828, %v1596, 0
  %v1938 = vsel %vm1828, %v1597, 0
  %v1941 = vsel %vm1828, %v1598, 0
  %v1944 = vsel %vm1828, %v1599, 0
  %v1947 = vsel %vm1828, %v1600, 0
  %v1950 = vsel %vm1828, %v1601, 0
  %v1953 = vsel %vm1828, %v1602, 0
  %v1956 = vsel %vm1828, %v1603, 0
  %v1959 = vsel %vm1828, %v1604, 0
  %v1962 = vsel %vm1828, %v1605, 0
  %v1965 = vsel %vm1828, %v1606, 0
  %v1968 = vsel %vm1828, %v1607, 0
  %v1971 = vsel %vm1828, %v1608, 0
  %v1974 = vsel %vm1828, %v1609, 0
  %v1977 = vsel %vm1828, %v1610, 0
  %v1980 = vsel %vm1828, %v1611, 0
  %v1983 = vsel %vm1828, %v1612, 0
  %v1986 = vsel %vm1828, %v1613, 0
  %v1989 = vsel %vm1828, %v1614, 0
  %v1992 = vsel %vm1828, %v1615, 0
  %v1995 = vsel %vm1828, %v1616, 0
  %v1998 = vsel %vm1828, %v1617, 0
  %v2001 = vsel %vm1828, %v1618, 0
  %v2004 = vsel %vm1828, %v1619, 0
  %v2007 = vsel %vm1828, %v1620, 0
  %v2010 = vsel %vm1828, %v1621, 0
  %v2013 = vsel %vm1828, %v1622, 0
  %v2016 = vsel %vm1828, %v1623, 0
  %v2019 = vsel %vm1828, %v1624, 0
  %v2022 = vsel %vm1828, %v1625, 0
  %v2025 = vsel %vm1828, %v1626, 0
  %v2028 = vsel %vm1828, %v1627, 0
  %v2031 = vsel %vm1828, %v1628, 0
  %v2034 = vsel %vm1828, %v1629, 0
  %v2037 = vsel %vm1828, %v1630, 0
  %v2040 = vsel %vm1828, %v1631, 0
  %v2043 = vsel %vm1828, %v1632, 0
  %v2046 = vsel %vm1828, %v1633, 0
  %v2049 = vsel %vm1828, %v1634, 0
  %v2052 = vsel %vm1828, %v1635, 0
  %v2055 = vsel %vm1828, %v1636, 0
  %v2058 = vsel %vm1828, %v1637, 0
  %v2061 = vsel %vm1828, %v1638, 0
  %v2064 = vsel %vm1828, %v1639, 0
  %v2067 = vsel %vm1828, %v1640, 0
  %v2070 = vsel %vm1828, %v1641, 0
  %v2073 = vsel %vm1828, %v1642, 0
  %v2076 = vsel %vm1828, %v1643, 0
  %v2079 = vsel %vm1828, %v1644, 0
  %v2082 = vsel %vm1828, %v1645, 0
  %v2085 = vsel %vm1828, %v1646, 0
  %v2088 = vsel %vm1828, %v1647, 0
  %v2091 = vsel %vm1828, %v1648, 0
  %v2094 = vsel %vm1828, %v1649, 0
  %v2097 = vsel %vm1828, %v1650, 0
  %v2100 = vsel %vm1828, %v1651, 0
  %v2103 = vsel %vm1828, %v1652, 0
  %v2106 = vsel %vm1828, %v1653, 0
  %v2109 = vsel %vm1828, %v1654, 0
  %v2112 = vsel %vm1828, %v1655, 0
  %v2115 = vsel %vm1828, %v1656, 0
  %v2118 = vsel %vm1828, %v1657, 0
  %v2121 = vsel %vm1828, %v1658, 0
  %v2124 = vsel %vm1828, %v1659, 0
  %v2127 = vsel %vm1828, %v1660, 0
  %v2130 = vsel %vm1828, %v1661, 0
  %v2133 = vsel %vm1828, %v1662, 0
  %v2136 = vsel %vm1828, %v1663, 0
  %v2139 = vsel %vm1828, %v1664, 0
  %v2142 = vsel %vm1828, %v1665, 0
  %v2145 = vsel %vm1828, %v1666, 0
  %v2148 = vsel %vm1828, %v1667, 0
  %v2151 = vsel %vm1828, %v1668, 0
  %v2154 = vsel %vm1828, %v1669, 0
  %v2157 = vsel %vm1828, %v1670, 0
  %v2160 = vsel %vm1828, %v1671, 0
  %v2163 = vsel %vm1828, %v1672, 0
  %v2166 = vsel %vm1828, %v1673, 0
  %v2169 = vsel %vm1828, %v1674, 0
  %v2172 = vsel %vm1828, %v1675, 0
  %v2175 = vsel %vm1828, %v1676, 0
  %v2178 = vsel %vm1828, %v1677, 0
  %v2181 = vsel %vm1828, %v1678, 0
  %v2184 = vsel %vm1828, %v1679, 0
  %v2187 = vsel %vm1828, %v1680, 0
  %v2190 = vsel %vm1828, %v1681, 0
  %v2193 = vsel %vm1828, %v1682, 0
  %v2196 = vsel %vm1828, %v1683, 0
  %v2199 = vsel %vm1828, %v1684, 0
  %v2202 = vsel %vm1828, %v1685, 0
  %v2205 = vsel %vm1828, %v1686, 0
  %v2208 = vsel %vm1828, %v1687, 0
  %v2211 = vsel %vm1828, %v1688, 0
  %v2214 = vsel %vm1828, %v1689, 0
  %v2217 = vsel %vm1828, %v1690, 0
  %v2220 = vsel %vm1828, %v1691, 0
  %v2223 = vsel %vm1828, %v1692, 0
  %v2226 = vsel %vm1828, %v1693, 0
  %v2229 = vsel %vm1828, %v1694, 0
  %v2232 = vsel %vm1828, %v1695, 0
  %v2235 = vsel %vm1828, %v1696, 0
  %v2238 = vsel %vm1828, %v1697, 0
  %v2241 = vsel %vm1828, %v1698, 0
  %v2244 = vsel %vm1828, %v1699, 0
  %v2247 = vsel %vm1828, %v1700, 0
  %v2250 = vsel %vm1828, %v1701, 0
  %v2253 = vsel %vm1828, %v1702, 0
  %v2256 = vsel %vm1828, %v1703, 0
  %v2259 = vsel %vm1828, %v1704, 0
  %v2262 = vsel %vm1828, %v1705, 0
  %v2265 = vsel %vm1828, %v1706, 0
  %v2268 = vsel %vm1828, %v1707, 0
  %v2271 = vsel %vm1828, %v1708, 0
  %v2274 = vsel %vm1828, %v1709, 0
  %v2277 = vsel %vm1828, %v1710, 0
  %v2280 = vsel %vm1828, %v1711, 0
  %v2283 = vsel %vm1828, %v1712, 0
  %v2286 = vsel %vm1828, %v1713, 0
  %v2289 = vsel %vm1828, %v1714, 0
  %v2292 = vsel %vm1828, %v1715, 0
  %v2295 = vsel %vm1828, %v1716, 0
  %v2298 = vsel %vm1828, %v1717, 0
  %v2301 = vsel %vm1828, %v1718, 0
  %v2304 = vsel %vm1828, %v1719, 0
  %v2307 = vsel %vm1828, %v1720, 0
  %v2310 = vsel %vm1828, %v1721, 0
  %v2313 = vsel %vm1828, %v1722, 0
  %v2316 = vsel %vm1828, %v1723, 0
  %v2319 = vsel %vm1828, %v1724, 0
  %v2322 = vsel %vm1828, %v1725, 0
  %v2325 = vsel %vm1828, %v1726, 0
  %v2328 = vsel %vm1828, %v1727, 0
  %v2331 = vsel %vm1828, %v1728, 0
  %v2334 = vsel %vm1828, %v1729, 0
  %v2337 = vsel %vm1828, %v1730, 0
  %v2340 = vsel %vm1828, %v1731, 0
  %v2343 = vsel %vm1828, %v1732, 0
  %v2346 = vsel %vm1828, %v1733, 0
  %v2349 = vsel %vm1828, %v1734, 0
  %v2352 = vsel %vm1828, %v1735, 0
  %v2355 = vsel %vm1828, %v1736, 0
  %v2358 = vsel %vm1828, %v1737, 0
  %v2361 = vsel %vm1828, %v1738, 0
  %v2364 = vsel %vm1828, %v1739, 0
  %v2367 = vsel %vm1828, %v1740, 0
  %v2370 = vsel %vm1828, %v1741, 0
  %v2373 = vsel %vm1828, %v1742, 0
  %v2376 = vsel %vm1828, %v1743, 0
  %v2379 = vsel %vm1828, %v1744, 0
  %v2382 = vsel %vm1828, %v1745, 0
  %v2385 = vsel %vm1828, %v1746, 0
  %v2388 = vsel %vm1828, %v1747, 0
  %v2391 = vsel %vm1828, %v1748, 0
  %v2394 = vsel %vm1828, %v1749, 0
  %v2397 = vsel %vm1828, %v1750, 0
  %v2400 = vsel %vm1828, %v1751, 0
  %v2403 = vsel %vm1828, %v1752, 0
  %v2406 = vsel %vm1828, %v1753, 0
  %v2409 = vsel %vm1828, %v1754, 0
  %v2412 = vsel %vm1828, %v1755, 0
  %v2415 = vsel %vm1828, %v1756, 0
  %v2418 = vsel %vm1828, %v1757, 0
  %v2421 = vsel %vm1828, %v1758, 0
  %v2424 = vsel %vm1828, %v1759, 0
  %v2427 = vsel %vm1828, %v1760, 0
  %v2430 = vsel %vm1828, %v1761, 0
  %v2433 = vsel %vm1828, %v1762, 0
  %v2436 = vsel %vm1828, %v1763, 0
  %v2439 = vsel %vm1828, %v1764, 0
  %v2442 = vsel %vm1828, %v1765, 0
  %v2445 = vsel %vm1828, %v1766, 0
  %v2448 = vsel %vm1828, %v1767, 0
  %v2451 = vsel %vm1828, %v1768, 0
  %v2454 = vsel %vm1828, %v1769, 0
  %v2457 = vsel %vm1828, %v1770, 0
  %v2460 = vsel %vm1828, %v1771, 0
  %v2463 = vsel %vm1828, %v1772, 0
  %v2466 = vsel %vm1828, %v1773, 0
  %v2469 = vsel %vm1828, %v1774, 0
  %v2472 = vsel %vm1828, %v1775, 0
  %v2475 = vsel %vm1828, %v1776, 0
  %v2478 = vsel %vm1828, %v1777, 0
  %v2481 = vsel %vm1828, %v1778, 0
  %v2484 = vsel %vm1828, %v1779, 0
  %v2487 = vsel %vm1828, %v1780, 0
  %v2490 = vsel %vm1828, %v1781, 0
  %v2493 = vsel %vm1828, %v1782, 0
  %v2496 = vsel %vm1828, %v1783, 0
  %v2499 = vsel %vm1828, %v1784, 0
  %v2502 = vsel %vm1828, %v1785, 0
  %v2505 = vsel %vm1828, %v1786, 0
  %v2508 = vsel %vm1828, %v1787, 0
  %v2511 = vsel %vm1828, %v1788, 0
  %v2514 = vsel %vm1828, %v1789, 0
  %v2517 = vsel %vm1828, %v1790, 0
  %v2520 = vsel %vm1828, %v1791, 0
  %v2523 = vsel %vm1828, %v1792, 0
  %v2526 = vsel %vm1828, %v1793, 0
  %v2529 = vsel %vm1828, %v1794, 0
  %v2532 = vsel %vm1828, %v1795, 0
  %v2535 = vsel %vm1828, %v1796, 0
  %v2538 = vsel %vm1828, %v1797, 0
  %v2541 = vsel %vm1828, %v1798, 0
  %v2544 = vsel %vm1828, %v1799, 0
  %v2547 = vsel %vm1828, %v1800, 0
  %v2550 = vsel %vm1828, %v1801, 0
  %v2553 = vsel %vm1828, %v1802, 0
  %v2556 = vsel %vm1828, %v1803, 0
  %v2559 = vsel %vm1828, %v1804, 0
  %v2562 = vsel %vm1828, %v1805, 0
  %v2565 = vsel %vm1828, %v1806, 0
  %v2568 = vsel %vm1828, %v1807, 0
  %v2571 = vsel %vm1828, %v1808, 0
  %v2574 = vsel %vm1828, %v1809, 0
  %v2577 = vsel %vm1828, %v1810, 0
  %v2580 = vsel %vm1828, %v1811, 0
  %v2583 = vsel %vm1828, %v1812, 0
  %v2586 = vsel %vm1828, %v1813, 0
  %v2589 = vsel %vm1828, %v1814, 0
  %v2592 = vsel %vm1828, %v1815, 0
  %v2595 = vsel %vm1828, %v1816, 0
  %vm2597 = vcmask 1043456
  %vm2598 = vcmask 1044480
  %v2599 = vsel %vm2597, 4294967295, 65535
  %v2600 = vsel %vm2598, %v2599, 0
  %v2602 = vand.u32 %v1826, %v2600
  %2604 = vmatprep.subr.bf16.mxu0 0
  %2605 = vmatpush1.bf16.msra.mxu0 %v1825
  %2606 = vmatprep.subr.bf16.mxu0 0
  %2607 = vmatpush1.bf16.msra.mxu0 %v2602
  %2608 = vmatprep.subr.bf16.mxu0 0
  %2609 = vmatpush1.bf16.msra.mxu0 0
  %2610 = vmatprep.subr.bf16.mxu0 0
  %2611 = vmatpush1.bf16.msra.mxu0 0
  %2612 = vmatprep.subr.bf16.mxu0 0
  %2613 = vmatpush1.bf16.msra.mxu0 0
  %2614 = vmatprep.subr.bf16.mxu0 0
  %2615 = vmatpush1.bf16.msra.mxu0 0
  %2616 = vmatprep.subr.bf16.mxu0 0
  %2617 = vmatpush1.bf16.msra.mxu0 0
  %2618 = vmatprep.subr.bf16.mxu0 0
  %2619 = vmatpush1.bf16.msra.mxu0 0
  %2620 = vmatprep.subr.bf16.mxu0 0
  %2621 = vmatpush1.bf16.msra.mxu0 0
  %2622 = vmatprep.subr.bf16.mxu0 0
  %2623 = vmatpush1.bf16.msra.mxu0 0
  %2624 = vmatprep.subr.bf16.mxu0 0
  %2625 = vmatpush1.bf16.msra.mxu0 0
  %2626 = vmatprep.subr.bf16.mxu0 0
  %2627 = vmatpush1.bf16.msra.mxu0 0
  %2628 = vmatprep.subr.bf16.mxu0 0
  %2629 = vmatpush1.bf16.msra.mxu0 0
  %2630 = vmatprep.subr.bf16.mxu0 0
  %2631 = vmatpush1.bf16.msra.mxu0 0
  %2632 = vmatprep.subr.bf16.mxu0 0
  %2633 = vmatpush1.bf16.msra.mxu0 0
  %2634 = vmatprep.subr.bf16.mxu0 0
  %2635 = vmatpush1.bf16.msra.mxu0 0
  %2636 = vmatprep.mubr.bf16.mxu0 0
  %2637 = vmatmul.mubr.bf16.gmra.mrb[0].mxu0 %v1830
  %v2638 = vpop.f32.mrb[0].mxu0
  %v2639 = vadd.f32 0.0, %v2638
  %v2640 = vpop.f32.mrb[0].mxu0
  %v2641 = vpop.f32.mrb[0].mxu0
  %v2642 = vadd.f32 0.0, %v2641
  %v2643 = vpop.f32.mrb[0].mxu0
  %2644 = vmatprep.mubr.bf16.mxu0 0
  %2645 = vmatmul.mubr.bf16.gmra.mrb[0].mxu0 %v1833
  %v2646 = vpop.f32.mrb[0].mxu0
  %v2647 = vadd.f32 0.0, %v2646
  %v2648 = vpop.f32.mrb[0].mxu0
  %v2649 = vpop.f32.mrb[0].mxu0
  %v2650 = vadd.f32 0.0, %v2649
  %v2651 = vpop.f32.mrb[0].mxu0
  %2652 = vmatprep.mubr.bf16.mxu0 0
  %2653 = vmatmul.mubr.bf16.gmra.mrb[0].mxu0 %v1836
  %v2654 = vpop.f32.mrb[0].mxu0
  %v2655 = vadd.f32 0.0, %v2654
  %v2656 = vpop.f32.mrb[0].mxu0
  %v2657 = vpop.f32.mrb[0].mxu0
  %v2658 = vadd.f32 0.0, %v2657
  %v2659 = vpop.f32.mrb[0].mxu0
  %2660 = vmatprep.mubr.bf16.mxu0 0
  %2661 = vmatmul.mubr.bf16.gmra.mrb[0].mxu0 %v1839
  %v2662 = vpop.f32.mrb[0].mxu0
  %v2663 = vadd.f32 0.0, %v2662
  %v2664 = vpop.f32.mrb[0].mxu0
  %v2665 = vpop.f32.mrb[0].mxu0
  %v2666 = vadd.f32 0.0, %v2665
  %v2667 = vpop.f32.mrb[0].mxu0
  %2668 = vmatprep.mubr.bf16.mxu0 0
  %2669 = vmatmul.mubr.bf16.gmra.mrb[0].mxu0 %v1842
  %v2670 = vpop.f32.mrb[0].mxu0
  %v2671 = vadd.f32 0.0, %v2670
  %v2672 = vpop.f32.mrb[0].mxu0
  %v2673 = vpop.f32.mrb[0].mxu0
  %v2674 = vadd.f32 0.0, %v2673
  %v2675 = vpop.f32.mrb[0].mxu0
  %2676 = vmatprep.mubr.bf16.mxu0 0
  %2677 = vmatmul.mubr.bf16.gmra.mrb[0].mxu0 %v1845
  %v2678 = vpop.f32.mrb[0].mxu0
  %v2679 = vadd.f32 0.0, %v2678
  %v2680 = vpop.f32.mrb[0].mxu0
  %v2681 = vpop.f32.mrb[0].mxu0
  %v2682 = vadd.f32 0.0, %v2681
  %v2683 = vpop.f32.mrb[0].mxu0
  %2684 = vmatprep.mubr.bf16.mxu0 0
  %2685 = vmatmul.mubr.bf16.gmra.mrb[0].mxu0 %v1848
  %v2686 = vpop.f32.mrb[0].mxu0
  %v2687 = vadd.f32 0.0, %v2686
  %v2688 = vpop.f32.mrb[0].mxu0
  %v2689 = vpop.f32.mrb[0].mxu0
  %v2690 = vadd.f32 0.0, %v2689
  %v2691 = vpop.f32.mrb[0].mxu0
  %2692 = vmatprep.mubr.bf16.mxu0 0
  %2693 = vmatmul.mubr.bf16.gmra.mrb[0].mxu0 %v1851
  %v2694 = vpop.f32.mrb[0].mxu0
  %v2695 = vadd.f32 0.0, %v2694
  %v2696 = vpop.f32.mrb[0].mxu0
  %v2697 = vpop.f32.mrb[0].mxu0
  %v2698 = vadd.f32 0.0, %v2697
  %v2699 = vpop.f32.mrb[0].mxu0
  %2700 = vmatprep.mubr.bf16.mxu0 0
  %2701 = vmatmul.mubr.bf16.gmra.mrb[0].mxu0 %v1854
  %v2702 = vpop.f32.mrb[0].mxu0
  %v2703 = vadd.f32 0.0, %v2702
  %v2704 = vpop.f32.mrb[0].mxu0
  %v2705 = vpop.f32.mrb[0].mxu0
  %v2706 = vadd.f32 0.0, %v2705
  %v2707 = vpop.f32.mrb[0].mxu0
  %2708 = vmatprep.mubr.bf16.mxu0 0
  %2709 = vmatmul.mubr.bf16.gmra.mrb[0].mxu0 %v1857
  %v2710 = vpop.f32.mrb[0].mxu0
  %v2711 = vadd.f32 0.0, %v2710
  %v2712 = vpop.f32.mrb[0].mxu0
  %v2713 = vpop.f32.mrb[0].mxu0
  %v2714 = vadd.f32 0.0, %v2713
  %v2715 = vpop.f32.mrb[0].mxu0
  %2716 = vmatprep.mubr.bf16.mxu0 0
  %2717 = vmatmul.mubr.bf16.gmra.mrb[0].mxu0 %v1860
  %v2718 = vpop.f32.mrb[0].mxu0
  %v2719 = vadd.f32 0.0, %v2718
  %v2720 = vpop.f32.mrb[0].mxu0
  %v2721 = vpop.f32.mrb[0].mxu0
  %v2722 = vadd.f32 0.0, %v2721
  %v2723 = vpop.f32.mrb[0].mxu0
  %2724 = vmatprep.mubr.bf16.mxu0 0
  %2725 = vmatmul.mubr.bf16.gmra.mrb[0].mxu0 %v1863
  %v2726 = vpop.f32.mrb[0].mxu0
  %v2727 = vadd.f32 0.0, %v2726
  %v2728 = vpop.f32.mrb[0].mxu0
  %v2729 = vpop.f32.mrb[0].mxu0
  %v2730 = vadd.f32 0.0, %v2729
  %v2731 = vpop.f32.mrb[0].mxu0
  %2732 = vmatprep.mubr.bf16.mxu0 0
  %2733 = vmatmul.mubr.bf16.gmra.mrb[0].mxu0 %v1866
  %v2734 = vpop.f32.mrb[0].mxu0
  %v2735 = vadd.f32 0.0, %v2734
  %v2736 = vpop.f32.mrb[0].mxu0
  %v2737 = vpop.f32.mrb[0].mxu0
  %v2738 = vadd.f32 0.0, %v2737
  %v2739 = vpop.f32.mrb[0].mxu0
  %2740 = vmatprep.mubr.bf16.mxu0 0
  %2741 = vmatmul.mubr.bf16.gmra.mrb[0].mxu0 %v1869
  %v2742 = vpop.f32.mrb[0].mxu0
  %v2743 = vadd.f32 0.0, %v2742
  %v2744 = vpop.f32.mrb[0].mxu0
  %v2745 = vpop.f32.mrb[0].mxu0
  %v2746 = vadd.f32 0.0, %v2745
  %v2747 = vpop.f32.mrb[0].mxu0
  %2748 = vmatprep.mubr.bf16.mxu0 0
  %2749 = vmatmul.mubr.bf16.gmra.mrb[0].mxu0 %v1872
  %v2750 = vpop.f32.mrb[0].mxu0
  %v2751 = vadd.f32 0.0, %v2750
  %v2752 = vpop.f32.mrb[0].mxu0
  %v2753 = vpop.f32.mrb[0].mxu0
  %v2754 = vadd.f32 0.0, %v2753
  %v2755 = vpop.f32.mrb[0].mxu0
  %2756 = vmatprep.mubr.bf16.mxu0 0
  %2757 = vmatmul.mubr.bf16.gmra.mrb[0].mxu0 %v1875
  %v2758 = vpop.f32.mrb[0].mxu0
  %v2759 = vadd.f32 0.0, %v2758
  %v2760 = vpop.f32.mrb[0].mxu0
  %v2761 = vpop.f32.mrb[0].mxu0
  %v2762 = vadd.f32 0.0, %v2761
  %v2763 = vpop.f32.mrb[0].mxu0
  %2764 = vmatprep.mubr.bf16.mxu0 0
  %2765 = vmatmul.mubr.bf16.gmra.mrb[0].mxu0 %v1878
  %v2766 = vpop.f32.mrb[0].mxu0
  %v2767 = vadd.f32 0.0, %v2766
  %v2768 = vpop.f32.mrb[0].mxu0
  %v2769 = vpop.f32.mrb[0].mxu0
  %v2770 = vadd.f32 0.0, %v2769
  %v2771 = vpop.f32.mrb[0].mxu0
  %2772 = vmatprep.mubr.bf16.mxu0 0
  %2773 = vmatmul.mubr.bf16.gmra.mrb[0].mxu0 %v1881
  %v2774 = vpop.f32.mrb[0].mxu0
  %v2775 = vadd.f32 0.0, %v2774
  %v2776 = vpop.f32.mrb[0].mxu0
  %v2777 = vpop.f32.mrb[0].mxu0
  %v2778 = vadd.f32 0.0, %v2777
  %v2779 = vpop.f32.mrb[0].mxu0
  %2780 = vmatprep.mubr.bf16.mxu0 0
  %2781 = vmatmul.mubr.bf16.gmra.mrb[0].mxu0 %v1884
  %v2782 = vpop.f32.mrb[0].mxu0
  %v2783 = vadd.f32 0.0, %v2782
  %v2784 = vpop.f32.mrb[0].mxu0
  %v2785 = vpop.f32.mrb[0].mxu0
  %v2786 = vadd.f32 0.0, %v2785
  %v2787 = vpop.f32.mrb[0].mxu0
  %2788 = vmatprep.mubr.bf16.mxu0 0
  %2789 = vmatmul.mubr.bf16.gmra.mrb[0].mxu0 %v1887
  %v2790 = vpop.f32.mrb[0].mxu0
  %v2791 = vadd.f32 0.0, %v2790
  %v2792 = vpop.f32.mrb[0].mxu0
  %v2793 = vpop.f32.mrb[0].mxu0
  %v2794 = vadd.f32 0.0, %v2793
  %v2795 = vpop.f32.mrb[0].mxu0
  %2796 = vmatprep.mubr.bf16.mxu0 0
  %2797 = vmatmul.mubr.bf16.gmra.mrb[0].mxu0 %v1890
  %v2798 = vpop.f32.mrb[0].mxu0
  %v2799 = vadd.f32 0.0, %v2798
  %v2800 = vpop.f32.mrb[0].mxu0
  %v2801 = vpop.f32.mrb[0].mxu0
  %v2802 = vadd.f32 0.0, %v2801
  %v2803 = vpop.f32.mrb[0].mxu0
  %2804 = vmatprep.mubr.bf16.mxu0 0
  %2805 = vmatmul.mubr.bf16.gmra.mrb[0].mxu0 %v1893
  %v2806 = vpop.f32.mrb[0].mxu0
  %v2807 = vadd.f32 0.0, %v2806
  %v2808 = vpop.f32.mrb[0].mxu0
  %v2809 = vpop.f32.mrb[0].mxu0
  %v2810 = vadd.f32 0.0, %v2809
  %v2811 = vpop.f32.mrb[0].mxu0
  %2812 = vmatprep.mubr.bf16.mxu0 0
  %2813 = vmatmul.mubr.bf16.gmra.mrb[0].mxu0 %v1896
  %v2814 = vpop.f32.mrb[0].mxu0
  %v2815 = vadd.f32 0.0, %v2814
  %v2816 = vpop.f32.mrb[0].mxu0
  %v2817 = vpop.f32.mrb[0].mxu0
  %v2818 = vadd.f32 0.0, %v2817
  %v2819 = vpop.f32.mrb[0].mxu0
  %2820 = vmatprep.mubr.bf16.mxu0 0
  %2821 = vmatmul.mubr.bf16.gmra.mrb[0].mxu0 %v1899
  %v2822 = vpop.f32.mrb[0].mxu0
  %v2823 = vadd.f32 0.0, %v2822
  %v2824 = vpop.f32.mrb[0].mxu0
  %v2825 = vpop.f32.mrb[0].mxu0
  %v2826 = vadd.f32 0.0, %v2825
  %v2827 = vpop.f32.mrb[0].mxu0
  %2828 = vmatprep.mubr.bf16.mxu0 0
  %2829 = vmatmul.mubr.bf16.gmra.mrb[0].mxu0 %v1902
  %v2830 = vpop.f32.mrb[0].mxu0
  %v2831 = vadd.f32 0.0, %v2830
  %v2832 = vpop.f32.mrb[0].mxu0
  %v2833 = vpop.f32.mrb[0].mxu0
  %v2834 = vadd.f32 0.0, %v2833
  %v2835 = vpop.f32.mrb[0].mxu0
  %2836 = vmatprep.mubr.bf16.mxu0 0
  %2837 = vmatmul.mubr.bf16.gmra.mrb[0].mxu0 %v1905
  %v2838 = vpop.f32.mrb[0].mxu0
  %v2839 = vadd.f32 0.0, %v2838
  %v2840 = vpop.f32.mrb[0].mxu0
  %v2841 = vpop.f32.mrb[0].mxu0
  %v2842 = vadd.f32 0.0, %v2841
  %v2843 = vpop.f32.mrb[0].mxu0
  %2844 = vmatprep.mubr.bf16.mxu0 0
  %2845 = vmatmul.mubr.bf16.gmra.mrb[0].mxu0 %v1908
  %v2846 = vpop.f32.mrb[0].mxu0
  %v2847 = vadd.f32 0.0, %v2846
  %v2848 = vpop.f32.mrb[0].mxu0
  %v2849 = vpop.f32.mrb[0].mxu0
  %v2850 = vadd.f32 0.0, %v2849
  %v2851 = vpop.f32.mrb[0].mxu0
  %2852 = vmatprep.mubr.bf16.mxu0 0
  %2853 = vmatmul.mubr.bf16.gmra.mrb[0].mxu0 %v1911
  %v2854 = vpop.f32.mrb[0].mxu0
  %v2855 = vadd.f32 0.0, %v2854
  %v2856 = vpop.f32.mrb[0].mxu0
  %v2857 = vpop.f32.mrb[0].mxu0
  %v2858 = vadd.f32 0.0, %v2857
  %v2859 = vpop.f32.mrb[0].mxu0
  %2860 = vmatprep.mubr.bf16.mxu0 0
  %2861 = vmatmul.mubr.bf16.gmra.mrb[0].mxu0 %v1914
  %v2862 = vpop.f32.mrb[0].mxu0
  %v2863 = vadd.f32 0.0, %v2862
  %v2864 = vpop.f32.mrb[0].mxu0
  %v2865 = vpop.f32.mrb[0].mxu0
  %v2866 = vadd.f32 0.0, %v2865
  %v2867 = vpop.f32.mrb[0].mxu0
  %2868 = vmatprep.mubr.bf16.mxu0 0
  %2869 = vmatmul.mubr.bf16.gmra.mrb[0].mxu0 %v1917
  %v2870 = vpop.f32.mrb[0].mxu0
  %v2871 = vadd.f32 0.0, %v2870
  %v2872 = vpop.f32.mrb[0].mxu0
  %v2873 = vpop.f32.mrb[0].mxu0
  %v2874 = vadd.f32 0.0, %v2873
  %v2875 = vpop.f32.mrb[0].mxu0
  %2876 = vmatprep.mubr.bf16.mxu0 0
  %2877 = vmatmul.mubr.bf16.gmra.mrb[0].mxu0 %v1920
  %v2878 = vpop.f32.mrb[0].mxu0
  %v2879 = vadd.f32 0.0, %v2878
  %v2880 = vpop.f32.mrb[0].mxu0
  %v2881 = vpop.f32.mrb[0].mxu0
  %v2882 = vadd.f32 0.0, %v2881
  %v2883 = vpop.f32.mrb[0].mxu0
  %2884 = vmatprep.mubr.bf16.mxu0 0
  %2885 = vmatmul.mubr.bf16.gmra.mrb[0].mxu0 %v1923
  %v2886 = vpop.f32.mrb[0].mxu0
  %v2887 = vadd.f32 0.0, %v2886
  %v2888 = vpop.f32.mrb[0].mxu0
  %v2889 = vpop.f32.mrb[0].mxu0
  %v2890 = vadd.f32 0.0, %v2889
  %v2891 = vpop.f32.mrb[0].mxu0
  %2892 = vmatprep.mubr.bf16.mxu0 0
  %2893 = vmatmul.mubr.bf16.gmra.mrb[0].mxu0 %v1926
  %v2894 = vpop.f32.mrb[0].mxu0
  %v2895 = vadd.f32 0.0, %v2894
  %v2896 = vpop.f32.mrb[0].mxu0
  %v2897 = vpop.f32.mrb[0].mxu0
  %v2898 = vadd.f32 0.0, %v2897
  %v2899 = vpop.f32.mrb[0].mxu0
  %2900 = vmatprep.mubr.bf16.mxu0 0
  %2901 = vmatmul.mubr.bf16.gmra.mrb[0].mxu0 %v1929
  %v2902 = vpop.f32.mrb[0].mxu0
  %v2903 = vadd.f32 0.0, %v2902
  %v2904 = vpop.f32.mrb[0].mxu0
  %v2905 = vpop.f32.mrb[0].mxu0
  %v2906 = vadd.f32 0.0, %v2905
  %v2907 = vpop.f32.mrb[0].mxu0
  %2908 = vmatprep.mubr.bf16.mxu0 0
  %2909 = vmatmul.mubr.bf16.gmra.mrb[0].mxu0 %v1932
  %v2910 = vpop.f32.mrb[0].mxu0
  %v2911 = vadd.f32 0.0, %v2910
  %v2912 = vpop.f32.mrb[0].mxu0
  %v2913 = vpop.f32.mrb[0].mxu0
  %v2914 = vadd.f32 0.0, %v2913
  %v2915 = vpop.f32.mrb[0].mxu0
  %2916 = vmatprep.mubr.bf16.mxu0 0
  %2917 = vmatmul.mubr.bf16.gmra.mrb[0].mxu0 %v1935
  %v2918 = vpop.f32.mrb[0].mxu0
  %v2919 = vadd.f32 0.0, %v2918
  %v2920 = vpop.f32.mrb[0].mxu0
  %v2921 = vpop.f32.mrb[0].mxu0
  %v2922 = vadd.f32 0.0, %v2921
  %v2923 = vpop.f32.mrb[0].mxu0
  %2924 = vmatprep.mubr.bf16.mxu0 0
  %2925 = vmatmul.mubr.bf16.gmra.mrb[0].mxu0 %v1938
  %v2926 = vpop.f32.mrb[0].mxu0
  %v2927 = vadd.f32 0.0, %v2926
  %v2928 = vpop.f32.mrb[0].mxu0
  %v2929 = vpop.f32.mrb[0].mxu0
  %v2930 = vadd.f32 0.0, %v2929
  %v2931 = vpop.f32.mrb[0].mxu0
  %2932 = vmatprep.mubr.bf16.mxu0 0
  %2933 = vmatmul.mubr.bf16.gmra.mrb[0].mxu0 %v1941
  %v2934 = vpop.f32.mrb[0].mxu0
  %v2935 = vadd.f32 0.0, %v2934
  %v2936 = vpop.f32.mrb[0].mxu0
  %v2937 = vpop.f32.mrb[0].mxu0
  %v2938 = vadd.f32 0.0, %v2937
  %v2939 = vpop.f32.mrb[0].mxu0
  %2940 = vmatprep.mubr.bf16.mxu0 0
  %2941 = vmatmul.mubr.bf16.gmra.mrb[0].mxu0 %v1944
  %v2942 = vpop.f32.mrb[0].mxu0
  %v2943 = vadd.f32 0.0, %v2942
  %v2944 = vpop.f32.mrb[0].mxu0
  %v2945 = vpop.f32.mrb[0].mxu0
  %v2946 = vadd.f32 0.0, %v2945
  %v2947 = vpop.f32.mrb[0].mxu0
  %2948 = vmatprep.mubr.bf16.mxu0 0
  %2949 = vmatmul.mubr.bf16.gmra.mrb[0].mxu0 %v1947
  %v2950 = vpop.f32.mrb[0].mxu0
  %v2951 = vadd.f32 0.0, %v2950
  %v2952 = vpop.f32.mrb[0].mxu0
  %v2953 = vpop.f32.mrb[0].mxu0
  %v2954 = vadd.f32 0.0, %v2953
  %v2955 = vpop.f32.mrb[0].mxu0
  %2956 = vmatprep.mubr.bf16.mxu0 0
  %2957 = vmatmul.mubr.bf16.gmra.mrb[0].mxu0 %v1950
  %v2958 = vpop.f32.mrb[0].mxu0
  %v2959 = vadd.f32 0.0, %v2958
  %v2960 = vpop.f32.mrb[0].mxu0
  %v2961 = vpop.f32.mrb[0].mxu0
  %v2962 = vadd.f32 0.0, %v2961
  %v2963 = vpop.f32.mrb[0].mxu0
  %2964 = vmatprep.mubr.bf16.mxu0 0
  %2965 = vmatmul.mubr.bf16.gmra.mrb[0].mxu0 %v1953
  %v2966 = vpop.f32.mrb[0].mxu0
  %v2967 = vadd.f32 0.0, %v2966
  %v2968 = vpop.f32.mrb[0].mxu0
  %v2969 = vpop.f32.mrb[0].mxu0
  %v2970 = vadd.f32 0.0, %v2969
  %v2971 = vpop.f32.mrb[0].mxu0
  %2972 = vmatprep.mubr.bf16.mxu0 0
  %2973 = vmatmul.mubr.bf16.gmra.mrb[0].mxu0 %v1956
  %v2974 = vpop.f32.mrb[0].mxu0
  %v2975 = vadd.f32 0.0, %v2974
  %v2976 = vpop.f32.mrb[0].mxu0
  %v2977 = vpop.f32.mrb[0].mxu0
  %v2978 = vadd.f32 0.0, %v2977
  %v2979 = vpop.f32.mrb[0].mxu0
  %2980 = vmatprep.mubr.bf16.mxu0 0
  %2981 = vmatmul.mubr.bf16.gmra.mrb[0].mxu0 %v1959
  %v2982 = vpop.f32.mrb[0].mxu0
  %v2983 = vadd.f32 0.0, %v2982
  %v2984 = vpop.f32.mrb[0].mxu0
  %v2985 = vpop.f32.mrb[0].mxu0
  %v2986 = vadd.f32 0.0, %v2985
  %v2987 = vpop.f32.mrb[0].mxu0
  %2988 = vmatprep.mubr.bf16.mxu0 0
  %2989 = vmatmul.mubr.bf16.gmra.mrb[0].mxu0 %v1962
  %v2990 = vpop.f32.mrb[0].mxu0
  %v2991 = vadd.f32 0.0, %v2990
  %v2992 = vpop.f32.mrb[0].mxu0
  %v2993 = vpop.f32.mrb[0].mxu0
  %v2994 = vadd.f32 0.0, %v2993
  %v2995 = vpop.f32.mrb[0].mxu0
  %2996 = vmatprep.mubr.bf16.mxu0 0
  %2997 = vmatmul.mubr.bf16.gmra.mrb[0].mxu0 %v1965
  %v2998 = vpop.f32.mrb[0].mxu0
  %v2999 = vadd.f32 0.0, %v2998
  %v3000 = vpop.f32.mrb[0].mxu0
  %v3001 = vpop.f32.mrb[0].mxu0
  %v3002 = vadd.f32 0.0, %v3001
  %v3003 = vpop.f32.mrb[0].mxu0
  %3004 = vmatprep.mubr.bf16.mxu0 0
  %3005 = vmatmul.mubr.bf16.gmra.mrb[0].mxu0 %v1968
  %v3006 = vpop.f32.mrb[0].mxu0
  %v3007 = vadd.f32 0.0, %v3006
  %v3008 = vpop.f32.mrb[0].mxu0
  %v3009 = vpop.f32.mrb[0].mxu0
  %v3010 = vadd.f32 0.0, %v3009
  %v3011 = vpop.f32.mrb[0].mxu0
  %3012 = vmatprep.mubr.bf16.mxu0 0
  %3013 = vmatmul.mubr.bf16.gmra.mrb[0].mxu0 %v1971
  %v3014 = vpop.f32.mrb[0].mxu0
  %v3015 = vadd.f32 0.0, %v3014
  %v3016 = vpop.f32.mrb[0].mxu0
  %v3017 = vpop.f32.mrb[0].mxu0
  %v3018 = vadd.f32 0.0, %v3017
  %v3019 = vpop.f32.mrb[0].mxu0
  %3020 = vmatprep.mubr.bf16.mxu0 0
  %3021 = vmatmul.mubr.bf16.gmra.mrb[0].mxu0 %v1974
  %v3022 = vpop.f32.mrb[0].mxu0
  %v3023 = vadd.f32 0.0, %v3022
  %v3024 = vpop.f32.mrb[0].mxu0
  %v3025 = vpop.f32.mrb[0].mxu0
  %v3026 = vadd.f32 0.0, %v3025
  %v3027 = vpop.f32.mrb[0].mxu0
  %3028 = vmatprep.mubr.bf16.mxu0 0
  %3029 = vmatmul.mubr.bf16.gmra.mrb[0].mxu0 %v1977
  %v3030 = vpop.f32.mrb[0].mxu0
  %v3031 = vadd.f32 0.0, %v3030
  %v3032 = vpop.f32.mrb[0].mxu0
  %v3033 = vpop.f32.mrb[0].mxu0
  %v3034 = vadd.f32 0.0, %v3033
  %v3035 = vpop.f32.mrb[0].mxu0
  %3036 = vmatprep.mubr.bf16.mxu0 0
  %3037 = vmatmul.mubr.bf16.gmra.mrb[0].mxu0 %v1980
  %v3038 = vpop.f32.mrb[0].mxu0
  %v3039 = vadd.f32 0.0, %v3038
  %v3040 = vpop.f32.mrb[0].mxu0
  %v3041 = vpop.f32.mrb[0].mxu0
  %v3042 = vadd.f32 0.0, %v3041
  %v3043 = vpop.f32.mrb[0].mxu0
  %3044 = vmatprep.mubr.bf16.mxu0 0
  %3045 = vmatmul.mubr.bf16.gmra.mrb[0].mxu0 %v1983
  %v3046 = vpop.f32.mrb[0].mxu0
  %v3047 = vadd.f32 0.0, %v3046
  %v3048 = vpop.f32.mrb[0].mxu0
  %v3049 = vpop.f32.mrb[0].mxu0
  %v3050 = vadd.f32 0.0, %v3049
  %v3051 = vpop.f32.mrb[0].mxu0
  %3052 = vmatprep.mubr.bf16.mxu0 0
  %3053 = vmatmul.mubr.bf16.gmra.mrb[0].mxu0 %v1986
  %v3054 = vpop.f32.mrb[0].mxu0
  %v3055 = vadd.f32 0.0, %v3054
  %v3056 = vpop.f32.mrb[0].mxu0
  %v3057 = vpop.f32.mrb[0].mxu0
  %v3058 = vadd.f32 0.0, %v3057
  %v3059 = vpop.f32.mrb[0].mxu0
  %3060 = vmatprep.mubr.bf16.mxu0 0
  %3061 = vmatmul.mubr.bf16.gmra.mrb[0].mxu0 %v1989
  %v3062 = vpop.f32.mrb[0].mxu0
  %v3063 = vadd.f32 0.0, %v3062
  %v3064 = vpop.f32.mrb[0].mxu0
  %v3065 = vpop.f32.mrb[0].mxu0
  %v3066 = vadd.f32 0.0, %v3065
  %v3067 = vpop.f32.mrb[0].mxu0
  %3068 = vmatprep.mubr.bf16.mxu0 0
  %3069 = vmatmul.mubr.bf16.gmra.mrb[0].mxu0 %v1992
  %v3070 = vpop.f32.mrb[0].mxu0
  %v3071 = vadd.f32 0.0, %v3070
  %v3072 = vpop.f32.mrb[0].mxu0
  %v3073 = vpop.f32.mrb[0].mxu0
  %v3074 = vadd.f32 0.0, %v3073
  %v3075 = vpop.f32.mrb[0].mxu0
  %3076 = vmatprep.mubr.bf16.mxu0 0
  %3077 = vmatmul.mubr.bf16.gmra.mrb[0].mxu0 %v1995
  %v3078 = vpop.f32.mrb[0].mxu0
  %v3079 = vadd.f32 0.0, %v3078
  %v3080 = vpop.f32.mrb[0].mxu0
  %v3081 = vpop.f32.mrb[0].mxu0
  %v3082 = vadd.f32 0.0, %v3081
  %v3083 = vpop.f32.mrb[0].mxu0
  %3084 = vmatprep.mubr.bf16.mxu0 0
  %3085 = vmatmul.mubr.bf16.gmra.mrb[0].mxu0 %v1998
  %v3086 = vpop.f32.mrb[0].mxu0
  %v3087 = vadd.f32 0.0, %v3086
  %v3088 = vpop.f32.mrb[0].mxu0
  %v3089 = vpop.f32.mrb[0].mxu0
  %v3090 = vadd.f32 0.0, %v3089
  %v3091 = vpop.f32.mrb[0].mxu0
  %3092 = vmatprep.mubr.bf16.mxu0 0
  %3093 = vmatmul.mubr.bf16.gmra.mrb[0].mxu0 %v2001
  %v3094 = vpop.f32.mrb[0].mxu0
  %v3095 = vadd.f32 0.0, %v3094
  %v3096 = vpop.f32.mrb[0].mxu0
  %v3097 = vpop.f32.mrb[0].mxu0
  %v3098 = vadd.f32 0.0, %v3097
  %v3099 = vpop.f32.mrb[0].mxu0
  %3100 = vmatprep.mubr.bf16.mxu0 0
  %3101 = vmatmul.mubr.bf16.gmra.mrb[0].mxu0 %v2004
  %v3102 = vpop.f32.mrb[0].mxu0
  %v3103 = vadd.f32 0.0, %v3102
  %v3104 = vpop.f32.mrb[0].mxu0
  %v3105 = vpop.f32.mrb[0].mxu0
  %v3106 = vadd.f32 0.0, %v3105
  %v3107 = vpop.f32.mrb[0].mxu0
  %3108 = vmatprep.mubr.bf16.mxu0 0
  %3109 = vmatmul.mubr.bf16.gmra.mrb[0].mxu0 %v2007
  %v3110 = vpop.f32.mrb[0].mxu0
  %v3111 = vadd.f32 0.0, %v3110
  %v3112 = vpop.f32.mrb[0].mxu0
  %v3113 = vpop.f32.mrb[0].mxu0
  %v3114 = vadd.f32 0.0, %v3113
  %v3115 = vpop.f32.mrb[0].mxu0
  %3116 = vmatprep.mubr.bf16.mxu0 0
  %3117 = vmatmul.mubr.bf16.gmra.mrb[0].mxu0 %v2010
  %v3118 = vpop.f32.mrb[0].mxu0
  %v3119 = vadd.f32 0.0, %v3118
  %v3120 = vpop.f32.mrb[0].mxu0
  %v3121 = vpop.f32.mrb[0].mxu0
  %v3122 = vadd.f32 0.0, %v3121
  %v3123 = vpop.f32.mrb[0].mxu0
  %3124 = vmatprep.mubr.bf16.mxu0 0
  %3125 = vmatmul.mubr.bf16.gmra.mrb[0].mxu0 %v2013
  %v3126 = vpop.f32.mrb[0].mxu0
  %v3127 = vadd.f32 0.0, %v3126
  %v3128 = vpop.f32.mrb[0].mxu0
  %v3129 = vpop.f32.mrb[0].mxu0
  %v3130 = vadd.f32 0.0, %v3129
  %v3131 = vpop.f32.mrb[0].mxu0
  %3132 = vmatprep.mubr.bf16.mxu0 0
  %3133 = vmatmul.mubr.bf16.gmra.mrb[0].mxu0 %v2016
  %v3134 = vpop.f32.mrb[0].mxu0
  %v3135 = vadd.f32 0.0, %v3134
  %v3136 = vpop.f32.mrb[0].mxu0
  %v3137 = vpop.f32.mrb[0].mxu0
  %v3138 = vadd.f32 0.0, %v3137
  %v3139 = vpop.f32.mrb[0].mxu0
  %3140 = vmatprep.mubr.bf16.mxu0 0
  %3141 = vmatmul.mubr.bf16.gmra.mrb[0].mxu0 %v2019
  %v3142 = vpop.f32.mrb[0].mxu0
  %v3143 = vadd.f32 0.0, %v3142
  %v3144 = vpop.f32.mrb[0].mxu0
  %v3145 = vpop.f32.mrb[0].mxu0
  %v3146 = vadd.f32 0.0, %v3145
  %v3147 = vpop.f32.mrb[0].mxu0
  %3148 = vmatprep.mubr.bf16.mxu0 0
  %3149 = vmatmul.mubr.bf16.gmra.mrb[0].mxu0 %v2022
  %v3150 = vpop.f32.mrb[0].mxu0
  %v3151 = vadd.f32 0.0, %v3150
  %v3152 = vpop.f32.mrb[0].mxu0
  %v3153 = vpop.f32.mrb[0].mxu0
  %v3154 = vadd.f32 0.0, %v3153
  %v3155 = vpop.f32.mrb[0].mxu0
  %3156 = vmatprep.mubr.bf16.mxu0 0
  %3157 = vmatmul.mubr.bf16.gmra.mrb[0].mxu0 %v2025
  %v3158 = vpop.f32.mrb[0].mxu0
  %v3159 = vadd.f32 0.0, %v3158
  %v3160 = vpop.f32.mrb[0].mxu0
  %v3161 = vpop.f32.mrb[0].mxu0
  %v3162 = vadd.f32 0.0, %v3161
  %v3163 = vpop.f32.mrb[0].mxu0
  %3164 = vmatprep.mubr.bf16.mxu0 0
  %3165 = vmatmul.mubr.bf16.gmra.mrb[0].mxu0 %v2028
  %v3166 = vpop.f32.mrb[0].mxu0
  %v3167 = vadd.f32 0.0, %v3166
  %v3168 = vpop.f32.mrb[0].mxu0
  %v3169 = vpop.f32.mrb[0].mxu0
  %v3170 = vadd.f32 0.0, %v3169
  %v3171 = vpop.f32.mrb[0].mxu0
  %3172 = vmatprep.mubr.bf16.mxu0 0
  %3173 = vmatmul.mubr.bf16.gmra.mrb[0].mxu0 %v2031
  %v3174 = vpop.f32.mrb[0].mxu0
  %v3175 = vadd.f32 0.0, %v3174
  %v3176 = vpop.f32.mrb[0].mxu0
  %v3177 = vpop.f32.mrb[0].mxu0
  %v3178 = vadd.f32 0.0, %v3177
  %v3179 = vpop.f32.mrb[0].mxu0
  %3180 = vmatprep.mubr.bf16.mxu0 0
  %3181 = vmatmul.mubr.bf16.gmra.mrb[0].mxu0 %v2034
  %v3182 = vpop.f32.mrb[0].mxu0
  %v3183 = vadd.f32 0.0, %v3182
  %v3184 = vpop.f32.mrb[0].mxu0
  %v3185 = vpop.f32.mrb[0].mxu0
  %v3186 = vadd.f32 0.0, %v3185
  %v3187 = vpop.f32.mrb[0].mxu0
  %3188 = vmatprep.mubr.bf16.mxu0 0
  %3189 = vmatmul.mubr.bf16.gmra.mrb[0].mxu0 %v2037
  %v3190 = vpop.f32.mrb[0].mxu0
  %v3191 = vadd.f32 0.0, %v3190
  %v3192 = vpop.f32.mrb[0].mxu0
  %v3193 = vpop.f32.mrb[0].mxu0
  %v3194 = vadd.f32 0.0, %v3193
  %v3195 = vpop.f32.mrb[0].mxu0
  %3196 = vmatprep.mubr.bf16.mxu0 0
  %3197 = vmatmul.mubr.bf16.gmra.mrb[0].mxu0 %v2040
  %v3198 = vpop.f32.mrb[0].mxu0
  %v3199 = vadd.f32 0.0, %v3198
  %v3200 = vpop.f32.mrb[0].mxu0
  %v3201 = vpop.f32.mrb[0].mxu0
  %v3202 = vadd.f32 0.0, %v3201
  %v3203 = vpop.f32.mrb[0].mxu0
  %3204 = vmatprep.mubr.bf16.mxu0 0
  %3205 = vmatmul.mubr.bf16.gmra.mrb[0].mxu0 %v2043
  %v3206 = vpop.f32.mrb[0].mxu0
  %v3207 = vadd.f32 0.0, %v3206
  %v3208 = vpop.f32.mrb[0].mxu0
  %v3209 = vpop.f32.mrb[0].mxu0
  %v3210 = vadd.f32 0.0, %v3209
  %v3211 = vpop.f32.mrb[0].mxu0
  %3212 = vmatprep.mubr.bf16.mxu0 0
  %3213 = vmatmul.mubr.bf16.gmra.mrb[0].mxu0 %v2046
  %v3214 = vpop.f32.mrb[0].mxu0
  %v3215 = vadd.f32 0.0, %v3214
  %v3216 = vpop.f32.mrb[0].mxu0
  %v3217 = vpop.f32.mrb[0].mxu0
  %v3218 = vadd.f32 0.0, %v3217
  %v3219 = vpop.f32.mrb[0].mxu0
  %3220 = vmatprep.mubr.bf16.mxu0 0
  %3221 = vmatmul.mubr.bf16.gmra.mrb[0].mxu0 %v2049
  %v3222 = vpop.f32.mrb[0].mxu0
  %v3223 = vadd.f32 0.0, %v3222
  %v3224 = vpop.f32.mrb[0].mxu0
  %v3225 = vpop.f32.mrb[0].mxu0
  %v3226 = vadd.f32 0.0, %v3225
  %v3227 = vpop.f32.mrb[0].mxu0
  %3228 = vmatprep.mubr.bf16.mxu0 0
  %3229 = vmatmul.mubr.bf16.gmra.mrb[0].mxu0 %v2052
  %v3230 = vpop.f32.mrb[0].mxu0
  %v3231 = vadd.f32 0.0, %v3230
  %v3232 = vpop.f32.mrb[0].mxu0
  %v3233 = vpop.f32.mrb[0].mxu0
  %v3234 = vadd.f32 0.0, %v3233
  %v3235 = vpop.f32.mrb[0].mxu0
  %3236 = vmatprep.mubr.bf16.mxu0 0
  %3237 = vmatmul.mubr.bf16.gmra.mrb[0].mxu0 %v2055
  %v3238 = vpop.f32.mrb[0].mxu0
  %v3239 = vadd.f32 0.0, %v3238
  %v3240 = vpop.f32.mrb[0].mxu0
  %v3241 = vpop.f32.mrb[0].mxu0
  %v3242 = vadd.f32 0.0, %v3241
  %v3243 = vpop.f32.mrb[0].mxu0
  %3244 = vmatprep.mubr.bf16.mxu0 0
  %3245 = vmatmul.mubr.bf16.gmra.mrb[0].mxu0 %v2058
  %v3246 = vpop.f32.mrb[0].mxu0
  %v3247 = vadd.f32 0.0, %v3246
  %v3248 = vpop.f32.mrb[0].mxu0
  %v3249 = vpop.f32.mrb[0].mxu0
  %v3250 = vadd.f32 0.0, %v3249
  %v3251 = vpop.f32.mrb[0].mxu0
  %3252 = vmatprep.mubr.bf16.mxu0 0
  %3253 = vmatmul.mubr.bf16.gmra.mrb[0].mxu0 %v2061
  %v3254 = vpop.f32.mrb[0].mxu0
  %v3255 = vadd.f32 0.0, %v3254
  %v3256 = vpop.f32.mrb[0].mxu0
  %v3257 = vpop.f32.mrb[0].mxu0
  %v3258 = vadd.f32 0.0, %v3257
  %v3259 = vpop.f32.mrb[0].mxu0
  %3260 = vmatprep.mubr.bf16.mxu0 0
  %3261 = vmatmul.mubr.bf16.gmra.mrb[0].mxu0 %v2064
  %v3262 = vpop.f32.mrb[0].mxu0
  %v3263 = vadd.f32 0.0, %v3262
  %v3264 = vpop.f32.mrb[0].mxu0
  %v3265 = vpop.f32.mrb[0].mxu0
  %v3266 = vadd.f32 0.0, %v3265
  %v3267 = vpop.f32.mrb[0].mxu0
  %3268 = vmatprep.mubr.bf16.mxu0 0
  %3269 = vmatmul.mubr.bf16.gmra.mrb[0].mxu0 %v2067
  %v3270 = vpop.f32.mrb[0].mxu0
  %v3271 = vadd.f32 0.0, %v3270
  %v3272 = vpop.f32.mrb[0].mxu0
  %v3273 = vpop.f32.mrb[0].mxu0
  %v3274 = vadd.f32 0.0, %v3273
  %v3275 = vpop.f32.mrb[0].mxu0
  %3276 = vmatprep.mubr.bf16.mxu0 0
  %3277 = vmatmul.mubr.bf16.gmra.mrb[0].mxu0 %v2070
  %v3278 = vpop.f32.mrb[0].mxu0
  %v3279 = vadd.f32 0.0, %v3278
  %v3280 = vpop.f32.mrb[0].mxu0
  %v3281 = vpop.f32.mrb[0].mxu0
  %v3282 = vadd.f32 0.0, %v3281
  %v3283 = vpop.f32.mrb[0].mxu0
  %3284 = vmatprep.mubr.bf16.mxu0 0
  %3285 = vmatmul.mubr.bf16.gmra.mrb[0].mxu0 %v2073
  %v3286 = vpop.f32.mrb[0].mxu0
  %v3287 = vadd.f32 0.0, %v3286
  %v3288 = vpop.f32.mrb[0].mxu0
  %v3289 = vpop.f32.mrb[0].mxu0
  %v3290 = vadd.f32 0.0, %v3289
  %v3291 = vpop.f32.mrb[0].mxu0
  %3292 = vmatprep.mubr.bf16.mxu0 0
  %3293 = vmatmul.mubr.bf16.gmra.mrb[0].mxu0 %v2076
  %v3294 = vpop.f32.mrb[0].mxu0
  %v3295 = vadd.f32 0.0, %v3294
  %v3296 = vpop.f32.mrb[0].mxu0
  %v3297 = vpop.f32.mrb[0].mxu0
  %v3298 = vadd.f32 0.0, %v3297
  %v3299 = vpop.f32.mrb[0].mxu0
  %3300 = vmatprep.mubr.bf16.mxu0 0
  %3301 = vmatmul.mubr.bf16.gmra.mrb[0].mxu0 %v2079
  %v3302 = vpop.f32.mrb[0].mxu0
  %v3303 = vadd.f32 0.0, %v3302
  %v3304 = vpop.f32.mrb[0].mxu0
  %v3305 = vpop.f32.mrb[0].mxu0
  %v3306 = vadd.f32 0.0, %v3305
  %v3307 = vpop.f32.mrb[0].mxu0
  %3308 = vmatprep.mubr.bf16.mxu0 0
  %3309 = vmatmul.mubr.bf16.gmra.mrb[0].mxu0 %v2082
  %v3310 = vpop.f32.mrb[0].mxu0
  %v3311 = vadd.f32 0.0, %v3310
  %v3312 = vpop.f32.mrb[0].mxu0
  %v3313 = vpop.f32.mrb[0].mxu0
  %v3314 = vadd.f32 0.0, %v3313
  %v3315 = vpop.f32.mrb[0].mxu0
  %3316 = vmatprep.mubr.bf16.mxu0 0
  %3317 = vmatmul.mubr.bf16.gmra.mrb[0].mxu0 %v2085
  %v3318 = vpop.f32.mrb[0].mxu0
  %v3319 = vadd.f32 0.0, %v3318
  %v3320 = vpop.f32.mrb[0].mxu0
  %v3321 = vpop.f32.mrb[0].mxu0
  %v3322 = vadd.f32 0.0, %v3321
  %v3323 = vpop.f32.mrb[0].mxu0
  %3324 = vmatprep.mubr.bf16.mxu0 0
  %3325 = vmatmul.mubr.bf16.gmra.mrb[0].mxu0 %v2088
  %v3326 = vpop.f32.mrb[0].mxu0
  %v3327 = vadd.f32 0.0, %v3326
  %v3328 = vpop.f32.mrb[0].mxu0
  %v3329 = vpop.f32.mrb[0].mxu0
  %v3330 = vadd.f32 0.0, %v3329
  %v3331 = vpop.f32.mrb[0].mxu0
  %3332 = vmatprep.mubr.bf16.mxu0 0
  %3333 = vmatmul.mubr.bf16.gmra.mrb[0].mxu0 %v2091
  %v3334 = vpop.f32.mrb[0].mxu0
  %v3335 = vadd.f32 0.0, %v3334
  %v3336 = vpop.f32.mrb[0].mxu0
  %v3337 = vpop.f32.mrb[0].mxu0
  %v3338 = vadd.f32 0.0, %v3337
  %v3339 = vpop.f32.mrb[0].mxu0
  %3340 = vmatprep.mubr.bf16.mxu0 0
  %3341 = vmatmul.mubr.bf16.gmra.mrb[0].mxu0 %v2094
  %v3342 = vpop.f32.mrb[0].mxu0
  %v3343 = vadd.f32 0.0, %v3342
  %v3344 = vpop.f32.mrb[0].mxu0
  %v3345 = vpop.f32.mrb[0].mxu0
  %v3346 = vadd.f32 0.0, %v3345
  %v3347 = vpop.f32.mrb[0].mxu0
  %3348 = vmatprep.mubr.bf16.mxu0 0
  %3349 = vmatmul.mubr.bf16.gmra.mrb[0].mxu0 %v2097
  %v3350 = vpop.f32.mrb[0].mxu0
  %v3351 = vadd.f32 0.0, %v3350
  %v3352 = vpop.f32.mrb[0].mxu0
  %v3353 = vpop.f32.mrb[0].mxu0
  %v3354 = vadd.f32 0.0, %v3353
  %v3355 = vpop.f32.mrb[0].mxu0
  %3356 = vmatprep.mubr.bf16.mxu0 0
  %3357 = vmatmul.mubr.bf16.gmra.mrb[0].mxu0 %v2100
  %v3358 = vpop.f32.mrb[0].mxu0
  %v3359 = vadd.f32 0.0, %v3358
  %v3360 = vpop.f32.mrb[0].mxu0
  %v3361 = vpop.f32.mrb[0].mxu0
  %v3362 = vadd.f32 0.0, %v3361
  %v3363 = vpop.f32.mrb[0].mxu0
  %3364 = vmatprep.mubr.bf16.mxu0 0
  %3365 = vmatmul.mubr.bf16.gmra.mrb[0].mxu0 %v2103
  %v3366 = vpop.f32.mrb[0].mxu0
  %v3367 = vadd.f32 0.0, %v3366
  %v3368 = vpop.f32.mrb[0].mxu0
  %v3369 = vpop.f32.mrb[0].mxu0
  %v3370 = vadd.f32 0.0, %v3369
  %v3371 = vpop.f32.mrb[0].mxu0
  %3372 = vmatprep.mubr.bf16.mxu0 0
  %3373 = vmatmul.mubr.bf16.gmra.mrb[0].mxu0 %v2106
  %v3374 = vpop.f32.mrb[0].mxu0
  %v3375 = vadd.f32 0.0, %v3374
  %v3376 = vpop.f32.mrb[0].mxu0
  %v3377 = vpop.f32.mrb[0].mxu0
  %v3378 = vadd.f32 0.0, %v3377
  %v3379 = vpop.f32.mrb[0].mxu0
  %3380 = vmatprep.mubr.bf16.mxu0 0
  %3381 = vmatmul.mubr.bf16.gmra.mrb[0].mxu0 %v2109
  %v3382 = vpop.f32.mrb[0].mxu0
  %v3383 = vadd.f32 0.0, %v3382
  %v3384 = vpop.f32.mrb[0].mxu0
  %v3385 = vpop.f32.mrb[0].mxu0
  %v3386 = vadd.f32 0.0, %v3385
  %v3387 = vpop.f32.mrb[0].mxu0
  %3388 = vmatprep.mubr.bf16.mxu0 0
  %3389 = vmatmul.mubr.bf16.gmra.mrb[0].mxu0 %v2112
  %v3390 = vpop.f32.mrb[0].mxu0
  %v3391 = vadd.f32 0.0, %v3390
  %v3392 = vpop.f32.mrb[0].mxu0
  %v3393 = vpop.f32.mrb[0].mxu0
  %v3394 = vadd.f32 0.0, %v3393
  %v3395 = vpop.f32.mrb[0].mxu0
  %3396 = vmatprep.mubr.bf16.mxu0 0
  %3397 = vmatmul.mubr.bf16.gmra.mrb[0].mxu0 %v2115
  %v3398 = vpop.f32.mrb[0].mxu0
  %v3399 = vadd.f32 0.0, %v3398
  %v3400 = vpop.f32.mrb[0].mxu0
  %v3401 = vpop.f32.mrb[0].mxu0
  %v3402 = vadd.f32 0.0, %v3401
  %v3403 = vpop.f32.mrb[0].mxu0
  %3404 = vmatprep.mubr.bf16.mxu0 0
  %3405 = vmatmul.mubr.bf16.gmra.mrb[0].mxu0 %v2118
  %v3406 = vpop.f32.mrb[0].mxu0
  %v3407 = vadd.f32 0.0, %v3406
  %v3408 = vpop.f32.mrb[0].mxu0
  %v3409 = vpop.f32.mrb[0].mxu0
  %v3410 = vadd.f32 0.0, %v3409
  %v3411 = vpop.f32.mrb[0].mxu0
  %3412 = vmatprep.mubr.bf16.mxu0 0
  %3413 = vmatmul.mubr.bf16.gmra.mrb[0].mxu0 %v2121
  %v3414 = vpop.f32.mrb[0].mxu0
  %v3415 = vadd.f32 0.0, %v3414
  %v3416 = vpop.f32.mrb[0].mxu0
  %v3417 = vpop.f32.mrb[0].mxu0
  %v3418 = vadd.f32 0.0, %v3417
  %v3419 = vpop.f32.mrb[0].mxu0
  %3420 = vmatprep.mubr.bf16.mxu0 0
  %3421 = vmatmul.mubr.bf16.gmra.mrb[0].mxu0 %v2124
  %v3422 = vpop.f32.mrb[0].mxu0
  %v3423 = vadd.f32 0.0, %v3422
  %v3424 = vpop.f32.mrb[0].mxu0
  %v3425 = vpop.f32.mrb[0].mxu0
  %v3426 = vadd.f32 0.0, %v3425
  %v3427 = vpop.f32.mrb[0].mxu0
  %3428 = vmatprep.mubr.bf16.mxu0 0
  %3429 = vmatmul.mubr.bf16.gmra.mrb[0].mxu0 %v2127
  %v3430 = vpop.f32.mrb[0].mxu0
  %v3431 = vadd.f32 0.0, %v3430
  %v3432 = vpop.f32.mrb[0].mxu0
  %v3433 = vpop.f32.mrb[0].mxu0
  %v3434 = vadd.f32 0.0, %v3433
  %v3435 = vpop.f32.mrb[0].mxu0
  %3436 = vmatprep.mubr.bf16.mxu0 0
  %3437 = vmatmul.mubr.bf16.gmra.mrb[0].mxu0 %v2130
  %v3438 = vpop.f32.mrb[0].mxu0
  %v3439 = vadd.f32 0.0, %v3438
  %v3440 = vpop.f32.mrb[0].mxu0
  %v3441 = vpop.f32.mrb[0].mxu0
  %v3442 = vadd.f32 0.0, %v3441
  %v3443 = vpop.f32.mrb[0].mxu0
  %3444 = vmatprep.mubr.bf16.mxu0 0
  %3445 = vmatmul.mubr.bf16.gmra.mrb[0].mxu0 %v2133
  %v3446 = vpop.f32.mrb[0].mxu0
  %v3447 = vadd.f32 0.0, %v3446
  %v3448 = vpop.f32.mrb[0].mxu0
  %v3449 = vpop.f32.mrb[0].mxu0
  %v3450 = vadd.f32 0.0, %v3449
  %v3451 = vpop.f32.mrb[0].mxu0
  %3452 = vmatprep.mubr.bf16.mxu0 0
  %3453 = vmatmul.mubr.bf16.gmra.mrb[0].mxu0 %v2136
  %v3454 = vpop.f32.mrb[0].mxu0
  %v3455 = vadd.f32 0.0, %v3454
  %v3456 = vpop.f32.mrb[0].mxu0
  %v3457 = vpop.f32.mrb[0].mxu0
  %v3458 = vadd.f32 0.0, %v3457
  %v3459 = vpop.f32.mrb[0].mxu0
  %3460 = vmatprep.mubr.bf16.mxu0 0
  %3461 = vmatmul.mubr.bf16.gmra.mrb[0].mxu0 %v2139
  %v3462 = vpop.f32.mrb[0].mxu0
  %v3463 = vadd.f32 0.0, %v3462
  %v3464 = vpop.f32.mrb[0].mxu0
  %v3465 = vpop.f32.mrb[0].mxu0
  %v3466 = vadd.f32 0.0, %v3465
  %v3467 = vpop.f32.mrb[0].mxu0
  %3468 = vmatprep.mubr.bf16.mxu0 0
  %3469 = vmatmul.mubr.bf16.gmra.mrb[0].mxu0 %v2142
  %v3470 = vpop.f32.mrb[0].mxu0
  %v3471 = vadd.f32 0.0, %v3470
  %v3472 = vpop.f32.mrb[0].mxu0
  %v3473 = vpop.f32.mrb[0].mxu0
  %v3474 = vadd.f32 0.0, %v3473
  %v3475 = vpop.f32.mrb[0].mxu0
  %3476 = vmatprep.mubr.bf16.mxu0 0
  %3477 = vmatmul.mubr.bf16.gmra.mrb[0].mxu0 %v2145
  %v3478 = vpop.f32.mrb[0].mxu0
  %v3479 = vadd.f32 0.0, %v3478
  %v3480 = vpop.f32.mrb[0].mxu0
  %v3481 = vpop.f32.mrb[0].mxu0
  %v3482 = vadd.f32 0.0, %v3481
  %v3483 = vpop.f32.mrb[0].mxu0
  %3484 = vmatprep.mubr.bf16.mxu0 0
  %3485 = vmatmul.mubr.bf16.gmra.mrb[0].mxu0 %v2148
  %v3486 = vpop.f32.mrb[0].mxu0
  %v3487 = vadd.f32 0.0, %v3486
  %v3488 = vpop.f32.mrb[0].mxu0
  %v3489 = vpop.f32.mrb[0].mxu0
  %v3490 = vadd.f32 0.0, %v3489
  %v3491 = vpop.f32.mrb[0].mxu0
  %3492 = vmatprep.mubr.bf16.mxu0 0
  %3493 = vmatmul.mubr.bf16.gmra.mrb[0].mxu0 %v2151
  %v3494 = vpop.f32.mrb[0].mxu0
  %v3495 = vadd.f32 0.0, %v3494
  %v3496 = vpop.f32.mrb[0].mxu0
  %v3497 = vpop.f32.mrb[0].mxu0
  %v3498 = vadd.f32 0.0, %v3497
  %v3499 = vpop.f32.mrb[0].mxu0
  %3500 = vmatprep.mubr.bf16.mxu0 0
  %3501 = vmatmul.mubr.bf16.gmra.mrb[0].mxu0 %v2154
  %v3502 = vpop.f32.mrb[0].mxu0
  %v3503 = vadd.f32 0.0, %v3502
  %v3504 = vpop.f32.mrb[0].mxu0
  %v3505 = vpop.f32.mrb[0].mxu0
  %v3506 = vadd.f32 0.0, %v3505
  %v3507 = vpop.f32.mrb[0].mxu0
  %3508 = vmatprep.mubr.bf16.mxu0 0
  %3509 = vmatmul.mubr.bf16.gmra.mrb[0].mxu0 %v2157
  %v3510 = vpop.f32.mrb[0].mxu0
  %v3511 = vadd.f32 0.0, %v3510
  %v3512 = vpop.f32.mrb[0].mxu0
  %v3513 = vpop.f32.mrb[0].mxu0
  %v3514 = vadd.f32 0.0, %v3513
  %v3515 = vpop.f32.mrb[0].mxu0
  %3516 = vmatprep.mubr.bf16.mxu0 0
  %3517 = vmatmul.mubr.bf16.gmra.mrb[0].mxu0 %v2160
  %v3518 = vpop.f32.mrb[0].mxu0
  %v3519 = vadd.f32 0.0, %v3518
  %v3520 = vpop.f32.mrb[0].mxu0
  %v3521 = vpop.f32.mrb[0].mxu0
  %v3522 = vadd.f32 0.0, %v3521
  %v3523 = vpop.f32.mrb[0].mxu0
  %3524 = vmatprep.mubr.bf16.mxu0 0
  %3525 = vmatmul.mubr.bf16.gmra.mrb[0].mxu0 %v2163
  %v3526 = vpop.f32.mrb[0].mxu0
  %v3527 = vadd.f32 0.0, %v3526
  %v3528 = vpop.f32.mrb[0].mxu0
  %v3529 = vpop.f32.mrb[0].mxu0
  %v3530 = vadd.f32 0.0, %v3529
  %v3531 = vpop.f32.mrb[0].mxu0
  %3532 = vmatprep.mubr.bf16.mxu0 0
  %3533 = vmatmul.mubr.bf16.gmra.mrb[0].mxu0 %v2166
  %v3534 = vpop.f32.mrb[0].mxu0
  %v3535 = vadd.f32 0.0, %v3534
  %v3536 = vpop.f32.mrb[0].mxu0
  %v3537 = vpop.f32.mrb[0].mxu0
  %v3538 = vadd.f32 0.0, %v3537
  %v3539 = vpop.f32.mrb[0].mxu0
  %3540 = vmatprep.mubr.bf16.mxu0 0
  %3541 = vmatmul.mubr.bf16.gmra.mrb[0].mxu0 %v2169
  %v3542 = vpop.f32.mrb[0].mxu0
  %v3543 = vadd.f32 0.0, %v3542
  %v3544 = vpop.f32.mrb[0].mxu0
  %v3545 = vpop.f32.mrb[0].mxu0
  %v3546 = vadd.f32 0.0, %v3545
  %v3547 = vpop.f32.mrb[0].mxu0
  %3548 = vmatprep.mubr.bf16.mxu0 0
  %3549 = vmatmul.mubr.bf16.gmra.mrb[0].mxu0 %v2172
  %v3550 = vpop.f32.mrb[0].mxu0
  %v3551 = vadd.f32 0.0, %v3550
  %v3552 = vpop.f32.mrb[0].mxu0
  %v3553 = vpop.f32.mrb[0].mxu0
  %v3554 = vadd.f32 0.0, %v3553
  %v3555 = vpop.f32.mrb[0].mxu0
  %3556 = vmatprep.mubr.bf16.mxu0 0
  %3557 = vmatmul.mubr.bf16.gmra.mrb[0].mxu0 %v2175
  %v3558 = vpop.f32.mrb[0].mxu0
  %v3559 = vadd.f32 0.0, %v3558
  %v3560 = vpop.f32.mrb[0].mxu0
  %v3561 = vpop.f32.mrb[0].mxu0
  %v3562 = vadd.f32 0.0, %v3561
  %v3563 = vpop.f32.mrb[0].mxu0
  %3564 = vmatprep.mubr.bf16.mxu0 0
  %3565 = vmatmul.mubr.bf16.gmra.mrb[0].mxu0 %v2178
  %v3566 = vpop.f32.mrb[0].mxu0
  %v3567 = vadd.f32 0.0, %v3566
  %v3568 = vpop.f32.mrb[0].mxu0
  %v3569 = vpop.f32.mrb[0].mxu0
  %v3570 = vadd.f32 0.0, %v3569
  %v3571 = vpop.f32.mrb[0].mxu0
  %3572 = vmatprep.mubr.bf16.mxu0 0
  %3573 = vmatmul.mubr.bf16.gmra.mrb[0].mxu0 %v2181
  %v3574 = vpop.f32.mrb[0].mxu0
  %v3575 = vadd.f32 0.0, %v3574
  %v3576 = vpop.f32.mrb[0].mxu0
  %v3577 = vpop.f32.mrb[0].mxu0
  %v3578 = vadd.f32 0.0, %v3577
  %v3579 = vpop.f32.mrb[0].mxu0
  %3580 = vmatprep.mubr.bf16.mxu0 0
  %3581 = vmatmul.mubr.bf16.gmra.mrb[0].mxu0 %v2184
  %v3582 = vpop.f32.mrb[0].mxu0
  %v3583 = vadd.f32 0.0, %v3582
  %v3584 = vpop.f32.mrb[0].mxu0
  %v3585 = vpop.f32.mrb[0].mxu0
  %v3586 = vadd.f32 0.0, %v3585
  %v3587 = vpop.f32.mrb[0].mxu0
  %3588 = vmatprep.mubr.bf16.mxu0 0
  %3589 = vmatmul.mubr.bf16.gmra.mrb[0].mxu0 %v2187
  %v3590 = vpop.f32.mrb[0].mxu0
  %v3591 = vadd.f32 0.0, %v3590
  %v3592 = vpop.f32.mrb[0].mxu0
  %v3593 = vpop.f32.mrb[0].mxu0
  %v3594 = vadd.f32 0.0, %v3593
  %v3595 = vpop.f32.mrb[0].mxu0
  %3596 = vmatprep.mubr.bf16.mxu0 0
  %3597 = vmatmul.mubr.bf16.gmra.mrb[0].mxu0 %v2190
  %v3598 = vpop.f32.mrb[0].mxu0
  %v3599 = vadd.f32 0.0, %v3598
  %v3600 = vpop.f32.mrb[0].mxu0
  %v3601 = vpop.f32.mrb[0].mxu0
  %v3602 = vadd.f32 0.0, %v3601
  %v3603 = vpop.f32.mrb[0].mxu0
  %3604 = vmatprep.mubr.bf16.mxu0 0
  %3605 = vmatmul.mubr.bf16.gmra.mrb[0].mxu0 %v2193
  %v3606 = vpop.f32.mrb[0].mxu0
  %v3607 = vadd.f32 0.0, %v3606
  %v3608 = vpop.f32.mrb[0].mxu0
  %v3609 = vpop.f32.mrb[0].mxu0
  %v3610 = vadd.f32 0.0, %v3609
  %v3611 = vpop.f32.mrb[0].mxu0
  %3612 = vmatprep.mubr.bf16.mxu0 0
  %3613 = vmatmul.mubr.bf16.gmra.mrb[0].mxu0 %v2196
  %v3614 = vpop.f32.mrb[0].mxu0
  %v3615 = vadd.f32 0.0, %v3614
  %v3616 = vpop.f32.mrb[0].mxu0
  %v3617 = vpop.f32.mrb[0].mxu0
  %v3618 = vadd.f32 0.0, %v3617
  %v3619 = vpop.f32.mrb[0].mxu0
  %3620 = vmatprep.mubr.bf16.mxu0 0
  %3621 = vmatmul.mubr.bf16.gmra.mrb[0].mxu0 %v2199
  %v3622 = vpop.f32.mrb[0].mxu0
  %v3623 = vadd.f32 0.0, %v3622
  %v3624 = vpop.f32.mrb[0].mxu0
  %v3625 = vpop.f32.mrb[0].mxu0
  %v3626 = vadd.f32 0.0, %v3625
  %v3627 = vpop.f32.mrb[0].mxu0
  %3628 = vmatprep.mubr.bf16.mxu0 0
  %3629 = vmatmul.mubr.bf16.gmra.mrb[0].mxu0 %v2202
  %v3630 = vpop.f32.mrb[0].mxu0
  %v3631 = vadd.f32 0.0, %v3630
  %v3632 = vpop.f32.mrb[0].mxu0
  %v3633 = vpop.f32.mrb[0].mxu0
  %v3634 = vadd.f32 0.0, %v3633
  %v3635 = vpop.f32.mrb[0].mxu0
  %3636 = vmatprep.mubr.bf16.mxu0 0
  %3637 = vmatmul.mubr.bf16.gmra.mrb[0].mxu0 %v2205
  %v3638 = vpop.f32.mrb[0].mxu0
  %v3639 = vadd.f32 0.0, %v3638
  %v3640 = vpop.f32.mrb[0].mxu0
  %v3641 = vpop.f32.mrb[0].mxu0
  %v3642 = vadd.f32 0.0, %v3641
  %v3643 = vpop.f32.mrb[0].mxu0
  %3644 = vmatprep.mubr.bf16.mxu0 0
  %3645 = vmatmul.mubr.bf16.gmra.mrb[0].mxu0 %v2208
  %v3646 = vpop.f32.mrb[0].mxu0
  %v3647 = vadd.f32 0.0, %v3646
  %v3648 = vpop.f32.mrb[0].mxu0
  %v3649 = vpop.f32.mrb[0].mxu0
  %v3650 = vadd.f32 0.0, %v3649
  %v3651 = vpop.f32.mrb[0].mxu0
  %3652 = vmatprep.mubr.bf16.mxu0 0
  %3653 = vmatmul.mubr.bf16.gmra.mrb[0].mxu0 %v2211
  %v3654 = vpop.f32.mrb[0].mxu0
  %v3655 = vadd.f32 0.0, %v3654
  %v3656 = vpop.f32.mrb[0].mxu0
  %v3657 = vpop.f32.mrb[0].mxu0
  %v3658 = vadd.f32 0.0, %v3657
  %v3659 = vpop.f32.mrb[0].mxu0
  %3660 = vmatprep.mubr.bf16.mxu0 0
  %3661 = vmatmul.mubr.bf16.gmra.mrb[0].mxu0 %v2214
  %v3662 = vpop.f32.mrb[0].mxu0
  %v3663 = vadd.f32 0.0, %v3662
  %v3664 = vpop.f32.mrb[0].mxu0
  %v3665 = vpop.f32.mrb[0].mxu0
  %v3666 = vadd.f32 0.0, %v3665
  %v3667 = vpop.f32.mrb[0].mxu0
  %3668 = vmatprep.mubr.bf16.mxu0 0
  %3669 = vmatmul.mubr.bf16.gmra.mrb[0].mxu0 %v2217
  %v3670 = vpop.f32.mrb[0].mxu0
  %v3671 = vadd.f32 0.0, %v3670
  %v3672 = vpop.f32.mrb[0].mxu0
  %v3673 = vpop.f32.mrb[0].mxu0
  %v3674 = vadd.f32 0.0, %v3673
  %v3675 = vpop.f32.mrb[0].mxu0
  %3676 = vmatprep.mubr.bf16.mxu0 0
  %3677 = vmatmul.mubr.bf16.gmra.mrb[0].mxu0 %v2220
  %v3678 = vpop.f32.mrb[0].mxu0
  %v3679 = vadd.f32 0.0, %v3678
  %v3680 = vpop.f32.mrb[0].mxu0
  %v3681 = vpop.f32.mrb[0].mxu0
  %v3682 = vadd.f32 0.0, %v3681
  %v3683 = vpop.f32.mrb[0].mxu0
  %3684 = vmatprep.mubr.bf16.mxu0 0
  %3685 = vmatmul.mubr.bf16.gmra.mrb[0].mxu0 %v2223
  %v3686 = vpop.f32.mrb[0].mxu0
  %v3687 = vadd.f32 0.0, %v3686
  %v3688 = vpop.f32.mrb[0].mxu0
  %v3689 = vpop.f32.mrb[0].mxu0
  %v3690 = vadd.f32 0.0, %v3689
  %v3691 = vpop.f32.mrb[0].mxu0
  %3692 = vmatprep.mubr.bf16.mxu0 0
  %3693 = vmatmul.mubr.bf16.gmra.mrb[0].mxu0 %v2226
  %v3694 = vpop.f32.mrb[0].mxu0
  %v3695 = vadd.f32 0.0, %v3694
  %v3696 = vpop.f32.mrb[0].mxu0
  %v3697 = vpop.f32.mrb[0].mxu0
  %v3698 = vadd.f32 0.0, %v3697
  %v3699 = vpop.f32.mrb[0].mxu0
  %3700 = vmatprep.mubr.bf16.mxu0 0
  %3701 = vmatmul.mubr.bf16.gmra.mrb[0].mxu0 %v2229
  %v3702 = vpop.f32.mrb[0].mxu0
  %v3703 = vadd.f32 0.0, %v3702
  %v3704 = vpop.f32.mrb[0].mxu0
  %v3705 = vpop.f32.mrb[0].mxu0
  %v3706 = vadd.f32 0.0, %v3705
  %v3707 = vpop.f32.mrb[0].mxu0
  %3708 = vmatprep.mubr.bf16.mxu0 0
  %3709 = vmatmul.mubr.bf16.gmra.mrb[0].mxu0 %v2232
  %v3710 = vpop.f32.mrb[0].mxu0
  %v3711 = vadd.f32 0.0, %v3710
  %v3712 = vpop.f32.mrb[0].mxu0
  %v3713 = vpop.f32.mrb[0].mxu0
  %v3714 = vadd.f32 0.0, %v3713
  %v3715 = vpop.f32.mrb[0].mxu0
  %3716 = vmatprep.mubr.bf16.mxu0 0
  %3717 = vmatmul.mubr.bf16.gmra.mrb[0].mxu0 %v2235
  %v3718 = vpop.f32.mrb[0].mxu0
  %v3719 = vadd.f32 0.0, %v3718
  %v3720 = vpop.f32.mrb[0].mxu0
  %v3721 = vpop.f32.mrb[0].mxu0
  %v3722 = vadd.f32 0.0, %v3721
  %v3723 = vpop.f32.mrb[0].mxu0
  %3724 = vmatprep.mubr.bf16.mxu0 0
  %3725 = vmatmul.mubr.bf16.gmra.mrb[0].mxu0 %v2238
  %v3726 = vpop.f32.mrb[0].mxu0
  %v3727 = vadd.f32 0.0, %v3726
  %v3728 = vpop.f32.mrb[0].mxu0
  %v3729 = vpop.f32.mrb[0].mxu0
  %v3730 = vadd.f32 0.0, %v3729
  %v3731 = vpop.f32.mrb[0].mxu0
  %3732 = vmatprep.mubr.bf16.mxu0 0
  %3733 = vmatmul.mubr.bf16.gmra.mrb[0].mxu0 %v2241
  %v3734 = vpop.f32.mrb[0].mxu0
  %v3735 = vadd.f32 0.0, %v3734
  %v3736 = vpop.f32.mrb[0].mxu0
  %v3737 = vpop.f32.mrb[0].mxu0
  %v3738 = vadd.f32 0.0, %v3737
  %v3739 = vpop.f32.mrb[0].mxu0
  %3740 = vmatprep.mubr.bf16.mxu0 0
  %3741 = vmatmul.mubr.bf16.gmra.mrb[0].mxu0 %v2244
  %v3742 = vpop.f32.mrb[0].mxu0
  %v3743 = vadd.f32 0.0, %v3742
  %v3744 = vpop.f32.mrb[0].mxu0
  %v3745 = vpop.f32.mrb[0].mxu0
  %v3746 = vadd.f32 0.0, %v3745
  %v3747 = vpop.f32.mrb[0].mxu0
  %3748 = vmatprep.mubr.bf16.mxu0 0
  %3749 = vmatmul.mubr.bf16.gmra.mrb[0].mxu0 %v2247
  %v3750 = vpop.f32.mrb[0].mxu0
  %v3751 = vadd.f32 0.0, %v3750
  %v3752 = vpop.f32.mrb[0].mxu0
  %v3753 = vpop.f32.mrb[0].mxu0
  %v3754 = vadd.f32 0.0, %v3753
  %v3755 = vpop.f32.mrb[0].mxu0
  %3756 = vmatprep.mubr.bf16.mxu0 0
  %3757 = vmatmul.mubr.bf16.gmra.mrb[0].mxu0 %v2250
  %v3758 = vpop.f32.mrb[0].mxu0
  %v3759 = vadd.f32 0.0, %v3758
  %v3760 = vpop.f32.mrb[0].mxu0
  %v3761 = vpop.f32.mrb[0].mxu0
  %v3762 = vadd.f32 0.0, %v3761
  %v3763 = vpop.f32.mrb[0].mxu0
  %3764 = vmatprep.mubr.bf16.mxu0 0
  %3765 = vmatmul.mubr.bf16.gmra.mrb[0].mxu0 %v2253
  %v3766 = vpop.f32.mrb[0].mxu0
  %v3767 = vadd.f32 0.0, %v3766
  %v3768 = vpop.f32.mrb[0].mxu0
  %v3769 = vpop.f32.mrb[0].mxu0
  %v3770 = vadd.f32 0.0, %v3769
  %v3771 = vpop.f32.mrb[0].mxu0
  %3772 = vmatprep.mubr.bf16.mxu0 0
  %3773 = vmatmul.mubr.bf16.gmra.mrb[0].mxu0 %v2256
  %v3774 = vpop.f32.mrb[0].mxu0
  %v3775 = vadd.f32 0.0, %v3774
  %v3776 = vpop.f32.mrb[0].mxu0
  %v3777 = vpop.f32.mrb[0].mxu0
  %v3778 = vadd.f32 0.0, %v3777
  %v3779 = vpop.f32.mrb[0].mxu0
  %3780 = vmatprep.mubr.bf16.mxu0 0
  %3781 = vmatmul.mubr.bf16.gmra.mrb[0].mxu0 %v2259
  %v3782 = vpop.f32.mrb[0].mxu0
  %v3783 = vadd.f32 0.0, %v3782
  %v3784 = vpop.f32.mrb[0].mxu0
  %v3785 = vpop.f32.mrb[0].mxu0
  %v3786 = vadd.f32 0.0, %v3785
  %v3787 = vpop.f32.mrb[0].mxu0
  %3788 = vmatprep.mubr.bf16.mxu0 0
  %3789 = vmatmul.mubr.bf16.gmra.mrb[0].mxu0 %v2262
  %v3790 = vpop.f32.mrb[0].mxu0
  %v3791 = vadd.f32 0.0, %v3790
  %v3792 = vpop.f32.mrb[0].mxu0
  %v3793 = vpop.f32.mrb[0].mxu0
  %v3794 = vadd.f32 0.0, %v3793
  %v3795 = vpop.f32.mrb[0].mxu0
  %3796 = vmatprep.mubr.bf16.mxu0 0
  %3797 = vmatmul.mubr.bf16.gmra.mrb[0].mxu0 %v2265
  %v3798 = vpop.f32.mrb[0].mxu0
  %v3799 = vadd.f32 0.0, %v3798
  %v3800 = vpop.f32.mrb[0].mxu0
  %v3801 = vpop.f32.mrb[0].mxu0
  %v3802 = vadd.f32 0.0, %v3801
  %v3803 = vpop.f32.mrb[0].mxu0
  %3804 = vmatprep.mubr.bf16.mxu0 0
  %3805 = vmatmul.mubr.bf16.gmra.mrb[0].mxu0 %v2268
  %v3806 = vpop.f32.mrb[0].mxu0
  %v3807 = vadd.f32 0.0, %v3806
  %v3808 = vpop.f32.mrb[0].mxu0
  %v3809 = vpop.f32.mrb[0].mxu0
  %v3810 = vadd.f32 0.0, %v3809
  %v3811 = vpop.f32.mrb[0].mxu0
  %3812 = vmatprep.mubr.bf16.mxu0 0
  %3813 = vmatmul.mubr.bf16.gmra.mrb[0].mxu0 %v2271
  %v3814 = vpop.f32.mrb[0].mxu0
  %v3815 = vadd.f32 0.0, %v3814
  %v3816 = vpop.f32.mrb[0].mxu0
  %v3817 = vpop.f32.mrb[0].mxu0
  %v3818 = vadd.f32 0.0, %v3817
  %v3819 = vpop.f32.mrb[0].mxu0
  %3820 = vmatprep.mubr.bf16.mxu0 0
  %3821 = vmatmul.mubr.bf16.gmra.mrb[0].mxu0 %v2274
  %v3822 = vpop.f32.mrb[0].mxu0
  %v3823 = vadd.f32 0.0, %v3822
  %v3824 = vpop.f32.mrb[0].mxu0
  %v3825 = vpop.f32.mrb[0].mxu0
  %v3826 = vadd.f32 0.0, %v3825
  %v3827 = vpop.f32.mrb[0].mxu0
  %3828 = vmatprep.mubr.bf16.mxu0 0
  %3829 = vmatmul.mubr.bf16.gmra.mrb[0].mxu0 %v2277
  %v3830 = vpop.f32.mrb[0].mxu0
  %v3831 = vadd.f32 0.0, %v3830
  %v3832 = vpop.f32.mrb[0].mxu0
  %v3833 = vpop.f32.mrb[0].mxu0
  %v3834 = vadd.f32 0.0, %v3833
  %v3835 = vpop.f32.mrb[0].mxu0
  %3836 = vmatprep.mubr.bf16.mxu0 0
  %3837 = vmatmul.mubr.bf16.gmra.mrb[0].mxu0 %v2280
  %v3838 = vpop.f32.mrb[0].mxu0
  %v3839 = vadd.f32 0.0, %v3838
  %v3840 = vpop.f32.mrb[0].mxu0
  %v3841 = vpop.f32.mrb[0].mxu0
  %v3842 = vadd.f32 0.0, %v3841
  %v3843 = vpop.f32.mrb[0].mxu0
  %3844 = vmatprep.mubr.bf16.mxu0 0
  %3845 = vmatmul.mubr.bf16.gmra.mrb[0].mxu0 %v2283
  %v3846 = vpop.f32.mrb[0].mxu0
  %v3847 = vadd.f32 0.0, %v3846
  %v3848 = vpop.f32.mrb[0].mxu0
  %v3849 = vpop.f32.mrb[0].mxu0
  %v3850 = vadd.f32 0.0, %v3849
  %v3851 = vpop.f32.mrb[0].mxu0
  %3852 = vmatprep.mubr.bf16.mxu0 0
  %3853 = vmatmul.mubr.bf16.gmra.mrb[0].mxu0 %v2286
  %v3854 = vpop.f32.mrb[0].mxu0
  %v3855 = vadd.f32 0.0, %v3854
  %v3856 = vpop.f32.mrb[0].mxu0
  %v3857 = vpop.f32.mrb[0].mxu0
  %v3858 = vadd.f32 0.0, %v3857
  %v3859 = vpop.f32.mrb[0].mxu0
  %3860 = vmatprep.mubr.bf16.mxu0 0
  %3861 = vmatmul.mubr.bf16.gmra.mrb[0].mxu0 %v2289
  %v3862 = vpop.f32.mrb[0].mxu0
  %v3863 = vadd.f32 0.0, %v3862
  %v3864 = vpop.f32.mrb[0].mxu0
  %v3865 = vpop.f32.mrb[0].mxu0
  %v3866 = vadd.f32 0.0, %v3865
  %v3867 = vpop.f32.mrb[0].mxu0
  %3868 = vmatprep.mubr.bf16.mxu0 0
  %3869 = vmatmul.mubr.bf16.gmra.mrb[0].mxu0 %v2292
  %v3870 = vpop.f32.mrb[0].mxu0
  %v3871 = vadd.f32 0.0, %v3870
  %v3872 = vpop.f32.mrb[0].mxu0
  %v3873 = vpop.f32.mrb[0].mxu0
  %v3874 = vadd.f32 0.0, %v3873
  %v3875 = vpop.f32.mrb[0].mxu0
  %3876 = vmatprep.mubr.bf16.mxu0 0
  %3877 = vmatmul.mubr.bf16.gmra.mrb[0].mxu0 %v2295
  %v3878 = vpop.f32.mrb[0].mxu0
  %v3879 = vadd.f32 0.0, %v3878
  %v3880 = vpop.f32.mrb[0].mxu0
  %v3881 = vpop.f32.mrb[0].mxu0
  %v3882 = vadd.f32 0.0, %v3881
  %v3883 = vpop.f32.mrb[0].mxu0
  %3884 = vmatprep.mubr.bf16.mxu0 0
  %3885 = vmatmul.mubr.bf16.gmra.mrb[0].mxu0 %v2298
  %v3886 = vpop.f32.mrb[0].mxu0
  %v3887 = vadd.f32 0.0, %v3886
  %v3888 = vpop.f32.mrb[0].mxu0
  %v3889 = vpop.f32.mrb[0].mxu0
  %v3890 = vadd.f32 0.0, %v3889
  %v3891 = vpop.f32.mrb[0].mxu0
  %3892 = vmatprep.mubr.bf16.mxu0 0
  %3893 = vmatmul.mubr.bf16.gmra.mrb[0].mxu0 %v2301
  %v3894 = vpop.f32.mrb[0].mxu0
  %v3895 = vadd.f32 0.0, %v3894
  %v3896 = vpop.f32.mrb[0].mxu0
  %v3897 = vpop.f32.mrb[0].mxu0
  %v3898 = vadd.f32 0.0, %v3897
  %v3899 = vpop.f32.mrb[0].mxu0
  %3900 = vmatprep.mubr.bf16.mxu0 0
  %3901 = vmatmul.mubr.bf16.gmra.mrb[0].mxu0 %v2304
  %v3902 = vpop.f32.mrb[0].mxu0
  %v3903 = vadd.f32 0.0, %v3902
  %v3904 = vpop.f32.mrb[0].mxu0
  %v3905 = vpop.f32.mrb[0].mxu0
  %v3906 = vadd.f32 0.0, %v3905
  %v3907 = vpop.f32.mrb[0].mxu0
  %3908 = vmatprep.mubr.bf16.mxu0 0
  %3909 = vmatmul.mubr.bf16.gmra.mrb[0].mxu0 %v2307
  %v3910 = vpop.f32.mrb[0].mxu0
  %v3911 = vadd.f32 0.0, %v3910
  %v3912 = vpop.f32.mrb[0].mxu0
  %v3913 = vpop.f32.mrb[0].mxu0
  %v3914 = vadd.f32 0.0, %v3913
  %v3915 = vpop.f32.mrb[0].mxu0
  %3916 = vmatprep.mubr.bf16.mxu0 0
  %3917 = vmatmul.mubr.bf16.gmra.mrb[0].mxu0 %v2310
  %v3918 = vpop.f32.mrb[0].mxu0
  %v3919 = vadd.f32 0.0, %v3918
  %v3920 = vpop.f32.mrb[0].mxu0
  %v3921 = vpop.f32.mrb[0].mxu0
  %v3922 = vadd.f32 0.0, %v3921
  %v3923 = vpop.f32.mrb[0].mxu0
  %3924 = vmatprep.mubr.bf16.mxu0 0
  %3925 = vmatmul.mubr.bf16.gmra.mrb[0].mxu0 %v2313
  %v3926 = vpop.f32.mrb[0].mxu0
  %v3927 = vadd.f32 0.0, %v3926
  %v3928 = vpop.f32.mrb[0].mxu0
  %v3929 = vpop.f32.mrb[0].mxu0
  %v3930 = vadd.f32 0.0, %v3929
  %v3931 = vpop.f32.mrb[0].mxu0
  %3932 = vmatprep.mubr.bf16.mxu0 0
  %3933 = vmatmul.mubr.bf16.gmra.mrb[0].mxu0 %v2316
  %v3934 = vpop.f32.mrb[0].mxu0
  %v3935 = vadd.f32 0.0, %v3934
  %v3936 = vpop.f32.mrb[0].mxu0
  %v3937 = vpop.f32.mrb[0].mxu0
  %v3938 = vadd.f32 0.0, %v3937
  %v3939 = vpop.f32.mrb[0].mxu0
  %3940 = vmatprep.mubr.bf16.mxu0 0
  %3941 = vmatmul.mubr.bf16.gmra.mrb[0].mxu0 %v2319
  %v3942 = vpop.f32.mrb[0].mxu0
  %v3943 = vadd.f32 0.0, %v3942
  %v3944 = vpop.f32.mrb[0].mxu0
  %v3945 = vpop.f32.mrb[0].mxu0
  %v3946 = vadd.f32 0.0, %v3945
  %v3947 = vpop.f32.mrb[0].mxu0
  %3948 = vmatprep.mubr.bf16.mxu0 0
  %3949 = vmatmul.mubr.bf16.gmra.mrb[0].mxu0 %v2322
  %v3950 = vpop.f32.mrb[0].mxu0
  %v3951 = vadd.f32 0.0, %v3950
  %v3952 = vpop.f32.mrb[0].mxu0
  %v3953 = vpop.f32.mrb[0].mxu0
  %v3954 = vadd.f32 0.0, %v3953
  %v3955 = vpop.f32.mrb[0].mxu0
  %3956 = vmatprep.mubr.bf16.mxu0 0
  %3957 = vmatmul.mubr.bf16.gmra.mrb[0].mxu0 %v2325
  %v3958 = vpop.f32.mrb[0].mxu0
  %v3959 = vadd.f32 0.0, %v3958
  %v3960 = vpop.f32.mrb[0].mxu0
  %v3961 = vpop.f32.mrb[0].mxu0
  %v3962 = vadd.f32 0.0, %v3961
  %v3963 = vpop.f32.mrb[0].mxu0
  %3964 = vmatprep.mubr.bf16.mxu0 0
  %3965 = vmatmul.mubr.bf16.gmra.mrb[0].mxu0 %v2328
  %v3966 = vpop.f32.mrb[0].mxu0
  %v3967 = vadd.f32 0.0, %v3966
  %v3968 = vpop.f32.mrb[0].mxu0
  %v3969 = vpop.f32.mrb[0].mxu0
  %v3970 = vadd.f32 0.0, %v3969
  %v3971 = vpop.f32.mrb[0].mxu0
  %3972 = vmatprep.mubr.bf16.mxu0 0
  %3973 = vmatmul.mubr.bf16.gmra.mrb[0].mxu0 %v2331
  %v3974 = vpop.f32.mrb[0].mxu0
  %v3975 = vadd.f32 0.0, %v3974
  %v3976 = vpop.f32.mrb[0].mxu0
  %v3977 = vpop.f32.mrb[0].mxu0
  %v3978 = vadd.f32 0.0, %v3977
  %v3979 = vpop.f32.mrb[0].mxu0
  %3980 = vmatprep.mubr.bf16.mxu0 0
  %3981 = vmatmul.mubr.bf16.gmra.mrb[0].mxu0 %v2334
  %v3982 = vpop.f32.mrb[0].mxu0
  %v3983 = vadd.f32 0.0, %v3982
  %v3984 = vpop.f32.mrb[0].mxu0
  %v3985 = vpop.f32.mrb[0].mxu0
  %v3986 = vadd.f32 0.0, %v3985
  %v3987 = vpop.f32.mrb[0].mxu0
  %3988 = vmatprep.mubr.bf16.mxu0 0
  %3989 = vmatmul.mubr.bf16.gmra.mrb[0].mxu0 %v2337
  %v3990 = vpop.f32.mrb[0].mxu0
  %v3991 = vadd.f32 0.0, %v3990
  %v3992 = vpop.f32.mrb[0].mxu0
  %v3993 = vpop.f32.mrb[0].mxu0
  %v3994 = vadd.f32 0.0, %v3993
  %v3995 = vpop.f32.mrb[0].mxu0
  %3996 = vmatprep.mubr.bf16.mxu0 0
  %3997 = vmatmul.mubr.bf16.gmra.mrb[0].mxu0 %v2340
  %v3998 = vpop.f32.mrb[0].mxu0
  %v3999 = vadd.f32 0.0, %v3998
  %v4000 = vpop.f32.mrb[0].mxu0
  %v4001 = vpop.f32.mrb[0].mxu0
  %v4002 = vadd.f32 0.0, %v4001
  %v4003 = vpop.f32.mrb[0].mxu0
  %4004 = vmatprep.mubr.bf16.mxu0 0
  %4005 = vmatmul.mubr.bf16.gmra.mrb[0].mxu0 %v2343
  %v4006 = vpop.f32.mrb[0].mxu0
  %v4007 = vadd.f32 0.0, %v4006
  %v4008 = vpop.f32.mrb[0].mxu0
  %v4009 = vpop.f32.mrb[0].mxu0
  %v4010 = vadd.f32 0.0, %v4009
  %v4011 = vpop.f32.mrb[0].mxu0
  %4012 = vmatprep.mubr.bf16.mxu0 0
  %4013 = vmatmul.mubr.bf16.gmra.mrb[0].mxu0 %v2346
  %v4014 = vpop.f32.mrb[0].mxu0
  %v4015 = vadd.f32 0.0, %v4014
  %v4016 = vpop.f32.mrb[0].mxu0
  %v4017 = vpop.f32.mrb[0].mxu0
  %v4018 = vadd.f32 0.0, %v4017
  %v4019 = vpop.f32.mrb[0].mxu0
  %4020 = vmatprep.mubr.bf16.mxu0 0
  %4021 = vmatmul.mubr.bf16.gmra.mrb[0].mxu0 %v2349
  %v4022 = vpop.f32.mrb[0].mxu0
  %v4023 = vadd.f32 0.0, %v4022
  %v4024 = vpop.f32.mrb[0].mxu0
  %v4025 = vpop.f32.mrb[0].mxu0
  %v4026 = vadd.f32 0.0, %v4025
  %v4027 = vpop.f32.mrb[0].mxu0
  %4028 = vmatprep.mubr.bf16.mxu0 0
  %4029 = vmatmul.mubr.bf16.gmra.mrb[0].mxu0 %v2352
  %v4030 = vpop.f32.mrb[0].mxu0
  %v4031 = vadd.f32 0.0, %v4030
  %v4032 = vpop.f32.mrb[0].mxu0
  %v4033 = vpop.f32.mrb[0].mxu0
  %v4034 = vadd.f32 0.0, %v4033
  %v4035 = vpop.f32.mrb[0].mxu0
  %4036 = vmatprep.mubr.bf16.mxu0 0
  %4037 = vmatmul.mubr.bf16.gmra.mrb[0].mxu0 %v2355
  %v4038 = vpop.f32.mrb[0].mxu0
  %v4039 = vadd.f32 0.0, %v4038
  %v4040 = vpop.f32.mrb[0].mxu0
  %v4041 = vpop.f32.mrb[0].mxu0
  %v4042 = vadd.f32 0.0, %v4041
  %v4043 = vpop.f32.mrb[0].mxu0
  %4044 = vmatprep.mubr.bf16.mxu0 0
  %4045 = vmatmul.mubr.bf16.gmra.mrb[0].mxu0 %v2358
  %v4046 = vpop.f32.mrb[0].mxu0
  %v4047 = vadd.f32 0.0, %v4046
  %v4048 = vpop.f32.mrb[0].mxu0
  %v4049 = vpop.f32.mrb[0].mxu0
  %v4050 = vadd.f32 0.0, %v4049
  %v4051 = vpop.f32.mrb[0].mxu0
  %4052 = vmatprep.mubr.bf16.mxu0 0
  %4053 = vmatmul.mubr.bf16.gmra.mrb[0].mxu0 %v2361
  %v4054 = vpop.f32.mrb[0].mxu0
  %v4055 = vadd.f32 0.0, %v4054
  %v4056 = vpop.f32.mrb[0].mxu0
  %v4057 = vpop.f32.mrb[0].mxu0
  %v4058 = vadd.f32 0.0, %v4057
  %v4059 = vpop.f32.mrb[0].mxu0
  %4060 = vmatprep.mubr.bf16.mxu0 0
  %4061 = vmatmul.mubr.bf16.gmra.mrb[0].mxu0 %v2364
  %v4062 = vpop.f32.mrb[0].mxu0
  %v4063 = vadd.f32 0.0, %v4062
  %v4064 = vpop.f32.mrb[0].mxu0
  %v4065 = vpop.f32.mrb[0].mxu0
  %v4066 = vadd.f32 0.0, %v4065
  %v4067 = vpop.f32.mrb[0].mxu0
  %4068 = vmatprep.mubr.bf16.mxu0 0
  %4069 = vmatmul.mubr.bf16.gmra.mrb[0].mxu0 %v2367
  %v4070 = vpop.f32.mrb[0].mxu0
  %v4071 = vadd.f32 0.0, %v4070
  %v4072 = vpop.f32.mrb[0].mxu0
  %v4073 = vpop.f32.mrb[0].mxu0
  %v4074 = vadd.f32 0.0, %v4073
  %v4075 = vpop.f32.mrb[0].mxu0
  %4076 = vmatprep.mubr.bf16.mxu0 0
  %4077 = vmatmul.mubr.bf16.gmra.mrb[0].mxu0 %v2370
  %v4078 = vpop.f32.mrb[0].mxu0
  %v4079 = vadd.f32 0.0, %v4078
  %v4080 = vpop.f32.mrb[0].mxu0
  %v4081 = vpop.f32.mrb[0].mxu0
  %v4082 = vadd.f32 0.0, %v4081
  %v4083 = vpop.f32.mrb[0].mxu0
  %4084 = vmatprep.mubr.bf16.mxu0 0
  %4085 = vmatmul.mubr.bf16.gmra.mrb[0].mxu0 %v2373
  %v4086 = vpop.f32.mrb[0].mxu0
  %v4087 = vadd.f32 0.0, %v4086
  %v4088 = vpop.f32.mrb[0].mxu0
  %v4089 = vpop.f32.mrb[0].mxu0
  %v4090 = vadd.f32 0.0, %v4089
  %v4091 = vpop.f32.mrb[0].mxu0
  %4092 = vmatprep.mubr.bf16.mxu0 0
  %4093 = vmatmul.mubr.bf16.gmra.mrb[0].mxu0 %v2376
  %v4094 = vpop.f32.mrb[0].mxu0
  %v4095 = vadd.f32 0.0, %v4094
  %v4096 = vpop.f32.mrb[0].mxu0
  %v4097 = vpop.f32.mrb[0].mxu0
  %v4098 = vadd.f32 0.0, %v4097
  %v4099 = vpop.f32.mrb[0].mxu0
  %4100 = vmatprep.mubr.bf16.mxu0 0
  %4101 = vmatmul.mubr.bf16.gmra.mrb[0].mxu0 %v2379
  %v4102 = vpop.f32.mrb[0].mxu0
  %v4103 = vadd.f32 0.0, %v4102
  %v4104 = vpop.f32.mrb[0].mxu0
  %v4105 = vpop.f32.mrb[0].mxu0
  %v4106 = vadd.f32 0.0, %v4105
  %v4107 = vpop.f32.mrb[0].mxu0
  %4108 = vmatprep.mubr.bf16.mxu0 0
  %4109 = vmatmul.mubr.bf16.gmra.mrb[0].mxu0 %v2382
  %v4110 = vpop.f32.mrb[0].mxu0
  %v4111 = vadd.f32 0.0, %v4110
  %v4112 = vpop.f32.mrb[0].mxu0
  %v4113 = vpop.f32.mrb[0].mxu0
  %v4114 = vadd.f32 0.0, %v4113
  %v4115 = vpop.f32.mrb[0].mxu0
  %4116 = vmatprep.mubr.bf16.mxu0 0
  %4117 = vmatmul.mubr.bf16.gmra.mrb[0].mxu0 %v2385
  %v4118 = vpop.f32.mrb[0].mxu0
  %v4119 = vadd.f32 0.0, %v4118
  %v4120 = vpop.f32.mrb[0].mxu0
  %v4121 = vpop.f32.mrb[0].mxu0
  %v4122 = vadd.f32 0.0, %v4121
  %v4123 = vpop.f32.mrb[0].mxu0
  %4124 = vmatprep.mubr.bf16.mxu0 0
  %4125 = vmatmul.mubr.bf16.gmra.mrb[0].mxu0 %v2388
  %v4126 = vpop.f32.mrb[0].mxu0
  %v4127 = vadd.f32 0.0, %v4126
  %v4128 = vpop.f32.mrb[0].mxu0
  %v4129 = vpop.f32.mrb[0].mxu0
  %v4130 = vadd.f32 0.0, %v4129
  %v4131 = vpop.f32.mrb[0].mxu0
  %4132 = vmatprep.mubr.bf16.mxu0 0
  %4133 = vmatmul.mubr.bf16.gmra.mrb[0].mxu0 %v2391
  %v4134 = vpop.f32.mrb[0].mxu0
  %v4135 = vadd.f32 0.0, %v4134
  %v4136 = vpop.f32.mrb[0].mxu0
  %v4137 = vpop.f32.mrb[0].mxu0
  %v4138 = vadd.f32 0.0, %v4137
  %v4139 = vpop.f32.mrb[0].mxu0
  %4140 = vmatprep.mubr.bf16.mxu0 0
  %4141 = vmatmul.mubr.bf16.gmra.mrb[0].mxu0 %v2394
  %v4142 = vpop.f32.mrb[0].mxu0
  %v4143 = vadd.f32 0.0, %v4142
  %v4144 = vpop.f32.mrb[0].mxu0
  %v4145 = vpop.f32.mrb[0].mxu0
  %v4146 = vadd.f32 0.0, %v4145
  %v4147 = vpop.f32.mrb[0].mxu0
  %4148 = vmatprep.mubr.bf16.mxu0 0
  %4149 = vmatmul.mubr.bf16.gmra.mrb[0].mxu0 %v2397
  %v4150 = vpop.f32.mrb[0].mxu0
  %v4151 = vadd.f32 0.0, %v4150
  %v4152 = vpop.f32.mrb[0].mxu0
  %v4153 = vpop.f32.mrb[0].mxu0
  %v4154 = vadd.f32 0.0, %v4153
  %v4155 = vpop.f32.mrb[0].mxu0
  %4156 = vmatprep.mubr.bf16.mxu0 0
  %4157 = vmatmul.mubr.bf16.gmra.mrb[0].mxu0 %v2400
  %v4158 = vpop.f32.mrb[0].mxu0
  %v4159 = vadd.f32 0.0, %v4158
  %v4160 = vpop.f32.mrb[0].mxu0
  %v4161 = vpop.f32.mrb[0].mxu0
  %v4162 = vadd.f32 0.0, %v4161
  %v4163 = vpop.f32.mrb[0].mxu0
  %4164 = vmatprep.mubr.bf16.mxu0 0
  %4165 = vmatmul.mubr.bf16.gmra.mrb[0].mxu0 %v2403
  %v4166 = vpop.f32.mrb[0].mxu0
  %v4167 = vadd.f32 0.0, %v4166
  %v4168 = vpop.f32.mrb[0].mxu0
  %v4169 = vpop.f32.mrb[0].mxu0
  %v4170 = vadd.f32 0.0, %v4169
  %v4171 = vpop.f32.mrb[0].mxu0
  %4172 = vmatprep.mubr.bf16.mxu0 0
  %4173 = vmatmul.mubr.bf16.gmra.mrb[0].mxu0 %v2406
  %v4174 = vpop.f32.mrb[0].mxu0
  %v4175 = vadd.f32 0.0, %v4174
  %v4176 = vpop.f32.mrb[0].mxu0
  %v4177 = vpop.f32.mrb[0].mxu0
  %v4178 = vadd.f32 0.0, %v4177
  %v4179 = vpop.f32.mrb[0].mxu0
  %4180 = vmatprep.mubr.bf16.mxu0 0
  %4181 = vmatmul.mubr.bf16.gmra.mrb[0].mxu0 %v2409
  %v4182 = vpop.f32.mrb[0].mxu0
  %v4183 = vadd.f32 0.0, %v4182
  %v4184 = vpop.f32.mrb[0].mxu0
  %v4185 = vpop.f32.mrb[0].mxu0
  %v4186 = vadd.f32 0.0, %v4185
  %v4187 = vpop.f32.mrb[0].mxu0
  %4188 = vmatprep.mubr.bf16.mxu0 0
  %4189 = vmatmul.mubr.bf16.gmra.mrb[0].mxu0 %v2412
  %v4190 = vpop.f32.mrb[0].mxu0
  %v4191 = vadd.f32 0.0, %v4190
  %v4192 = vpop.f32.mrb[0].mxu0
  %v4193 = vpop.f32.mrb[0].mxu0
  %v4194 = vadd.f32 0.0, %v4193
  %v4195 = vpop.f32.mrb[0].mxu0
  %4196 = vmatprep.mubr.bf16.mxu0 0
  %4197 = vmatmul.mubr.bf16.gmra.mrb[0].mxu0 %v2415
  %v4198 = vpop.f32.mrb[0].mxu0
  %v4199 = vadd.f32 0.0, %v4198
  %v4200 = vpop.f32.mrb[0].mxu0
  %v4201 = vpop.f32.mrb[0].mxu0
  %v4202 = vadd.f32 0.0, %v4201
  %v4203 = vpop.f32.mrb[0].mxu0
  %4204 = vmatprep.mubr.bf16.mxu0 0
  %4205 = vmatmul.mubr.bf16.gmra.mrb[0].mxu0 %v2418
  %v4206 = vpop.f32.mrb[0].mxu0
  %v4207 = vadd.f32 0.0, %v4206
  %v4208 = vpop.f32.mrb[0].mxu0
  %v4209 = vpop.f32.mrb[0].mxu0
  %v4210 = vadd.f32 0.0, %v4209
  %v4211 = vpop.f32.mrb[0].mxu0
  %4212 = vmatprep.mubr.bf16.mxu0 0
  %4213 = vmatmul.mubr.bf16.gmra.mrb[0].mxu0 %v2421
  %v4214 = vpop.f32.mrb[0].mxu0
  %v4215 = vadd.f32 0.0, %v4214
  %v4216 = vpop.f32.mrb[0].mxu0
  %v4217 = vpop.f32.mrb[0].mxu0
  %v4218 = vadd.f32 0.0, %v4217
  %v4219 = vpop.f32.mrb[0].mxu0
  %4220 = vmatprep.mubr.bf16.mxu0 0
  %4221 = vmatmul.mubr.bf16.gmra.mrb[0].mxu0 %v2424
  %v4222 = vpop.f32.mrb[0].mxu0
  %v4223 = vadd.f32 0.0, %v4222
  %v4224 = vpop.f32.mrb[0].mxu0
  %v4225 = vpop.f32.mrb[0].mxu0
  %v4226 = vadd.f32 0.0, %v4225
  %v4227 = vpop.f32.mrb[0].mxu0
  %4228 = vmatprep.mubr.bf16.mxu0 0
  %4229 = vmatmul.mubr.bf16.gmra.mrb[0].mxu0 %v2427
  %v4230 = vpop.f32.mrb[0].mxu0
  %v4231 = vadd.f32 0.0, %v4230
  %v4232 = vpop.f32.mrb[0].mxu0
  %v4233 = vpop.f32.mrb[0].mxu0
  %v4234 = vadd.f32 0.0, %v4233
  %v4235 = vpop.f32.mrb[0].mxu0
  %4236 = vmatprep.mubr.bf16.mxu0 0
  %4237 = vmatmul.mubr.bf16.gmra.mrb[0].mxu0 %v2430
  %v4238 = vpop.f32.mrb[0].mxu0
  %v4239 = vadd.f32 0.0, %v4238
  %v4240 = vpop.f32.mrb[0].mxu0
  %v4241 = vpop.f32.mrb[0].mxu0
  %v4242 = vadd.f32 0.0, %v4241
  %v4243 = vpop.f32.mrb[0].mxu0
  %4244 = vmatprep.mubr.bf16.mxu0 0
  %4245 = vmatmul.mubr.bf16.gmra.mrb[0].mxu0 %v2433
  %v4246 = vpop.f32.mrb[0].mxu0
  %v4247 = vadd.f32 0.0, %v4246
  %v4248 = vpop.f32.mrb[0].mxu0
  %v4249 = vpop.f32.mrb[0].mxu0
  %v4250 = vadd.f32 0.0, %v4249
  %v4251 = vpop.f32.mrb[0].mxu0
  %4252 = vmatprep.mubr.bf16.mxu0 0
  %4253 = vmatmul.mubr.bf16.gmra.mrb[0].mxu0 %v2436
  %v4254 = vpop.f32.mrb[0].mxu0
  %v4255 = vadd.f32 0.0, %v4254
  %v4256 = vpop.f32.mrb[0].mxu0
  %v4257 = vpop.f32.mrb[0].mxu0
  %v4258 = vadd.f32 0.0, %v4257
  %v4259 = vpop.f32.mrb[0].mxu0
  %4260 = vmatprep.mubr.bf16.mxu0 0
  %4261 = vmatmul.mubr.bf16.gmra.mrb[0].mxu0 %v2439
  %v4262 = vpop.f32.mrb[0].mxu0
  %v4263 = vadd.f32 0.0, %v4262
  %v4264 = vpop.f32.mrb[0].mxu0
  %v4265 = vpop.f32.mrb[0].mxu0
  %v4266 = vadd.f32 0.0, %v4265
  %v4267 = vpop.f32.mrb[0].mxu0
  %4268 = vmatprep.mubr.bf16.mxu0 0
  %4269 = vmatmul.mubr.bf16.gmra.mrb[0].mxu0 %v2442
  %v4270 = vpop.f32.mrb[0].mxu0
  %v4271 = vadd.f32 0.0, %v4270
  %v4272 = vpop.f32.mrb[0].mxu0
  %v4273 = vpop.f32.mrb[0].mxu0
  %v4274 = vadd.f32 0.0, %v4273
  %v4275 = vpop.f32.mrb[0].mxu0
  %4276 = vmatprep.mubr.bf16.mxu0 0
  %4277 = vmatmul.mubr.bf16.gmra.mrb[0].mxu0 %v2445
  %v4278 = vpop.f32.mrb[0].mxu0
  %v4279 = vadd.f32 0.0, %v4278
  %v4280 = vpop.f32.mrb[0].mxu0
  %v4281 = vpop.f32.mrb[0].mxu0
  %v4282 = vadd.f32 0.0, %v4281
  %v4283 = vpop.f32.mrb[0].mxu0
  %4284 = vmatprep.mubr.bf16.mxu0 0
  %4285 = vmatmul.mubr.bf16.gmra.mrb[0].mxu0 %v2448
  %v4286 = vpop.f32.mrb[0].mxu0
  %v4287 = vadd.f32 0.0, %v4286
  %v4288 = vpop.f32.mrb[0].mxu0
  %v4289 = vpop.f32.mrb[0].mxu0
  %v4290 = vadd.f32 0.0, %v4289
  %v4291 = vpop.f32.mrb[0].mxu0
  %4292 = vmatprep.mubr.bf16.mxu0 0
  %4293 = vmatmul.mubr.bf16.gmra.mrb[0].mxu0 %v2451
  %v4294 = vpop.f32.mrb[0].mxu0
  %v4295 = vadd.f32 0.0, %v4294
  %v4296 = vpop.f32.mrb[0].mxu0
  %v4297 = vpop.f32.mrb[0].mxu0
  %v4298 = vadd.f32 0.0, %v4297
  %v4299 = vpop.f32.mrb[0].mxu0
  %4300 = vmatprep.mubr.bf16.mxu0 0
  %4301 = vmatmul.mubr.bf16.gmra.mrb[0].mxu0 %v2454
  %v4302 = vpop.f32.mrb[0].mxu0
  %v4303 = vadd.f32 0.0, %v4302
  %v4304 = vpop.f32.mrb[0].mxu0
  %v4305 = vpop.f32.mrb[0].mxu0
  %v4306 = vadd.f32 0.0, %v4305
  %v4307 = vpop.f32.mrb[0].mxu0
  %4308 = vmatprep.mubr.bf16.mxu0 0
  %4309 = vmatmul.mubr.bf16.gmra.mrb[0].mxu0 %v2457
  %v4310 = vpop.f32.mrb[0].mxu0
  %v4311 = vadd.f32 0.0, %v4310
  %v4312 = vpop.f32.mrb[0].mxu0
  %v4313 = vpop.f32.mrb[0].mxu0
  %v4314 = vadd.f32 0.0, %v4313
  %v4315 = vpop.f32.mrb[0].mxu0
  %4316 = vmatprep.mubr.bf16.mxu0 0
  %4317 = vmatmul.mubr.bf16.gmra.mrb[0].mxu0 %v2460
  %v4318 = vpop.f32.mrb[0].mxu0
  %v4319 = vadd.f32 0.0, %v4318
  %v4320 = vpop.f32.mrb[0].mxu0
  %v4321 = vpop.f32.mrb[0].mxu0
  %v4322 = vadd.f32 0.0, %v4321
  %v4323 = vpop.f32.mrb[0].mxu0
  %4324 = vmatprep.mubr.bf16.mxu0 0
  %4325 = vmatmul.mubr.bf16.gmra.mrb[0].mxu0 %v2463
  %v4326 = vpop.f32.mrb[0].mxu0
  %v4327 = vadd.f32 0.0, %v4326
  %v4328 = vpop.f32.mrb[0].mxu0
  %v4329 = vpop.f32.mrb[0].mxu0
  %v4330 = vadd.f32 0.0, %v4329
  %v4331 = vpop.f32.mrb[0].mxu0
  %4332 = vmatprep.mubr.bf16.mxu0 0
  %4333 = vmatmul.mubr.bf16.gmra.mrb[0].mxu0 %v2466
  %v4334 = vpop.f32.mrb[0].mxu0
  %v4335 = vadd.f32 0.0, %v4334
  %v4336 = vpop.f32.mrb[0].mxu0
  %v4337 = vpop.f32.mrb[0].mxu0
  %v4338 = vadd.f32 0.0, %v4337
  %v4339 = vpop.f32.mrb[0].mxu0
  %4340 = vmatprep.mubr.bf16.mxu0 0
  %4341 = vmatmul.mubr.bf16.gmra.mrb[0].mxu0 %v2469
  %v4342 = vpop.f32.mrb[0].mxu0
  %v4343 = vadd.f32 0.0, %v4342
  %v4344 = vpop.f32.mrb[0].mxu0
  %v4345 = vpop.f32.mrb[0].mxu0
  %v4346 = vadd.f32 0.0, %v4345
  %v4347 = vpop.f32.mrb[0].mxu0
  %4348 = vmatprep.mubr.bf16.mxu0 0
  %4349 = vmatmul.mubr.bf16.gmra.mrb[0].mxu0 %v2472
  %v4350 = vpop.f32.mrb[0].mxu0
  %v4351 = vadd.f32 0.0, %v4350
  %v4352 = vpop.f32.mrb[0].mxu0
  %v4353 = vpop.f32.mrb[0].mxu0
  %v4354 = vadd.f32 0.0, %v4353
  %v4355 = vpop.f32.mrb[0].mxu0
  %4356 = vmatprep.mubr.bf16.mxu0 0
  %4357 = vmatmul.mubr.bf16.gmra.mrb[0].mxu0 %v2475
  %v4358 = vpop.f32.mrb[0].mxu0
  %v4359 = vadd.f32 0.0, %v4358
  %v4360 = vpop.f32.mrb[0].mxu0
  %v4361 = vpop.f32.mrb[0].mxu0
  %v4362 = vadd.f32 0.0, %v4361
  %v4363 = vpop.f32.mrb[0].mxu0
  %4364 = vmatprep.mubr.bf16.mxu0 0
  %4365 = vmatmul.mubr.bf16.gmra.mrb[0].mxu0 %v2478
  %v4366 = vpop.f32.mrb[0].mxu0
  %v4367 = vadd.f32 0.0, %v4366
  %v4368 = vpop.f32.mrb[0].mxu0
  %v4369 = vpop.f32.mrb[0].mxu0
  %v4370 = vadd.f32 0.0, %v4369
  %v4371 = vpop.f32.mrb[0].mxu0
  %4372 = vmatprep.mubr.bf16.mxu0 0
  %4373 = vmatmul.mubr.bf16.gmra.mrb[0].mxu0 %v2481
  %v4374 = vpop.f32.mrb[0].mxu0
  %v4375 = vadd.f32 0.0, %v4374
  %v4376 = vpop.f32.mrb[0].mxu0
  %v4377 = vpop.f32.mrb[0].mxu0
  %v4378 = vadd.f32 0.0, %v4377
  %v4379 = vpop.f32.mrb[0].mxu0
  %4380 = vmatprep.mubr.bf16.mxu0 0
  %4381 = vmatmul.mubr.bf16.gmra.mrb[0].mxu0 %v2484
  %v4382 = vpop.f32.mrb[0].mxu0
  %v4383 = vadd.f32 0.0, %v4382
  %v4384 = vpop.f32.mrb[0].mxu0
  %v4385 = vpop.f32.mrb[0].mxu0
  %v4386 = vadd.f32 0.0, %v4385
  %v4387 = vpop.f32.mrb[0].mxu0
  %4388 = vmatprep.mubr.bf16.mxu0 0
  %4389 = vmatmul.mubr.bf16.gmra.mrb[0].mxu0 %v2487
  %v4390 = vpop.f32.mrb[0].mxu0
  %v4391 = vadd.f32 0.0, %v4390
  %v4392 = vpop.f32.mrb[0].mxu0
  %v4393 = vpop.f32.mrb[0].mxu0
  %v4394 = vadd.f32 0.0, %v4393
  %v4395 = vpop.f32.mrb[0].mxu0
  %4396 = vmatprep.mubr.bf16.mxu0 0
  %4397 = vmatmul.mubr.bf16.gmra.mrb[0].mxu0 %v2490
  %v4398 = vpop.f32.mrb[0].mxu0
  %v4399 = vadd.f32 0.0, %v4398
  %v4400 = vpop.f32.mrb[0].mxu0
  %v4401 = vpop.f32.mrb[0].mxu0
  %v4402 = vadd.f32 0.0, %v4401
  %v4403 = vpop.f32.mrb[0].mxu0
  %4404 = vmatprep.mubr.bf16.mxu0 0
  %4405 = vmatmul.mubr.bf16.gmra.mrb[0].mxu0 %v2493
  %v4406 = vpop.f32.mrb[0].mxu0
  %v4407 = vadd.f32 0.0, %v4406
  %v4408 = vpop.f32.mrb[0].mxu0
  %v4409 = vpop.f32.mrb[0].mxu0
  %v4410 = vadd.f32 0.0, %v4409
  %v4411 = vpop.f32.mrb[0].mxu0
  %4412 = vmatprep.mubr.bf16.mxu0 0
  %4413 = vmatmul.mubr.bf16.gmra.mrb[0].mxu0 %v2496
  %v4414 = vpop.f32.mrb[0].mxu0
  %v4415 = vadd.f32 0.0, %v4414
  %v4416 = vpop.f32.mrb[0].mxu0
  %v4417 = vpop.f32.mrb[0].mxu0
  %v4418 = vadd.f32 0.0, %v4417
  %v4419 = vpop.f32.mrb[0].mxu0
  %4420 = vmatprep.mubr.bf16.mxu0 0
  %4421 = vmatmul.mubr.bf16.gmra.mrb[0].mxu0 %v2499
  %v4422 = vpop.f32.mrb[0].mxu0
  %v4423 = vadd.f32 0.0, %v4422
  %v4424 = vpop.f32.mrb[0].mxu0
  %v4425 = vpop.f32.mrb[0].mxu0
  %v4426 = vadd.f32 0.0, %v4425
  %v4427 = vpop.f32.mrb[0].mxu0
  %4428 = vmatprep.mubr.bf16.mxu0 0
  %4429 = vmatmul.mubr.bf16.gmra.mrb[0].mxu0 %v2502
  %v4430 = vpop.f32.mrb[0].mxu0
  %v4431 = vadd.f32 0.0, %v4430
  %v4432 = vpop.f32.mrb[0].mxu0
  %v4433 = vpop.f32.mrb[0].mxu0
  %v4434 = vadd.f32 0.0, %v4433
  %v4435 = vpop.f32.mrb[0].mxu0
  %4436 = vmatprep.mubr.bf16.mxu0 0
  %4437 = vmatmul.mubr.bf16.gmra.mrb[0].mxu0 %v2505
  %v4438 = vpop.f32.mrb[0].mxu0
  %v4439 = vadd.f32 0.0, %v4438
  %v4440 = vpop.f32.mrb[0].mxu0
  %v4441 = vpop.f32.mrb[0].mxu0
  %v4442 = vadd.f32 0.0, %v4441
  %v4443 = vpop.f32.mrb[0].mxu0
  %4444 = vmatprep.mubr.bf16.mxu0 0
  %4445 = vmatmul.mubr.bf16.gmra.mrb[0].mxu0 %v2508
  %v4446 = vpop.f32.mrb[0].mxu0
  %v4447 = vadd.f32 0.0, %v4446
  %v4448 = vpop.f32.mrb[0].mxu0
  %v4449 = vpop.f32.mrb[0].mxu0
  %v4450 = vadd.f32 0.0, %v4449
  %v4451 = vpop.f32.mrb[0].mxu0
  %4452 = vmatprep.mubr.bf16.mxu0 0
  %4453 = vmatmul.mubr.bf16.gmra.mrb[0].mxu0 %v2511
  %v4454 = vpop.f32.mrb[0].mxu0
  %v4455 = vadd.f32 0.0, %v4454
  %v4456 = vpop.f32.mrb[0].mxu0
  %v4457 = vpop.f32.mrb[0].mxu0
  %v4458 = vadd.f32 0.0, %v4457
  %v4459 = vpop.f32.mrb[0].mxu0
  %4460 = vmatprep.mubr.bf16.mxu0 0
  %4461 = vmatmul.mubr.bf16.gmra.mrb[0].mxu0 %v2514
  %v4462 = vpop.f32.mrb[0].mxu0
  %v4463 = vadd.f32 0.0, %v4462
  %v4464 = vpop.f32.mrb[0].mxu0
  %v4465 = vpop.f32.mrb[0].mxu0
  %v4466 = vadd.f32 0.0, %v4465
  %v4467 = vpop.f32.mrb[0].mxu0
  %4468 = vmatprep.mubr.bf16.mxu0 0
  %4469 = vmatmul.mubr.bf16.gmra.mrb[0].mxu0 %v2517
  %v4470 = vpop.f32.mrb[0].mxu0
  %v4471 = vadd.f32 0.0, %v4470
  %v4472 = vpop.f32.mrb[0].mxu0
  %v4473 = vpop.f32.mrb[0].mxu0
  %v4474 = vadd.f32 0.0, %v4473
  %v4475 = vpop.f32.mrb[0].mxu0
  %4476 = vmatprep.mubr.bf16.mxu0 0
  %4477 = vmatmul.mubr.bf16.gmra.mrb[0].mxu0 %v2520
  %v4478 = vpop.f32.mrb[0].mxu0
  %v4479 = vadd.f32 0.0, %v4478
  %v4480 = vpop.f32.mrb[0].mxu0
  %v4481 = vpop.f32.mrb[0].mxu0
  %v4482 = vadd.f32 0.0, %v4481
  %v4483 = vpop.f32.mrb[0].mxu0
  %4484 = vmatprep.mubr.bf16.mxu0 0
  %4485 = vmatmul.mubr.bf16.gmra.mrb[0].mxu0 %v2523
  %v4486 = vpop.f32.mrb[0].mxu0
  %v4487 = vadd.f32 0.0, %v4486
  %v4488 = vpop.f32.mrb[0].mxu0
  %v4489 = vpop.f32.mrb[0].mxu0
  %v4490 = vadd.f32 0.0, %v4489
  %v4491 = vpop.f32.mrb[0].mxu0
  %4492 = vmatprep.mubr.bf16.mxu0 0
  %4493 = vmatmul.mubr.bf16.gmra.mrb[0].mxu0 %v2526
  %v4494 = vpop.f32.mrb[0].mxu0
  %v4495 = vadd.f32 0.0, %v4494
  %v4496 = vpop.f32.mrb[0].mxu0
  %v4497 = vpop.f32.mrb[0].mxu0
  %v4498 = vadd.f32 0.0, %v4497
  %v4499 = vpop.f32.mrb[0].mxu0
  %4500 = vmatprep.mubr.bf16.mxu0 0
  %4501 = vmatmul.mubr.bf16.gmra.mrb[0].mxu0 %v2529
  %v4502 = vpop.f32.mrb[0].mxu0
  %v4503 = vadd.f32 0.0, %v4502
  %v4504 = vpop.f32.mrb[0].mxu0
  %v4505 = vpop.f32.mrb[0].mxu0
  %v4506 = vadd.f32 0.0, %v4505
  %v4507 = vpop.f32.mrb[0].mxu0
  %4508 = vmatprep.mubr.bf16.mxu0 0
  %4509 = vmatmul.mubr.bf16.gmra.mrb[0].mxu0 %v2532
  %v4510 = vpop.f32.mrb[0].mxu0
  %v4511 = vadd.f32 0.0, %v4510
  %v4512 = vpop.f32.mrb[0].mxu0
  %v4513 = vpop.f32.mrb[0].mxu0
  %v4514 = vadd.f32 0.0, %v4513
  %v4515 = vpop.f32.mrb[0].mxu0
  %4516 = vmatprep.mubr.bf16.mxu0 0
  %4517 = vmatmul.mubr.bf16.gmra.mrb[0].mxu0 %v2535
  %v4518 = vpop.f32.mrb[0].mxu0
  %v4519 = vadd.f32 0.0, %v4518
  %v4520 = vpop.f32.mrb[0].mxu0
  %v4521 = vpop.f32.mrb[0].mxu0
  %v4522 = vadd.f32 0.0, %v4521
  %v4523 = vpop.f32.mrb[0].mxu0
  %4524 = vmatprep.mubr.bf16.mxu0 0
  %4525 = vmatmul.mubr.bf16.gmra.mrb[0].mxu0 %v2538
  %v4526 = vpop.f32.mrb[0].mxu0
  %v4527 = vadd.f32 0.0, %v4526
  %v4528 = vpop.f32.mrb[0].mxu0
  %v4529 = vpop.f32.mrb[0].mxu0
  %v4530 = vadd.f32 0.0, %v4529
  %v4531 = vpop.f32.mrb[0].mxu0
  %4532 = vmatprep.mubr.bf16.mxu0 0
  %4533 = vmatmul.mubr.bf16.gmra.mrb[0].mxu0 %v2541
  %v4534 = vpop.f32.mrb[0].mxu0
  %v4535 = vadd.f32 0.0, %v4534
  %v4536 = vpop.f32.mrb[0].mxu0
  %v4537 = vpop.f32.mrb[0].mxu0
  %v4538 = vadd.f32 0.0, %v4537
  %v4539 = vpop.f32.mrb[0].mxu0
  %4540 = vmatprep.mubr.bf16.mxu0 0
  %4541 = vmatmul.mubr.bf16.gmra.mrb[0].mxu0 %v2544
  %v4542 = vpop.f32.mrb[0].mxu0
  %v4543 = vadd.f32 0.0, %v4542
  %v4544 = vpop.f32.mrb[0].mxu0
  %v4545 = vpop.f32.mrb[0].mxu0
  %v4546 = vadd.f32 0.0, %v4545
  %v4547 = vpop.f32.mrb[0].mxu0
  %4548 = vmatprep.mubr.bf16.mxu0 0
  %4549 = vmatmul.mubr.bf16.gmra.mrb[0].mxu0 %v2547
  %v4550 = vpop.f32.mrb[0].mxu0
  %v4551 = vadd.f32 0.0, %v4550
  %v4552 = vpop.f32.mrb[0].mxu0
  %v4553 = vpop.f32.mrb[0].mxu0
  %v4554 = vadd.f32 0.0, %v4553
  %v4555 = vpop.f32.mrb[0].mxu0
  %4556 = vmatprep.mubr.bf16.mxu0 0
  %4557 = vmatmul.mubr.bf16.gmra.mrb[0].mxu0 %v2550
  %v4558 = vpop.f32.mrb[0].mxu0
  %v4559 = vadd.f32 0.0, %v4558
  %v4560 = vpop.f32.mrb[0].mxu0
  %v4561 = vpop.f32.mrb[0].mxu0
  %v4562 = vadd.f32 0.0, %v4561
  %v4563 = vpop.f32.mrb[0].mxu0
  %4564 = vmatprep.mubr.bf16.mxu0 0
  %4565 = vmatmul.mubr.bf16.gmra.mrb[0].mxu0 %v2553
  %v4566 = vpop.f32.mrb[0].mxu0
  %v4567 = vadd.f32 0.0, %v4566
  %v4568 = vpop.f32.mrb[0].mxu0
  %v4569 = vpop.f32.mrb[0].mxu0
  %v4570 = vadd.f32 0.0, %v4569
  %v4571 = vpop.f32.mrb[0].mxu0
  %4572 = vmatprep.mubr.bf16.mxu0 0
  %4573 = vmatmul.mubr.bf16.gmra.mrb[0].mxu0 %v2556
  %v4574 = vpop.f32.mrb[0].mxu0
  %v4575 = vadd.f32 0.0, %v4574
  %v4576 = vpop.f32.mrb[0].mxu0
  %v4577 = vpop.f32.mrb[0].mxu0
  %v4578 = vadd.f32 0.0, %v4577
  %v4579 = vpop.f32.mrb[0].mxu0
  %4580 = vmatprep.mubr.bf16.mxu0 0
  %4581 = vmatmul.mubr.bf16.gmra.mrb[0].mxu0 %v2559
  %v4582 = vpop.f32.mrb[0].mxu0
  %v4583 = vadd.f32 0.0, %v4582
  %v4584 = vpop.f32.mrb[0].mxu0
  %v4585 = vpop.f32.mrb[0].mxu0
  %v4586 = vadd.f32 0.0, %v4585
  %v4587 = vpop.f32.mrb[0].mxu0
  %4588 = vmatprep.mubr.bf16.mxu0 0
  %4589 = vmatmul.mubr.bf16.gmra.mrb[0].mxu0 %v2562
  %v4590 = vpop.f32.mrb[0].mxu0
  %v4591 = vadd.f32 0.0, %v4590
  %v4592 = vpop.f32.mrb[0].mxu0
  %v4593 = vpop.f32.mrb[0].mxu0
  %v4594 = vadd.f32 0.0, %v4593
  %v4595 = vpop.f32.mrb[0].mxu0
  %4596 = vmatprep.mubr.bf16.mxu0 0
  %4597 = vmatmul.mubr.bf16.gmra.mrb[0].mxu0 %v2565
  %v4598 = vpop.f32.mrb[0].mxu0
  %v4599 = vadd.f32 0.0, %v4598
  %v4600 = vpop.f32.mrb[0].mxu0
  %v4601 = vpop.f32.mrb[0].mxu0
  %v4602 = vadd.f32 0.0, %v4601
  %v4603 = vpop.f32.mrb[0].mxu0
  %4604 = vmatprep.mubr.bf16.mxu0 0
  %4605 = vmatmul.mubr.bf16.gmra.mrb[0].mxu0 %v2568
  %v4606 = vpop.f32.mrb[0].mxu0
  %v4607 = vadd.f32 0.0, %v4606
  %v4608 = vpop.f32.mrb[0].mxu0
  %v4609 = vpop.f32.mrb[0].mxu0
  %v4610 = vadd.f32 0.0, %v4609
  %v4611 = vpop.f32.mrb[0].mxu0
  %4612 = vmatprep.mubr.bf16.mxu0 0
  %4613 = vmatmul.mubr.bf16.gmra.mrb[0].mxu0 %v2571
  %v4614 = vpop.f32.mrb[0].mxu0
  %v4615 = vadd.f32 0.0, %v4614
  %v4616 = vpop.f32.mrb[0].mxu0
  %v4617 = vpop.f32.mrb[0].mxu0
  %v4618 = vadd.f32 0.0, %v4617
  %v4619 = vpop.f32.mrb[0].mxu0
  %4620 = vmatprep.mubr.bf16.mxu0 0
  %4621 = vmatmul.mubr.bf16.gmra.mrb[0].mxu0 %v2574
  %v4622 = vpop.f32.mrb[0].mxu0
  %v4623 = vadd.f32 0.0, %v4622
  %v4624 = vpop.f32.mrb[0].mxu0
  %v4625 = vpop.f32.mrb[0].mxu0
  %v4626 = vadd.f32 0.0, %v4625
  %v4627 = vpop.f32.mrb[0].mxu0
  %4628 = vmatprep.mubr.bf16.mxu0 0
  %4629 = vmatmul.mubr.bf16.gmra.mrb[0].mxu0 %v2577
  %v4630 = vpop.f32.mrb[0].mxu0
  %v4631 = vadd.f32 0.0, %v4630
  %v4632 = vpop.f32.mrb[0].mxu0
  %v4633 = vpop.f32.mrb[0].mxu0
  %v4634 = vadd.f32 0.0, %v4633
  %v4635 = vpop.f32.mrb[0].mxu0
  %4636 = vmatprep.mubr.bf16.mxu0 0
  %4637 = vmatmul.mubr.bf16.gmra.mrb[0].mxu0 %v2580
  %v4638 = vpop.f32.mrb[0].mxu0
  %v4639 = vadd.f32 0.0, %v4638
  %v4640 = vpop.f32.mrb[0].mxu0
  %v4641 = vpop.f32.mrb[0].mxu0
  %v4642 = vadd.f32 0.0, %v4641
  %v4643 = vpop.f32.mrb[0].mxu0
  %4644 = vmatprep.mubr.bf16.mxu0 0
  %4645 = vmatmul.mubr.bf16.gmra.mrb[0].mxu0 %v2583
  %v4646 = vpop.f32.mrb[0].mxu0
  %v4647 = vadd.f32 0.0, %v4646
  %v4648 = vpop.f32.mrb[0].mxu0
  %v4649 = vpop.f32.mrb[0].mxu0
  %v4650 = vadd.f32 0.0, %v4649
  %v4651 = vpop.f32.mrb[0].mxu0
  %4652 = vmatprep.mubr.bf16.mxu0 0
  %4653 = vmatmul.mubr.bf16.gmra.mrb[0].mxu0 %v2586
  %v4654 = vpop.f32.mrb[0].mxu0
  %v4655 = vadd.f32 0.0, %v4654
  %v4656 = vpop.f32.mrb[0].mxu0
  %v4657 = vpop.f32.mrb[0].mxu0
  %v4658 = vadd.f32 0.0, %v4657
  %v4659 = vpop.f32.mrb[0].mxu0
  %4660 = vmatprep.mubr.bf16.mxu0 0
  %4661 = vmatmul.mubr.bf16.gmra.mrb[0].mxu0 %v2589
  %v4662 = vpop.f32.mrb[0].mxu0
  %v4663 = vadd.f32 0.0, %v4662
  %v4664 = vpop.f32.mrb[0].mxu0
  %v4665 = vpop.f32.mrb[0].mxu0
  %v4666 = vadd.f32 0.0, %v4665
  %v4667 = vpop.f32.mrb[0].mxu0
  %4668 = vmatprep.mubr.bf16.mxu0 0
  %4669 = vmatmul.mubr.bf16.gmra.mrb[0].mxu0 %v2592
  %v4670 = vpop.f32.mrb[0].mxu0
  %v4671 = vadd.f32 0.0, %v4670
  %v4672 = vpop.f32.mrb[0].mxu0
  %v4673 = vpop.f32.mrb[0].mxu0
  %v4674 = vadd.f32 0.0, %v4673
  %v4675 = vpop.f32.mrb[0].mxu0
  %4676 = vmatprep.mubr.bf16.mxu0 0
  %4677 = vmatmul.mubr.bf16.gmra.mrb[0].mxu0 %v2595
  %v4678 = vpop.f32.mrb[0].mxu0
  %v4679 = vadd.f32 0.0, %v4678
  %v4680 = vpop.f32.mrb[0].mxu0
  %v4681 = vpop.f32.mrb[0].mxu0
  %v4682 = vadd.f32 0.0, %v4681
  %v4683 = vpop.f32.mrb[0].mxu0
  %4684 = vdwg.mxu0
  %v4685 = vmax.f32 %v2639, %v3151
  %v4686 = vmax.f32 %v2642, %v3154
  %v4687 = vmax.f32 %v2647, %v3159
  %v4688 = vmax.f32 %v2650, %v3162
  %v4689 = vmax.f32 %v2655, %v3167
  %v4690 = vmax.f32 %v2658, %v3170
  %v4691 = vmax.f32 %v2663, %v3175
  %v4692 = vmax.f32 %v2666, %v3178
  %v4693 = vmax.f32 %v2671, %v3183
  %v4694 = vmax.f32 %v2674, %v3186
  %v4695 = vmax.f32 %v2679, %v3191
  %v4696 = vmax.f32 %v2682, %v3194
  %v4697 = vmax.f32 %v2687, %v3199
  %v4698 = vmax.f32 %v2690, %v3202
  %v4699 = vmax.f32 %v2695, %v3207
  %v4700 = vmax.f32 %v2698, %v3210
  %v4701 = vmax.f32 %v2703, %v3215
  %v4702 = vmax.f32 %v2706, %v3218
  %v4703 = vmax.f32 %v2711, %v3223
  %v4704 = vmax.f32 %v2714, %v3226
  %v4705 = vmax.f32 %v2719, %v3231
  %v4706 = vmax.f32 %v2722, %v3234
  %v4707 = vmax.f32 %v2727, %v3239
  %v4708 = vmax.f32 %v2730, %v3242
  %v4709 = vmax.f32 %v2735, %v3247
  %v4710 = vmax.f32 %v2738, %v3250
  %v4711 = vmax.f32 %v2743, %v3255
  %v4712 = vmax.f32 %v2746, %v3258
  %v4713 = vmax.f32 %v2751, %v3263
  %v4714 = vmax.f32 %v2754, %v3266
  %v4715 = vmax.f32 %v2759, %v3271
  %v4716 = vmax.f32 %v2762, %v3274
  %v4717 = vmax.f32 %v2767, %v3279
  %v4718 = vmax.f32 %v2770, %v3282
  %v4719 = vmax.f32 %v2775, %v3287
  %v4720 = vmax.f32 %v2778, %v3290
  %v4721 = vmax.f32 %v2783, %v3295
  %v4722 = vmax.f32 %v2786, %v3298
  %v4723 = vmax.f32 %v2791, %v3303
  %v4724 = vmax.f32 %v2794, %v3306
  %v4725 = vmax.f32 %v2799, %v3311
  %v4726 = vmax.f32 %v2802, %v3314
  %v4727 = vmax.f32 %v2807, %v3319
  %v4728 = vmax.f32 %v2810, %v3322
  %v4729 = vmax.f32 %v2815, %v3327
  %v4730 = vmax.f32 %v2818, %v3330
  %v4731 = vmax.f32 %v2823, %v3335
  %v4732 = vmax.f32 %v2826, %v3338
  %v4733 = vmax.f32 %v2831, %v3343
  %v4734 = vmax.f32 %v2834, %v3346
  %v4735 = vmax.f32 %v2839, %v3351
  %v4736 = vmax.f32 %v2842, %v3354
  %v4737 = vmax.f32 %v2847, %v3359
  %v4738 = vmax.f32 %v2850, %v3362
  %v4739 = vmax.f32 %v2855, %v3367
  %v4740 = vmax.f32 %v2858, %v3370
  %v4741 = vmax.f32 %v2863, %v3375
  %v4742 = vmax.f32 %v2866, %v3378
  %v4743 = vmax.f32 %v2871, %v3383
  %v4744 = vmax.f32 %v2874, %v3386
  %v4745 = vmax.f32 %v2879, %v3391
  %v4746 = vmax.f32 %v2882, %v3394
  %v4747 = vmax.f32 %v2887, %v3399
  %v4748 = vmax.f32 %v2890, %v3402
  %v4749 = vmax.f32 %v2895, %v3407
  %v4750 = vmax.f32 %v2898, %v3410
  %v4751 = vmax.f32 %v2903, %v3415
  %v4752 = vmax.f32 %v2906, %v3418
  %v4753 = vmax.f32 %v2911, %v3423
  %v4754 = vmax.f32 %v2914, %v3426
  %v4755 = vmax.f32 %v2919, %v3431
  %v4756 = vmax.f32 %v2922, %v3434
  %v4757 = vmax.f32 %v2927, %v3439
  %v4758 = vmax.f32 %v2930, %v3442
  %v4759 = vmax.f32 %v2935, %v3447
  %v4760 = vmax.f32 %v2938, %v3450
  %v4761 = vmax.f32 %v2943, %v3455
  %v4762 = vmax.f32 %v2946, %v3458
  %v4763 = vmax.f32 %v2951, %v3463
  %v4764 = vmax.f32 %v2954, %v3466
  %v4765 = vmax.f32 %v2959, %v3471
  %v4766 = vmax.f32 %v2962, %v3474
  %v4767 = vmax.f32 %v2967, %v3479
  %v4768 = vmax.f32 %v2970, %v3482
  %v4769 = vmax.f32 %v2975, %v3487
  %v4770 = vmax.f32 %v2978, %v3490
  %v4771 = vmax.f32 %v2983, %v3495
  %v4772 = vmax.f32 %v2986, %v3498
  %v4773 = vmax.f32 %v2991, %v3503
  %v4774 = vmax.f32 %v2994, %v3506
  %v4775 = vmax.f32 %v2999, %v3511
  %v4776 = vmax.f32 %v3002, %v3514
  %v4777 = vmax.f32 %v3007, %v3519
  %v4778 = vmax.f32 %v3010, %v3522
  %v4779 = vmax.f32 %v3015, %v3527
  %v4780 = vmax.f32 %v3018, %v3530
  %v4781 = vmax.f32 %v3023, %v3535
  %v4782 = vmax.f32 %v3026, %v3538
  %v4783 = vmax.f32 %v3031, %v3543
  %v4784 = vmax.f32 %v3034, %v3546
  %v4785 = vmax.f32 %v3039, %v3551
  %v4786 = vmax.f32 %v3042, %v3554
  %v4787 = vmax.f32 %v3047, %v3559
  %v4788 = vmax.f32 %v3050, %v3562
  %v4789 = vmax.f32 %v3055, %v3567
  %v4790 = vmax.f32 %v3058, %v3570
  %v4791 = vmax.f32 %v3063, %v3575
  %v4792 = vmax.f32 %v3066, %v3578
  %v4793 = vmax.f32 %v3071, %v3583
  %v4794 = vmax.f32 %v3074, %v3586
  %v4795 = vmax.f32 %v3079, %v3591
  %v4796 = vmax.f32 %v3082, %v3594
  %v4797 = vmax.f32 %v3087, %v3599
  %v4798 = vmax.f32 %v3090, %v3602
  %v4799 = vmax.f32 %v3095, %v3607
  %v4800 = vmax.f32 %v3098, %v3610
  %v4801 = vmax.f32 %v3103, %v3615
  %v4802 = vmax.f32 %v3106, %v3618
  %v4803 = vmax.f32 %v3111, %v3623
  %v4804 = vmax.f32 %v3114, %v3626
  %v4805 = vmax.f32 %v3119, %v3631
  %v4806 = vmax.f32 %v3122, %v3634
  %v4807 = vmax.f32 %v3127, %v3639
  %v4808 = vmax.f32 %v3130, %v3642
  %v4809 = vmax.f32 %v3135, %v3647
  %v4810 = vmax.f32 %v3138, %v3650
  %v4811 = vmax.f32 %v3143, %v3655
  %v4812 = vmax.f32 %v3146, %v3658
  %v4813 = vmax.f32 %v3663, %v4175
  %v4814 = vmax.f32 %v3666, %v4178
  %v4815 = vmax.f32 %v3671, %v4183
  %v4816 = vmax.f32 %v3674, %v4186
  %v4817 = vmax.f32 %v3679, %v4191
  %v4818 = vmax.f32 %v3682, %v4194
  %v4819 = vmax.f32 %v3687, %v4199
  %v4820 = vmax.f32 %v3690, %v4202
  %v4821 = vmax.f32 %v3695, %v4207
  %v4822 = vmax.f32 %v3698, %v4210
  %v4823 = vmax.f32 %v3703, %v4215
  %v4824 = vmax.f32 %v3706, %v4218
  %v4825 = vmax.f32 %v3711, %v4223
  %v4826 = vmax.f32 %v3714, %v4226
  %v4827 = vmax.f32 %v3719, %v4231
  %v4828 = vmax.f32 %v3722, %v4234
  %v4829 = vmax.f32 %v3727, %v4239
  %v4830 = vmax.f32 %v3730, %v4242
  %v4831 = vmax.f32 %v3735, %v4247
  %v4832 = vmax.f32 %v3738, %v4250
  %v4833 = vmax.f32 %v3743, %v4255
  %v4834 = vmax.f32 %v3746, %v4258
  %v4835 = vmax.f32 %v3751, %v4263
  %v4836 = vmax.f32 %v3754, %v4266
  %v4837 = vmax.f32 %v3759, %v4271
  %v4838 = vmax.f32 %v3762, %v4274
  %v4839 = vmax.f32 %v3767, %v4279
  %v4840 = vmax.f32 %v3770, %v4282
  %v4841 = vmax.f32 %v3775, %v4287
  %v4842 = vmax.f32 %v3778, %v4290
  %v4843 = vmax.f32 %v3783, %v4295
  %v4844 = vmax.f32 %v3786, %v4298
  %v4845 = vmax.f32 %v3791, %v4303
  %v4846 = vmax.f32 %v3794, %v4306
  %v4847 = vmax.f32 %v3799, %v4311
  %v4848 = vmax.f32 %v3802, %v4314
  %v4849 = vmax.f32 %v3807, %v4319
  %v4850 = vmax.f32 %v3810, %v4322
  %v4851 = vmax.f32 %v3815, %v4327
  %v4852 = vmax.f32 %v3818, %v4330
  %v4853 = vmax.f32 %v3823, %v4335
  %v4854 = vmax.f32 %v3826, %v4338
  %v4855 = vmax.f32 %v3831, %v4343
  %v4856 = vmax.f32 %v3834, %v4346
  %v4857 = vmax.f32 %v3839, %v4351
  %v4858 = vmax.f32 %v3842, %v4354
  %v4859 = vmax.f32 %v3847, %v4359
  %v4860 = vmax.f32 %v3850, %v4362
  %v4861 = vmax.f32 %v3855, %v4367
  %v4862 = vmax.f32 %v3858, %v4370
  %v4863 = vmax.f32 %v3863, %v4375
  %v4864 = vmax.f32 %v3866, %v4378
  %v4865 = vmax.f32 %v3871, %v4383
  %v4866 = vmax.f32 %v3874, %v4386
  %v4867 = vmax.f32 %v3879, %v4391
  %v4868 = vmax.f32 %v3882, %v4394
  %v4869 = vmax.f32 %v3887, %v4399
  %v4870 = vmax.f32 %v3890, %v4402
  %v4871 = vmax.f32 %v3895, %v4407
  %v4872 = vmax.f32 %v3898, %v4410
  %v4873 = vmax.f32 %v3903, %v4415
  %v4874 = vmax.f32 %v3906, %v4418
  %v4875 = vmax.f32 %v3911, %v4423
  %v4876 = vmax.f32 %v3914, %v4426
  %v4877 = vmax.f32 %v3919, %v4431
  %v4878 = vmax.f32 %v3922, %v4434
  %v4879 = vmax.f32 %v3927, %v4439
  %v4880 = vmax.f32 %v3930, %v4442
  %v4881 = vmax.f32 %v3935, %v4447
  %v4882 = vmax.f32 %v3938, %v4450
  %v4883 = vmax.f32 %v3943, %v4455
  %v4884 = vmax.f32 %v3946, %v4458
  %v4885 = vmax.f32 %v3951, %v4463
  %v4886 = vmax.f32 %v3954, %v4466
  %v4887 = vmax.f32 %v3959, %v4471
  %v4888 = vmax.f32 %v3962, %v4474
  %v4889 = vmax.f32 %v3967, %v4479
  %v4890 = vmax.f32 %v3970, %v4482
  %v4891 = vmax.f32 %v3975, %v4487
  %v4892 = vmax.f32 %v3978, %v4490
  %v4893 = vmax.f32 %v3983, %v4495
  %v4894 = vmax.f32 %v3986, %v4498
  %v4895 = vmax.f32 %v3991, %v4503
  %v4896 = vmax.f32 %v3994, %v4506
  %v4897 = vmax.f32 %v3999, %v4511
  %v4898 = vmax.f32 %v4002, %v4514
  %v4899 = vmax.f32 %v4007, %v4519
  %v4900 = vmax.f32 %v4010, %v4522
  %v4901 = vmax.f32 %v4015, %v4527
  %v4902 = vmax.f32 %v4018, %v4530
  %v4903 = vmax.f32 %v4023, %v4535
  %v4904 = vmax.f32 %v4026, %v4538
  %v4905 = vmax.f32 %v4031, %v4543
  %v4906 = vmax.f32 %v4034, %v4546
  %v4907 = vmax.f32 %v4039, %v4551
  %v4908 = vmax.f32 %v4042, %v4554
  %v4909 = vmax.f32 %v4047, %v4559
  %v4910 = vmax.f32 %v4050, %v4562
  %v4911 = vmax.f32 %v4055, %v4567
  %v4912 = vmax.f32 %v4058, %v4570
  %v4913 = vmax.f32 %v4063, %v4575
  %v4914 = vmax.f32 %v4066, %v4578
  %v4915 = vmax.f32 %v4071, %v4583
  %v4916 = vmax.f32 %v4074, %v4586
  %v4917 = vmax.f32 %v4079, %v4591
  %v4918 = vmax.f32 %v4082, %v4594
  %v4919 = vmax.f32 %v4087, %v4599
  %v4920 = vmax.f32 %v4090, %v4602
  %v4921 = vmax.f32 %v4095, %v4607
  %v4922 = vmax.f32 %v4098, %v4610
  %v4923 = vmax.f32 %v4103, %v4615
  %v4924 = vmax.f32 %v4106, %v4618
  %v4925 = vmax.f32 %v4111, %v4623
  %v4926 = vmax.f32 %v4114, %v4626
  %v4927 = vmax.f32 %v4119, %v4631
  %v4928 = vmax.f32 %v4122, %v4634
  %v4929 = vmax.f32 %v4127, %v4639
  %v4930 = vmax.f32 %v4130, %v4642
  %v4931 = vmax.f32 %v4135, %v4647
  %v4932 = vmax.f32 %v4138, %v4650
  %v4933 = vmax.f32 %v4143, %v4655
  %v4934 = vmax.f32 %v4146, %v4658
  %v4935 = vmax.f32 %v4151, %v4663
  %v4936 = vmax.f32 %v4154, %v4666
  %v4937 = vmax.f32 %v4159, %v4671
  %v4938 = vmax.f32 %v4162, %v4674
  %v4939 = vmax.f32 %v4167, %v4679
  %v4940 = vmax.f32 %v4170, %v4682
  %v4941 = vmax.f32 %v4685, %v4813
  %v4942 = vmax.f32 %v4686, %v4814
  %v4943 = vmax.f32 %v4687, %v4815
  %v4944 = vmax.f32 %v4688, %v4816
  %v4945 = vmax.f32 %v4689, %v4817
  %v4946 = vmax.f32 %v4690, %v4818
  %v4947 = vmax.f32 %v4691, %v4819
  %v4948 = vmax.f32 %v4692, %v4820
  %v4949 = vmax.f32 %v4693, %v4821
  %v4950 = vmax.f32 %v4694, %v4822
  %v4951 = vmax.f32 %v4695, %v4823
  %v4952 = vmax.f32 %v4696, %v4824
  %v4953 = vmax.f32 %v4697, %v4825
  %v4954 = vmax.f32 %v4698, %v4826
  %v4955 = vmax.f32 %v4699, %v4827
  %v4956 = vmax.f32 %v4700, %v4828
  %v4957 = vmax.f32 %v4701, %v4829
  %v4958 = vmax.f32 %v4702, %v4830
  %v4959 = vmax.f32 %v4703, %v4831
  %v4960 = vmax.f32 %v4704, %v4832
  %v4961 = vmax.f32 %v4705, %v4833
  %v4962 = vmax.f32 %v4706, %v4834
  %v4963 = vmax.f32 %v4707, %v4835
  %v4964 = vmax.f32 %v4708, %v4836
  %v4965 = vmax.f32 %v4709, %v4837
  %v4966 = vmax.f32 %v4710, %v4838
  %v4967 = vmax.f32 %v4711, %v4839
  %v4968 = vmax.f32 %v4712, %v4840
  %v4969 = vmax.f32 %v4713, %v4841
  %v4970 = vmax.f32 %v4714, %v4842
  %v4971 = vmax.f32 %v4715, %v4843
  %v4972 = vmax.f32 %v4716, %v4844
  %v4973 = vmax.f32 %v4717, %v4845
  %v4974 = vmax.f32 %v4718, %v4846
  %v4975 = vmax.f32 %v4719, %v4847
  %v4976 = vmax.f32 %v4720, %v4848
  %v4977 = vmax.f32 %v4721, %v4849
  %v4978 = vmax.f32 %v4722, %v4850
  %v4979 = vmax.f32 %v4723, %v4851
  %v4980 = vmax.f32 %v4724, %v4852
  %v4981 = vmax.f32 %v4725, %v4853
  %v4982 = vmax.f32 %v4726, %v4854
  %v4983 = vmax.f32 %v4727, %v4855
  %v4984 = vmax.f32 %v4728, %v4856
  %v4985 = vmax.f32 %v4729, %v4857
  %v4986 = vmax.f32 %v4730, %v4858
  %v4987 = vmax.f32 %v4731, %v4859
  %v4988 = vmax.f32 %v4732, %v4860
  %v4989 = vmax.f32 %v4733, %v4861
  %v4990 = vmax.f32 %v4734, %v4862
  %v4991 = vmax.f32 %v4735, %v4863
  %v4992 = vmax.f32 %v4736, %v4864
  %v4993 = vmax.f32 %v4737, %v4865
  %v4994 = vmax.f32 %v4738, %v4866
  %v4995 = vmax.f32 %v4739, %v4867
  %v4996 = vmax.f32 %v4740, %v4868
  %v4997 = vmax.f32 %v4741, %v4869
  %v4998 = vmax.f32 %v4742, %v4870
  %v4999 = vmax.f32 %v4743, %v4871
  %v5000 = vmax.f32 %v4744, %v4872
  %v5001 = vmax.f32 %v4745, %v4873
  %v5002 = vmax.f32 %v4746, %v4874
  %v5003 = vmax.f32 %v4747, %v4875
  %v5004 = vmax.f32 %v4748, %v4876
  %v5005 = vmax.f32 %v4749, %v4877
  %v5006 = vmax.f32 %v4750, %v4878
  %v5007 = vmax.f32 %v4751, %v4879
  %v5008 = vmax.f32 %v4752, %v4880
  %v5009 = vmax.f32 %v4753, %v4881
  %v5010 = vmax.f32 %v4754, %v4882
  %v5011 = vmax.f32 %v4755, %v4883
  %v5012 = vmax.f32 %v4756, %v4884
  %v5013 = vmax.f32 %v4757, %v4885
  %v5014 = vmax.f32 %v4758, %v4886
  %v5015 = vmax.f32 %v4759, %v4887
  %v5016 = vmax.f32 %v4760, %v4888
  %v5017 = vmax.f32 %v4761, %v4889
  %v5018 = vmax.f32 %v4762, %v4890
  %v5019 = vmax.f32 %v4763, %v4891
  %v5020 = vmax.f32 %v4764, %v4892
  %v5021 = vmax.f32 %v4765, %v4893
  %v5022 = vmax.f32 %v4766, %v4894
  %v5023 = vmax.f32 %v4767, %v4895
  %v5024 = vmax.f32 %v4768, %v4896
  %v5025 = vmax.f32 %v4769, %v4897
  %v5026 = vmax.f32 %v4770, %v4898
  %v5027 = vmax.f32 %v4771, %v4899
  %v5028 = vmax.f32 %v4772, %v4900
  %v5029 = vmax.f32 %v4773, %v4901
  %v5030 = vmax.f32 %v4774, %v4902
  %v5031 = vmax.f32 %v4775, %v4903
  %v5032 = vmax.f32 %v4776, %v4904
  %v5033 = vmax.f32 %v4777, %v4905
  %v5034 = vmax.f32 %v4778, %v4906
  %v5035 = vmax.f32 %v4779, %v4907
  %v5036 = vmax.f32 %v4780, %v4908
  %v5037 = vmax.f32 %v4781, %v4909
  %v5038 = vmax.f32 %v4782, %v4910
  %v5039 = vmax.f32 %v4783, %v4911
  %v5040 = vmax.f32 %v4784, %v4912
  %v5041 = vmax.f32 %v4785, %v4913
  %v5042 = vmax.f32 %v4786, %v4914
  %v5043 = vmax.f32 %v4787, %v4915
  %v5044 = vmax.f32 %v4788, %v4916
  %v5045 = vmax.f32 %v4789, %v4917
  %v5046 = vmax.f32 %v4790, %v4918
  %v5047 = vmax.f32 %v4791, %v4919
  %v5048 = vmax.f32 %v4792, %v4920
  %v5049 = vmax.f32 %v4793, %v4921
  %v5050 = vmax.f32 %v4794, %v4922
  %v5051 = vmax.f32 %v4795, %v4923
  %v5052 = vmax.f32 %v4796, %v4924
  %v5053 = vmax.f32 %v4797, %v4925
  %v5054 = vmax.f32 %v4798, %v4926
  %v5055 = vmax.f32 %v4799, %v4927
  %v5056 = vmax.f32 %v4800, %v4928
  %v5057 = vmax.f32 %v4801, %v4929
  %v5058 = vmax.f32 %v4802, %v4930
  %v5059 = vmax.f32 %v4803, %v4931
  %v5060 = vmax.f32 %v4804, %v4932
  %v5061 = vmax.f32 %v4805, %v4933
  %v5062 = vmax.f32 %v4806, %v4934
  %v5063 = vmax.f32 %v4807, %v4935
  %v5064 = vmax.f32 %v4808, %v4936
  %v5065 = vmax.f32 %v4809, %v4937
  %v5066 = vmax.f32 %v4810, %v4938
  %v5067 = vmax.f32 %v4811, %v4939
  %v5068 = vmax.f32 %v4812, %v4940
  %v5069 = vld [vmem:[%s2] sm:$0x1]
  %v5071 = vlaneseq
  %v5072 = vshrl.u32 %v5071, 7
  %v5073 = vsub.s32 0, %v5072
  %v5074 = vrot.slane %v5069, %v5073
  %v5076 = vadd.f32 %v4941, %v5074
  %v5077 = vadd.f32 %v4942, %v5074
  %v5078 = vadd.f32 %v4943, %v5074
  %v5079 = vadd.f32 %v4944, %v5074
  %v5080 = vadd.f32 %v4945, %v5074
  %v5081 = vadd.f32 %v4946, %v5074
  %v5082 = vadd.f32 %v4947, %v5074
  %v5083 = vadd.f32 %v4948, %v5074
  %v5084 = vadd.f32 %v4949, %v5074
  %v5085 = vadd.f32 %v4950, %v5074
  %v5086 = vadd.f32 %v4951, %v5074
  %v5087 = vadd.f32 %v4952, %v5074
  %v5088 = vadd.f32 %v4953, %v5074
  %v5089 = vadd.f32 %v4954, %v5074
  %v5090 = vadd.f32 %v4955, %v5074
  %v5091 = vadd.f32 %v4956, %v5074
  %v5092 = vadd.f32 %v4957, %v5074
  %v5093 = vadd.f32 %v4958, %v5074
  %v5094 = vadd.f32 %v4959, %v5074
  %v5095 = vadd.f32 %v4960, %v5074
  %v5096 = vadd.f32 %v4961, %v5074
  %v5097 = vadd.f32 %v4962, %v5074
  %v5098 = vadd.f32 %v4963, %v5074
  %v5099 = vadd.f32 %v4964, %v5074
  %v5100 = vadd.f32 %v4965, %v5074
  %v5101 = vadd.f32 %v4966, %v5074
  %v5102 = vadd.f32 %v4967, %v5074
  %v5103 = vadd.f32 %v4968, %v5074
  %v5104 = vadd.f32 %v4969, %v5074
  %v5105 = vadd.f32 %v4970, %v5074
  %v5106 = vadd.f32 %v4971, %v5074
  %v5107 = vadd.f32 %v4972, %v5074
  %v5108 = vadd.f32 %v4973, %v5074
  %v5109 = vadd.f32 %v4974, %v5074
  %v5110 = vadd.f32 %v4975, %v5074
  %v5111 = vadd.f32 %v4976, %v5074
  %v5112 = vadd.f32 %v4977, %v5074
  %v5113 = vadd.f32 %v4978, %v5074
  %v5114 = vadd.f32 %v4979, %v5074
  %v5115 = vadd.f32 %v4980, %v5074
  %v5116 = vadd.f32 %v4981, %v5074
  %v5117 = vadd.f32 %v4982, %v5074
  %v5118 = vadd.f32 %v4983, %v5074
  %v5119 = vadd.f32 %v4984, %v5074
  %v5120 = vadd.f32 %v4985, %v5074
  %v5121 = vadd.f32 %v4986, %v5074
  %v5122 = vadd.f32 %v4987, %v5074
  %v5123 = vadd.f32 %v4988, %v5074
  %v5124 = vadd.f32 %v4989, %v5074
  %v5125 = vadd.f32 %v4990, %v5074
  %v5126 = vadd.f32 %v4991, %v5074
  %v5127 = vadd.f32 %v4992, %v5074
  %v5128 = vadd.f32 %v4993, %v5074
  %v5129 = vadd.f32 %v4994, %v5074
  %v5130 = vadd.f32 %v4995, %v5074
  %v5131 = vadd.f32 %v4996, %v5074
  %v5132 = vadd.f32 %v4997, %v5074
  %v5133 = vadd.f32 %v4998, %v5074
  %v5134 = vadd.f32 %v4999, %v5074
  %v5135 = vadd.f32 %v5000, %v5074
  %v5136 = vadd.f32 %v5001, %v5074
  %v5137 = vadd.f32 %v5002, %v5074
  %v5138 = vadd.f32 %v5003, %v5074
  %v5139 = vadd.f32 %v5004, %v5074
  %v5140 = vadd.f32 %v5005, %v5074
  %v5141 = vadd.f32 %v5006, %v5074
  %v5142 = vadd.f32 %v5007, %v5074
  %v5143 = vadd.f32 %v5008, %v5074
  %v5144 = vadd.f32 %v5009, %v5074
  %v5145 = vadd.f32 %v5010, %v5074
  %v5146 = vadd.f32 %v5011, %v5074
  %v5147 = vadd.f32 %v5012, %v5074
  %v5148 = vadd.f32 %v5013, %v5074
  %v5149 = vadd.f32 %v5014, %v5074
  %v5150 = vadd.f32 %v5015, %v5074
  %v5151 = vadd.f32 %v5016, %v5074
  %v5152 = vadd.f32 %v5017, %v5074
  %v5153 = vadd.f32 %v5018, %v5074
  %v5154 = vadd.f32 %v5019, %v5074
  %v5155 = vadd.f32 %v5020, %v5074
  %v5156 = vadd.f32 %v5021, %v5074
  %v5157 = vadd.f32 %v5022, %v5074
  %v5158 = vadd.f32 %v5023, %v5074
  %v5159 = vadd.f32 %v5024, %v5074
  %v5160 = vadd.f32 %v5025, %v5074
  %v5161 = vadd.f32 %v5026, %v5074
  %v5162 = vadd.f32 %v5027, %v5074
  %v5163 = vadd.f32 %v5028, %v5074
  %v5164 = vadd.f32 %v5029, %v5074
  %v5165 = vadd.f32 %v5030, %v5074
  %v5166 = vadd.f32 %v5031, %v5074
  %v5167 = vadd.f32 %v5032, %v5074
  %v5168 = vadd.f32 %v5033, %v5074
  %v5169 = vadd.f32 %v5034, %v5074
  %v5170 = vadd.f32 %v5035, %v5074
  %v5171 = vadd.f32 %v5036, %v5074
  %v5172 = vadd.f32 %v5037, %v5074
  %v5173 = vadd.f32 %v5038, %v5074
  %v5174 = vadd.f32 %v5039, %v5074
  %v5175 = vadd.f32 %v5040, %v5074
  %v5176 = vadd.f32 %v5041, %v5074
  %v5177 = vadd.f32 %v5042, %v5074
  %v5178 = vadd.f32 %v5043, %v5074
  %v5179 = vadd.f32 %v5044, %v5074
  %v5180 = vadd.f32 %v5045, %v5074
  %v5181 = vadd.f32 %v5046, %v5074
  %v5182 = vadd.f32 %v5047, %v5074
  %v5183 = vadd.f32 %v5048, %v5074
  %v5184 = vadd.f32 %v5049, %v5074
  %v5185 = vadd.f32 %v5050, %v5074
  %v5186 = vadd.f32 %v5051, %v5074
  %v5187 = vadd.f32 %v5052, %v5074
  %v5188 = vadd.f32 %v5053, %v5074
  %v5189 = vadd.f32 %v5054, %v5074
  %v5190 = vadd.f32 %v5055, %v5074
  %v5191 = vadd.f32 %v5056, %v5074
  %v5192 = vadd.f32 %v5057, %v5074
  %v5193 = vadd.f32 %v5058, %v5074
  %v5194 = vadd.f32 %v5059, %v5074
  %v5195 = vadd.f32 %v5060, %v5074
  %v5196 = vadd.f32 %v5061, %v5074
  %v5197 = vadd.f32 %v5062, %v5074
  %v5198 = vadd.f32 %v5063, %v5074
  %v5199 = vadd.f32 %v5064, %v5074
  %v5200 = vadd.f32 %v5065, %v5074
  %v5201 = vadd.f32 %v5066, %v5074
  %v5202 = vadd.f32 %v5067, %v5074
  %v5203 = vadd.f32 %v5068, %v5074
  %v5204 = vmax.f32 %v5076, 0.0
  %v5205 = vmax.f32 %v5077, 0.0
  %v5206 = vmax.f32 %v5078, 0.0
  %v5207 = vmax.f32 %v5079, 0.0
  %v5208 = vmax.f32 %v5080, 0.0
  %v5209 = vmax.f32 %v5081, 0.0
  %v5210 = vmax.f32 %v5082, 0.0
  %v5211 = vmax.f32 %v5083, 0.0
  %v5212 = vmax.f32 %v5084, 0.0
  %v5213 = vmax.f32 %v5085, 0.0
  %v5214 = vmax.f32 %v5086, 0.0
  %v5215 = vmax.f32 %v5087, 0.0
  %v5216 = vmax.f32 %v5088, 0.0
  %v5217 = vmax.f32 %v5089, 0.0
  %v5218 = vmax.f32 %v5090, 0.0
  %v5219 = vmax.f32 %v5091, 0.0
  %v5220 = vmax.f32 %v5092, 0.0
  %v5221 = vmax.f32 %v5093, 0.0
  %v5222 = vmax.f32 %v5094, 0.0
  %v5223 = vmax.f32 %v5095, 0.0
  %v5224 = vmax.f32 %v5096, 0.0
  %v5225 = vmax.f32 %v5097, 0.0
  %v5226 = vmax.f32 %v5098, 0.0
  %v5227 = vmax.f32 %v5099, 0.0
  %v5228 = vmax.f32 %v5100, 0.0
  %v5229 = vmax.f32 %v5101, 0.0
  %v5230 = vmax.f32 %v5102, 0.0
  %v5231 = vmax.f32 %v5103, 0.0
  %v5232 = vmax.f32 %v5104, 0.0
  %v5233 = vmax.f32 %v5105, 0.0
  %v5234 = vmax.f32 %v5106, 0.0
  %v5235 = vmax.f32 %v5107, 0.0
  %v5236 = vmax.f32 %v5108, 0.0
  %v5237 = vmax.f32 %v5109, 0.0
  %v5238 = vmax.f32 %v5110, 0.0
  %v5239 = vmax.f32 %v5111, 0.0
  %v5240 = vmax.f32 %v5112, 0.0
  %v5241 = vmax.f32 %v5113, 0.0
  %v5242 = vmax.f32 %v5114, 0.0
  %v5243 = vmax.f32 %v5115, 0.0
  %v5244 = vmax.f32 %v5116, 0.0
  %v5245 = vmax.f32 %v5117, 0.0
  %v5246 = vmax.f32 %v5118, 0.0
  %v5247 = vmax.f32 %v5119, 0.0
  %v5248 = vmax.f32 %v5120, 0.0
  %v5249 = vmax.f32 %v5121, 0.0
  %v5250 = vmax.f32 %v5122, 0.0
  %v5251 = vmax.f32 %v5123, 0.0
  %v5252 = vmax.f32 %v5124, 0.0
  %v5253 = vmax.f32 %v5125, 0.0
  %v5254 = vmax.f32 %v5126, 0.0
  %v5255 = vmax.f32 %v5127, 0.0
  %v5256 = vmax.f32 %v5128, 0.0
  %v5257 = vmax.f32 %v5129, 0.0
  %v5258 = vmax.f32 %v5130, 0.0
  %v5259 = vmax.f32 %v5131, 0.0
  %v5260 = vmax.f32 %v5132, 0.0
  %v5261 = vmax.f32 %v5133, 0.0
  %v5262 = vmax.f32 %v5134, 0.0
  %v5263 = vmax.f32 %v5135, 0.0
  %v5264 = vmax.f32 %v5136, 0.0
  %v5265 = vmax.f32 %v5137, 0.0
  %v5266 = vmax.f32 %v5138, 0.0
  %v5267 = vmax.f32 %v5139, 0.0
  %v5268 = vmax.f32 %v5140, 0.0
  %v5269 = vmax.f32 %v5141, 0.0
  %v5270 = vmax.f32 %v5142, 0.0
  %v5271 = vmax.f32 %v5143, 0.0
  %v5272 = vmax.f32 %v5144, 0.0
  %v5273 = vmax.f32 %v5145, 0.0
  %v5274 = vmax.f32 %v5146, 0.0
  %v5275 = vmax.f32 %v5147, 0.0
  %v5276 = vmax.f32 %v5148, 0.0
  %v5277 = vmax.f32 %v5149, 0.0
  %v5278 = vmax.f32 %v5150, 0.0
  %v5279 = vmax.f32 %v5151, 0.0
  %v5280 = vmax.f32 %v5152, 0.0
  %v5281 = vmax.f32 %v5153, 0.0
  %v5282 = vmax.f32 %v5154, 0.0
  %v5283 = vmax.f32 %v5155, 0.0
  %v5284 = vmax.f32 %v5156, 0.0
  %v5285 = vmax.f32 %v5157, 0.0
  %v5286 = vmax.f32 %v5158, 0.0
  %v5287 = vmax.f32 %v5159, 0.0
  %v5288 = vmax.f32 %v5160, 0.0
  %v5289 = vmax.f32 %v5161, 0.0
  %v5290 = vmax.f32 %v5162, 0.0
  %v5291 = vmax.f32 %v5163, 0.0
  %v5292 = vmax.f32 %v5164, 0.0
  %v5293 = vmax.f32 %v5165, 0.0
  %v5294 = vmax.f32 %v5166, 0.0
  %v5295 = vmax.f32 %v5167, 0.0
  %v5296 = vmax.f32 %v5168, 0.0
  %v5297 = vmax.f32 %v5169, 0.0
  %v5298 = vmax.f32 %v5170, 0.0
  %v5299 = vmax.f32 %v5171, 0.0
  %v5300 = vmax.f32 %v5172, 0.0
  %v5301 = vmax.f32 %v5173, 0.0
  %v5302 = vmax.f32 %v5174, 0.0
  %v5303 = vmax.f32 %v5175, 0.0
  %v5304 = vmax.f32 %v5176, 0.0
  %v5305 = vmax.f32 %v5177, 0.0
  %v5306 = vmax.f32 %v5178, 0.0
  %v5307 = vmax.f32 %v5179, 0.0
  %v5308 = vmax.f32 %v5180, 0.0
  %v5309 = vmax.f32 %v5181, 0.0
  %v5310 = vmax.f32 %v5182, 0.0
  %v5311 = vmax.f32 %v5183, 0.0
  %v5312 = vmax.f32 %v5184, 0.0
  %v5313 = vmax.f32 %v5185, 0.0
  %v5314 = vmax.f32 %v5186, 0.0
  %v5315 = vmax.f32 %v5187, 0.0
  %v5316 = vmax.f32 %v5188, 0.0
  %v5317 = vmax.f32 %v5189, 0.0
  %v5318 = vmax.f32 %v5190, 0.0
  %v5319 = vmax.f32 %v5191, 0.0
  %v5320 = vmax.f32 %v5192, 0.0
  %v5321 = vmax.f32 %v5193, 0.0
  %v5322 = vmax.f32 %v5194, 0.0
  %v5323 = vmax.f32 %v5195, 0.0
  %v5324 = vmax.f32 %v5196, 0.0
  %v5325 = vmax.f32 %v5197, 0.0
  %v5326 = vmax.f32 %v5198, 0.0
  %v5327 = vmax.f32 %v5199, 0.0
  %v5328 = vmax.f32 %v5200, 0.0
  %v5329 = vmax.f32 %v5201, 0.0
  %v5330 = vmax.f32 %v5202, 0.0
  %v5331 = vmax.f32 %v5203, 0.0
  %v5332 = vld [vmem:[%s3] sm:$0x1]
  %v5333 = vld [vmem:[%s4] sm:$0x1]
  %vm5334 = vcmask 130048
  %v5335 = vsel %vm5334, %v5204, 0.0
  %v5336 = vsel %vm5334, %v5205, 0.0
  %v5337 = vadd.f32 %v5335, %v5336
  %v5338 = vsel %vm5334, %v5206, 0.0
  %v5339 = vadd.f32 %v5337, %v5338
  %v5340 = vsel %vm5334, %v5207, 0.0
  %v5341 = vadd.f32 %v5339, %v5340
  %v5342 = vsel %vm5334, %v5208, 0.0
  %v5343 = vadd.f32 %v5341, %v5342
  %v5344 = vsel %vm5334, %v5209, 0.0
  %v5345 = vadd.f32 %v5343, %v5344
  %v5346 = vsel %vm5334, %v5210, 0.0
  %v5347 = vadd.f32 %v5345, %v5346
  %v5348 = vsel %vm5334, %v5211, 0.0
  %v5349 = vadd.f32 %v5347, %v5348
  %v5350 = vsel %vm5334, %v5212, 0.0
  %v5351 = vadd.f32 %v5349, %v5350
  %v5352 = vsel %vm5334, %v5213, 0.0
  %v5353 = vadd.f32 %v5351, %v5352
  %v5354 = vsel %vm5334, %v5214, 0.0
  %v5355 = vadd.f32 %v5353, %v5354
  %v5356 = vsel %vm5334, %v5215, 0.0
  %v5357 = vadd.f32 %v5355, %v5356
  %v5358 = vsel %vm5334, %v5216, 0.0
  %v5359 = vadd.f32 %v5357, %v5358
  %v5360 = vsel %vm5334, %v5217, 0.0
  %v5361 = vadd.f32 %v5359, %v5360
  %v5362 = vsel %vm5334, %v5218, 0.0
  %v5363 = vadd.f32 %v5361, %v5362
  %v5364 = vsel %vm5334, %v5219, 0.0
  %v5365 = vadd.f32 %v5363, %v5364
  %v5366 = vsel %vm5334, %v5220, 0.0
  %v5367 = vadd.f32 %v5365, %v5366
  %v5368 = vsel %vm5334, %v5221, 0.0
  %v5369 = vadd.f32 %v5367, %v5368
  %v5370 = vsel %vm5334, %v5222, 0.0
  %v5371 = vadd.f32 %v5369, %v5370
  %v5372 = vsel %vm5334, %v5223, 0.0
  %v5373 = vadd.f32 %v5371, %v5372
  %v5374 = vsel %vm5334, %v5224, 0.0
  %v5375 = vadd.f32 %v5373, %v5374
  %v5376 = vsel %vm5334, %v5225, 0.0
  %v5377 = vadd.f32 %v5375, %v5376
  %v5378 = vsel %vm5334, %v5226, 0.0
  %v5379 = vadd.f32 %v5377, %v5378
  %v5380 = vsel %vm5334, %v5227, 0.0
  %v5381 = vadd.f32 %v5379, %v5380
  %v5382 = vsel %vm5334, %v5228, 0.0
  %v5383 = vadd.f32 %v5381, %v5382
  %v5384 = vsel %vm5334, %v5229, 0.0
  %v5385 = vadd.f32 %v5383, %v5384
  %v5386 = vsel %vm5334, %v5230, 0.0
  %v5387 = vadd.f32 %v5385, %v5386
  %v5388 = vsel %vm5334, %v5231, 0.0
  %v5389 = vadd.f32 %v5387, %v5388
  %v5390 = vsel %vm5334, %v5232, 0.0
  %v5391 = vadd.f32 %v5389, %v5390
  %v5392 = vsel %vm5334, %v5233, 0.0
  %v5393 = vadd.f32 %v5391, %v5392
  %v5394 = vsel %vm5334, %v5234, 0.0
  %v5395 = vadd.f32 %v5393, %v5394
  %v5396 = vsel %vm5334, %v5235, 0.0
  %v5397 = vadd.f32 %v5395, %v5396
  %v5398 = vsel %vm5334, %v5236, 0.0
  %v5399 = vadd.f32 %v5397, %v5398
  %v5400 = vsel %vm5334, %v5237, 0.0
  %v5401 = vadd.f32 %v5399, %v5400
  %v5402 = vsel %vm5334, %v5238, 0.0
  %v5403 = vadd.f32 %v5401, %v5402
  %v5404 = vsel %vm5334, %v5239, 0.0
  %v5405 = vadd.f32 %v5403, %v5404
  %v5406 = vsel %vm5334, %v5240, 0.0
  %v5407 = vadd.f32 %v5405, %v5406
  %v5408 = vsel %vm5334, %v5241, 0.0
  %v5409 = vadd.f32 %v5407, %v5408
  %v5410 = vsel %vm5334, %v5242, 0.0
  %v5411 = vadd.f32 %v5409, %v5410
  %v5412 = vsel %vm5334, %v5243, 0.0
  %v5413 = vadd.f32 %v5411, %v5412
  %v5414 = vsel %vm5334, %v5244, 0.0
  %v5415 = vadd.f32 %v5413, %v5414
  %v5416 = vsel %vm5334, %v5245, 0.0
  %v5417 = vadd.f32 %v5415, %v5416
  %v5418 = vsel %vm5334, %v5246, 0.0
  %v5419 = vadd.f32 %v5417, %v5418
  %v5420 = vsel %vm5334, %v5247, 0.0
  %v5421 = vadd.f32 %v5419, %v5420
  %v5422 = vsel %vm5334, %v5248, 0.0
  %v5423 = vadd.f32 %v5421, %v5422
  %v5424 = vsel %vm5334, %v5249, 0.0
  %v5425 = vadd.f32 %v5423, %v5424
  %v5426 = vsel %vm5334, %v5250, 0.0
  %v5427 = vadd.f32 %v5425, %v5426
  %v5428 = vsel %vm5334, %v5251, 0.0
  %v5429 = vadd.f32 %v5427, %v5428
  %v5430 = vsel %vm5334, %v5252, 0.0
  %v5431 = vadd.f32 %v5429, %v5430
  %v5432 = vsel %vm5334, %v5253, 0.0
  %v5433 = vadd.f32 %v5431, %v5432
  %v5434 = vsel %vm5334, %v5254, 0.0
  %v5435 = vadd.f32 %v5433, %v5434
  %v5436 = vsel %vm5334, %v5255, 0.0
  %v5437 = vadd.f32 %v5435, %v5436
  %v5438 = vsel %vm5334, %v5256, 0.0
  %v5439 = vadd.f32 %v5437, %v5438
  %v5440 = vsel %vm5334, %v5257, 0.0
  %v5441 = vadd.f32 %v5439, %v5440
  %v5442 = vsel %vm5334, %v5258, 0.0
  %v5443 = vadd.f32 %v5441, %v5442
  %v5444 = vsel %vm5334, %v5259, 0.0
  %v5445 = vadd.f32 %v5443, %v5444
  %v5446 = vsel %vm5334, %v5260, 0.0
  %v5447 = vadd.f32 %v5445, %v5446
  %v5448 = vsel %vm5334, %v5261, 0.0
  %v5449 = vadd.f32 %v5447, %v5448
  %v5450 = vsel %vm5334, %v5262, 0.0
  %v5451 = vadd.f32 %v5449, %v5450
  %v5452 = vsel %vm5334, %v5263, 0.0
  %v5453 = vadd.f32 %v5451, %v5452
  %v5454 = vsel %vm5334, %v5264, 0.0
  %v5455 = vadd.f32 %v5453, %v5454
  %v5456 = vsel %vm5334, %v5265, 0.0
  %v5457 = vadd.f32 %v5455, %v5456
  %v5458 = vsel %vm5334, %v5266, 0.0
  %v5459 = vadd.f32 %v5457, %v5458
  %v5460 = vsel %vm5334, %v5267, 0.0
  %v5461 = vadd.f32 %v5459, %v5460
  %v5462 = vrot.slane %v5461, 4
  %v5463 = vadd.f32 %v5461, %v5462
  %v5464 = vrot.slane %v5463, 2
  %v5465 = vadd.f32 %v5463, %v5464
  %v5466 = vrot.slane %v5465, 1
  %v5467 = vadd.f32 %v5465, %v5466
  %v5468 = vmul.f32 %v5467, 0.001953125
  %v5469 = vmul.f32 %v5204, %v5204
  %v5470 = vmul.f32 %v5205, %v5205
  %v5471 = vmul.f32 %v5206, %v5206
  %v5472 = vmul.f32 %v5207, %v5207
  %v5473 = vmul.f32 %v5208, %v5208
  %v5474 = vmul.f32 %v5209, %v5209
  %v5475 = vmul.f32 %v5210, %v5210
  %v5476 = vmul.f32 %v5211, %v5211
  %v5477 = vmul.f32 %v5212, %v5212
  %v5478 = vmul.f32 %v5213, %v5213
  %v5479 = vmul.f32 %v5214, %v5214
  %v5480 = vmul.f32 %v5215, %v5215
  %v5481 = vmul.f32 %v5216, %v5216
  %v5482 = vmul.f32 %v5217, %v5217
  %v5483 = vmul.f32 %v5218, %v5218
  %v5484 = vmul.f32 %v5219, %v5219
  %v5485 = vmul.f32 %v5220, %v5220
  %v5486 = vmul.f32 %v5221, %v5221
  %v5487 = vmul.f32 %v5222, %v5222
  %v5488 = vmul.f32 %v5223, %v5223
  %v5489 = vmul.f32 %v5224, %v5224
  %v5490 = vmul.f32 %v5225, %v5225
  %v5491 = vmul.f32 %v5226, %v5226
  %v5492 = vmul.f32 %v5227, %v5227
  %v5493 = vmul.f32 %v5228, %v5228
  %v5494 = vmul.f32 %v5229, %v5229
  %v5495 = vmul.f32 %v5230, %v5230
  %v5496 = vmul.f32 %v5231, %v5231
  %v5497 = vmul.f32 %v5232, %v5232
  %v5498 = vmul.f32 %v5233, %v5233
  %v5499 = vmul.f32 %v5234, %v5234
  %v5500 = vmul.f32 %v5235, %v5235
  %v5501 = vmul.f32 %v5236, %v5236
  %v5502 = vmul.f32 %v5237, %v5237
  %v5503 = vmul.f32 %v5238, %v5238
  %v5504 = vmul.f32 %v5239, %v5239
  %v5505 = vmul.f32 %v5240, %v5240
  %v5506 = vmul.f32 %v5241, %v5241
  %v5507 = vmul.f32 %v5242, %v5242
  %v5508 = vmul.f32 %v5243, %v5243
  %v5509 = vmul.f32 %v5244, %v5244
  %v5510 = vmul.f32 %v5245, %v5245
  %v5511 = vmul.f32 %v5246, %v5246
  %v5512 = vmul.f32 %v5247, %v5247
  %v5513 = vmul.f32 %v5248, %v5248
  %v5514 = vmul.f32 %v5249, %v5249
  %v5515 = vmul.f32 %v5250, %v5250
  %v5516 = vmul.f32 %v5251, %v5251
  %v5517 = vmul.f32 %v5252, %v5252
  %v5518 = vmul.f32 %v5253, %v5253
  %v5519 = vmul.f32 %v5254, %v5254
  %v5520 = vmul.f32 %v5255, %v5255
  %v5521 = vmul.f32 %v5256, %v5256
  %v5522 = vmul.f32 %v5257, %v5257
  %v5523 = vmul.f32 %v5258, %v5258
  %v5524 = vmul.f32 %v5259, %v5259
  %v5525 = vmul.f32 %v5260, %v5260
  %v5526 = vmul.f32 %v5261, %v5261
  %v5527 = vmul.f32 %v5262, %v5262
  %v5528 = vmul.f32 %v5263, %v5263
  %v5529 = vmul.f32 %v5264, %v5264
  %v5530 = vmul.f32 %v5265, %v5265
  %v5531 = vmul.f32 %v5266, %v5266
  %v5532 = vmul.f32 %v5267, %v5267
  %v5533 = vsel %vm5334, %v5469, 0.0
  %v5534 = vsel %vm5334, %v5470, 0.0
  %v5535 = vadd.f32 %v5533, %v5534
  %v5536 = vsel %vm5334, %v5471, 0.0
  %v5537 = vadd.f32 %v5535, %v5536
  %v5538 = vsel %vm5334, %v5472, 0.0
  %v5539 = vadd.f32 %v5537, %v5538
  %v5540 = vsel %vm5334, %v5473, 0.0
  %v5541 = vadd.f32 %v5539, %v5540
  %v5542 = vsel %vm5334, %v5474, 0.0
  %v5543 = vadd.f32 %v5541, %v5542
  %v5544 = vsel %vm5334, %v5475, 0.0
  %v5545 = vadd.f32 %v5543, %v5544
  %v5546 = vsel %vm5334, %v5476, 0.0
  %v5547 = vadd.f32 %v5545, %v5546
  %v5548 = vsel %vm5334, %v5477, 0.0
  %v5549 = vadd.f32 %v5547, %v5548
  %v5550 = vsel %vm5334, %v5478, 0.0
  %v5551 = vadd.f32 %v5549, %v5550
  %v5552 = vsel %vm5334, %v5479, 0.0
  %v5553 = vadd.f32 %v5551, %v5552
  %v5554 = vsel %vm5334, %v5480, 0.0
  %v5555 = vadd.f32 %v5553, %v5554
  %v5556 = vsel %vm5334, %v5481, 0.0
  %v5557 = vadd.f32 %v5555, %v5556
  %v5558 = vsel %vm5334, %v5482, 0.0
  %v5559 = vadd.f32 %v5557, %v5558
  %v5560 = vsel %vm5334, %v5483, 0.0
  %v5561 = vadd.f32 %v5559, %v5560
  %v5562 = vsel %vm5334, %v5484, 0.0
  %v5563 = vadd.f32 %v5561, %v5562
  %v5564 = vsel %vm5334, %v5485, 0.0
  %v5565 = vadd.f32 %v5563, %v5564
  %v5566 = vsel %vm5334, %v5486, 0.0
  %v5567 = vadd.f32 %v5565, %v5566
  %v5568 = vsel %vm5334, %v5487, 0.0
  %v5569 = vadd.f32 %v5567, %v5568
  %v5570 = vsel %vm5334, %v5488, 0.0
  %v5571 = vadd.f32 %v5569, %v5570
  %v5572 = vsel %vm5334, %v5489, 0.0
  %v5573 = vadd.f32 %v5571, %v5572
  %v5574 = vsel %vm5334, %v5490, 0.0
  %v5575 = vadd.f32 %v5573, %v5574
  %v5576 = vsel %vm5334, %v5491, 0.0
  %v5577 = vadd.f32 %v5575, %v5576
  %v5578 = vsel %vm5334, %v5492, 0.0
  %v5579 = vadd.f32 %v5577, %v5578
  %v5580 = vsel %vm5334, %v5493, 0.0
  %v5581 = vadd.f32 %v5579, %v5580
  %v5582 = vsel %vm5334, %v5494, 0.0
  %v5583 = vadd.f32 %v5581, %v5582
  %v5584 = vsel %vm5334, %v5495, 0.0
  %v5585 = vadd.f32 %v5583, %v5584
  %v5586 = vsel %vm5334, %v5496, 0.0
  %v5587 = vadd.f32 %v5585, %v5586
  %v5588 = vsel %vm5334, %v5497, 0.0
  %v5589 = vadd.f32 %v5587, %v5588
  %v5590 = vsel %vm5334, %v5498, 0.0
  %v5591 = vadd.f32 %v5589, %v5590
  %v5592 = vsel %vm5334, %v5499, 0.0
  %v5593 = vadd.f32 %v5591, %v5592
  %v5594 = vsel %vm5334, %v5500, 0.0
  %v5595 = vadd.f32 %v5593, %v5594
  %v5596 = vsel %vm5334, %v5501, 0.0
  %v5597 = vadd.f32 %v5595, %v5596
  %v5598 = vsel %vm5334, %v5502, 0.0
  %v5599 = vadd.f32 %v5597, %v5598
  %v5600 = vsel %vm5334, %v5503, 0.0
  %v5601 = vadd.f32 %v5599, %v5600
  %v5602 = vsel %vm5334, %v5504, 0.0
  %v5603 = vadd.f32 %v5601, %v5602
  %v5604 = vsel %vm5334, %v5505, 0.0
  %v5605 = vadd.f32 %v5603, %v5604
  %v5606 = vsel %vm5334, %v5506, 0.0
  %v5607 = vadd.f32 %v5605, %v5606
  %v5608 = vsel %vm5334, %v5507, 0.0
  %v5609 = vadd.f32 %v5607, %v5608
  %v5610 = vsel %vm5334, %v5508, 0.0
  %v5611 = vadd.f32 %v5609, %v5610
  %v5612 = vsel %vm5334, %v5509, 0.0
  %v5613 = vadd.f32 %v5611, %v5612
  %v5614 = vsel %vm5334, %v5510, 0.0
  %v5615 = vadd.f32 %v5613, %v5614
  %v5616 = vsel %vm5334, %v5511, 0.0
  %v5617 = vadd.f32 %v5615, %v5616
  %v5618 = vsel %vm5334, %v5512, 0.0
  %v5619 = vadd.f32 %v5617, %v5618
  %v5620 = vsel %vm5334, %v5513, 0.0
  %v5621 = vadd.f32 %v5619, %v5620
  %v5622 = vsel %vm5334, %v5514, 0.0
  %v5623 = vadd.f32 %v5621, %v5622
  %v5624 = vsel %vm5334, %v5515, 0.0
  %v5625 = vadd.f32 %v5623, %v5624
  %v5626 = vsel %vm5334, %v5516, 0.0
  %v5627 = vadd.f32 %v5625, %v5626
  %v5628 = vsel %vm5334, %v5517, 0.0
  %v5629 = vadd.f32 %v5627, %v5628
  %v5630 = vsel %vm5334, %v5518, 0.0
  %v5631 = vadd.f32 %v5629, %v5630
  %v5632 = vsel %vm5334, %v5519, 0.0
  %v5633 = vadd.f32 %v5631, %v5632
  %v5634 = vsel %vm5334, %v5520, 0.0
  %v5635 = vadd.f32 %v5633, %v5634
  %v5636 = vsel %vm5334, %v5521, 0.0
  %v5637 = vadd.f32 %v5635, %v5636
  %v5638 = vsel %vm5334, %v5522, 0.0
  %v5639 = vadd.f32 %v5637, %v5638
  %v5640 = vsel %vm5334, %v5523, 0.0
  %v5641 = vadd.f32 %v5639, %v5640
  %v5642 = vsel %vm5334, %v5524, 0.0
  %v5643 = vadd.f32 %v5641, %v5642
  %v5644 = vsel %vm5334, %v5525, 0.0
  %v5645 = vadd.f32 %v5643, %v5644
  %v5646 = vsel %vm5334, %v5526, 0.0
  %v5647 = vadd.f32 %v5645, %v5646
  %v5648 = vsel %vm5334, %v5527, 0.0
  %v5649 = vadd.f32 %v5647, %v5648
  %v5650 = vsel %vm5334, %v5528, 0.0
  %v5651 = vadd.f32 %v5649, %v5650
  %v5652 = vsel %vm5334, %v5529, 0.0
  %v5653 = vadd.f32 %v5651, %v5652
  %v5654 = vsel %vm5334, %v5530, 0.0
  %v5655 = vadd.f32 %v5653, %v5654
  %v5656 = vsel %vm5334, %v5531, 0.0
  %v5657 = vadd.f32 %v5655, %v5656
  %v5658 = vsel %vm5334, %v5532, 0.0
  %v5659 = vadd.f32 %v5657, %v5658
  %v5660 = vrot.slane %v5659, 4
  %v5661 = vadd.f32 %v5659, %v5660
  %v5662 = vrot.slane %v5661, 2
  %v5663 = vadd.f32 %v5661, %v5662
  %v5664 = vrot.slane %v5663, 1
  %v5665 = vadd.f32 %v5663, %v5664
  %v5666 = vmul.f32 %v5665, 0.001953125
  %v5667 = vmul.f32 %v5468, %v5468
  %v5668 = vsub.f32 %v5666, %v5667
  %v5669 = vmax.f32 %v5668, 0.0
  %v5670 = vsub.f32 %v5204, %v5468
  %v5671 = vsub.f32 %v5205, %v5468
  %v5672 = vsub.f32 %v5206, %v5468
  %v5673 = vsub.f32 %v5207, %v5468
  %v5674 = vsub.f32 %v5208, %v5468
  %v5675 = vsub.f32 %v5209, %v5468
  %v5676 = vsub.f32 %v5210, %v5468
  %v5677 = vsub.f32 %v5211, %v5468
  %v5678 = vsub.f32 %v5212, %v5468
  %v5679 = vsub.f32 %v5213, %v5468
  %v5680 = vsub.f32 %v5214, %v5468
  %v5681 = vsub.f32 %v5215, %v5468
  %v5682 = vsub.f32 %v5216, %v5468
  %v5683 = vsub.f32 %v5217, %v5468
  %v5684 = vsub.f32 %v5218, %v5468
  %v5685 = vsub.f32 %v5219, %v5468
  %v5686 = vsub.f32 %v5220, %v5468
  %v5687 = vsub.f32 %v5221, %v5468
  %v5688 = vsub.f32 %v5222, %v5468
  %v5689 = vsub.f32 %v5223, %v5468
  %v5690 = vsub.f32 %v5224, %v5468
  %v5691 = vsub.f32 %v5225, %v5468
  %v5692 = vsub.f32 %v5226, %v5468
  %v5693 = vsub.f32 %v5227, %v5468
  %v5694 = vsub.f32 %v5228, %v5468
  %v5695 = vsub.f32 %v5229, %v5468
  %v5696 = vsub.f32 %v5230, %v5468
  %v5697 = vsub.f32 %v5231, %v5468
  %v5698 = vsub.f32 %v5232, %v5468
  %v5699 = vsub.f32 %v5233, %v5468
  %v5700 = vsub.f32 %v5234, %v5468
  %v5701 = vsub.f32 %v5235, %v5468
  %v5702 = vsub.f32 %v5236, %v5468
  %v5703 = vsub.f32 %v5237, %v5468
  %v5704 = vsub.f32 %v5238, %v5468
  %v5705 = vsub.f32 %v5239, %v5468
  %v5706 = vsub.f32 %v5240, %v5468
  %v5707 = vsub.f32 %v5241, %v5468
  %v5708 = vsub.f32 %v5242, %v5468
  %v5709 = vsub.f32 %v5243, %v5468
  %v5710 = vsub.f32 %v5244, %v5468
  %v5711 = vsub.f32 %v5245, %v5468
  %v5712 = vsub.f32 %v5246, %v5468
  %v5713 = vsub.f32 %v5247, %v5468
  %v5714 = vsub.f32 %v5248, %v5468
  %v5715 = vsub.f32 %v5249, %v5468
  %v5716 = vsub.f32 %v5250, %v5468
  %v5717 = vsub.f32 %v5251, %v5468
  %v5718 = vsub.f32 %v5252, %v5468
  %v5719 = vsub.f32 %v5253, %v5468
  %v5720 = vsub.f32 %v5254, %v5468
  %v5721 = vsub.f32 %v5255, %v5468
  %v5722 = vsub.f32 %v5256, %v5468
  %v5723 = vsub.f32 %v5257, %v5468
  %v5724 = vsub.f32 %v5258, %v5468
  %v5725 = vsub.f32 %v5259, %v5468
  %v5726 = vsub.f32 %v5260, %v5468
  %v5727 = vsub.f32 %v5261, %v5468
  %v5728 = vsub.f32 %v5262, %v5468
  %v5729 = vsub.f32 %v5263, %v5468
  %v5730 = vsub.f32 %v5264, %v5468
  %v5731 = vsub.f32 %v5265, %v5468
  %v5732 = vsub.f32 %v5266, %v5468
  %v5733 = vsub.f32 %v5267, %v5468
  %v5734 = vadd.f32 %v5669, 1e-05
  %v5735 = vrsqrt.pop %v5734
  %v5736 = vmul.f32 %v5670, %v5735
  %v5737 = vmul.f32 %v5671, %v5735
  %v5738 = vmul.f32 %v5672, %v5735
  %v5739 = vmul.f32 %v5673, %v5735
  %v5740 = vmul.f32 %v5674, %v5735
  %v5741 = vmul.f32 %v5675, %v5735
  %v5742 = vmul.f32 %v5676, %v5735
  %v5743 = vmul.f32 %v5677, %v5735
  %v5744 = vmul.f32 %v5678, %v5735
  %v5745 = vmul.f32 %v5679, %v5735
  %v5746 = vmul.f32 %v5680, %v5735
  %v5747 = vmul.f32 %v5681, %v5735
  %v5748 = vmul.f32 %v5682, %v5735
  %v5749 = vmul.f32 %v5683, %v5735
  %v5750 = vmul.f32 %v5684, %v5735
  %v5751 = vmul.f32 %v5685, %v5735
  %v5752 = vmul.f32 %v5686, %v5735
  %v5753 = vmul.f32 %v5687, %v5735
  %v5754 = vmul.f32 %v5688, %v5735
  %v5755 = vmul.f32 %v5689, %v5735
  %v5756 = vmul.f32 %v5690, %v5735
  %v5757 = vmul.f32 %v5691, %v5735
  %v5758 = vmul.f32 %v5692, %v5735
  %v5759 = vmul.f32 %v5693, %v5735
  %v5760 = vmul.f32 %v5694, %v5735
  %v5761 = vmul.f32 %v5695, %v5735
  %v5762 = vmul.f32 %v5696, %v5735
  %v5763 = vmul.f32 %v5697, %v5735
  %v5764 = vmul.f32 %v5698, %v5735
  %v5765 = vmul.f32 %v5699, %v5735
  %v5766 = vmul.f32 %v5700, %v5735
  %v5767 = vmul.f32 %v5701, %v5735
  %v5768 = vmul.f32 %v5702, %v5735
  %v5769 = vmul.f32 %v5703, %v5735
  %v5770 = vmul.f32 %v5704, %v5735
  %v5771 = vmul.f32 %v5705, %v5735
  %v5772 = vmul.f32 %v5706, %v5735
  %v5773 = vmul.f32 %v5707, %v5735
  %v5774 = vmul.f32 %v5708, %v5735
  %v5775 = vmul.f32 %v5709, %v5735
  %v5776 = vmul.f32 %v5710, %v5735
  %v5777 = vmul.f32 %v5711, %v5735
  %v5778 = vmul.f32 %v5712, %v5735
  %v5779 = vmul.f32 %v5713, %v5735
  %v5780 = vmul.f32 %v5714, %v5735
  %v5781 = vmul.f32 %v5715, %v5735
  %v5782 = vmul.f32 %v5716, %v5735
  %v5783 = vmul.f32 %v5717, %v5735
  %v5784 = vmul.f32 %v5718, %v5735
  %v5785 = vmul.f32 %v5719, %v5735
  %v5786 = vmul.f32 %v5720, %v5735
  %v5787 = vmul.f32 %v5721, %v5735
  %v5788 = vmul.f32 %v5722, %v5735
  %v5789 = vmul.f32 %v5723, %v5735
  %v5790 = vmul.f32 %v5724, %v5735
  %v5791 = vmul.f32 %v5725, %v5735
  %v5792 = vmul.f32 %v5726, %v5735
  %v5793 = vmul.f32 %v5727, %v5735
  %v5794 = vmul.f32 %v5728, %v5735
  %v5795 = vmul.f32 %v5729, %v5735
  %v5796 = vmul.f32 %v5730, %v5735
  %v5797 = vmul.f32 %v5731, %v5735
  %v5798 = vmul.f32 %v5732, %v5735
  %v5799 = vmul.f32 %v5733, %v5735
  %v5801 = vlaneseq
  %v5802 = vshrl.u32 %v5801, 7
  %v5803 = vsub.s32 0, %v5802
  %v5804 = vrot.slane %v5332, %v5803
  %v5806 = vmul.f32 %v5736, %v5804
  %v5807 = vmul.f32 %v5737, %v5804
  %v5808 = vmul.f32 %v5738, %v5804
  %v5809 = vmul.f32 %v5739, %v5804
  %v5810 = vmul.f32 %v5740, %v5804
  %v5811 = vmul.f32 %v5741, %v5804
  %v5812 = vmul.f32 %v5742, %v5804
  %v5813 = vmul.f32 %v5743, %v5804
  %v5814 = vmul.f32 %v5744, %v5804
  %v5815 = vmul.f32 %v5745, %v5804
  %v5816 = vmul.f32 %v5746, %v5804
  %v5817 = vmul.f32 %v5747, %v5804
  %v5818 = vmul.f32 %v5748, %v5804
  %v5819 = vmul.f32 %v5749, %v5804
  %v5820 = vmul.f32 %v5750, %v5804
  %v5821 = vmul.f32 %v5751, %v5804
  %v5822 = vmul.f32 %v5752, %v5804
  %v5823 = vmul.f32 %v5753, %v5804
  %v5824 = vmul.f32 %v5754, %v5804
  %v5825 = vmul.f32 %v5755, %v5804
  %v5826 = vmul.f32 %v5756, %v5804
  %v5827 = vmul.f32 %v5757, %v5804
  %v5828 = vmul.f32 %v5758, %v5804
  %v5829 = vmul.f32 %v5759, %v5804
  %v5830 = vmul.f32 %v5760, %v5804
  %v5831 = vmul.f32 %v5761, %v5804
  %v5832 = vmul.f32 %v5762, %v5804
  %v5833 = vmul.f32 %v5763, %v5804
  %v5834 = vmul.f32 %v5764, %v5804
  %v5835 = vmul.f32 %v5765, %v5804
  %v5836 = vmul.f32 %v5766, %v5804
  %v5837 = vmul.f32 %v5767, %v5804
  %v5838 = vmul.f32 %v5768, %v5804
  %v5839 = vmul.f32 %v5769, %v5804
  %v5840 = vmul.f32 %v5770, %v5804
  %v5841 = vmul.f32 %v5771, %v5804
  %v5842 = vmul.f32 %v5772, %v5804
  %v5843 = vmul.f32 %v5773, %v5804
  %v5844 = vmul.f32 %v5774, %v5804
  %v5845 = vmul.f32 %v5775, %v5804
  %v5846 = vmul.f32 %v5776, %v5804
  %v5847 = vmul.f32 %v5777, %v5804
  %v5848 = vmul.f32 %v5778, %v5804
  %v5849 = vmul.f32 %v5779, %v5804
  %v5850 = vmul.f32 %v5780, %v5804
  %v5851 = vmul.f32 %v5781, %v5804
  %v5852 = vmul.f32 %v5782, %v5804
  %v5853 = vmul.f32 %v5783, %v5804
  %v5854 = vmul.f32 %v5784, %v5804
  %v5855 = vmul.f32 %v5785, %v5804
  %v5856 = vmul.f32 %v5786, %v5804
  %v5857 = vmul.f32 %v5787, %v5804
  %v5858 = vmul.f32 %v5788, %v5804
  %v5859 = vmul.f32 %v5789, %v5804
  %v5860 = vmul.f32 %v5790, %v5804
  %v5861 = vmul.f32 %v5791, %v5804
  %v5862 = vmul.f32 %v5792, %v5804
  %v5863 = vmul.f32 %v5793, %v5804
  %v5864 = vmul.f32 %v5794, %v5804
  %v5865 = vmul.f32 %v5795, %v5804
  %v5866 = vmul.f32 %v5796, %v5804
  %v5867 = vmul.f32 %v5797, %v5804
  %v5868 = vmul.f32 %v5798, %v5804
  %v5869 = vmul.f32 %v5799, %v5804
  %v5871 = vlaneseq
  %v5872 = vshrl.u32 %v5871, 7
  %v5873 = vsub.s32 0, %v5872
  %v5874 = vrot.slane %v5333, %v5873
  %v5876 = vadd.f32 %v5806, %v5874
  %v5877 = vadd.f32 %v5807, %v5874
  %v5878 = vadd.f32 %v5808, %v5874
  %v5879 = vadd.f32 %v5809, %v5874
  %v5880 = vadd.f32 %v5810, %v5874
  %v5881 = vadd.f32 %v5811, %v5874
  %v5882 = vadd.f32 %v5812, %v5874
  %v5883 = vadd.f32 %v5813, %v5874
  %v5884 = vadd.f32 %v5814, %v5874
  %v5885 = vadd.f32 %v5815, %v5874
  %v5886 = vadd.f32 %v5816, %v5874
  %v5887 = vadd.f32 %v5817, %v5874
  %v5888 = vadd.f32 %v5818, %v5874
  %v5889 = vadd.f32 %v5819, %v5874
  %v5890 = vadd.f32 %v5820, %v5874
  %v5891 = vadd.f32 %v5821, %v5874
  %v5892 = vadd.f32 %v5822, %v5874
  %v5893 = vadd.f32 %v5823, %v5874
  %v5894 = vadd.f32 %v5824, %v5874
  %v5895 = vadd.f32 %v5825, %v5874
  %v5896 = vadd.f32 %v5826, %v5874
  %v5897 = vadd.f32 %v5827, %v5874
  %v5898 = vadd.f32 %v5828, %v5874
  %v5899 = vadd.f32 %v5829, %v5874
  %v5900 = vadd.f32 %v5830, %v5874
  %v5901 = vadd.f32 %v5831, %v5874
  %v5902 = vadd.f32 %v5832, %v5874
  %v5903 = vadd.f32 %v5833, %v5874
  %v5904 = vadd.f32 %v5834, %v5874
  %v5905 = vadd.f32 %v5835, %v5874
  %v5906 = vadd.f32 %v5836, %v5874
  %v5907 = vadd.f32 %v5837, %v5874
  %v5908 = vadd.f32 %v5838, %v5874
  %v5909 = vadd.f32 %v5839, %v5874
  %v5910 = vadd.f32 %v5840, %v5874
  %v5911 = vadd.f32 %v5841, %v5874
  %v5912 = vadd.f32 %v5842, %v5874
  %v5913 = vadd.f32 %v5843, %v5874
  %v5914 = vadd.f32 %v5844, %v5874
  %v5915 = vadd.f32 %v5845, %v5874
  %v5916 = vadd.f32 %v5846, %v5874
  %v5917 = vadd.f32 %v5847, %v5874
  %v5918 = vadd.f32 %v5848, %v5874
  %v5919 = vadd.f32 %v5849, %v5874
  %v5920 = vadd.f32 %v5850, %v5874
  %v5921 = vadd.f32 %v5851, %v5874
  %v5922 = vadd.f32 %v5852, %v5874
  %v5923 = vadd.f32 %v5853, %v5874
  %v5924 = vadd.f32 %v5854, %v5874
  %v5925 = vadd.f32 %v5855, %v5874
  %v5926 = vadd.f32 %v5856, %v5874
  %v5927 = vadd.f32 %v5857, %v5874
  %v5928 = vadd.f32 %v5858, %v5874
  %v5929 = vadd.f32 %v5859, %v5874
  %v5930 = vadd.f32 %v5860, %v5874
  %v5931 = vadd.f32 %v5861, %v5874
  %v5932 = vadd.f32 %v5862, %v5874
  %v5933 = vadd.f32 %v5863, %v5874
  %v5934 = vadd.f32 %v5864, %v5874
  %v5935 = vadd.f32 %v5865, %v5874
  %v5936 = vadd.f32 %v5866, %v5874
  %v5937 = vadd.f32 %v5867, %v5874
  %v5938 = vadd.f32 %v5868, %v5874
  %v5939 = vadd.f32 %v5869, %v5874
  %v5940 = vpack.c.bf16 %v5877, %v5876
  %v5941 = vpack.c.bf16 %v5879, %v5878
  %v5942 = vpack.c.bf16 %v5881, %v5880
  %v5943 = vpack.c.bf16 %v5883, %v5882
  %v5944 = vpack.c.bf16 %v5885, %v5884
  %v5945 = vpack.c.bf16 %v5887, %v5886
  %v5946 = vpack.c.bf16 %v5889, %v5888
  %v5947 = vpack.c.bf16 %v5891, %v5890
  %v5948 = vpack.c.bf16 %v5893, %v5892
  %v5949 = vpack.c.bf16 %v5895, %v5894
  %v5950 = vpack.c.bf16 %v5897, %v5896
  %v5951 = vpack.c.bf16 %v5899, %v5898
  %v5952 = vpack.c.bf16 %v5901, %v5900
  %v5953 = vpack.c.bf16 %v5903, %v5902
  %v5954 = vpack.c.bf16 %v5905, %v5904
  %v5955 = vpack.c.bf16 %v5907, %v5906
  %v5956 = vpack.c.bf16 %v5909, %v5908
  %v5957 = vpack.c.bf16 %v5911, %v5910
  %v5958 = vpack.c.bf16 %v5913, %v5912
  %v5959 = vpack.c.bf16 %v5915, %v5914
  %v5960 = vpack.c.bf16 %v5917, %v5916
  %v5961 = vpack.c.bf16 %v5919, %v5918
  %v5962 = vpack.c.bf16 %v5921, %v5920
  %v5963 = vpack.c.bf16 %v5923, %v5922
  %v5964 = vpack.c.bf16 %v5925, %v5924
  %v5965 = vpack.c.bf16 %v5927, %v5926
  %v5966 = vpack.c.bf16 %v5929, %v5928
  %v5967 = vpack.c.bf16 %v5931, %v5930
  %v5968 = vpack.c.bf16 %v5933, %v5932
  %v5969 = vpack.c.bf16 %v5935, %v5934
  %v5970 = vpack.c.bf16 %v5937, %v5936
  %v5971 = vpack.c.bf16 %v5939, %v5938
  %v6004 = vunpack.c.l.b16 %v5940
  %v6005 = vunpack.c.h.b16 %v5940
  %v6006 = vunpack.c.l.b16 %v5941
  %v6007 = vunpack.c.h.b16 %v5941
  %v6008 = vunpack.c.l.b16 %v5942
  %v6009 = vunpack.c.h.b16 %v5942
  %v6010 = vunpack.c.l.b16 %v5943
  %v6011 = vunpack.c.h.b16 %v5943
  %v6012 = vunpack.c.l.b16 %v5944
  %v6013 = vunpack.c.h.b16 %v5944
  %v6014 = vunpack.c.l.b16 %v5945
  %v6015 = vunpack.c.h.b16 %v5945
  %v6016 = vunpack.c.l.b16 %v5946
  %v6017 = vunpack.c.h.b16 %v5946
  %v6018 = vunpack.c.l.b16 %v5947
  %v6019 = vunpack.c.h.b16 %v5947
  %v6020 = vunpack.c.l.b16 %v5948
  %v6021 = vunpack.c.h.b16 %v5948
  %v6022 = vunpack.c.l.b16 %v5949
  %v6023 = vunpack.c.h.b16 %v5949
  %v6024 = vunpack.c.l.b16 %v5950
  %v6025 = vunpack.c.h.b16 %v5950
  %v6026 = vunpack.c.l.b16 %v5951
  %v6027 = vunpack.c.h.b16 %v5951
  %v6028 = vunpack.c.l.b16 %v5952
  %v6029 = vunpack.c.h.b16 %v5952
  %v6030 = vunpack.c.l.b16 %v5953
  %v6031 = vunpack.c.h.b16 %v5953
  %v6032 = vunpack.c.l.b16 %v5954
  %v6033 = vunpack.c.h.b16 %v5954
  %v6034 = vunpack.c.l.b16 %v5955
  %v6035 = vunpack.c.h.b16 %v5955
  %v6036 = vunpack.c.l.b16 %v5956
  %v6037 = vunpack.c.h.b16 %v5956
  %v6038 = vunpack.c.l.b16 %v5957
  %v6039 = vunpack.c.h.b16 %v5957
  %v6040 = vunpack.c.l.b16 %v5958
  %v6041 = vunpack.c.h.b16 %v5958
  %v6042 = vunpack.c.l.b16 %v5959
  %v6043 = vunpack.c.h.b16 %v5959
  %v6044 = vunpack.c.l.b16 %v5960
  %v6045 = vunpack.c.h.b16 %v5960
  %v6046 = vunpack.c.l.b16 %v5961
  %v6047 = vunpack.c.h.b16 %v5961
  %v6048 = vunpack.c.l.b16 %v5962
  %v6049 = vunpack.c.h.b16 %v5962
  %v6050 = vunpack.c.l.b16 %v5963
  %v6051 = vunpack.c.h.b16 %v5963
  %v6052 = vunpack.c.l.b16 %v5964
  %v6053 = vunpack.c.h.b16 %v5964
  %v6054 = vunpack.c.l.b16 %v5965
  %v6055 = vunpack.c.h.b16 %v5965
  %v6056 = vunpack.c.l.b16 %v5966
  %v6057 = vunpack.c.h.b16 %v5966
  %v6058 = vunpack.c.l.b16 %v5967
  %v6059 = vunpack.c.h.b16 %v5967
  %v6060 = vunpack.c.l.b16 %v5968
  %v6061 = vunpack.c.h.b16 %v5968
  %v6062 = vunpack.c.l.b16 %v5969
  %v6063 = vunpack.c.h.b16 %v5969
  %v6064 = vunpack.c.l.b16 %v5970
  %v6065 = vunpack.c.h.b16 %v5970
  %v6066 = vunpack.c.l.b16 %v5971
  %v6067 = vunpack.c.h.b16 %v5971
  %v6068 = vpack.c.b16 %v6004, %v6004
  %v6069 = vpack.c.b16 %v6005, %v6005
  %v6070 = vpack.c.b16 %v6006, %v6006
  %v6071 = vpack.c.b16 %v6007, %v6007
  %v6072 = vpack.c.b16 %v6008, %v6008
  %v6073 = vpack.c.b16 %v6009, %v6009
  %v6074 = vpack.c.b16 %v6010, %v6010
  %v6075 = vpack.c.b16 %v6011, %v6011
  %v6076 = vpack.c.b16 %v6012, %v6012
  %v6077 = vpack.c.b16 %v6013, %v6013
  %v6078 = vpack.c.b16 %v6014, %v6014
  %v6079 = vpack.c.b16 %v6015, %v6015
  %v6080 = vpack.c.b16 %v6016, %v6016
  %v6081 = vpack.c.b16 %v6017, %v6017
  %v6082 = vpack.c.b16 %v6018, %v6018
  %v6083 = vpack.c.b16 %v6019, %v6019
  %v6084 = vpack.c.b16 %v6020, %v6020
  %v6085 = vpack.c.b16 %v6021, %v6021
  %v6086 = vpack.c.b16 %v6022, %v6022
  %v6087 = vpack.c.b16 %v6023, %v6023
  %v6088 = vpack.c.b16 %v6024, %v6024
  %v6089 = vpack.c.b16 %v6025, %v6025
  %v6090 = vpack.c.b16 %v6026, %v6026
  %v6091 = vpack.c.b16 %v6027, %v6027
  %v6092 = vpack.c.b16 %v6028, %v6028
  %v6093 = vpack.c.b16 %v6029, %v6029
  %v6094 = vpack.c.b16 %v6030, %v6030
  %v6095 = vpack.c.b16 %v6031, %v6031
  %v6096 = vpack.c.b16 %v6032, %v6032
  %v6097 = vpack.c.b16 %v6033, %v6033
  %v6098 = vpack.c.b16 %v6034, %v6034
  %v6099 = vpack.c.b16 %v6035, %v6035
  %v6100 = vpack.c.b16 %v6036, %v6036
  %v6101 = vpack.c.b16 %v6037, %v6037
  %v6102 = vpack.c.b16 %v6038, %v6038
  %v6103 = vpack.c.b16 %v6039, %v6039
  %v6104 = vpack.c.b16 %v6040, %v6040
  %v6105 = vpack.c.b16 %v6041, %v6041
  %v6106 = vpack.c.b16 %v6042, %v6042
  %v6107 = vpack.c.b16 %v6043, %v6043
  %v6108 = vpack.c.b16 %v6044, %v6044
  %v6109 = vpack.c.b16 %v6045, %v6045
  %v6110 = vpack.c.b16 %v6046, %v6046
  %v6111 = vpack.c.b16 %v6047, %v6047
  %v6112 = vpack.c.b16 %v6048, %v6048
  %v6113 = vpack.c.b16 %v6049, %v6049
  %v6114 = vpack.c.b16 %v6050, %v6050
  %v6115 = vpack.c.b16 %v6051, %v6051
  %v6116 = vpack.c.b16 %v6052, %v6052
  %v6117 = vpack.c.b16 %v6053, %v6053
  %v6118 = vpack.c.b16 %v6054, %v6054
  %v6119 = vpack.c.b16 %v6055, %v6055
  %v6120 = vpack.c.b16 %v6056, %v6056
  %v6121 = vpack.c.b16 %v6057, %v6057
  %v6122 = vpack.c.b16 %v6058, %v6058
  %v6123 = vpack.c.b16 %v6059, %v6059
  %v6124 = vpack.c.b16 %v6060, %v6060
  %v6125 = vpack.c.b16 %v6061, %v6061
  %v6126 = vpack.c.b16 %v6062, %v6062
  %v6127 = vpack.c.b16 %v6063, %v6063
  %v6128 = vpack.c.b16 %v6064, %v6064
  %v6129 = vpack.c.b16 %v6065, %v6065
  %v6130 = vpack.c.b16 %v6066, %v6066
  %v6131 = vpack.c.b16 %v6067, %v6067
  %vm6196 = vcmask 125952
  %6197 = vst.msk [vmem:[%s5] sm:$0xf] %vm6196, %v6068
  %6198 = vst.msk [vmem:[%s5 + $0x4] sm:$0xf] %vm6196, %v6069
  %6199 = vst.msk [vmem:[%s5 + $0x8] sm:$0xf] %vm6196, %v6070
  %6200 = vst.msk [vmem:[%s5 + $0xc] sm:$0xf] %vm6196, %v6071
  %6201 = vst.msk [vmem:[%s5 + $0x10] sm:$0xf] %vm6196, %v6072
  %6202 = vst.msk [vmem:[%s5 + $0x14] sm:$0xf] %vm6196, %v6073
  %6203 = vst.msk [vmem:[%s5 + $0x18] sm:$0xf] %vm6196, %v6074
  %6204 = vst.msk [vmem:[%s5 + $0x1c] sm:$0xf] %vm6196, %v6075
  %6205 = vst.msk [vmem:[%s5 + $0x20] sm:$0xf] %vm6196, %v6076
  %6206 = vst.msk [vmem:[%s5 + $0x24] sm:$0xf] %vm6196, %v6077
  %6207 = vst.msk [vmem:[%s5 + $0x28] sm:$0xf] %vm6196, %v6078
  %6208 = vst.msk [vmem:[%s5 + $0x2c] sm:$0xf] %vm6196, %v6079
  %6209 = vst.msk [vmem:[%s5 + $0x30] sm:$0xf] %vm6196, %v6080
  %6210 = vst.msk [vmem:[%s5 + $0x34] sm:$0xf] %vm6196, %v6081
  %6211 = vst.msk [vmem:[%s5 + $0x38] sm:$0xf] %vm6196, %v6082
  %6212 = vst.msk [vmem:[%s5 + $0x3c] sm:$0xf] %vm6196, %v6083
  %6213 = vst.msk [vmem:[%s5 + $0x40] sm:$0xf] %vm6196, %v6084
  %6214 = vst.msk [vmem:[%s5 + $0x44] sm:$0xf] %vm6196, %v6085
  %6215 = vst.msk [vmem:[%s5 + $0x48] sm:$0xf] %vm6196, %v6086
  %6216 = vst.msk [vmem:[%s5 + $0x4c] sm:$0xf] %vm6196, %v6087
  %6217 = vst.msk [vmem:[%s5 + $0x50] sm:$0xf] %vm6196, %v6088
  %6218 = vst.msk [vmem:[%s5 + $0x54] sm:$0xf] %vm6196, %v6089
  %6219 = vst.msk [vmem:[%s5 + $0x58] sm:$0xf] %vm6196, %v6090
  %6220 = vst.msk [vmem:[%s5 + $0x5c] sm:$0xf] %vm6196, %v6091
  %6221 = vst.msk [vmem:[%s5 + $0x60] sm:$0xf] %vm6196, %v6092
  %6222 = vst.msk [vmem:[%s5 + $0x64] sm:$0xf] %vm6196, %v6093
  %6223 = vst.msk [vmem:[%s5 + $0x68] sm:$0xf] %vm6196, %v6094
  %6224 = vst.msk [vmem:[%s5 + $0x6c] sm:$0xf] %vm6196, %v6095
  %6225 = vst.msk [vmem:[%s5 + $0x70] sm:$0xf] %vm6196, %v6096
  %6226 = vst.msk [vmem:[%s5 + $0x74] sm:$0xf] %vm6196, %v6097
  %6227 = vst.msk [vmem:[%s5 + $0x78] sm:$0xf] %vm6196, %v6098
  %6228 = vst.msk [vmem:[%s5 + $0x7c] sm:$0xf] %vm6196, %v6099
  %6229 = vst.msk [vmem:[%s5 + $0x80] sm:$0xf] %vm6196, %v6100
  %6230 = vst.msk [vmem:[%s5 + $0x84] sm:$0xf] %vm6196, %v6101
  %6231 = vst.msk [vmem:[%s5 + $0x88] sm:$0xf] %vm6196, %v6102
  %6232 = vst.msk [vmem:[%s5 + $0x8c] sm:$0xf] %vm6196, %v6103
  %6233 = vst.msk [vmem:[%s5 + $0x90] sm:$0xf] %vm6196, %v6104
  %6234 = vst.msk [vmem:[%s5 + $0x94] sm:$0xf] %vm6196, %v6105
  %6235 = vst.msk [vmem:[%s5 + $0x98] sm:$0xf] %vm6196, %v6106
  %6236 = vst.msk [vmem:[%s5 + $0x9c] sm:$0xf] %vm6196, %v6107
  %6237 = vst.msk [vmem:[%s5 + $0xa0] sm:$0xf] %vm6196, %v6108
  %6238 = vst.msk [vmem:[%s5 + $0xa4] sm:$0xf] %vm6196, %v6109
  %6239 = vst.msk [vmem:[%s5 + $0xa8] sm:$0xf] %vm6196, %v6110
  %6240 = vst.msk [vmem:[%s5 + $0xac] sm:$0xf] %vm6196, %v6111
  %6241 = vst.msk [vmem:[%s5 + $0xb0] sm:$0xf] %vm6196, %v6112
  %6242 = vst.msk [vmem:[%s5 + $0xb4] sm:$0xf] %vm6196, %v6113
  %6243 = vst.msk [vmem:[%s5 + $0xb8] sm:$0xf] %vm6196, %v6114
  %6244 = vst.msk [vmem:[%s5 + $0xbc] sm:$0xf] %vm6196, %v6115
  %6245 = vst.msk [vmem:[%s5 + $0xc0] sm:$0xf] %vm6196, %v6116
  %6246 = vst.msk [vmem:[%s5 + $0xc4] sm:$0xf] %vm6196, %v6117
  %6247 = vst.msk [vmem:[%s5 + $0xc8] sm:$0xf] %vm6196, %v6118
  %6248 = vst.msk [vmem:[%s5 + $0xcc] sm:$0xf] %vm6196, %v6119
  %6249 = vst.msk [vmem:[%s5 + $0xd0] sm:$0xf] %vm6196, %v6120
  %6250 = vst.msk [vmem:[%s5 + $0xd4] sm:$0xf] %vm6196, %v6121
  %6251 = vst.msk [vmem:[%s5 + $0xd8] sm:$0xf] %vm6196, %v6122
  %6252 = vst.msk [vmem:[%s5 + $0xdc] sm:$0xf] %vm6196, %v6123
  %6253 = vst.msk [vmem:[%s5 + $0xe0] sm:$0xf] %vm6196, %v6124
  %6254 = vst.msk [vmem:[%s5 + $0xe4] sm:$0xf] %vm6196, %v6125
  %6255 = vst.msk [vmem:[%s5 + $0xe8] sm:$0xf] %vm6196, %v6126
  %6256 = vst.msk [vmem:[%s5 + $0xec] sm:$0xf] %vm6196, %v6127
  %6257 = vst.msk [vmem:[%s5 + $0xf0] sm:$0xf] %vm6196, %v6128
  %6258 = vst.msk [vmem:[%s5 + $0xf4] sm:$0xf] %vm6196, %v6129
  %6259 = vst.msk [vmem:[%s5 + $0xf8] sm:$0xf] %vm6196, %v6130
  %6260 = vst.msk [vmem:[%s5 + $0xfc] sm:$0xf] %vm6196, %v6131
  %v6261 = vld [vmem:[%s3] sm:$0x1]
  %v6262 = vld [vmem:[%s4] sm:$0x1]
  %v6263 = vsel %vm5334, %v5268, 0.0
  %v6264 = vsel %vm5334, %v5269, 0.0
  %v6265 = vadd.f32 %v6263, %v6264
  %v6266 = vsel %vm5334, %v5270, 0.0
  %v6267 = vadd.f32 %v6265, %v6266
  %v6268 = vsel %vm5334, %v5271, 0.0
  %v6269 = vadd.f32 %v6267, %v6268
  %v6270 = vsel %vm5334, %v5272, 0.0
  %v6271 = vadd.f32 %v6269, %v6270
  %v6272 = vsel %vm5334, %v5273, 0.0
  %v6273 = vadd.f32 %v6271, %v6272
  %v6274 = vsel %vm5334, %v5274, 0.0
  %v6275 = vadd.f32 %v6273, %v6274
  %v6276 = vsel %vm5334, %v5275, 0.0
  %v6277 = vadd.f32 %v6275, %v6276
  %v6278 = vsel %vm5334, %v5276, 0.0
  %v6279 = vadd.f32 %v6277, %v6278
  %v6280 = vsel %vm5334, %v5277, 0.0
  %v6281 = vadd.f32 %v6279, %v6280
  %v6282 = vsel %vm5334, %v5278, 0.0
  %v6283 = vadd.f32 %v6281, %v6282
  %v6284 = vsel %vm5334, %v5279, 0.0
  %v6285 = vadd.f32 %v6283, %v6284
  %v6286 = vsel %vm5334, %v5280, 0.0
  %v6287 = vadd.f32 %v6285, %v6286
  %v6288 = vsel %vm5334, %v5281, 0.0
  %v6289 = vadd.f32 %v6287, %v6288
  %v6290 = vsel %vm5334, %v5282, 0.0
  %v6291 = vadd.f32 %v6289, %v6290
  %v6292 = vsel %vm5334, %v5283, 0.0
  %v6293 = vadd.f32 %v6291, %v6292
  %v6294 = vsel %vm5334, %v5284, 0.0
  %v6295 = vadd.f32 %v6293, %v6294
  %v6296 = vsel %vm5334, %v5285, 0.0
  %v6297 = vadd.f32 %v6295, %v6296
  %v6298 = vsel %vm5334, %v5286, 0.0
  %v6299 = vadd.f32 %v6297, %v6298
  %v6300 = vsel %vm5334, %v5287, 0.0
  %v6301 = vadd.f32 %v6299, %v6300
  %v6302 = vsel %vm5334, %v5288, 0.0
  %v6303 = vadd.f32 %v6301, %v6302
  %v6304 = vsel %vm5334, %v5289, 0.0
  %v6305 = vadd.f32 %v6303, %v6304
  %v6306 = vsel %vm5334, %v5290, 0.0
  %v6307 = vadd.f32 %v6305, %v6306
  %v6308 = vsel %vm5334, %v5291, 0.0
  %v6309 = vadd.f32 %v6307, %v6308
  %v6310 = vsel %vm5334, %v5292, 0.0
  %v6311 = vadd.f32 %v6309, %v6310
  %v6312 = vsel %vm5334, %v5293, 0.0
  %v6313 = vadd.f32 %v6311, %v6312
  %v6314 = vsel %vm5334, %v5294, 0.0
  %v6315 = vadd.f32 %v6313, %v6314
  %v6316 = vsel %vm5334, %v5295, 0.0
  %v6317 = vadd.f32 %v6315, %v6316
  %v6318 = vsel %vm5334, %v5296, 0.0
  %v6319 = vadd.f32 %v6317, %v6318
  %v6320 = vsel %vm5334, %v5297, 0.0
  %v6321 = vadd.f32 %v6319, %v6320
  %v6322 = vsel %vm5334, %v5298, 0.0
  %v6323 = vadd.f32 %v6321, %v6322
  %v6324 = vsel %vm5334, %v5299, 0.0
  %v6325 = vadd.f32 %v6323, %v6324
  %v6326 = vsel %vm5334, %v5300, 0.0
  %v6327 = vadd.f32 %v6325, %v6326
  %v6328 = vsel %vm5334, %v5301, 0.0
  %v6329 = vadd.f32 %v6327, %v6328
  %v6330 = vsel %vm5334, %v5302, 0.0
  %v6331 = vadd.f32 %v6329, %v6330
  %v6332 = vsel %vm5334, %v5303, 0.0
  %v6333 = vadd.f32 %v6331, %v6332
  %v6334 = vsel %vm5334, %v5304, 0.0
  %v6335 = vadd.f32 %v6333, %v6334
  %v6336 = vsel %vm5334, %v5305, 0.0
  %v6337 = vadd.f32 %v6335, %v6336
  %v6338 = vsel %vm5334, %v5306, 0.0
  %v6339 = vadd.f32 %v6337, %v6338
  %v6340 = vsel %vm5334, %v5307, 0.0
  %v6341 = vadd.f32 %v6339, %v6340
  %v6342 = vsel %vm5334, %v5308, 0.0
  %v6343 = vadd.f32 %v6341, %v6342
  %v6344 = vsel %vm5334, %v5309, 0.0
  %v6345 = vadd.f32 %v6343, %v6344
  %v6346 = vsel %vm5334, %v5310, 0.0
  %v6347 = vadd.f32 %v6345, %v6346
  %v6348 = vsel %vm5334, %v5311, 0.0
  %v6349 = vadd.f32 %v6347, %v6348
  %v6350 = vsel %vm5334, %v5312, 0.0
  %v6351 = vadd.f32 %v6349, %v6350
  %v6352 = vsel %vm5334, %v5313, 0.0
  %v6353 = vadd.f32 %v6351, %v6352
  %v6354 = vsel %vm5334, %v5314, 0.0
  %v6355 = vadd.f32 %v6353, %v6354
  %v6356 = vsel %vm5334, %v5315, 0.0
  %v6357 = vadd.f32 %v6355, %v6356
  %v6358 = vsel %vm5334, %v5316, 0.0
  %v6359 = vadd.f32 %v6357, %v6358
  %v6360 = vsel %vm5334, %v5317, 0.0
  %v6361 = vadd.f32 %v6359, %v6360
  %v6362 = vsel %vm5334, %v5318, 0.0
  %v6363 = vadd.f32 %v6361, %v6362
  %v6364 = vsel %vm5334, %v5319, 0.0
  %v6365 = vadd.f32 %v6363, %v6364
  %v6366 = vsel %vm5334, %v5320, 0.0
  %v6367 = vadd.f32 %v6365, %v6366
  %v6368 = vsel %vm5334, %v5321, 0.0
  %v6369 = vadd.f32 %v6367, %v6368
  %v6370 = vsel %vm5334, %v5322, 0.0
  %v6371 = vadd.f32 %v6369, %v6370
  %v6372 = vsel %vm5334, %v5323, 0.0
  %v6373 = vadd.f32 %v6371, %v6372
  %v6374 = vsel %vm5334, %v5324, 0.0
  %v6375 = vadd.f32 %v6373, %v6374
  %v6376 = vsel %vm5334, %v5325, 0.0
  %v6377 = vadd.f32 %v6375, %v6376
  %v6378 = vsel %vm5334, %v5326, 0.0
  %v6379 = vadd.f32 %v6377, %v6378
  %v6380 = vsel %vm5334, %v5327, 0.0
  %v6381 = vadd.f32 %v6379, %v6380
  %v6382 = vsel %vm5334, %v5328, 0.0
  %v6383 = vadd.f32 %v6381, %v6382
  %v6384 = vsel %vm5334, %v5329, 0.0
  %v6385 = vadd.f32 %v6383, %v6384
  %v6386 = vsel %vm5334, %v5330, 0.0
  %v6387 = vadd.f32 %v6385, %v6386
  %v6388 = vsel %vm5334, %v5331, 0.0
  %v6389 = vadd.f32 %v6387, %v6388
  %v6390 = vrot.slane %v6389, 4
  %v6391 = vadd.f32 %v6389, %v6390
  %v6392 = vrot.slane %v6391, 2
  %v6393 = vadd.f32 %v6391, %v6392
  %v6394 = vrot.slane %v6393, 1
  %v6395 = vadd.f32 %v6393, %v6394
  %v6396 = vmul.f32 %v6395, 0.001953125
  %v6397 = vmul.f32 %v5268, %v5268
  %v6398 = vmul.f32 %v5269, %v5269
  %v6399 = vmul.f32 %v5270, %v5270
  %v6400 = vmul.f32 %v5271, %v5271
  %v6401 = vmul.f32 %v5272, %v5272
  %v6402 = vmul.f32 %v5273, %v5273
  %v6403 = vmul.f32 %v5274, %v5274
  %v6404 = vmul.f32 %v5275, %v5275
  %v6405 = vmul.f32 %v5276, %v5276
  %v6406 = vmul.f32 %v5277, %v5277
  %v6407 = vmul.f32 %v5278, %v5278
  %v6408 = vmul.f32 %v5279, %v5279
  %v6409 = vmul.f32 %v5280, %v5280
  %v6410 = vmul.f32 %v5281, %v5281
  %v6411 = vmul.f32 %v5282, %v5282
  %v6412 = vmul.f32 %v5283, %v5283
  %v6413 = vmul.f32 %v5284, %v5284
  %v6414 = vmul.f32 %v5285, %v5285
  %v6415 = vmul.f32 %v5286, %v5286
  %v6416 = vmul.f32 %v5287, %v5287
  %v6417 = vmul.f32 %v5288, %v5288
  %v6418 = vmul.f32 %v5289, %v5289
  %v6419 = vmul.f32 %v5290, %v5290
  %v6420 = vmul.f32 %v5291, %v5291
  %v6421 = vmul.f32 %v5292, %v5292
  %v6422 = vmul.f32 %v5293, %v5293
  %v6423 = vmul.f32 %v5294, %v5294
  %v6424 = vmul.f32 %v5295, %v5295
  %v6425 = vmul.f32 %v5296, %v5296
  %v6426 = vmul.f32 %v5297, %v5297
  %v6427 = vmul.f32 %v5298, %v5298
  %v6428 = vmul.f32 %v5299, %v5299
  %v6429 = vmul.f32 %v5300, %v5300
  %v6430 = vmul.f32 %v5301, %v5301
  %v6431 = vmul.f32 %v5302, %v5302
  %v6432 = vmul.f32 %v5303, %v5303
  %v6433 = vmul.f32 %v5304, %v5304
  %v6434 = vmul.f32 %v5305, %v5305
  %v6435 = vmul.f32 %v5306, %v5306
  %v6436 = vmul.f32 %v5307, %v5307
  %v6437 = vmul.f32 %v5308, %v5308
  %v6438 = vmul.f32 %v5309, %v5309
  %v6439 = vmul.f32 %v5310, %v5310
  %v6440 = vmul.f32 %v5311, %v5311
  %v6441 = vmul.f32 %v5312, %v5312
  %v6442 = vmul.f32 %v5313, %v5313
  %v6443 = vmul.f32 %v5314, %v5314
  %v6444 = vmul.f32 %v5315, %v5315
  %v6445 = vmul.f32 %v5316, %v5316
  %v6446 = vmul.f32 %v5317, %v5317
  %v6447 = vmul.f32 %v5318, %v5318
  %v6448 = vmul.f32 %v5319, %v5319
  %v6449 = vmul.f32 %v5320, %v5320
  %v6450 = vmul.f32 %v5321, %v5321
  %v6451 = vmul.f32 %v5322, %v5322
  %v6452 = vmul.f32 %v5323, %v5323
  %v6453 = vmul.f32 %v5324, %v5324
  %v6454 = vmul.f32 %v5325, %v5325
  %v6455 = vmul.f32 %v5326, %v5326
  %v6456 = vmul.f32 %v5327, %v5327
  %v6457 = vmul.f32 %v5328, %v5328
  %v6458 = vmul.f32 %v5329, %v5329
  %v6459 = vmul.f32 %v5330, %v5330
  %v6460 = vmul.f32 %v5331, %v5331
  %v6461 = vsel %vm5334, %v6397, 0.0
  %v6462 = vsel %vm5334, %v6398, 0.0
  %v6463 = vadd.f32 %v6461, %v6462
  %v6464 = vsel %vm5334, %v6399, 0.0
  %v6465 = vadd.f32 %v6463, %v6464
  %v6466 = vsel %vm5334, %v6400, 0.0
  %v6467 = vadd.f32 %v6465, %v6466
  %v6468 = vsel %vm5334, %v6401, 0.0
  %v6469 = vadd.f32 %v6467, %v6468
  %v6470 = vsel %vm5334, %v6402, 0.0
  %v6471 = vadd.f32 %v6469, %v6470
  %v6472 = vsel %vm5334, %v6403, 0.0
  %v6473 = vadd.f32 %v6471, %v6472
  %v6474 = vsel %vm5334, %v6404, 0.0
  %v6475 = vadd.f32 %v6473, %v6474
  %v6476 = vsel %vm5334, %v6405, 0.0
  %v6477 = vadd.f32 %v6475, %v6476
  %v6478 = vsel %vm5334, %v6406, 0.0
  %v6479 = vadd.f32 %v6477, %v6478
  %v6480 = vsel %vm5334, %v6407, 0.0
  %v6481 = vadd.f32 %v6479, %v6480
  %v6482 = vsel %vm5334, %v6408, 0.0
  %v6483 = vadd.f32 %v6481, %v6482
  %v6484 = vsel %vm5334, %v6409, 0.0
  %v6485 = vadd.f32 %v6483, %v6484
  %v6486 = vsel %vm5334, %v6410, 0.0
  %v6487 = vadd.f32 %v6485, %v6486
  %v6488 = vsel %vm5334, %v6411, 0.0
  %v6489 = vadd.f32 %v6487, %v6488
  %v6490 = vsel %vm5334, %v6412, 0.0
  %v6491 = vadd.f32 %v6489, %v6490
  %v6492 = vsel %vm5334, %v6413, 0.0
  %v6493 = vadd.f32 %v6491, %v6492
  %v6494 = vsel %vm5334, %v6414, 0.0
  %v6495 = vadd.f32 %v6493, %v6494
  %v6496 = vsel %vm5334, %v6415, 0.0
  %v6497 = vadd.f32 %v6495, %v6496
  %v6498 = vsel %vm5334, %v6416, 0.0
  %v6499 = vadd.f32 %v6497, %v6498
  %v6500 = vsel %vm5334, %v6417, 0.0
  %v6501 = vadd.f32 %v6499, %v6500
  %v6502 = vsel %vm5334, %v6418, 0.0
  %v6503 = vadd.f32 %v6501, %v6502
  %v6504 = vsel %vm5334, %v6419, 0.0
  %v6505 = vadd.f32 %v6503, %v6504
  %v6506 = vsel %vm5334, %v6420, 0.0
  %v6507 = vadd.f32 %v6505, %v6506
  %v6508 = vsel %vm5334, %v6421, 0.0
  %v6509 = vadd.f32 %v6507, %v6508
  %v6510 = vsel %vm5334, %v6422, 0.0
  %v6511 = vadd.f32 %v6509, %v6510
  %v6512 = vsel %vm5334, %v6423, 0.0
  %v6513 = vadd.f32 %v6511, %v6512
  %v6514 = vsel %vm5334, %v6424, 0.0
  %v6515 = vadd.f32 %v6513, %v6514
  %v6516 = vsel %vm5334, %v6425, 0.0
  %v6517 = vadd.f32 %v6515, %v6516
  %v6518 = vsel %vm5334, %v6426, 0.0
  %v6519 = vadd.f32 %v6517, %v6518
  %v6520 = vsel %vm5334, %v6427, 0.0
  %v6521 = vadd.f32 %v6519, %v6520
  %v6522 = vsel %vm5334, %v6428, 0.0
  %v6523 = vadd.f32 %v6521, %v6522
  %v6524 = vsel %vm5334, %v6429, 0.0
  %v6525 = vadd.f32 %v6523, %v6524
  %v6526 = vsel %vm5334, %v6430, 0.0
  %v6527 = vadd.f32 %v6525, %v6526
  %v6528 = vsel %vm5334, %v6431, 0.0
  %v6529 = vadd.f32 %v6527, %v6528
  %v6530 = vsel %vm5334, %v6432, 0.0
  %v6531 = vadd.f32 %v6529, %v6530
  %v6532 = vsel %vm5334, %v6433, 0.0
  %v6533 = vadd.f32 %v6531, %v6532
  %v6534 = vsel %vm5334, %v6434, 0.0
  %v6535 = vadd.f32 %v6533, %v6534
  %v6536 = vsel %vm5334, %v6435, 0.0
  %v6537 = vadd.f32 %v6535, %v6536
  %v6538 = vsel %vm5334, %v6436, 0.0
  %v6539 = vadd.f32 %v6537, %v6538
  %v6540 = vsel %vm5334, %v6437, 0.0
  %v6541 = vadd.f32 %v6539, %v6540
  %v6542 = vsel %vm5334, %v6438, 0.0
  %v6543 = vadd.f32 %v6541, %v6542
  %v6544 = vsel %vm5334, %v6439, 0.0
  %v6545 = vadd.f32 %v6543, %v6544
  %v6546 = vsel %vm5334, %v6440, 0.0
  %v6547 = vadd.f32 %v6545, %v6546
  %v6548 = vsel %vm5334, %v6441, 0.0
  %v6549 = vadd.f32 %v6547, %v6548
  %v6550 = vsel %vm5334, %v6442, 0.0
  %v6551 = vadd.f32 %v6549, %v6550
  %v6552 = vsel %vm5334, %v6443, 0.0
  %v6553 = vadd.f32 %v6551, %v6552
  %v6554 = vsel %vm5334, %v6444, 0.0
  %v6555 = vadd.f32 %v6553, %v6554
  %v6556 = vsel %vm5334, %v6445, 0.0
  %v6557 = vadd.f32 %v6555, %v6556
  %v6558 = vsel %vm5334, %v6446, 0.0
  %v6559 = vadd.f32 %v6557, %v6558
  %v6560 = vsel %vm5334, %v6447, 0.0
  %v6561 = vadd.f32 %v6559, %v6560
  %v6562 = vsel %vm5334, %v6448, 0.0
  %v6563 = vadd.f32 %v6561, %v6562
  %v6564 = vsel %vm5334, %v6449, 0.0
  %v6565 = vadd.f32 %v6563, %v6564
  %v6566 = vsel %vm5334, %v6450, 0.0
  %v6567 = vadd.f32 %v6565, %v6566
  %v6568 = vsel %vm5334, %v6451, 0.0
  %v6569 = vadd.f32 %v6567, %v6568
  %v6570 = vsel %vm5334, %v6452, 0.0
  %v6571 = vadd.f32 %v6569, %v6570
  %v6572 = vsel %vm5334, %v6453, 0.0
  %v6573 = vadd.f32 %v6571, %v6572
  %v6574 = vsel %vm5334, %v6454, 0.0
  %v6575 = vadd.f32 %v6573, %v6574
  %v6576 = vsel %vm5334, %v6455, 0.0
  %v6577 = vadd.f32 %v6575, %v6576
  %v6578 = vsel %vm5334, %v6456, 0.0
  %v6579 = vadd.f32 %v6577, %v6578
  %v6580 = vsel %vm5334, %v6457, 0.0
  %v6581 = vadd.f32 %v6579, %v6580
  %v6582 = vsel %vm5334, %v6458, 0.0
  %v6583 = vadd.f32 %v6581, %v6582
  %v6584 = vsel %vm5334, %v6459, 0.0
  %v6585 = vadd.f32 %v6583, %v6584
  %v6586 = vsel %vm5334, %v6460, 0.0
  %v6587 = vadd.f32 %v6585, %v6586
  %v6588 = vrot.slane %v6587, 4
  %v6589 = vadd.f32 %v6587, %v6588
  %v6590 = vrot.slane %v6589, 2
  %v6591 = vadd.f32 %v6589, %v6590
  %v6592 = vrot.slane %v6591, 1
  %v6593 = vadd.f32 %v6591, %v6592
  %v6594 = vmul.f32 %v6593, 0.001953125
  %v6595 = vmul.f32 %v6396, %v6396
  %v6596 = vsub.f32 %v6594, %v6595
  %v6597 = vmax.f32 %v6596, 0.0
  %v6598 = vsub.f32 %v5268, %v6396
  %v6599 = vsub.f32 %v5269, %v6396
  %v6600 = vsub.f32 %v5270, %v6396
  %v6601 = vsub.f32 %v5271, %v6396
  %v6602 = vsub.f32 %v5272, %v6396
  %v6603 = vsub.f32 %v5273, %v6396
  %v6604 = vsub.f32 %v5274, %v6396
  %v6605 = vsub.f32 %v5275, %v6396
  %v6606 = vsub.f32 %v5276, %v6396
  %v6607 = vsub.f32 %v5277, %v6396
  %v6608 = vsub.f32 %v5278, %v6396
  %v6609 = vsub.f32 %v5279, %v6396
  %v6610 = vsub.f32 %v5280, %v6396
  %v6611 = vsub.f32 %v5281, %v6396
  %v6612 = vsub.f32 %v5282, %v6396
  %v6613 = vsub.f32 %v5283, %v6396
  %v6614 = vsub.f32 %v5284, %v6396
  %v6615 = vsub.f32 %v5285, %v6396
  %v6616 = vsub.f32 %v5286, %v6396
  %v6617 = vsub.f32 %v5287, %v6396
  %v6618 = vsub.f32 %v5288, %v6396
  %v6619 = vsub.f32 %v5289, %v6396
  %v6620 = vsub.f32 %v5290, %v6396
  %v6621 = vsub.f32 %v5291, %v6396
  %v6622 = vsub.f32 %v5292, %v6396
  %v6623 = vsub.f32 %v5293, %v6396
  %v6624 = vsub.f32 %v5294, %v6396
  %v6625 = vsub.f32 %v5295, %v6396
  %v6626 = vsub.f32 %v5296, %v6396
  %v6627 = vsub.f32 %v5297, %v6396
  %v6628 = vsub.f32 %v5298, %v6396
  %v6629 = vsub.f32 %v5299, %v6396
  %v6630 = vsub.f32 %v5300, %v6396
  %v6631 = vsub.f32 %v5301, %v6396
  %v6632 = vsub.f32 %v5302, %v6396
  %v6633 = vsub.f32 %v5303, %v6396
  %v6634 = vsub.f32 %v5304, %v6396
  %v6635 = vsub.f32 %v5305, %v6396
  %v6636 = vsub.f32 %v5306, %v6396
  %v6637 = vsub.f32 %v5307, %v6396
  %v6638 = vsub.f32 %v5308, %v6396
  %v6639 = vsub.f32 %v5309, %v6396
  %v6640 = vsub.f32 %v5310, %v6396
  %v6641 = vsub.f32 %v5311, %v6396
  %v6642 = vsub.f32 %v5312, %v6396
  %v6643 = vsub.f32 %v5313, %v6396
  %v6644 = vsub.f32 %v5314, %v6396
  %v6645 = vsub.f32 %v5315, %v6396
  %v6646 = vsub.f32 %v5316, %v6396
  %v6647 = vsub.f32 %v5317, %v6396
  %v6648 = vsub.f32 %v5318, %v6396
  %v6649 = vsub.f32 %v5319, %v6396
  %v6650 = vsub.f32 %v5320, %v6396
  %v6651 = vsub.f32 %v5321, %v6396
  %v6652 = vsub.f32 %v5322, %v6396
  %v6653 = vsub.f32 %v5323, %v6396
  %v6654 = vsub.f32 %v5324, %v6396
  %v6655 = vsub.f32 %v5325, %v6396
  %v6656 = vsub.f32 %v5326, %v6396
  %v6657 = vsub.f32 %v5327, %v6396
  %v6658 = vsub.f32 %v5328, %v6396
  %v6659 = vsub.f32 %v5329, %v6396
  %v6660 = vsub.f32 %v5330, %v6396
  %v6661 = vsub.f32 %v5331, %v6396
  %v6662 = vadd.f32 %v6597, 1e-05
  %v6663 = vrsqrt.pop %v6662
  %v6664 = vmul.f32 %v6598, %v6663
  %v6665 = vmul.f32 %v6599, %v6663
  %v6666 = vmul.f32 %v6600, %v6663
  %v6667 = vmul.f32 %v6601, %v6663
  %v6668 = vmul.f32 %v6602, %v6663
  %v6669 = vmul.f32 %v6603, %v6663
  %v6670 = vmul.f32 %v6604, %v6663
  %v6671 = vmul.f32 %v6605, %v6663
  %v6672 = vmul.f32 %v6606, %v6663
  %v6673 = vmul.f32 %v6607, %v6663
  %v6674 = vmul.f32 %v6608, %v6663
  %v6675 = vmul.f32 %v6609, %v6663
  %v6676 = vmul.f32 %v6610, %v6663
  %v6677 = vmul.f32 %v6611, %v6663
  %v6678 = vmul.f32 %v6612, %v6663
  %v6679 = vmul.f32 %v6613, %v6663
  %v6680 = vmul.f32 %v6614, %v6663
  %v6681 = vmul.f32 %v6615, %v6663
  %v6682 = vmul.f32 %v6616, %v6663
  %v6683 = vmul.f32 %v6617, %v6663
  %v6684 = vmul.f32 %v6618, %v6663
  %v6685 = vmul.f32 %v6619, %v6663
  %v6686 = vmul.f32 %v6620, %v6663
  %v6687 = vmul.f32 %v6621, %v6663
  %v6688 = vmul.f32 %v6622, %v6663
  %v6689 = vmul.f32 %v6623, %v6663
  %v6690 = vmul.f32 %v6624, %v6663
  %v6691 = vmul.f32 %v6625, %v6663
  %v6692 = vmul.f32 %v6626, %v6663
  %v6693 = vmul.f32 %v6627, %v6663
  %v6694 = vmul.f32 %v6628, %v6663
  %v6695 = vmul.f32 %v6629, %v6663
  %v6696 = vmul.f32 %v6630, %v6663
  %v6697 = vmul.f32 %v6631, %v6663
  %v6698 = vmul.f32 %v6632, %v6663
  %v6699 = vmul.f32 %v6633, %v6663
  %v6700 = vmul.f32 %v6634, %v6663
  %v6701 = vmul.f32 %v6635, %v6663
  %v6702 = vmul.f32 %v6636, %v6663
  %v6703 = vmul.f32 %v6637, %v6663
  %v6704 = vmul.f32 %v6638, %v6663
  %v6705 = vmul.f32 %v6639, %v6663
  %v6706 = vmul.f32 %v6640, %v6663
  %v6707 = vmul.f32 %v6641, %v6663
  %v6708 = vmul.f32 %v6642, %v6663
  %v6709 = vmul.f32 %v6643, %v6663
  %v6710 = vmul.f32 %v6644, %v6663
  %v6711 = vmul.f32 %v6645, %v6663
  %v6712 = vmul.f32 %v6646, %v6663
  %v6713 = vmul.f32 %v6647, %v6663
  %v6714 = vmul.f32 %v6648, %v6663
  %v6715 = vmul.f32 %v6649, %v6663
  %v6716 = vmul.f32 %v6650, %v6663
  %v6717 = vmul.f32 %v6651, %v6663
  %v6718 = vmul.f32 %v6652, %v6663
  %v6719 = vmul.f32 %v6653, %v6663
  %v6720 = vmul.f32 %v6654, %v6663
  %v6721 = vmul.f32 %v6655, %v6663
  %v6722 = vmul.f32 %v6656, %v6663
  %v6723 = vmul.f32 %v6657, %v6663
  %v6724 = vmul.f32 %v6658, %v6663
  %v6725 = vmul.f32 %v6659, %v6663
  %v6726 = vmul.f32 %v6660, %v6663
  %v6727 = vmul.f32 %v6661, %v6663
  %v6729 = vlaneseq
  %v6730 = vshrl.u32 %v6729, 7
  %v6731 = vsub.s32 0, %v6730
  %v6732 = vrot.slane %v6261, %v6731
  %v6734 = vmul.f32 %v6664, %v6732
  %v6735 = vmul.f32 %v6665, %v6732
  %v6736 = vmul.f32 %v6666, %v6732
  %v6737 = vmul.f32 %v6667, %v6732
  %v6738 = vmul.f32 %v6668, %v6732
  %v6739 = vmul.f32 %v6669, %v6732
  %v6740 = vmul.f32 %v6670, %v6732
  %v6741 = vmul.f32 %v6671, %v6732
  %v6742 = vmul.f32 %v6672, %v6732
  %v6743 = vmul.f32 %v6673, %v6732
  %v6744 = vmul.f32 %v6674, %v6732
  %v6745 = vmul.f32 %v6675, %v6732
  %v6746 = vmul.f32 %v6676, %v6732
  %v6747 = vmul.f32 %v6677, %v6732
  %v6748 = vmul.f32 %v6678, %v6732
  %v6749 = vmul.f32 %v6679, %v6732
  %v6750 = vmul.f32 %v6680, %v6732
  %v6751 = vmul.f32 %v6681, %v6732
  %v6752 = vmul.f32 %v6682, %v6732
  %v6753 = vmul.f32 %v6683, %v6732
  %v6754 = vmul.f32 %v6684, %v6732
  %v6755 = vmul.f32 %v6685, %v6732
  %v6756 = vmul.f32 %v6686, %v6732
  %v6757 = vmul.f32 %v6687, %v6732
  %v6758 = vmul.f32 %v6688, %v6732
  %v6759 = vmul.f32 %v6689, %v6732
  %v6760 = vmul.f32 %v6690, %v6732
  %v6761 = vmul.f32 %v6691, %v6732
  %v6762 = vmul.f32 %v6692, %v6732
  %v6763 = vmul.f32 %v6693, %v6732
  %v6764 = vmul.f32 %v6694, %v6732
  %v6765 = vmul.f32 %v6695, %v6732
  %v6766 = vmul.f32 %v6696, %v6732
  %v6767 = vmul.f32 %v6697, %v6732
  %v6768 = vmul.f32 %v6698, %v6732
  %v6769 = vmul.f32 %v6699, %v6732
  %v6770 = vmul.f32 %v6700, %v6732
  %v6771 = vmul.f32 %v6701, %v6732
  %v6772 = vmul.f32 %v6702, %v6732
  %v6773 = vmul.f32 %v6703, %v6732
  %v6774 = vmul.f32 %v6704, %v6732
  %v6775 = vmul.f32 %v6705, %v6732
  %v6776 = vmul.f32 %v6706, %v6732
  %v6777 = vmul.f32 %v6707, %v6732
  %v6778 = vmul.f32 %v6708, %v6732
  %v6779 = vmul.f32 %v6709, %v6732
  %v6780 = vmul.f32 %v6710, %v6732
  %v6781 = vmul.f32 %v6711, %v6732
  %v6782 = vmul.f32 %v6712, %v6732
  %v6783 = vmul.f32 %v6713, %v6732
  %v6784 = vmul.f32 %v6714, %v6732
  %v6785 = vmul.f32 %v6715, %v6732
  %v6786 = vmul.f32 %v6716, %v6732
  %v6787 = vmul.f32 %v6717, %v6732
  %v6788 = vmul.f32 %v6718, %v6732
  %v6789 = vmul.f32 %v6719, %v6732
  %v6790 = vmul.f32 %v6720, %v6732
  %v6791 = vmul.f32 %v6721, %v6732
  %v6792 = vmul.f32 %v6722, %v6732
  %v6793 = vmul.f32 %v6723, %v6732
  %v6794 = vmul.f32 %v6724, %v6732
  %v6795 = vmul.f32 %v6725, %v6732
  %v6796 = vmul.f32 %v6726, %v6732
  %v6797 = vmul.f32 %v6727, %v6732
  %v6799 = vlaneseq
  %v6800 = vshrl.u32 %v6799, 7
  %v6801 = vsub.s32 0, %v6800
  %v6802 = vrot.slane %v6262, %v6801
  %v6804 = vadd.f32 %v6734, %v6802
  %v6805 = vadd.f32 %v6735, %v6802
  %v6806 = vadd.f32 %v6736, %v6802
  %v6807 = vadd.f32 %v6737, %v6802
  %v6808 = vadd.f32 %v6738, %v6802
  %v6809 = vadd.f32 %v6739, %v6802
  %v6810 = vadd.f32 %v6740, %v6802
  %v6811 = vadd.f32 %v6741, %v6802
  %v6812 = vadd.f32 %v6742, %v6802
  %v6813 = vadd.f32 %v6743, %v6802
  %v6814 = vadd.f32 %v6744, %v6802
  %v6815 = vadd.f32 %v6745, %v6802
  %v6816 = vadd.f32 %v6746, %v6802
  %v6817 = vadd.f32 %v6747, %v6802
  %v6818 = vadd.f32 %v6748, %v6802
  %v6819 = vadd.f32 %v6749, %v6802
  %v6820 = vadd.f32 %v6750, %v6802
  %v6821 = vadd.f32 %v6751, %v6802
  %v6822 = vadd.f32 %v6752, %v6802
  %v6823 = vadd.f32 %v6753, %v6802
  %v6824 = vadd.f32 %v6754, %v6802
  %v6825 = vadd.f32 %v6755, %v6802
  %v6826 = vadd.f32 %v6756, %v6802
  %v6827 = vadd.f32 %v6757, %v6802
  %v6828 = vadd.f32 %v6758, %v6802
  %v6829 = vadd.f32 %v6759, %v6802
  %v6830 = vadd.f32 %v6760, %v6802
  %v6831 = vadd.f32 %v6761, %v6802
  %v6832 = vadd.f32 %v6762, %v6802
  %v6833 = vadd.f32 %v6763, %v6802
  %v6834 = vadd.f32 %v6764, %v6802
  %v6835 = vadd.f32 %v6765, %v6802
  %v6836 = vadd.f32 %v6766, %v6802
  %v6837 = vadd.f32 %v6767, %v6802
  %v6838 = vadd.f32 %v6768, %v6802
  %v6839 = vadd.f32 %v6769, %v6802
  %v6840 = vadd.f32 %v6770, %v6802
  %v6841 = vadd.f32 %v6771, %v6802
  %v6842 = vadd.f32 %v6772, %v6802
  %v6843 = vadd.f32 %v6773, %v6802
  %v6844 = vadd.f32 %v6774, %v6802
  %v6845 = vadd.f32 %v6775, %v6802
  %v6846 = vadd.f32 %v6776, %v6802
  %v6847 = vadd.f32 %v6777, %v6802
  %v6848 = vadd.f32 %v6778, %v6802
  %v6849 = vadd.f32 %v6779, %v6802
  %v6850 = vadd.f32 %v6780, %v6802
  %v6851 = vadd.f32 %v6781, %v6802
  %v6852 = vadd.f32 %v6782, %v6802
  %v6853 = vadd.f32 %v6783, %v6802
  %v6854 = vadd.f32 %v6784, %v6802
  %v6855 = vadd.f32 %v6785, %v6802
  %v6856 = vadd.f32 %v6786, %v6802
  %v6857 = vadd.f32 %v6787, %v6802
  %v6858 = vadd.f32 %v6788, %v6802
  %v6859 = vadd.f32 %v6789, %v6802
  %v6860 = vadd.f32 %v6790, %v6802
  %v6861 = vadd.f32 %v6791, %v6802
  %v6862 = vadd.f32 %v6792, %v6802
  %v6863 = vadd.f32 %v6793, %v6802
  %v6864 = vadd.f32 %v6794, %v6802
  %v6865 = vadd.f32 %v6795, %v6802
  %v6866 = vadd.f32 %v6796, %v6802
  %v6867 = vadd.f32 %v6797, %v6802
  %v6868 = vpack.c.bf16 %v6805, %v6804
  %v6869 = vpack.c.bf16 %v6807, %v6806
  %v6870 = vpack.c.bf16 %v6809, %v6808
  %v6871 = vpack.c.bf16 %v6811, %v6810
  %v6872 = vpack.c.bf16 %v6813, %v6812
  %v6873 = vpack.c.bf16 %v6815, %v6814
  %v6874 = vpack.c.bf16 %v6817, %v6816
  %v6875 = vpack.c.bf16 %v6819, %v6818
  %v6876 = vpack.c.bf16 %v6821, %v6820
  %v6877 = vpack.c.bf16 %v6823, %v6822
  %v6878 = vpack.c.bf16 %v6825, %v6824
  %v6879 = vpack.c.bf16 %v6827, %v6826
  %v6880 = vpack.c.bf16 %v6829, %v6828
  %v6881 = vpack.c.bf16 %v6831, %v6830
  %v6882 = vpack.c.bf16 %v6833, %v6832
  %v6883 = vpack.c.bf16 %v6835, %v6834
  %v6884 = vpack.c.bf16 %v6837, %v6836
  %v6885 = vpack.c.bf16 %v6839, %v6838
  %v6886 = vpack.c.bf16 %v6841, %v6840
  %v6887 = vpack.c.bf16 %v6843, %v6842
  %v6888 = vpack.c.bf16 %v6845, %v6844
  %v6889 = vpack.c.bf16 %v6847, %v6846
  %v6890 = vpack.c.bf16 %v6849, %v6848
  %v6891 = vpack.c.bf16 %v6851, %v6850
  %v6892 = vpack.c.bf16 %v6853, %v6852
  %v6893 = vpack.c.bf16 %v6855, %v6854
  %v6894 = vpack.c.bf16 %v6857, %v6856
  %v6895 = vpack.c.bf16 %v6859, %v6858
  %v6896 = vpack.c.bf16 %v6861, %v6860
  %v6897 = vpack.c.bf16 %v6863, %v6862
  %v6898 = vpack.c.bf16 %v6865, %v6864
  %v6899 = vpack.c.bf16 %v6867, %v6866
  %v6932 = vunpack.c.l.b16 %v6868
  %v6933 = vunpack.c.h.b16 %v6868
  %v6934 = vunpack.c.l.b16 %v6869
  %v6935 = vunpack.c.h.b16 %v6869
  %v6936 = vunpack.c.l.b16 %v6870
  %v6937 = vunpack.c.h.b16 %v6870
  %v6938 = vunpack.c.l.b16 %v6871
  %v6939 = vunpack.c.h.b16 %v6871
  %v6940 = vunpack.c.l.b16 %v6872
  %v6941 = vunpack.c.h.b16 %v6872
  %v6942 = vunpack.c.l.b16 %v6873
  %v6943 = vunpack.c.h.b16 %v6873
  %v6944 = vunpack.c.l.b16 %v6874
  %v6945 = vunpack.c.h.b16 %v6874
  %v6946 = vunpack.c.l.b16 %v6875
  %v6947 = vunpack.c.h.b16 %v6875
  %v6948 = vunpack.c.l.b16 %v6876
  %v6949 = vunpack.c.h.b16 %v6876
  %v6950 = vunpack.c.l.b16 %v6877
  %v6951 = vunpack.c.h.b16 %v6877
  %v6952 = vunpack.c.l.b16 %v6878
  %v6953 = vunpack.c.h.b16 %v6878
  %v6954 = vunpack.c.l.b16 %v6879
  %v6955 = vunpack.c.h.b16 %v6879
  %v6956 = vunpack.c.l.b16 %v6880
  %v6957 = vunpack.c.h.b16 %v6880
  %v6958 = vunpack.c.l.b16 %v6881
  %v6959 = vunpack.c.h.b16 %v6881
  %v6960 = vunpack.c.l.b16 %v6882
  %v6961 = vunpack.c.h.b16 %v6882
  %v6962 = vunpack.c.l.b16 %v6883
  %v6963 = vunpack.c.h.b16 %v6883
  %v6964 = vunpack.c.l.b16 %v6884
  %v6965 = vunpack.c.h.b16 %v6884
  %v6966 = vunpack.c.l.b16 %v6885
  %v6967 = vunpack.c.h.b16 %v6885
  %v6968 = vunpack.c.l.b16 %v6886
  %v6969 = vunpack.c.h.b16 %v6886
  %v6970 = vunpack.c.l.b16 %v6887
  %v6971 = vunpack.c.h.b16 %v6887
  %v6972 = vunpack.c.l.b16 %v6888
  %v6973 = vunpack.c.h.b16 %v6888
  %v6974 = vunpack.c.l.b16 %v6889
  %v6975 = vunpack.c.h.b16 %v6889
  %v6976 = vunpack.c.l.b16 %v6890
  %v6977 = vunpack.c.h.b16 %v6890
  %v6978 = vunpack.c.l.b16 %v6891
  %v6979 = vunpack.c.h.b16 %v6891
  %v6980 = vunpack.c.l.b16 %v6892
  %v6981 = vunpack.c.h.b16 %v6892
  %v6982 = vunpack.c.l.b16 %v6893
  %v6983 = vunpack.c.h.b16 %v6893
  %v6984 = vunpack.c.l.b16 %v6894
  %v6985 = vunpack.c.h.b16 %v6894
  %v6986 = vunpack.c.l.b16 %v6895
  %v6987 = vunpack.c.h.b16 %v6895
  %v6988 = vunpack.c.l.b16 %v6896
  %v6989 = vunpack.c.h.b16 %v6896
  %v6990 = vunpack.c.l.b16 %v6897
  %v6991 = vunpack.c.h.b16 %v6897
  %v6992 = vunpack.c.l.b16 %v6898
  %v6993 = vunpack.c.h.b16 %v6898
  %v6994 = vunpack.c.l.b16 %v6899
  %v6995 = vunpack.c.h.b16 %v6899
  %v6996 = vpack.c.b16 %v6932, %v6932
  %v6997 = vpack.c.b16 %v6933, %v6933
  %v6998 = vpack.c.b16 %v6934, %v6934
  %v6999 = vpack.c.b16 %v6935, %v6935
  %v7000 = vpack.c.b16 %v6936, %v6936
  %v7001 = vpack.c.b16 %v6937, %v6937
  %v7002 = vpack.c.b16 %v6938, %v6938
  %v7003 = vpack.c.b16 %v6939, %v6939
  %v7004 = vpack.c.b16 %v6940, %v6940
  %v7005 = vpack.c.b16 %v6941, %v6941
  %v7006 = vpack.c.b16 %v6942, %v6942
  %v7007 = vpack.c.b16 %v6943, %v6943
  %v7008 = vpack.c.b16 %v6944, %v6944
  %v7009 = vpack.c.b16 %v6945, %v6945
  %v7010 = vpack.c.b16 %v6946, %v6946
  %v7011 = vpack.c.b16 %v6947, %v6947
  %v7012 = vpack.c.b16 %v6948, %v6948
  %v7013 = vpack.c.b16 %v6949, %v6949
  %v7014 = vpack.c.b16 %v6950, %v6950
  %v7015 = vpack.c.b16 %v6951, %v6951
  %v7016 = vpack.c.b16 %v6952, %v6952
  %v7017 = vpack.c.b16 %v6953, %v6953
  %v7018 = vpack.c.b16 %v6954, %v6954
  %v7019 = vpack.c.b16 %v6955, %v6955
  %v7020 = vpack.c.b16 %v6956, %v6956
  %v7021 = vpack.c.b16 %v6957, %v6957
  %v7022 = vpack.c.b16 %v6958, %v6958
  %v7023 = vpack.c.b16 %v6959, %v6959
  %v7024 = vpack.c.b16 %v6960, %v6960
  %v7025 = vpack.c.b16 %v6961, %v6961
  %v7026 = vpack.c.b16 %v6962, %v6962
  %v7027 = vpack.c.b16 %v6963, %v6963
  %v7028 = vpack.c.b16 %v6964, %v6964
  %v7029 = vpack.c.b16 %v6965, %v6965
  %v7030 = vpack.c.b16 %v6966, %v6966
  %v7031 = vpack.c.b16 %v6967, %v6967
  %v7032 = vpack.c.b16 %v6968, %v6968
  %v7033 = vpack.c.b16 %v6969, %v6969
  %v7034 = vpack.c.b16 %v6970, %v6970
  %v7035 = vpack.c.b16 %v6971, %v6971
  %v7036 = vpack.c.b16 %v6972, %v6972
  %v7037 = vpack.c.b16 %v6973, %v6973
  %v7038 = vpack.c.b16 %v6974, %v6974
  %v7039 = vpack.c.b16 %v6975, %v6975
  %v7040 = vpack.c.b16 %v6976, %v6976
  %v7041 = vpack.c.b16 %v6977, %v6977
  %v7042 = vpack.c.b16 %v6978, %v6978
  %v7043 = vpack.c.b16 %v6979, %v6979
  %v7044 = vpack.c.b16 %v6980, %v6980
  %v7045 = vpack.c.b16 %v6981, %v6981
  %v7046 = vpack.c.b16 %v6982, %v6982
  %v7047 = vpack.c.b16 %v6983, %v6983
  %v7048 = vpack.c.b16 %v6984, %v6984
  %v7049 = vpack.c.b16 %v6985, %v6985
  %v7050 = vpack.c.b16 %v6986, %v6986
  %v7051 = vpack.c.b16 %v6987, %v6987
  %v7052 = vpack.c.b16 %v6988, %v6988
  %v7053 = vpack.c.b16 %v6989, %v6989
  %v7054 = vpack.c.b16 %v6990, %v6990
  %v7055 = vpack.c.b16 %v6991, %v6991
  %v7056 = vpack.c.b16 %v6992, %v6992
  %v7057 = vpack.c.b16 %v6993, %v6993
  %v7058 = vpack.c.b16 %v6994, %v6994
  %v7059 = vpack.c.b16 %v6995, %v6995
  %7124 = vst.msk [vmem:[%s5 + $0x100] sm:$0xf] %vm6196, %v6996
  %7125 = vst.msk [vmem:[%s5 + $0x104] sm:$0xf] %vm6196, %v6997
  %7126 = vst.msk [vmem:[%s5 + $0x108] sm:$0xf] %vm6196, %v6998
  %7127 = vst.msk [vmem:[%s5 + $0x10c] sm:$0xf] %vm6196, %v6999
  %7128 = vst.msk [vmem:[%s5 + $0x110] sm:$0xf] %vm6196, %v7000
  %7129 = vst.msk [vmem:[%s5 + $0x114] sm:$0xf] %vm6196, %v7001
  %7130 = vst.msk [vmem:[%s5 + $0x118] sm:$0xf] %vm6196, %v7002
  %7131 = vst.msk [vmem:[%s5 + $0x11c] sm:$0xf] %vm6196, %v7003
  %7132 = vst.msk [vmem:[%s5 + $0x120] sm:$0xf] %vm6196, %v7004
  %7133 = vst.msk [vmem:[%s5 + $0x124] sm:$0xf] %vm6196, %v7005
  %7134 = vst.msk [vmem:[%s5 + $0x128] sm:$0xf] %vm6196, %v7006
  %7135 = vst.msk [vmem:[%s5 + $0x12c] sm:$0xf] %vm6196, %v7007
  %7136 = vst.msk [vmem:[%s5 + $0x130] sm:$0xf] %vm6196, %v7008
  %7137 = vst.msk [vmem:[%s5 + $0x134] sm:$0xf] %vm6196, %v7009
  %7138 = vst.msk [vmem:[%s5 + $0x138] sm:$0xf] %vm6196, %v7010
  %7139 = vst.msk [vmem:[%s5 + $0x13c] sm:$0xf] %vm6196, %v7011
  %7140 = vst.msk [vmem:[%s5 + $0x140] sm:$0xf] %vm6196, %v7012
  %7141 = vst.msk [vmem:[%s5 + $0x144] sm:$0xf] %vm6196, %v7013
  %7142 = vst.msk [vmem:[%s5 + $0x148] sm:$0xf] %vm6196, %v7014
  %7143 = vst.msk [vmem:[%s5 + $0x14c] sm:$0xf] %vm6196, %v7015
  %7144 = vst.msk [vmem:[%s5 + $0x150] sm:$0xf] %vm6196, %v7016
  %7145 = vst.msk [vmem:[%s5 + $0x154] sm:$0xf] %vm6196, %v7017
  %7146 = vst.msk [vmem:[%s5 + $0x158] sm:$0xf] %vm6196, %v7018
  %7147 = vst.msk [vmem:[%s5 + $0x15c] sm:$0xf] %vm6196, %v7019
  %7148 = vst.msk [vmem:[%s5 + $0x160] sm:$0xf] %vm6196, %v7020
  %7149 = vst.msk [vmem:[%s5 + $0x164] sm:$0xf] %vm6196, %v7021
  %7150 = vst.msk [vmem:[%s5 + $0x168] sm:$0xf] %vm6196, %v7022
  %7151 = vst.msk [vmem:[%s5 + $0x16c] sm:$0xf] %vm6196, %v7023
  %7152 = vst.msk [vmem:[%s5 + $0x170] sm:$0xf] %vm6196, %v7024
  %7153 = vst.msk [vmem:[%s5 + $0x174] sm:$0xf] %vm6196, %v7025
  %7154 = vst.msk [vmem:[%s5 + $0x178] sm:$0xf] %vm6196, %v7026
  %7155 = vst.msk [vmem:[%s5 + $0x17c] sm:$0xf] %vm6196, %v7027
  %7156 = vst.msk [vmem:[%s5 + $0x180] sm:$0xf] %vm6196, %v7028
  %7157 = vst.msk [vmem:[%s5 + $0x184] sm:$0xf] %vm6196, %v7029
  %7158 = vst.msk [vmem:[%s5 + $0x188] sm:$0xf] %vm6196, %v7030
  %7159 = vst.msk [vmem:[%s5 + $0x18c] sm:$0xf] %vm6196, %v7031
  %7160 = vst.msk [vmem:[%s5 + $0x190] sm:$0xf] %vm6196, %v7032
  %7161 = vst.msk [vmem:[%s5 + $0x194] sm:$0xf] %vm6196, %v7033
  %7162 = vst.msk [vmem:[%s5 + $0x198] sm:$0xf] %vm6196, %v7034
  %7163 = vst.msk [vmem:[%s5 + $0x19c] sm:$0xf] %vm6196, %v7035
  %7164 = vst.msk [vmem:[%s5 + $0x1a0] sm:$0xf] %vm6196, %v7036
  %7165 = vst.msk [vmem:[%s5 + $0x1a4] sm:$0xf] %vm6196, %v7037
  %7166 = vst.msk [vmem:[%s5 + $0x1a8] sm:$0xf] %vm6196, %v7038
  %7167 = vst.msk [vmem:[%s5 + $0x1ac] sm:$0xf] %vm6196, %v7039
  %7168 = vst.msk [vmem:[%s5 + $0x1b0] sm:$0xf] %vm6196, %v7040
  %7169 = vst.msk [vmem:[%s5 + $0x1b4] sm:$0xf] %vm6196, %v7041
  %7170 = vst.msk [vmem:[%s5 + $0x1b8] sm:$0xf] %vm6196, %v7042
  %7171 = vst.msk [vmem:[%s5 + $0x1bc] sm:$0xf] %vm6196, %v7043
  %7172 = vst.msk [vmem:[%s5 + $0x1c0] sm:$0xf] %vm6196, %v7044
  %7173 = vst.msk [vmem:[%s5 + $0x1c4] sm:$0xf] %vm6196, %v7045
  %7174 = vst.msk [vmem:[%s5 + $0x1c8] sm:$0xf] %vm6196, %v7046
  %7175 = vst.msk [vmem:[%s5 + $0x1cc] sm:$0xf] %vm6196, %v7047
  %7176 = vst.msk [vmem:[%s5 + $0x1d0] sm:$0xf] %vm6196, %v7048
  %7177 = vst.msk [vmem:[%s5 + $0x1d4] sm:$0xf] %vm6196, %v7049
  %7178 = vst.msk [vmem:[%s5 + $0x1d8] sm:$0xf] %vm6196, %v7050
  %7179 = vst.msk [vmem:[%s5 + $0x1dc] sm:$0xf] %vm6196, %v7051
  %7180 = vst.msk [vmem:[%s5 + $0x1e0] sm:$0xf] %vm6196, %v7052
  %7181 = vst.msk [vmem:[%s5 + $0x1e4] sm:$0xf] %vm6196, %v7053
  %7182 = vst.msk [vmem:[%s5 + $0x1e8] sm:$0xf] %vm6196, %v7054
  %7183 = vst.msk [vmem:[%s5 + $0x1ec] sm:$0xf] %vm6196, %v7055
  %7184 = vst.msk [vmem:[%s5 + $0x1f0] sm:$0xf] %vm6196, %v7056
  %7185 = vst.msk [vmem:[%s5 + $0x1f4] sm:$0xf] %vm6196, %v7057
  %7186 = vst.msk [vmem:[%s5 + $0x1f8] sm:$0xf] %vm6196, %v7058
  %7187 = vst.msk [vmem:[%s5 + $0x1fc] sm:$0xf] %vm6196, %v7059
  // Predicated region
  $region22: #{forward.2} parent=0 // pred_check
    _
  $region23: #{forward.2} parent=0 // pred_check_branch
    %7189 = sbr.rel (0) target = $region25
  $region24: #{forward.2} parent=0 // pred_region
    _
  $region25: #{forward.2} parent=0 // pred_fallthru
    _
  // Predicated region
  $region26: #{forward.2} parent=0 // pred_check
    _
  $region27: #{forward.2} parent=0 // pred_check_branch
    %7191 = sbr.rel (0) target = $region29
  $region28: #{forward.2} parent=0 // pred_region
    _
  $region29: #{forward.2} parent=0 // pred_fallthru
    _

// kernel: forward.3
$region0: #{forward.3}
  #allocation0 [shape = 'u32[]', space=smem, size = 0x4, offset = 0x4, fixed_abs, tag = 'smem constant byte address 0x4 - core index']
  #allocation1 [shape = 'u32[144,128]{1,0:T(1,128)}', space=vmem, size = 0x12000, scoped, tag = 'internal scratch']
  #allocation2 [shape = 'f32[16,800]{1,0:T(8,128)}', space=vmem, size = 0xe000, scoped, tag = 'scratch operand']
  %s0 = inlined_call_operand.vmem [shape: bf16[1600,144], index: 0, kind: input, shape index: {}]
  %s1 = inlined_call_operand.vmem [shape: bf16[144,32], index: 1, kind: input, shape index: {}]
  %s2 = inlined_call_operand.vmem [shape: f32[1,32], index: 2, kind: input, shape index: {}]
  %s3 = inlined_call_operand.vmem [shape: f32[1,32], index: 3, kind: input, shape index: {}]
  %s4 = inlined_call_operand.vmem [shape: f32[1,32], index: 4, kind: input, shape index: {}]
  %s5 = inlined_call_operand.vmem [shape: bf16[800,100], index: 5, kind: input, shape index: {}]
  %s6 = inlined_call_operand.vmem [shape: f32[1,100], index: 6, kind: input, shape index: {}]
  %s7 = inlined_call_operand.vmem [shape: f32[1,100], index: 7, kind: input, shape index: {}]
  %s8 = inlined_call_operand.vmem [shape: f32[1,100], index: 8, kind: input, shape index: {}]
  %s9 = inlined_call_operand.vmem [shape: f32[100,10], index: 9, kind: input, shape index: {}]
  %s10 = inlined_call_operand.vmem [shape: f32[1,10], index: 10, kind: input, shape index: {}]
  %s11 = inlined_call_operand.vmem [shape: f32[10,100], index: 11, kind: input, shape index: {}]
  %s12 = inlined_call_operand.vmem [shape: f32[10,100], index: 12, kind: input, shape index: {}]
  %s13 = inlined_call_operand.vmem [shape: f32[1,100], index: 13, kind: input, shape index: {}]
  %s14 = inlined_call_operand.vmem [shape: f32[1,100], index: 14, kind: input, shape index: {}]
  %s15 = inlined_call_operand.vmem [shape: f32[1,100], index: 15, kind: input, shape index: {}]
  %s16 = inlined_call_operand.vmem [shape: f32[100,2], index: 16, kind: input, shape index: {}]
  %s17 = inlined_call_operand.vmem [shape: f32[1,2], index: 17, kind: input, shape index: {}]
  %s18 = inlined_call_operand.vmem [shape: f32[2,8,10], index: 18, kind: output, shape index: {0}]
  %s19 = inlined_call_operand.vmem [shape: f32[8,2], index: 19, kind: output, shape index: {1}]
  %20 = xla_tuple %s18, %s19
  %s21 = sld [smem:[#allocation0]]
  $region90: #{forward.3} parent=0
    _
  %s23 = ssub.s32 1, %s21
  %s24 = scalar_select 0, %s23, %s21
  // Predicated region
  $region2: #{forward.3} parent=0 // pred_check
    _
  $region3: #{forward.3} parent=0 // pred_check_branch
    %26 = sbr.rel (0) target = $region5
  $region4: #{forward.3} parent=0 // pred_region
    _
  $region5: #{forward.3} parent=0 // pred_fallthru
    _
  // Predicated region
  $region6: #{forward.3} parent=0 // pred_check
    _
  $region7: #{forward.3} parent=0 // pred_check_branch
    %28 = sbr.rel (0) target = $region9
  $region8: #{forward.3} parent=0 // pred_region
    _
  $region9: #{forward.3} parent=0 // pred_fallthru
    _
  // Predicated region
  $region10: #{forward.3} parent=0 // pred_check
    _
  $region11: #{forward.3} parent=0 // pred_check_branch
    %30 = sbr.rel (0) target = $region13
  $region12: #{forward.3} parent=0 // pred_region
    _
  $region13: #{forward.3} parent=0 // pred_fallthru
    _
  // Predicated region
  $region14: #{forward.3} parent=0 // pred_check
    _
  $region15: #{forward.3} parent=0 // pred_check_branch
    %32 = sbr.rel (0) target = $region17
  $region16: #{forward.3} parent=0 // pred_region
    _
  $region17: #{forward.3} parent=0 // pred_fallthru
    _
  // Predicated region
  $region18: #{forward.3} parent=0 // pred_check
    _
  $region19: #{forward.3} parent=0 // pred_check_branch
    %34 = sbr.rel (0) target = $region21
  $region20: #{forward.3} parent=0 // pred_region
    _
  $region21: #{forward.3} parent=0 // pred_fallthru
    _
  // Predicated region
  $region22: #{forward.3} parent=0 // pred_check
    _
  $region23: #{forward.3} parent=0 // pred_check_branch
    %36 = sbr.rel (0) target = $region25
  $region24: #{forward.3} parent=0 // pred_region
    _
  $region25: #{forward.3} parent=0 // pred_fallthru
    _
  // Predicated region
  $region26: #{forward.3} parent=0 // pred_check
    _
  $region27: #{forward.3} parent=0 // pred_check_branch
    %38 = sbr.rel (0) target = $region29
  $region28: #{forward.3} parent=0 // pred_region
    _
  $region29: #{forward.3} parent=0 // pred_fallthru
    _
  // Predicated region
  $region30: #{forward.3} parent=0 // pred_check
    _
  $region31: #{forward.3} parent=0 // pred_check_branch
    %40 = sbr.rel (0) target = $region33
  $region32: #{forward.3} parent=0 // pred_region
    _
  $region33: #{forward.3} parent=0 // pred_fallthru
    _
  // Predicated region
  $region34: #{forward.3} parent=0 // pred_check
    _
  $region35: #{forward.3} parent=0 // pred_check_branch
    %42 = sbr.rel (0) target = $region37
  $region36: #{forward.3} parent=0 // pred_region
    _
  $region37: #{forward.3} parent=0 // pred_fallthru
    _
  // Predicated region
  $region38: #{forward.3} parent=0 // pred_check
    _
  $region39: #{forward.3} parent=0 // pred_check_branch
    %44 = sbr.rel (0) target = $region41
  $region40: #{forward.3} parent=0 // pred_region
    _
  $region41: #{forward.3} parent=0 // pred_fallthru
    _
  // Predicated region
  $region42: #{forward.3} parent=0 // pred_check
    _
  $region43: #{forward.3} parent=0 // pred_check_branch
    %46 = sbr.rel (0) target = $region45
  $region44: #{forward.3} parent=0 // pred_region
    _
  $region45: #{forward.3} parent=0 // pred_fallthru
    _
  // Predicated region
  $region46: #{forward.3} parent=0 // pred_check
    _
  $region47: #{forward.3} parent=0 // pred_check_branch
    %48 = sbr.rel (0) target = $region49
  $region48: #{forward.3} parent=0 // pred_region
    _
  $region49: #{forward.3} parent=0 // pred_fallthru
    _
  // Predicated region
  $region50: #{forward.3} parent=0 // pred_check
    _
  $region51: #{forward.3} parent=0 // pred_check_branch
    %50 = sbr.rel (0) target = $region53
  $region52: #{forward.3} parent=0 // pred_region
    _
  $region53: #{forward.3} parent=0 // pred_fallthru
    _
  // Predicated region
  $region54: #{forward.3} parent=0 // pred_check
    _
  $region55: #{forward.3} parent=0 // pred_check_branch
    %52 = sbr.rel (0) target = $region57
  $region56: #{forward.3} parent=0 // pred_region
    _
  $region57: #{forward.3} parent=0 // pred_fallthru
    _
  // Predicated region
  $region58: #{forward.3} parent=0 // pred_check
    _
  $region59: #{forward.3} parent=0 // pred_check_branch
    %54 = sbr.rel (0) target = $region61
  $region60: #{forward.3} parent=0 // pred_region
    _
  $region61: #{forward.3} parent=0 // pred_fallthru
    _
  // Predicated region
  $region62: #{forward.3} parent=0 // pred_check
    _
  $region63: #{forward.3} parent=0 // pred_check_branch
    %56 = sbr.rel (0) target = $region65
  $region64: #{forward.3} parent=0 // pred_region
    _
  $region65: #{forward.3} parent=0 // pred_fallthru
    _
  // Predicated region
  $region66: #{forward.3} parent=0 // pred_check
    _
  $region67: #{forward.3} parent=0 // pred_check_branch
    %58 = sbr.rel (0) target = $region69
  $region68: #{forward.3} parent=0 // pred_region
    _
  $region69: #{forward.3} parent=0 // pred_fallthru
    _
  // Predicated region
  $region70: #{forward.3} parent=0 // pred_check
    _
  $region71: #{forward.3} parent=0 // pred_check_branch
    %60 = sbr.rel (0) target = $region73
  $region72: #{forward.3} parent=0 // pred_region
    _
  $region73: #{forward.3} parent=0 // pred_fallthru
    _
  %v62 = vld [vmem:[%s0] sm:$0xff]
  %v63 = vld [vmem:[%s0 + $0x8] sm:$0xff]
  %v64 = vld [vmem:[%s0 + $0x10] sm:$0xff]
  %v65 = vld [vmem:[%s0 + $0x18] sm:$0xff]
  %v66 = vld [vmem:[%s0 + $0x20] sm:$0xff]
  %v67 = vld [vmem:[%s0 + $0x28] sm:$0xff]
  %v68 = vld [vmem:[%s0 + $0x30] sm:$0xff]
  %v69 = vld [vmem:[%s0 + $0x38] sm:$0xff]
  %v70 = vld [vmem:[%s0 + $0x40] sm:$0xff]
  %v71 = vld [vmem:[%s0 + $0x48] sm:$0xff]
  %v72 = vld [vmem:[%s0 + $0x50] sm:$0xff]
  %v73 = vld [vmem:[%s0 + $0x58] sm:$0xff]
  %v74 = vld [vmem:[%s0 + $0x60] sm:$0xff]
  %v75 = vld [vmem:[%s0 + $0x68] sm:$0xff]
  %v76 = vld [vmem:[%s0 + $0x70] sm:$0xff]
  %v77 = vld [vmem:[%s0 + $0x78] sm:$0xff]
  %v78 = vld [vmem:[%s0 + $0x80] sm:$0xff]
  %v79 = vld [vmem:[%s0 + $0x88] sm:$0xff]
  %v80 = vld [vmem:[%s0 + $0x90] sm:$0xff]
  %v81 = vld [vmem:[%s0 + $0x98] sm:$0xff]
  %v82 = vld [vmem:[%s0 + $0xa0] sm:$0xff]
  %v83 = vld [vmem:[%s0 + $0xa8] sm:$0xff]
  %v84 = vld [vmem:[%s0 + $0xb0] sm:$0xff]
  %v85 = vld [vmem:[%s0 + $0xb8] sm:$0xff]
  %v86 = vld [vmem:[%s0 + $0xc0] sm:$0xff]
  %v87 = vld [vmem:[%s0 + $0xc8] sm:$0xff]
  %v88 = vld [vmem:[%s0 + $0xd0] sm:$0xff]
  %v89 = vld [vmem:[%s0 + $0xd8] sm:$0xff]
  %v90 = vld [vmem:[%s0 + $0xe0] sm:$0xff]
  %v91 = vld [vmem:[%s0 + $0xe8] sm:$0xff]
  %v92 = vld [vmem:[%s0 + $0xf0] sm:$0xff]
  %v93 = vld [vmem:[%s0 + $0xf8] sm:$0xff]
  %v94 = vld [vmem:[%s0 + $0x100] sm:$0xff]
  %v95 = vld [vmem:[%s0 + $0x108] sm:$0xff]
  %v96 = vld [vmem:[%s0 + $0x110] sm:$0xff]
  %v97 = vld [vmem:[%s0 + $0x118] sm:$0xff]
  %v98 = vld [vmem:[%s0 + $0x120] sm:$0xff]
  %v99 = vld [vmem:[%s0 + $0x128] sm:$0xff]
  %v100 = vld [vmem:[%s0 + $0x130] sm:$0xff]
  %v101 = vld [vmem:[%s0 + $0x138] sm:$0xff]
  %v102 = vld [vmem:[%s0 + $0x140] sm:$0xff]
  %v103 = vld [vmem:[%s0 + $0x148] sm:$0xff]
  %v104 = vld [vmem:[%s0 + $0x150] sm:$0xff]
  %v105 = vld [vmem:[%s0 + $0x158] sm:$0xff]
  %v106 = vld [vmem:[%s0 + $0x160] sm:$0xff]
  %v107 = vld [vmem:[%s0 + $0x168] sm:$0xff]
  %v108 = vld [vmem:[%s0 + $0x170] sm:$0xff]
  %v109 = vld [vmem:[%s0 + $0x178] sm:$0xff]
  %v110 = vld [vmem:[%s0 + $0x180] sm:$0xff]
  %v111 = vld [vmem:[%s0 + $0x188] sm:$0xff]
  %v112 = vld [vmem:[%s0 + $0x190] sm:$0xff]
  %v113 = vld [vmem:[%s0 + $0x198] sm:$0xff]
  %v114 = vld [vmem:[%s0 + $0x1a0] sm:$0xff]
  %v115 = vld [vmem:[%s0 + $0x1a8] sm:$0xff]
  %v116 = vld [vmem:[%s0 + $0x1b0] sm:$0xff]
  %v117 = vld [vmem:[%s0 + $0x1b8] sm:$0xff]
  %v118 = vld [vmem:[%s0 + $0x1c0] sm:$0xff]
  %v119 = vld [vmem:[%s0 + $0x1c8] sm:$0xff]
  %v120 = vld [vmem:[%s0 + $0x1d0] sm:$0xff]
  %v121 = vld [vmem:[%s0 + $0x1d8] sm:$0xff]
  %v122 = vld [vmem:[%s0 + $0x1e0] sm:$0xff]
  %v123 = vld [vmem:[%s0 + $0x1e8] sm:$0xff]
  %v124 = vld [vmem:[%s0 + $0x1f0] sm:$0xff]
  %v125 = vld [vmem:[%s0 + $0x1f8] sm:$0xff]
  %v126 = vld [vmem:[%s0 + $0x200] sm:$0xff]
  %v127 = vld [vmem:[%s0 + $0x208] sm:$0xff]
  %v128 = vld [vmem:[%s0 + $0x210] sm:$0xff]
  %v129 = vld [vmem:[%s0 + $0x218] sm:$0xff]
  %v130 = vld [vmem:[%s0 + $0x220] sm:$0xff]
  %v131 = vld [vmem:[%s0 + $0x228] sm:$0xff]
  %v132 = vld [vmem:[%s0 + $0x230] sm:$0xff]
  %v133 = vld [vmem:[%s0 + $0x238] sm:$0xff]
  %v134 = vld [vmem:[%s0 + $0x240] sm:$0xff]
  %v135 = vld [vmem:[%s0 + $0x248] sm:$0xff]
  %v136 = vld [vmem:[%s0 + $0x250] sm:$0xff]
  %v137 = vld [vmem:[%s0 + $0x258] sm:$0xff]
  %v138 = vld [vmem:[%s0 + $0x260] sm:$0xff]
  %v139 = vld [vmem:[%s0 + $0x268] sm:$0xff]
  %v140 = vld [vmem:[%s0 + $0x270] sm:$0xff]
  %v141 = vld [vmem:[%s0 + $0x278] sm:$0xff]
  %v142 = vld [vmem:[%s0 + $0x280] sm:$0xff]
  %v143 = vld [vmem:[%s0 + $0x288] sm:$0xff]
  %v144 = vld [vmem:[%s0 + $0x290] sm:$0xff]
  %v145 = vld [vmem:[%s0 + $0x298] sm:$0xff]
  %v146 = vld [vmem:[%s0 + $0x2a0] sm:$0xff]
  %v147 = vld [vmem:[%s0 + $0x2a8] sm:$0xff]
  %v148 = vld [vmem:[%s0 + $0x2b0] sm:$0xff]
  %v149 = vld [vmem:[%s0 + $0x2b8] sm:$0xff]
  %v150 = vld [vmem:[%s0 + $0x2c0] sm:$0xff]
  %v151 = vld [vmem:[%s0 + $0x2c8] sm:$0xff]
  %v152 = vld [vmem:[%s0 + $0x2d0] sm:$0xff]
  %v153 = vld [vmem:[%s0 + $0x2d8] sm:$0xff]
  %v154 = vld [vmem:[%s0 + $0x2e0] sm:$0xff]
  %v155 = vld [vmem:[%s0 + $0x2e8] sm:$0xff]
  %v156 = vld [vmem:[%s0 + $0x2f0] sm:$0xff]
  %v157 = vld [vmem:[%s0 + $0x2f8] sm:$0xff]
  %v158 = vld [vmem:[%s0 + $0x300] sm:$0xff]
  %v159 = vld [vmem:[%s0 + $0x308] sm:$0xff]
  %v160 = vld [vmem:[%s0 + $0x310] sm:$0xff]
  %v161 = vld [vmem:[%s0 + $0x318] sm:$0xff]
  %v162 = vld [vmem:[%s0 + $0x320] sm:$0xff]
  %v163 = vld [vmem:[%s0 + $0x328] sm:$0xff]
  %v164 = vld [vmem:[%s0 + $0x330] sm:$0xff]
  %v165 = vld [vmem:[%s0 + $0x338] sm:$0xff]
  %v166 = vld [vmem:[%s0 + $0x340] sm:$0xff]
  %v167 = vld [vmem:[%s0 + $0x348] sm:$0xff]
  %v168 = vld [vmem:[%s0 + $0x350] sm:$0xff]
  %v169 = vld [vmem:[%s0 + $0x358] sm:$0xff]
  %v170 = vld [vmem:[%s0 + $0x360] sm:$0xff]
  %v171 = vld [vmem:[%s0 + $0x368] sm:$0xff]
  %v172 = vld [vmem:[%s0 + $0x370] sm:$0xff]
  %v173 = vld [vmem:[%s0 + $0x378] sm:$0xff]
  %v174 = vld [vmem:[%s0 + $0x380] sm:$0xff]
  %v175 = vld [vmem:[%s0 + $0x388] sm:$0xff]
  %v176 = vld [vmem:[%s0 + $0x390] sm:$0xff]
  %v177 = vld [vmem:[%s0 + $0x398] sm:$0xff]
  %v178 = vld [vmem:[%s0 + $0x3a0] sm:$0xff]
  %v179 = vld [vmem:[%s0 + $0x3a8] sm:$0xff]
  %v180 = vld [vmem:[%s0 + $0x3b0] sm:$0xff]
  %v181 = vld [vmem:[%s0 + $0x3b8] sm:$0xff]
  %v182 = vld [vmem:[%s0 + $0x3c0] sm:$0xff]
  %v183 = vld [vmem:[%s0 + $0x3c8] sm:$0xff]
  %v184 = vld [vmem:[%s0 + $0x3d0] sm:$0xff]
  %v185 = vld [vmem:[%s0 + $0x3d8] sm:$0xff]
  %v186 = vld [vmem:[%s0 + $0x3e0] sm:$0xff]
  %v187 = vld [vmem:[%s0 + $0x3e8] sm:$0xff]
  %v188 = vld [vmem:[%s0 + $0x3f0] sm:$0xff]
  %v189 = vld [vmem:[%s0 + $0x3f8] sm:$0xff]
  %v190 = vld [vmem:[%s0 + $0x400] sm:$0xff]
  %v191 = vld [vmem:[%s0 + $0x408] sm:$0xff]
  %v192 = vld [vmem:[%s0 + $0x410] sm:$0xff]
  %v193 = vld [vmem:[%s0 + $0x418] sm:$0xff]
  %v194 = vld [vmem:[%s0 + $0x420] sm:$0xff]
  %v195 = vld [vmem:[%s0 + $0x428] sm:$0xff]
  %v196 = vld [vmem:[%s0 + $0x430] sm:$0xff]
  %v197 = vld [vmem:[%s0 + $0x438] sm:$0xff]
  %v198 = vld [vmem:[%s0 + $0x440] sm:$0xff]
  %v199 = vld [vmem:[%s0 + $0x448] sm:$0xff]
  %v200 = vld [vmem:[%s0 + $0x450] sm:$0xff]
  %v201 = vld [vmem:[%s0 + $0x458] sm:$0xff]
  %v202 = vld [vmem:[%s0 + $0x460] sm:$0xff]
  %v203 = vld [vmem:[%s0 + $0x468] sm:$0xff]
  %v204 = vld [vmem:[%s0 + $0x470] sm:$0xff]
  %v205 = vld [vmem:[%s0 + $0x478] sm:$0xff]
  %v206 = vld [vmem:[%s0 + $0x480] sm:$0xff]
  %v207 = vld [vmem:[%s0 + $0x488] sm:$0xff]
  %v208 = vld [vmem:[%s0 + $0x490] sm:$0xff]
  %v209 = vld [vmem:[%s0 + $0x498] sm:$0xff]
  %v210 = vld [vmem:[%s0 + $0x4a0] sm:$0xff]
  %v211 = vld [vmem:[%s0 + $0x4a8] sm:$0xff]
  %v212 = vld [vmem:[%s0 + $0x4b0] sm:$0xff]
  %v213 = vld [vmem:[%s0 + $0x4b8] sm:$0xff]
  %v214 = vld [vmem:[%s0 + $0x4c0] sm:$0xff]
  %v215 = vld [vmem:[%s0 + $0x4c8] sm:$0xff]
  %v216 = vld [vmem:[%s0 + $0x4d0] sm:$0xff]
  %v217 = vld [vmem:[%s0 + $0x4d8] sm:$0xff]
  %v218 = vld [vmem:[%s0 + $0x4e0] sm:$0xff]
  %v219 = vld [vmem:[%s0 + $0x4e8] sm:$0xff]
  %v220 = vld [vmem:[%s0 + $0x4f0] sm:$0xff]
  %v221 = vld [vmem:[%s0 + $0x4f8] sm:$0xff]
  %v222 = vld [vmem:[%s0 + $0x500] sm:$0xff]
  %v223 = vld [vmem:[%s0 + $0x508] sm:$0xff]
  %v224 = vld [vmem:[%s0 + $0x510] sm:$0xff]
  %v225 = vld [vmem:[%s0 + $0x518] sm:$0xff]
  %v226 = vld [vmem:[%s0 + $0x520] sm:$0xff]
  %v227 = vld [vmem:[%s0 + $0x528] sm:$0xff]
  %v228 = vld [vmem:[%s0 + $0x530] sm:$0xff]
  %v229 = vld [vmem:[%s0 + $0x538] sm:$0xff]
  %v230 = vld [vmem:[%s0 + $0x540] sm:$0xff]
  %v231 = vld [vmem:[%s0 + $0x548] sm:$0xff]
  %v232 = vld [vmem:[%s0 + $0x550] sm:$0xff]
  %v233 = vld [vmem:[%s0 + $0x558] sm:$0xff]
  %v234 = vld [vmem:[%s0 + $0x560] sm:$0xff]
  %v235 = vld [vmem:[%s0 + $0x568] sm:$0xff]
  %v236 = vld [vmem:[%s0 + $0x570] sm:$0xff]
  %v237 = vld [vmem:[%s0 + $0x578] sm:$0xff]
  %v238 = vld [vmem:[%s0 + $0x580] sm:$0xff]
  %v239 = vld [vmem:[%s0 + $0x588] sm:$0xff]
  %v240 = vld [vmem:[%s0 + $0x590] sm:$0xff]
  %v241 = vld [vmem:[%s0 + $0x598] sm:$0xff]
  %v242 = vld [vmem:[%s0 + $0x5a0] sm:$0xff]
  %v243 = vld [vmem:[%s0 + $0x5a8] sm:$0xff]
  %v244 = vld [vmem:[%s0 + $0x5b0] sm:$0xff]
  %v245 = vld [vmem:[%s0 + $0x5b8] sm:$0xff]
  %v246 = vld [vmem:[%s0 + $0x5c0] sm:$0xff]
  %v247 = vld [vmem:[%s0 + $0x5c8] sm:$0xff]
  %v248 = vld [vmem:[%s0 + $0x5d0] sm:$0xff]
  %v249 = vld [vmem:[%s0 + $0x5d8] sm:$0xff]
  %v250 = vld [vmem:[%s0 + $0x5e0] sm:$0xff]
  %v251 = vld [vmem:[%s0 + $0x5e8] sm:$0xff]
  %v252 = vld [vmem:[%s0 + $0x5f0] sm:$0xff]
  %v253 = vld [vmem:[%s0 + $0x5f8] sm:$0xff]
  %v254 = vld [vmem:[%s0 + $0x600] sm:$0xff]
  %v255 = vld [vmem:[%s0 + $0x608] sm:$0xff]
  %v256 = vld [vmem:[%s0 + $0x610] sm:$0xff]
  %v257 = vld [vmem:[%s0 + $0x618] sm:$0xff]
  %v258 = vld [vmem:[%s0 + $0x620] sm:$0xff]
  %v259 = vld [vmem:[%s0 + $0x628] sm:$0xff]
  %v260 = vld [vmem:[%s0 + $0x630] sm:$0xff]
  %v261 = vld [vmem:[%s0 + $0x638] sm:$0xff]
  %v262 = vld [vmem:[%s1] sm:$0xf]
  %v263 = vld [vmem:[%s1 + $0x4] sm:$0xf]
  %v264 = vld [vmem:[%s1 + $0x8] sm:$0xf]
  %v265 = vld [vmem:[%s1 + $0xc] sm:$0xf]
  %v266 = vld [vmem:[%s1 + $0x10] sm:$0xf]
  %v267 = vld [vmem:[%s1 + $0x14] sm:$0xf]
  %v268 = vld [vmem:[%s1 + $0x18] sm:$0xf]
  %v269 = vld [vmem:[%s1 + $0x1c] sm:$0xf]
  %v270 = vld [vmem:[%s1 + $0x20] sm:$0xf]
  %v271 = vld [vmem:[%s1 + $0x24] sm:$0xf]
  %v272 = vld [vmem:[%s1 + $0x28] sm:$0xf]
  %v273 = vld [vmem:[%s1 + $0x2c] sm:$0xf]
  %v274 = vld [vmem:[%s1 + $0x30] sm:$0xf]
  %v275 = vld [vmem:[%s1 + $0x34] sm:$0xf]
  %v276 = vld [vmem:[%s1 + $0x38] sm:$0xf]
  %v277 = vld [vmem:[%s1 + $0x3c] sm:$0xf]
  %v278 = vld [vmem:[%s1 + $0x40] sm:$0xf]
  %v279 = vld [vmem:[%s1 + $0x44] sm:$0xf]
  %v480 = vunpack.c.l.b16 %v62
  %v481 = vunpack.c.h.b16 %v62
  %v482 = vunpack.c.l.b16 %v63
  %v483 = vunpack.c.h.b16 %v63
  %v484 = vunpack.c.l.b16 %v64
  %v485 = vunpack.c.h.b16 %v64
  %v486 = vunpack.c.l.b16 %v65
  %v487 = vunpack.c.h.b16 %v65
  %v488 = vunpack.c.l.b16 %v66
  %v489 = vunpack.c.h.b16 %v66
  %v490 = vunpack.c.l.b16 %v67
  %v491 = vunpack.c.h.b16 %v67
  %v492 = vunpack.c.l.b16 %v68
  %v493 = vunpack.c.h.b16 %v68
  %v494 = vunpack.c.l.b16 %v69
  %v495 = vunpack.c.h.b16 %v69
  %v496 = vunpack.c.l.b16 %v70
  %v497 = vunpack.c.h.b16 %v70
  %v498 = vunpack.c.l.b16 %v71
  %v499 = vunpack.c.h.b16 %v71
  %v500 = vunpack.c.l.b16 %v72
  %v501 = vunpack.c.h.b16 %v72
  %v502 = vunpack.c.l.b16 %v73
  %v503 = vunpack.c.h.b16 %v73
  %v504 = vunpack.c.l.b16 %v74
  %v505 = vunpack.c.h.b16 %v74
  %v506 = vunpack.c.l.b16 %v75
  %v507 = vunpack.c.h.b16 %v75
  %v508 = vunpack.c.l.b16 %v76
  %v509 = vunpack.c.h.b16 %v76
  %v510 = vunpack.c.l.b16 %v77
  %v511 = vunpack.c.h.b16 %v77
  %v512 = vunpack.c.l.b16 %v78
  %v513 = vunpack.c.h.b16 %v78
  %v514 = vunpack.c.l.b16 %v79
  %v515 = vunpack.c.h.b16 %v79
  %v516 = vunpack.c.l.b16 %v80
  %v517 = vunpack.c.h.b16 %v80
  %v518 = vunpack.c.l.b16 %v81
  %v519 = vunpack.c.h.b16 %v81
  %v520 = vunpack.c.l.b16 %v82
  %v521 = vunpack.c.h.b16 %v82
  %v522 = vunpack.c.l.b16 %v83
  %v523 = vunpack.c.h.b16 %v83
  %v524 = vunpack.c.l.b16 %v84
  %v525 = vunpack.c.h.b16 %v84
  %v526 = vunpack.c.l.b16 %v85
  %v527 = vunpack.c.h.b16 %v85
  %v528 = vunpack.c.l.b16 %v86
  %v529 = vunpack.c.h.b16 %v86
  %v530 = vunpack.c.l.b16 %v87
  %v531 = vunpack.c.h.b16 %v87
  %v532 = vunpack.c.l.b16 %v88
  %v533 = vunpack.c.h.b16 %v88
  %v534 = vunpack.c.l.b16 %v89
  %v535 = vunpack.c.h.b16 %v89
  %v536 = vunpack.c.l.b16 %v90
  %v537 = vunpack.c.h.b16 %v90
  %v538 = vunpack.c.l.b16 %v91
  %v539 = vunpack.c.h.b16 %v91
  %v540 = vunpack.c.l.b16 %v92
  %v541 = vunpack.c.h.b16 %v92
  %v542 = vunpack.c.l.b16 %v93
  %v543 = vunpack.c.h.b16 %v93
  %v544 = vunpack.c.l.b16 %v94
  %v545 = vunpack.c.h.b16 %v94
  %v546 = vunpack.c.l.b16 %v95
  %v547 = vunpack.c.h.b16 %v95
  %v548 = vunpack.c.l.b16 %v96
  %v549 = vunpack.c.h.b16 %v96
  %v550 = vunpack.c.l.b16 %v97
  %v551 = vunpack.c.h.b16 %v97
  %v552 = vunpack.c.l.b16 %v98
  %v553 = vunpack.c.h.b16 %v98
  %v554 = vunpack.c.l.b16 %v99
  %v555 = vunpack.c.h.b16 %v99
  %v556 = vunpack.c.l.b16 %v100
  %v557 = vunpack.c.h.b16 %v100
  %v558 = vunpack.c.l.b16 %v101
  %v559 = vunpack.c.h.b16 %v101
  %v560 = vunpack.c.l.b16 %v102
  %v561 = vunpack.c.h.b16 %v102
  %v562 = vunpack.c.l.b16 %v103
  %v563 = vunpack.c.h.b16 %v103
  %v564 = vunpack.c.l.b16 %v104
  %v565 = vunpack.c.h.b16 %v104
  %v566 = vunpack.c.l.b16 %v105
  %v567 = vunpack.c.h.b16 %v105
  %v568 = vunpack.c.l.b16 %v106
  %v569 = vunpack.c.h.b16 %v106
  %v570 = vunpack.c.l.b16 %v107
  %v571 = vunpack.c.h.b16 %v107
  %v572 = vunpack.c.l.b16 %v108
  %v573 = vunpack.c.h.b16 %v108
  %v574 = vunpack.c.l.b16 %v109
  %v575 = vunpack.c.h.b16 %v109
  %v576 = vunpack.c.l.b16 %v110
  %v577 = vunpack.c.h.b16 %v110
  %v578 = vunpack.c.l.b16 %v111
  %v579 = vunpack.c.h.b16 %v111
  %v580 = vunpack.c.l.b16 %v112
  %v581 = vunpack.c.h.b16 %v112
  %v582 = vunpack.c.l.b16 %v113
  %v583 = vunpack.c.h.b16 %v113
  %v584 = vunpack.c.l.b16 %v114
  %v585 = vunpack.c.h.b16 %v114
  %v586 = vunpack.c.l.b16 %v115
  %v587 = vunpack.c.h.b16 %v115
  %v588 = vunpack.c.l.b16 %v116
  %v589 = vunpack.c.h.b16 %v116
  %v590 = vunpack.c.l.b16 %v117
  %v591 = vunpack.c.h.b16 %v117
  %v592 = vunpack.c.l.b16 %v118
  %v593 = vunpack.c.h.b16 %v118
  %v594 = vunpack.c.l.b16 %v119
  %v595 = vunpack.c.h.b16 %v119
  %v596 = vunpack.c.l.b16 %v120
  %v597 = vunpack.c.h.b16 %v120
  %v598 = vunpack.c.l.b16 %v121
  %v599 = vunpack.c.h.b16 %v121
  %v600 = vunpack.c.l.b16 %v122
  %v601 = vunpack.c.h.b16 %v122
  %v602 = vunpack.c.l.b16 %v123
  %v603 = vunpack.c.h.b16 %v123
  %v604 = vunpack.c.l.b16 %v124
  %v605 = vunpack.c.h.b16 %v124
  %v606 = vunpack.c.l.b16 %v125
  %v607 = vunpack.c.h.b16 %v125
  %v608 = vunpack.c.l.b16 %v126
  %v609 = vunpack.c.h.b16 %v126
  %v610 = vunpack.c.l.b16 %v127
  %v611 = vunpack.c.h.b16 %v127
  %v612 = vunpack.c.l.b16 %v128
  %v613 = vunpack.c.h.b16 %v128
  %v614 = vunpack.c.l.b16 %v129
  %v615 = vunpack.c.h.b16 %v129
  %v616 = vunpack.c.l.b16 %v130
  %v617 = vunpack.c.h.b16 %v130
  %v618 = vunpack.c.l.b16 %v131
  %v619 = vunpack.c.h.b16 %v131
  %v620 = vunpack.c.l.b16 %v132
  %v621 = vunpack.c.h.b16 %v132
  %v622 = vunpack.c.l.b16 %v133
  %v623 = vunpack.c.h.b16 %v133
  %v624 = vunpack.c.l.b16 %v134
  %v625 = vunpack.c.h.b16 %v134
  %v626 = vunpack.c.l.b16 %v135
  %v627 = vunpack.c.h.b16 %v135
  %v628 = vunpack.c.l.b16 %v136
  %v629 = vunpack.c.h.b16 %v136
  %v630 = vunpack.c.l.b16 %v137
  %v631 = vunpack.c.h.b16 %v137
  %v632 = vunpack.c.l.b16 %v138
  %v633 = vunpack.c.h.b16 %v138
  %v634 = vunpack.c.l.b16 %v139
  %v635 = vunpack.c.h.b16 %v139
  %v636 = vunpack.c.l.b16 %v140
  %v637 = vunpack.c.h.b16 %v140
  %v638 = vunpack.c.l.b16 %v141
  %v639 = vunpack.c.h.b16 %v141
  %v640 = vunpack.c.l.b16 %v142
  %v641 = vunpack.c.h.b16 %v142
  %v642 = vunpack.c.l.b16 %v143
  %v643 = vunpack.c.h.b16 %v143
  %v644 = vunpack.c.l.b16 %v144
  %v645 = vunpack.c.h.b16 %v144
  %v646 = vunpack.c.l.b16 %v145
  %v647 = vunpack.c.h.b16 %v145
  %v648 = vunpack.c.l.b16 %v146
  %v649 = vunpack.c.h.b16 %v146
  %v650 = vunpack.c.l.b16 %v147
  %v651 = vunpack.c.h.b16 %v147
  %v652 = vunpack.c.l.b16 %v148
  %v653 = vunpack.c.h.b16 %v148
  %v654 = vunpack.c.l.b16 %v149
  %v655 = vunpack.c.h.b16 %v149
  %v656 = vunpack.c.l.b16 %v150
  %v657 = vunpack.c.h.b16 %v150
  %v658 = vunpack.c.l.b16 %v151
  %v659 = vunpack.c.h.b16 %v151
  %v660 = vunpack.c.l.b16 %v152
  %v661 = vunpack.c.h.b16 %v152
  %v662 = vunpack.c.l.b16 %v153
  %v663 = vunpack.c.h.b16 %v153
  %v664 = vunpack.c.l.b16 %v154
  %v665 = vunpack.c.h.b16 %v154
  %v666 = vunpack.c.l.b16 %v155
  %v667 = vunpack.c.h.b16 %v155
  %v668 = vunpack.c.l.b16 %v156
  %v669 = vunpack.c.h.b16 %v156
  %v670 = vunpack.c.l.b16 %v157
  %v671 = vunpack.c.h.b16 %v157
  %v672 = vunpack.c.l.b16 %v158
  %v673 = vunpack.c.h.b16 %v158
  %v674 = vunpack.c.l.b16 %v159
  %v675 = vunpack.c.h.b16 %v159
  %v676 = vunpack.c.l.b16 %v160
  %v677 = vunpack.c.h.b16 %v160
  %v678 = vunpack.c.l.b16 %v161
  %v679 = vunpack.c.h.b16 %v161
  %v680 = vunpack.c.l.b16 %v162
  %v681 = vunpack.c.h.b16 %v162
  %v682 = vunpack.c.l.b16 %v163
  %v683 = vunpack.c.h.b16 %v163
  %v684 = vunpack.c.l.b16 %v164
  %v685 = vunpack.c.h.b16 %v164
  %v686 = vunpack.c.l.b16 %v165
  %v687 = vunpack.c.h.b16 %v165
  %v688 = vunpack.c.l.b16 %v166
  %v689 = vunpack.c.h.b16 %v166
  %v690 = vunpack.c.l.b16 %v167
  %v691 = vunpack.c.h.b16 %v167
  %v692 = vunpack.c.l.b16 %v168
  %v693 = vunpack.c.h.b16 %v168
  %v694 = vunpack.c.l.b16 %v169
  %v695 = vunpack.c.h.b16 %v169
  %v696 = vunpack.c.l.b16 %v170
  %v697 = vunpack.c.h.b16 %v170
  %v698 = vunpack.c.l.b16 %v171
  %v699 = vunpack.c.h.b16 %v171
  %v700 = vunpack.c.l.b16 %v172
  %v701 = vunpack.c.h.b16 %v172
  %v702 = vunpack.c.l.b16 %v173
  %v703 = vunpack.c.h.b16 %v173
  %v704 = vunpack.c.l.b16 %v174
  %v705 = vunpack.c.h.b16 %v174
  %v706 = vunpack.c.l.b16 %v175
  %v707 = vunpack.c.h.b16 %v175
  %v708 = vunpack.c.l.b16 %v176
  %v709 = vunpack.c.h.b16 %v176
  %v710 = vunpack.c.l.b16 %v177
  %v711 = vunpack.c.h.b16 %v177
  %v712 = vunpack.c.l.b16 %v178
  %v713 = vunpack.c.h.b16 %v178
  %v714 = vunpack.c.l.b16 %v179
  %v715 = vunpack.c.h.b16 %v179
  %v716 = vunpack.c.l.b16 %v180
  %v717 = vunpack.c.h.b16 %v180
  %v718 = vunpack.c.l.b16 %v181
  %v719 = vunpack.c.h.b16 %v181
  %v720 = vunpack.c.l.b16 %v182
  %v721 = vunpack.c.h.b16 %v182
  %v722 = vunpack.c.l.b16 %v183
  %v723 = vunpack.c.h.b16 %v183
  %v724 = vunpack.c.l.b16 %v184
  %v725 = vunpack.c.h.b16 %v184
  %v726 = vunpack.c.l.b16 %v185
  %v727 = vunpack.c.h.b16 %v185
  %v728 = vunpack.c.l.b16 %v186
  %v729 = vunpack.c.h.b16 %v186
  %v730 = vunpack.c.l.b16 %v187
  %v731 = vunpack.c.h.b16 %v187
  %v732 = vunpack.c.l.b16 %v188
  %v733 = vunpack.c.h.b16 %v188
  %v734 = vunpack.c.l.b16 %v189
  %v735 = vunpack.c.h.b16 %v189
  %v736 = vunpack.c.l.b16 %v190
  %v737 = vunpack.c.h.b16 %v190
  %v738 = vunpack.c.l.b16 %v191
  %v739 = vunpack.c.h.b16 %v191
  %v740 = vunpack.c.l.b16 %v192
  %v741 = vunpack.c.h.b16 %v192
  %v742 = vunpack.c.l.b16 %v193
  %v743 = vunpack.c.h.b16 %v193
  %v744 = vunpack.c.l.b16 %v194
  %v745 = vunpack.c.h.b16 %v194
  %v746 = vunpack.c.l.b16 %v195
  %v747 = vunpack.c.h.b16 %v195
  %v748 = vunpack.c.l.b16 %v196
  %v749 = vunpack.c.h.b16 %v196
  %v750 = vunpack.c.l.b16 %v197
  %v751 = vunpack.c.h.b16 %v197
  %v752 = vunpack.c.l.b16 %v198
  %v753 = vunpack.c.h.b16 %v198
  %v754 = vunpack.c.l.b16 %v199
  %v755 = vunpack.c.h.b16 %v199
  %v756 = vunpack.c.l.b16 %v200
  %v757 = vunpack.c.h.b16 %v200
  %v758 = vunpack.c.l.b16 %v201
  %v759 = vunpack.c.h.b16 %v201
  %v760 = vunpack.c.l.b16 %v202
  %v761 = vunpack.c.h.b16 %v202
  %v762 = vunpack.c.l.b16 %v203
  %v763 = vunpack.c.h.b16 %v203
  %v764 = vunpack.c.l.b16 %v204
  %v765 = vunpack.c.h.b16 %v204
  %v766 = vunpack.c.l.b16 %v205
  %v767 = vunpack.c.h.b16 %v205
  %v768 = vunpack.c.l.b16 %v206
  %v769 = vunpack.c.h.b16 %v206
  %v770 = vunpack.c.l.b16 %v207
  %v771 = vunpack.c.h.b16 %v207
  %v772 = vunpack.c.l.b16 %v208
  %v773 = vunpack.c.h.b16 %v208
  %v774 = vunpack.c.l.b16 %v209
  %v775 = vunpack.c.h.b16 %v209
  %v776 = vunpack.c.l.b16 %v210
  %v777 = vunpack.c.h.b16 %v210
  %v778 = vunpack.c.l.b16 %v211
  %v779 = vunpack.c.h.b16 %v211
  %v780 = vunpack.c.l.b16 %v212
  %v781 = vunpack.c.h.b16 %v212
  %v782 = vunpack.c.l.b16 %v213
  %v783 = vunpack.c.h.b16 %v213
  %v784 = vunpack.c.l.b16 %v214
  %v785 = vunpack.c.h.b16 %v214
  %v786 = vunpack.c.l.b16 %v215
  %v787 = vunpack.c.h.b16 %v215
  %v788 = vunpack.c.l.b16 %v216
  %v789 = vunpack.c.h.b16 %v216
  %v790 = vunpack.c.l.b16 %v217
  %v791 = vunpack.c.h.b16 %v217
  %v792 = vunpack.c.l.b16 %v218
  %v793 = vunpack.c.h.b16 %v218
  %v794 = vunpack.c.l.b16 %v219
  %v795 = vunpack.c.h.b16 %v219
  %v796 = vunpack.c.l.b16 %v220
  %v797 = vunpack.c.h.b16 %v220
  %v798 = vunpack.c.l.b16 %v221
  %v799 = vunpack.c.h.b16 %v221
  %v800 = vunpack.c.l.b16 %v222
  %v801 = vunpack.c.h.b16 %v222
  %v802 = vunpack.c.l.b16 %v223
  %v803 = vunpack.c.h.b16 %v223
  %v804 = vunpack.c.l.b16 %v224
  %v805 = vunpack.c.h.b16 %v224
  %v806 = vunpack.c.l.b16 %v225
  %v807 = vunpack.c.h.b16 %v225
  %v808 = vunpack.c.l.b16 %v226
  %v809 = vunpack.c.h.b16 %v226
  %v810 = vunpack.c.l.b16 %v227
  %v811 = vunpack.c.h.b16 %v227
  %v812 = vunpack.c.l.b16 %v228
  %v813 = vunpack.c.h.b16 %v228
  %v814 = vunpack.c.l.b16 %v229
  %v815 = vunpack.c.h.b16 %v229
  %v816 = vunpack.c.l.b16 %v230
  %v817 = vunpack.c.h.b16 %v230
  %v818 = vunpack.c.l.b16 %v231
  %v819 = vunpack.c.h.b16 %v231
  %v820 = vunpack.c.l.b16 %v232
  %v821 = vunpack.c.h.b16 %v232
  %v822 = vunpack.c.l.b16 %v233
  %v823 = vunpack.c.h.b16 %v233
  %v824 = vunpack.c.l.b16 %v234
  %v825 = vunpack.c.h.b16 %v234
  %v826 = vunpack.c.l.b16 %v235
  %v827 = vunpack.c.h.b16 %v235
  %v828 = vunpack.c.l.b16 %v236
  %v829 = vunpack.c.h.b16 %v236
  %v830 = vunpack.c.l.b16 %v237
  %v831 = vunpack.c.h.b16 %v237
  %v832 = vunpack.c.l.b16 %v238
  %v833 = vunpack.c.h.b16 %v238
  %v834 = vunpack.c.l.b16 %v239
  %v835 = vunpack.c.h.b16 %v239
  %v836 = vunpack.c.l.b16 %v240
  %v837 = vunpack.c.h.b16 %v240
  %v838 = vunpack.c.l.b16 %v241
  %v839 = vunpack.c.h.b16 %v241
  %v840 = vunpack.c.l.b16 %v242
  %v841 = vunpack.c.h.b16 %v242
  %v842 = vunpack.c.l.b16 %v243
  %v843 = vunpack.c.h.b16 %v243
  %v844 = vunpack.c.l.b16 %v244
  %v845 = vunpack.c.h.b16 %v244
  %v846 = vunpack.c.l.b16 %v245
  %v847 = vunpack.c.h.b16 %v245
  %v848 = vunpack.c.l.b16 %v246
  %v849 = vunpack.c.h.b16 %v246
  %v850 = vunpack.c.l.b16 %v247
  %v851 = vunpack.c.h.b16 %v247
  %v852 = vunpack.c.l.b16 %v248
  %v853 = vunpack.c.h.b16 %v248
  %v854 = vunpack.c.l.b16 %v249
  %v855 = vunpack.c.h.b16 %v249
  %v856 = vunpack.c.l.b16 %v250
  %v857 = vunpack.c.h.b16 %v250
  %v858 = vunpack.c.l.b16 %v251
  %v859 = vunpack.c.h.b16 %v251
  %v860 = vunpack.c.l.b16 %v252
  %v861 = vunpack.c.h.b16 %v252
  %v862 = vunpack.c.l.b16 %v253
  %v863 = vunpack.c.h.b16 %v253
  %v864 = vunpack.c.l.b16 %v254
  %v865 = vunpack.c.h.b16 %v254
  %v866 = vunpack.c.l.b16 %v255
  %v867 = vunpack.c.h.b16 %v255
  %v868 = vunpack.c.l.b16 %v256
  %v869 = vunpack.c.h.b16 %v256
  %v870 = vunpack.c.l.b16 %v257
  %v871 = vunpack.c.h.b16 %v257
  %v872 = vunpack.c.l.b16 %v258
  %v873 = vunpack.c.h.b16 %v258
  %v874 = vunpack.c.l.b16 %v259
  %v875 = vunpack.c.h.b16 %v259
  %v876 = vunpack.c.l.b16 %v260
  %v877 = vunpack.c.h.b16 %v260
  %v878 = vunpack.c.l.b16 %v261
  %v879 = vunpack.c.h.b16 %v261
  %v880 = vpack.c.b16 %v482, %v480
  %v881 = vpack.c.b16 %v483, %v481
  %v882 = vpack.c.b16 %v486, %v484
  %v883 = vpack.c.b16 %v487, %v485
  %v884 = vpack.c.b16 %v490, %v488
  %v885 = vpack.c.b16 %v491, %v489
  %v886 = vpack.c.b16 %v494, %v492
  %v887 = vpack.c.b16 %v495, %v493
  %v888 = vpack.c.b16 %v498, %v496
  %v889 = vpack.c.b16 %v499, %v497
  %v890 = vpack.c.b16 %v502, %v500
  %v891 = vpack.c.b16 %v503, %v501
  %v892 = vpack.c.b16 %v506, %v504
  %v893 = vpack.c.b16 %v507, %v505
  %v894 = vpack.c.b16 %v510, %v508
  %v895 = vpack.c.b16 %v511, %v509
  %v896 = vpack.c.b16 %v514, %v512
  %v897 = vpack.c.b16 %v515, %v513
  %v898 = vpack.c.b16 %v518, %v516
  %v899 = vpack.c.b16 %v519, %v517
  %v900 = vpack.c.b16 %v522, %v520
  %v901 = vpack.c.b16 %v523, %v521
  %v902 = vpack.c.b16 %v526, %v524
  %v903 = vpack.c.b16 %v527, %v525
  %v904 = vpack.c.b16 %v530, %v528
  %v905 = vpack.c.b16 %v531, %v529
  %v906 = vpack.c.b16 %v534, %v532
  %v907 = vpack.c.b16 %v535, %v533
  %v908 = vpack.c.b16 %v538, %v536
  %v909 = vpack.c.b16 %v539, %v537
  %v910 = vpack.c.b16 %v542, %v540
  %v911 = vpack.c.b16 %v543, %v541
  %v912 = vpack.c.b16 %v546, %v544
  %v913 = vpack.c.b16 %v547, %v545
  %v914 = vpack.c.b16 %v550, %v548
  %v915 = vpack.c.b16 %v551, %v549
  %v916 = vpack.c.b16 %v554, %v552
  %v917 = vpack.c.b16 %v555, %v553
  %v918 = vpack.c.b16 %v558, %v556
  %v919 = vpack.c.b16 %v559, %v557
  %v920 = vpack.c.b16 %v562, %v560
  %v921 = vpack.c.b16 %v563, %v561
  %v922 = vpack.c.b16 %v566, %v564
  %v923 = vpack.c.b16 %v567, %v565
  %v924 = vpack.c.b16 %v570, %v568
  %v925 = vpack.c.b16 %v571, %v569
  %v926 = vpack.c.b16 %v574, %v572
  %v927 = vpack.c.b16 %v575, %v573
  %v928 = vpack.c.b16 %v578, %v576
  %v929 = vpack.c.b16 %v579, %v577
  %v930 = vpack.c.b16 %v582, %v580
  %v931 = vpack.c.b16 %v583, %v581
  %v932 = vpack.c.b16 %v586, %v584
  %v933 = vpack.c.b16 %v587, %v585
  %v934 = vpack.c.b16 %v590, %v588
  %v935 = vpack.c.b16 %v591, %v589
  %v936 = vpack.c.b16 %v594, %v592
  %v937 = vpack.c.b16 %v595, %v593
  %v938 = vpack.c.b16 %v598, %v596
  %v939 = vpack.c.b16 %v599, %v597
  %v940 = vpack.c.b16 %v602, %v600
  %v941 = vpack.c.b16 %v603, %v601
  %v942 = vpack.c.b16 %v606, %v604
  %v943 = vpack.c.b16 %v607, %v605
  %v944 = vpack.c.b16 %v610, %v608
  %v945 = vpack.c.b16 %v611, %v609
  %v946 = vpack.c.b16 %v614, %v612
  %v947 = vpack.c.b16 %v615, %v613
  %v948 = vpack.c.b16 %v618, %v616
  %v949 = vpack.c.b16 %v619, %v617
  %v950 = vpack.c.b16 %v622, %v620
  %v951 = vpack.c.b16 %v623, %v621
  %v952 = vpack.c.b16 %v626, %v624
  %v953 = vpack.c.b16 %v627, %v625
  %v954 = vpack.c.b16 %v630, %v628
  %v955 = vpack.c.b16 %v631, %v629
  %v956 = vpack.c.b16 %v634, %v632
  %v957 = vpack.c.b16 %v635, %v633
  %v958 = vpack.c.b16 %v638, %v636
  %v959 = vpack.c.b16 %v639, %v637
  %v960 = vpack.c.b16 %v642, %v640
  %v961 = vpack.c.b16 %v643, %v641
  %v962 = vpack.c.b16 %v646, %v644
  %v963 = vpack.c.b16 %v647, %v645
  %v964 = vpack.c.b16 %v650, %v648
  %v965 = vpack.c.b16 %v651, %v649
  %v966 = vpack.c.b16 %v654, %v652
  %v967 = vpack.c.b16 %v655, %v653
  %v968 = vpack.c.b16 %v658, %v656
  %v969 = vpack.c.b16 %v659, %v657
  %v970 = vpack.c.b16 %v662, %v660
  %v971 = vpack.c.b16 %v663, %v661
  %v972 = vpack.c.b16 %v666, %v664
  %v973 = vpack.c.b16 %v667, %v665
  %v974 = vpack.c.b16 %v670, %v668
  %v975 = vpack.c.b16 %v671, %v669
  %v976 = vpack.c.b16 %v674, %v672
  %v977 = vpack.c.b16 %v675, %v673
  %v978 = vpack.c.b16 %v678, %v676
  %v979 = vpack.c.b16 %v679, %v677
  %v980 = vpack.c.b16 %v682, %v680
  %v981 = vpack.c.b16 %v683, %v681
  %v982 = vpack.c.b16 %v686, %v684
  %v983 = vpack.c.b16 %v687, %v685
  %v984 = vpack.c.b16 %v690, %v688
  %v985 = vpack.c.b16 %v691, %v689
  %v986 = vpack.c.b16 %v694, %v692
  %v987 = vpack.c.b16 %v695, %v693
  %v988 = vpack.c.b16 %v698, %v696
  %v989 = vpack.c.b16 %v699, %v697
  %v990 = vpack.c.b16 %v702, %v700
  %v991 = vpack.c.b16 %v703, %v701
  %v992 = vpack.c.b16 %v706, %v704
  %v993 = vpack.c.b16 %v707, %v705
  %v994 = vpack.c.b16 %v710, %v708
  %v995 = vpack.c.b16 %v711, %v709
  %v996 = vpack.c.b16 %v714, %v712
  %v997 = vpack.c.b16 %v715, %v713
  %v998 = vpack.c.b16 %v718, %v716
  %v999 = vpack.c.b16 %v719, %v717
  %v1000 = vpack.c.b16 %v722, %v720
  %v1001 = vpack.c.b16 %v723, %v721
  %v1002 = vpack.c.b16 %v726, %v724
  %v1003 = vpack.c.b16 %v727, %v725
  %v1004 = vpack.c.b16 %v730, %v728
  %v1005 = vpack.c.b16 %v731, %v729
  %v1006 = vpack.c.b16 %v734, %v732
  %v1007 = vpack.c.b16 %v735, %v733
  %v1008 = vpack.c.b16 %v738, %v736
  %v1009 = vpack.c.b16 %v739, %v737
  %v1010 = vpack.c.b16 %v742, %v740
  %v1011 = vpack.c.b16 %v743, %v741
  %v1012 = vpack.c.b16 %v746, %v744
  %v1013 = vpack.c.b16 %v747, %v745
  %v1014 = vpack.c.b16 %v750, %v748
  %v1015 = vpack.c.b16 %v751, %v749
  %v1016 = vpack.c.b16 %v754, %v752
  %v1017 = vpack.c.b16 %v755, %v753
  %v1018 = vpack.c.b16 %v758, %v756
  %v1019 = vpack.c.b16 %v759, %v757
  %v1020 = vpack.c.b16 %v762, %v760
  %v1021 = vpack.c.b16 %v763, %v761
  %v1022 = vpack.c.b16 %v766, %v764
  %v1023 = vpack.c.b16 %v767, %v765
  %v1024 = vpack.c.b16 %v770, %v768
  %v1025 = vpack.c.b16 %v771, %v769
  %v1026 = vpack.c.b16 %v774, %v772
  %v1027 = vpack.c.b16 %v775, %v773
  %v1028 = vpack.c.b16 %v778, %v776
  %v1029 = vpack.c.b16 %v779, %v777
  %v1030 = vpack.c.b16 %v782, %v780
  %v1031 = vpack.c.b16 %v783, %v781
  %v1032 = vpack.c.b16 %v786, %v784
  %v1033 = vpack.c.b16 %v787, %v785
  %v1034 = vpack.c.b16 %v790, %v788
  %v1035 = vpack.c.b16 %v791, %v789
  %v1036 = vpack.c.b16 %v794, %v792
  %v1037 = vpack.c.b16 %v795, %v793
  %v1038 = vpack.c.b16 %v798, %v796
  %v1039 = vpack.c.b16 %v799, %v797
  %v1040 = vpack.c.b16 %v802, %v800
  %v1041 = vpack.c.b16 %v803, %v801
  %v1042 = vpack.c.b16 %v806, %v804
  %v1043 = vpack.c.b16 %v807, %v805
  %v1044 = vpack.c.b16 %v810, %v808
  %v1045 = vpack.c.b16 %v811, %v809
  %v1046 = vpack.c.b16 %v814, %v812
  %v1047 = vpack.c.b16 %v815, %v813
  %v1048 = vpack.c.b16 %v818, %v816
  %v1049 = vpack.c.b16 %v819, %v817
  %v1050 = vpack.c.b16 %v822, %v820
  %v1051 = vpack.c.b16 %v823, %v821
  %v1052 = vpack.c.b16 %v826, %v824
  %v1053 = vpack.c.b16 %v827, %v825
  %v1054 = vpack.c.b16 %v830, %v828
  %v1055 = vpack.c.b16 %v831, %v829
  %v1056 = vpack.c.b16 %v834, %v832
  %v1057 = vpack.c.b16 %v835, %v833
  %v1058 = vpack.c.b16 %v838, %v836
  %v1059 = vpack.c.b16 %v839, %v837
  %v1060 = vpack.c.b16 %v842, %v840
  %v1061 = vpack.c.b16 %v843, %v841
  %v1062 = vpack.c.b16 %v846, %v844
  %v1063 = vpack.c.b16 %v847, %v845
  %v1064 = vpack.c.b16 %v850, %v848
  %v1065 = vpack.c.b16 %v851, %v849
  %v1066 = vpack.c.b16 %v854, %v852
  %v1067 = vpack.c.b16 %v855, %v853
  %v1068 = vpack.c.b16 %v858, %v856
  %v1069 = vpack.c.b16 %v859, %v857
  %v1070 = vpack.c.b16 %v862, %v860
  %v1071 = vpack.c.b16 %v863, %v861
  %v1072 = vpack.c.b16 %v866, %v864
  %v1073 = vpack.c.b16 %v867, %v865
  %v1074 = vpack.c.b16 %v870, %v868
  %v1075 = vpack.c.b16 %v871, %v869
  %v1076 = vpack.c.b16 %v874, %v872
  %v1077 = vpack.c.b16 %v875, %v873
  %v1078 = vpack.c.b16 %v878, %v876
  %v1079 = vpack.c.b16 %v879, %v877
  %v1198 = vunpack.c.l.b16 %v262
  %v1199 = vunpack.c.l.b16 %v263
  %v1200 = vunpack.c.l.b16 %v264
  %v1201 = vunpack.c.l.b16 %v265
  %v1202 = vunpack.c.l.b16 %v266
  %v1203 = vunpack.c.l.b16 %v267
  %v1204 = vunpack.c.l.b16 %v268
  %v1205 = vunpack.c.l.b16 %v269
  %v1206 = vunpack.c.l.b16 %v270
  %v1207 = vunpack.c.l.b16 %v271
  %v1208 = vunpack.c.l.b16 %v272
  %v1209 = vunpack.c.l.b16 %v273
  %v1210 = vunpack.c.l.b16 %v274
  %v1211 = vunpack.c.l.b16 %v275
  %v1212 = vunpack.c.l.b16 %v276
  %v1213 = vunpack.c.l.b16 %v277
  %v1214 = vunpack.c.l.b16 %v278
  %v1215 = vunpack.c.l.b16 %v279
  %v1216 = vpack.c.b16 %v1199, %v1198
  %v1217 = vpack.c.b16 %v1201, %v1200
  %v1218 = vpack.c.b16 %v1203, %v1202
  %v1219 = vpack.c.b16 %v1205, %v1204
  %v1220 = vpack.c.b16 %v1207, %v1206
  %v1221 = vpack.c.b16 %v1209, %v1208
  %v1222 = vpack.c.b16 %v1211, %v1210
  %v1223 = vpack.c.b16 %v1213, %v1212
  %v1224 = vpack.c.b16 %v1215, %v1214
  %vm1234 = vcmask 130048
  %v1236 = vsel %vm1234, %v881, 0
  %v1239 = vsel %vm1234, %v883, 0
  %v1242 = vsel %vm1234, %v885, 0
  %v1245 = vsel %vm1234, %v887, 0
  %v1248 = vsel %vm1234, %v889, 0
  %v1251 = vsel %vm1234, %v891, 0
  %v1254 = vsel %vm1234, %v893, 0
  %v1257 = vsel %vm1234, %v895, 0
  %v1260 = vsel %vm1234, %v897, 0
  %v1263 = vsel %vm1234, %v899, 0
  %v1266 = vsel %vm1234, %v901, 0
  %v1269 = vsel %vm1234, %v903, 0
  %v1272 = vsel %vm1234, %v905, 0
  %v1275 = vsel %vm1234, %v907, 0
  %v1278 = vsel %vm1234, %v909, 0
  %v1281 = vsel %vm1234, %v911, 0
  %v1284 = vsel %vm1234, %v913, 0
  %v1287 = vsel %vm1234, %v915, 0
  %v1290 = vsel %vm1234, %v917, 0
  %v1293 = vsel %vm1234, %v919, 0
  %v1296 = vsel %vm1234, %v921, 0
  %v1299 = vsel %vm1234, %v923, 0
  %v1302 = vsel %vm1234, %v925, 0
  %v1305 = vsel %vm1234, %v927, 0
  %v1308 = vsel %vm1234, %v929, 0
  %v1311 = vsel %vm1234, %v931, 0
  %v1314 = vsel %vm1234, %v933, 0
  %v1317 = vsel %vm1234, %v935, 0
  %v1320 = vsel %vm1234, %v937, 0
  %v1323 = vsel %vm1234, %v939, 0
  %v1326 = vsel %vm1234, %v941, 0
  %v1329 = vsel %vm1234, %v943, 0
  %v1332 = vsel %vm1234, %v945, 0
  %v1335 = vsel %vm1234, %v947, 0
  %v1338 = vsel %vm1234, %v949, 0
  %v1341 = vsel %vm1234, %v951, 0
  %v1344 = vsel %vm1234, %v953, 0
  %v1347 = vsel %vm1234, %v955, 0
  %v1350 = vsel %vm1234, %v957, 0
  %v1353 = vsel %vm1234, %v959, 0
  %v1356 = vsel %vm1234, %v961, 0
  %v1359 = vsel %vm1234, %v963, 0
  %v1362 = vsel %vm1234, %v965, 0
  %v1365 = vsel %vm1234, %v967, 0
  %v1368 = vsel %vm1234, %v969, 0
  %v1371 = vsel %vm1234, %v971, 0
  %v1374 = vsel %vm1234, %v973, 0
  %v1377 = vsel %vm1234, %v975, 0
  %v1380 = vsel %vm1234, %v977, 0
  %v1383 = vsel %vm1234, %v979, 0
  %v1386 = vsel %vm1234, %v981, 0
  %v1389 = vsel %vm1234, %v983, 0
  %v1392 = vsel %vm1234, %v985, 0
  %v1395 = vsel %vm1234, %v987, 0
  %v1398 = vsel %vm1234, %v989, 0
  %v1401 = vsel %vm1234, %v991, 0
  %v1404 = vsel %vm1234, %v993, 0
  %v1407 = vsel %vm1234, %v995, 0
  %v1410 = vsel %vm1234, %v997, 0
  %v1413 = vsel %vm1234, %v999, 0
  %v1416 = vsel %vm1234, %v1001, 0
  %v1419 = vsel %vm1234, %v1003, 0
  %v1422 = vsel %vm1234, %v1005, 0
  %v1425 = vsel %vm1234, %v1007, 0
  %v1428 = vsel %vm1234, %v1009, 0
  %v1431 = vsel %vm1234, %v1011, 0
  %v1434 = vsel %vm1234, %v1013, 0
  %v1437 = vsel %vm1234, %v1015, 0
  %v1440 = vsel %vm1234, %v1017, 0
  %v1443 = vsel %vm1234, %v1019, 0
  %v1446 = vsel %vm1234, %v1021, 0
  %v1449 = vsel %vm1234, %v1023, 0
  %v1452 = vsel %vm1234, %v1025, 0
  %v1455 = vsel %vm1234, %v1027, 0
  %v1458 = vsel %vm1234, %v1029, 0
  %v1461 = vsel %vm1234, %v1031, 0
  %v1464 = vsel %vm1234, %v1033, 0
  %v1467 = vsel %vm1234, %v1035, 0
  %v1470 = vsel %vm1234, %v1037, 0
  %v1473 = vsel %vm1234, %v1039, 0
  %v1476 = vsel %vm1234, %v1041, 0
  %v1479 = vsel %vm1234, %v1043, 0
  %v1482 = vsel %vm1234, %v1045, 0
  %v1485 = vsel %vm1234, %v1047, 0
  %v1488 = vsel %vm1234, %v1049, 0
  %v1491 = vsel %vm1234, %v1051, 0
  %v1494 = vsel %vm1234, %v1053, 0
  %v1497 = vsel %vm1234, %v1055, 0
  %v1500 = vsel %vm1234, %v1057, 0
  %v1503 = vsel %vm1234, %v1059, 0
  %v1506 = vsel %vm1234, %v1061, 0
  %v1509 = vsel %vm1234, %v1063, 0
  %v1512 = vsel %vm1234, %v1065, 0
  %v1515 = vsel %vm1234, %v1067, 0
  %v1518 = vsel %vm1234, %v1069, 0
  %v1521 = vsel %vm1234, %v1071, 0
  %v1524 = vsel %vm1234, %v1073, 0
  %v1527 = vsel %vm1234, %v1075, 0
  %v1530 = vsel %vm1234, %v1077, 0
  %v1533 = vsel %vm1234, %v1079, 0
  %1535 = vmatprep.subr.bf16.mxu0 0
  %1536 = vmatpush1.bf16.msra.mxu0 %v1216
  %1537 = vmatprep.subr.bf16.mxu0 0
  %1538 = vmatpush1.bf16.msra.mxu0 %v1217
  %1539 = vmatprep.subr.bf16.mxu0 0
  %1540 = vmatpush1.bf16.msra.mxu0 %v1218
  %1541 = vmatprep.subr.bf16.mxu0 0
  %1542 = vmatpush1.bf16.msra.mxu0 %v1219
  %1543 = vmatprep.subr.bf16.mxu0 0
  %1544 = vmatpush1.bf16.msra.mxu0 %v1220
  %1545 = vmatprep.subr.bf16.mxu0 0
  %1546 = vmatpush1.bf16.msra.mxu0 %v1221
  %1547 = vmatprep.subr.bf16.mxu0 0
  %1548 = vmatpush1.bf16.msra.mxu0 %v1222
  %1549 = vmatprep.subr.bf16.mxu0 0
  %1550 = vmatpush1.bf16.msra.mxu0 %v1223
  %1551 = vmatprep.subr.bf16.mxu0 0
  %1552 = vmatpush1.bf16.msra.mxu0 %v1224
  %1553 = vmatprep.subr.bf16.mxu0 0
  %1554 = vmatpush1.bf16.msra.mxu0 0
  %1555 = vmatprep.subr.bf16.mxu0 0
  %1556 = vmatpush1.bf16.msra.mxu0 0
  %1557 = vmatprep.subr.bf16.mxu0 0
  %1558 = vmatpush1.bf16.msra.mxu0 0
  %1559 = vmatprep.subr.bf16.mxu0 0
  %1560 = vmatpush1.bf16.msra.mxu0 0
  %1561 = vmatprep.subr.bf16.mxu0 0
  %1562 = vmatpush1.bf16.msra.mxu0 0
  %1563 = vmatprep.subr.bf16.mxu0 0
  %1564 = vmatpush1.bf16.msra.mxu0 0
  %1565 = vmatprep.subr.bf16.mxu0 0
  %1566 = vmatpush1.bf16.msra.mxu0 0
  %1567 = vmatprep.mubr.bf16.mxu0 %v1236
  %1568 = vmatmul.mubr.bf16.gmra.mrb[0].mxu0 %v880
  %v1569 = vpop.f32.mrb[0].mxu0
  %v1570 = vadd.f32 0.0, %v1569
  %v1571 = vpop.f32.mrb[0].mxu0
  %v1572 = vpop.f32.mrb[0].mxu0
  %v1573 = vadd.f32 0.0, %v1572
  %v1574 = vpop.f32.mrb[0].mxu0
  %1575 = vmatprep.mubr.bf16.mxu0 %v1239
  %1576 = vmatmul.mubr.bf16.gmra.mrb[0].mxu0 %v882
  %v1577 = vpop.f32.mrb[0].mxu0
  %v1578 = vadd.f32 0.0, %v1577
  %v1579 = vpop.f32.mrb[0].mxu0
  %v1580 = vpop.f32.mrb[0].mxu0
  %v1581 = vadd.f32 0.0, %v1580
  %v1582 = vpop.f32.mrb[0].mxu0
  %1583 = vmatprep.mubr.bf16.mxu0 %v1242
  %1584 = vmatmul.mubr.bf16.gmra.mrb[0].mxu0 %v884
  %v1585 = vpop.f32.mrb[0].mxu0
  %v1586 = vadd.f32 0.0, %v1585
  %v1587 = vpop.f32.mrb[0].mxu0
  %v1588 = vpop.f32.mrb[0].mxu0
  %v1589 = vadd.f32 0.0, %v1588
  %v1590 = vpop.f32.mrb[0].mxu0
  %1591 = vmatprep.mubr.bf16.mxu0 %v1245
  %1592 = vmatmul.mubr.bf16.gmra.mrb[0].mxu0 %v886
  %v1593 = vpop.f32.mrb[0].mxu0
  %v1594 = vadd.f32 0.0, %v1593
  %v1595 = vpop.f32.mrb[0].mxu0
  %v1596 = vpop.f32.mrb[0].mxu0
  %v1597 = vadd.f32 0.0, %v1596
  %v1598 = vpop.f32.mrb[0].mxu0
  %1599 = vmatprep.mubr.bf16.mxu0 %v1248
  %1600 = vmatmul.mubr.bf16.gmra.mrb[0].mxu0 %v888
  %v1601 = vpop.f32.mrb[0].mxu0
  %v1602 = vadd.f32 0.0, %v1601
  %v1603 = vpop.f32.mrb[0].mxu0
  %v1604 = vpop.f32.mrb[0].mxu0
  %v1605 = vadd.f32 0.0, %v1604
  %v1606 = vpop.f32.mrb[0].mxu0
  %1607 = vmatprep.mubr.bf16.mxu0 %v1251
  %1608 = vmatmul.mubr.bf16.gmra.mrb[0].mxu0 %v890
  %v1609 = vpop.f32.mrb[0].mxu0
  %v1610 = vadd.f32 0.0, %v1609
  %v1611 = vpop.f32.mrb[0].mxu0
  %v1612 = vpop.f32.mrb[0].mxu0
  %v1613 = vadd.f32 0.0, %v1612
  %v1614 = vpop.f32.mrb[0].mxu0
  %1615 = vmatprep.mubr.bf16.mxu0 %v1254
  %1616 = vmatmul.mubr.bf16.gmra.mrb[0].mxu0 %v892
  %v1617 = vpop.f32.mrb[0].mxu0
  %v1618 = vadd.f32 0.0, %v1617
  %v1619 = vpop.f32.mrb[0].mxu0
  %v1620 = vpop.f32.mrb[0].mxu0
  %v1621 = vadd.f32 0.0, %v1620
  %v1622 = vpop.f32.mrb[0].mxu0
  %1623 = vmatprep.mubr.bf16.mxu0 %v1257
  %1624 = vmatmul.mubr.bf16.gmra.mrb[0].mxu0 %v894
  %v1625 = vpop.f32.mrb[0].mxu0
  %v1626 = vadd.f32 0.0, %v1625
  %v1627 = vpop.f32.mrb[0].mxu0
  %v1628 = vpop.f32.mrb[0].mxu0
  %v1629 = vadd.f32 0.0, %v1628
  %v1630 = vpop.f32.mrb[0].mxu0
  %1631 = vmatprep.mubr.bf16.mxu0 %v1260
  %1632 = vmatmul.mubr.bf16.gmra.mrb[0].mxu0 %v896
  %v1633 = vpop.f32.mrb[0].mxu0
  %v1634 = vadd.f32 0.0, %v1633
  %v1635 = vpop.f32.mrb[0].mxu0
  %v1636 = vpop.f32.mrb[0].mxu0
  %v1637 = vadd.f32 0.0, %v1636
  %v1638 = vpop.f32.mrb[0].mxu0
  %1639 = vmatprep.mubr.bf16.mxu0 %v1263
  %1640 = vmatmul.mubr.bf16.gmra.mrb[0].mxu0 %v898
  %v1641 = vpop.f32.mrb[0].mxu0
  %v1642 = vadd.f32 0.0, %v1641
  %v1643 = vpop.f32.mrb[0].mxu0
  %v1644 = vpop.f32.mrb[0].mxu0
  %v1645 = vadd.f32 0.0, %v1644
  %v1646 = vpop.f32.mrb[0].mxu0
  %1647 = vmatprep.mubr.bf16.mxu0 %v1266
  %1648 = vmatmul.mubr.bf16.gmra.mrb[0].mxu0 %v900
  %v1649 = vpop.f32.mrb[0].mxu0
  %v1650 = vadd.f32 0.0, %v1649
  %v1651 = vpop.f32.mrb[0].mxu0
  %v1652 = vpop.f32.mrb[0].mxu0
  %v1653 = vadd.f32 0.0, %v1652
  %v1654 = vpop.f32.mrb[0].mxu0
  %1655 = vmatprep.mubr.bf16.mxu0 %v1269
  %1656 = vmatmul.mubr.bf16.gmra.mrb[0].mxu0 %v902
  %v1657 = vpop.f32.mrb[0].mxu0
  %v1658 = vadd.f32 0.0, %v1657
  %v1659 = vpop.f32.mrb[0].mxu0
  %v1660 = vpop.f32.mrb[0].mxu0
  %v1661 = vadd.f32 0.0, %v1660
  %v1662 = vpop.f32.mrb[0].mxu0
  %1663 = vmatprep.mubr.bf16.mxu0 %v1272
  %1664 = vmatmul.mubr.bf16.gmra.mrb[0].mxu0 %v904
  %v1665 = vpop.f32.mrb[0].mxu0
  %v1666 = vadd.f32 0.0, %v1665
  %v1667 = vpop.f32.mrb[0].mxu0
  %v1668 = vpop.f32.mrb[0].mxu0
  %v1669 = vadd.f32 0.0, %v1668
  %v1670 = vpop.f32.mrb[0].mxu0
  %1671 = vmatprep.mubr.bf16.mxu0 %v1275
  %1672 = vmatmul.mubr.bf16.gmra.mrb[0].mxu0 %v906
  %v1673 = vpop.f32.mrb[0].mxu0
  %v1674 = vadd.f32 0.0, %v1673
  %v1675 = vpop.f32.mrb[0].mxu0
  %v1676 = vpop.f32.mrb[0].mxu0
  %v1677 = vadd.f32 0.0, %v1676
  %v1678 = vpop.f32.mrb[0].mxu0
  %1679 = vmatprep.mubr.bf16.mxu0 %v1278
  %1680 = vmatmul.mubr.bf16.gmra.mrb[0].mxu0 %v908
  %v1681 = vpop.f32.mrb[0].mxu0
  %v1682 = vadd.f32 0.0, %v1681
  %v1683 = vpop.f32.mrb[0].mxu0
  %v1684 = vpop.f32.mrb[0].mxu0
  %v1685 = vadd.f32 0.0, %v1684
  %v1686 = vpop.f32.mrb[0].mxu0
  %1687 = vmatprep.mubr.bf16.mxu0 %v1281
  %1688 = vmatmul.mubr.bf16.gmra.mrb[0].mxu0 %v910
  %v1689 = vpop.f32.mrb[0].mxu0
  %v1690 = vadd.f32 0.0, %v1689
  %v1691 = vpop.f32.mrb[0].mxu0
  %v1692 = vpop.f32.mrb[0].mxu0
  %v1693 = vadd.f32 0.0, %v1692
  %v1694 = vpop.f32.mrb[0].mxu0
  %1695 = vmatprep.mubr.bf16.mxu0 %v1284
  %1696 = vmatmul.mubr.bf16.gmra.mrb[0].mxu0 %v912
  %v1697 = vpop.f32.mrb[0].mxu0
  %v1698 = vadd.f32 0.0, %v1697
  %v1699 = vpop.f32.mrb[0].mxu0
  %v1700 = vpop.f32.mrb[0].mxu0
  %v1701 = vadd.f32 0.0, %v1700
  %v1702 = vpop.f32.mrb[0].mxu0
  %1703 = vmatprep.mubr.bf16.mxu0 %v1287
  %1704 = vmatmul.mubr.bf16.gmra.mrb[0].mxu0 %v914
  %v1705 = vpop.f32.mrb[0].mxu0
  %v1706 = vadd.f32 0.0, %v1705
  %v1707 = vpop.f32.mrb[0].mxu0
  %v1708 = vpop.f32.mrb[0].mxu0
  %v1709 = vadd.f32 0.0, %v1708
  %v1710 = vpop.f32.mrb[0].mxu0
  %1711 = vmatprep.mubr.bf16.mxu0 %v1290
  %1712 = vmatmul.mubr.bf16.gmra.mrb[0].mxu0 %v916
  %v1713 = vpop.f32.mrb[0].mxu0
  %v1714 = vadd.f32 0.0, %v1713
  %v1715 = vpop.f32.mrb[0].mxu0
  %v1716 = vpop.f32.mrb[0].mxu0
  %v1717 = vadd.f32 0.0, %v1716
  %v1718 = vpop.f32.mrb[0].mxu0
  %1719 = vmatprep.mubr.bf16.mxu0 %v1293
  %1720 = vmatmul.mubr.bf16.gmra.mrb[0].mxu0 %v918
  %v1721 = vpop.f32.mrb[0].mxu0
  %v1722 = vadd.f32 0.0, %v1721
  %v1723 = vpop.f32.mrb[0].mxu0
  %v1724 = vpop.f32.mrb[0].mxu0
  %v1725 = vadd.f32 0.0, %v1724
  %v1726 = vpop.f32.mrb[0].mxu0
  %1727 = vmatprep.mubr.bf16.mxu0 %v1296
  %1728 = vmatmul.mubr.bf16.gmra.mrb[0].mxu0 %v920
  %v1729 = vpop.f32.mrb[0].mxu0
  %v1730 = vadd.f32 0.0, %v1729
  %v1731 = vpop.f32.mrb[0].mxu0
  %v1732 = vpop.f32.mrb[0].mxu0
  %v1733 = vadd.f32 0.0, %v1732
  %v1734 = vpop.f32.mrb[0].mxu0
  %1735 = vmatprep.mubr.bf16.mxu0 %v1299
  %1736 = vmatmul.mubr.bf16.gmra.mrb[0].mxu0 %v922
  %v1737 = vpop.f32.mrb[0].mxu0
  %v1738 = vadd.f32 0.0, %v1737
  %v1739 = vpop.f32.mrb[0].mxu0
  %v1740 = vpop.f32.mrb[0].mxu0
  %v1741 = vadd.f32 0.0, %v1740
  %v1742 = vpop.f32.mrb[0].mxu0
  %1743 = vmatprep.mubr.bf16.mxu0 %v1302
  %1744 = vmatmul.mubr.bf16.gmra.mrb[0].mxu0 %v924
  %v1745 = vpop.f32.mrb[0].mxu0
  %v1746 = vadd.f32 0.0, %v1745
  %v1747 = vpop.f32.mrb[0].mxu0
  %v1748 = vpop.f32.mrb[0].mxu0
  %v1749 = vadd.f32 0.0, %v1748
  %v1750 = vpop.f32.mrb[0].mxu0
  %1751 = vmatprep.mubr.bf16.mxu0 %v1305
  %1752 = vmatmul.mubr.bf16.gmra.mrb[0].mxu0 %v926
  %v1753 = vpop.f32.mrb[0].mxu0
  %v1754 = vadd.f32 0.0, %v1753
  %v1755 = vpop.f32.mrb[0].mxu0
  %v1756 = vpop.f32.mrb[0].mxu0
  %v1757 = vadd.f32 0.0, %v1756
  %v1758 = vpop.f32.mrb[0].mxu0
  %1759 = vmatprep.mubr.bf16.mxu0 %v1308
  %1760 = vmatmul.mubr.bf16.gmra.mrb[0].mxu0 %v928
  %v1761 = vpop.f32.mrb[0].mxu0
  %v1762 = vadd.f32 0.0, %v1761
  %v1763 = vpop.f32.mrb[0].mxu0
  %v1764 = vpop.f32.mrb[0].mxu0
  %v1765 = vadd.f32 0.0, %v1764
  %v1766 = vpop.f32.mrb[0].mxu0
  %1767 = vmatprep.mubr.bf16.mxu0 %v1311
  %1768 = vmatmul.mubr.bf16.gmra.mrb[0].mxu0 %v930
  %v1769 = vpop.f32.mrb[0].mxu0
  %v1770 = vadd.f32 0.0, %v1769
  %v1771 = vpop.f32.mrb[0].mxu0
  %v1772 = vpop.f32.mrb[0].mxu0
  %v1773 = vadd.f32 0.0, %v1772
  %v1774 = vpop.f32.mrb[0].mxu0
  %1775 = vmatprep.mubr.bf16.mxu0 %v1314
  %1776 = vmatmul.mubr.bf16.gmra.mrb[0].mxu0 %v932
  %v1777 = vpop.f32.mrb[0].mxu0
  %v1778 = vadd.f32 0.0, %v1777
  %v1779 = vpop.f32.mrb[0].mxu0
  %v1780 = vpop.f32.mrb[0].mxu0
  %v1781 = vadd.f32 0.0, %v1780
  %v1782 = vpop.f32.mrb[0].mxu0
  %1783 = vmatprep.mubr.bf16.mxu0 %v1317
  %1784 = vmatmul.mubr.bf16.gmra.mrb[0].mxu0 %v934
  %v1785 = vpop.f32.mrb[0].mxu0
  %v1786 = vadd.f32 0.0, %v1785
  %v1787 = vpop.f32.mrb[0].mxu0
  %v1788 = vpop.f32.mrb[0].mxu0
  %v1789 = vadd.f32 0.0, %v1788
  %v1790 = vpop.f32.mrb[0].mxu0
  %1791 = vmatprep.mubr.bf16.mxu0 %v1320
  %1792 = vmatmul.mubr.bf16.gmra.mrb[0].mxu0 %v936
  %v1793 = vpop.f32.mrb[0].mxu0
  %v1794 = vadd.f32 0.0, %v1793
  %v1795 = vpop.f32.mrb[0].mxu0
  %v1796 = vpop.f32.mrb[0].mxu0
  %v1797 = vadd.f32 0.0, %v1796
  %v1798 = vpop.f32.mrb[0].mxu0
  %1799 = vmatprep.mubr.bf16.mxu0 %v1323
  %1800 = vmatmul.mubr.bf16.gmra.mrb[0].mxu0 %v938
  %v1801 = vpop.f32.mrb[0].mxu0
  %v1802 = vadd.f32 0.0, %v1801
  %v1803 = vpop.f32.mrb[0].mxu0
  %v1804 = vpop.f32.mrb[0].mxu0
  %v1805 = vadd.f32 0.0, %v1804
  %v1806 = vpop.f32.mrb[0].mxu0
  %1807 = vmatprep.mubr.bf16.mxu0 %v1326
  %1808 = vmatmul.mubr.bf16.gmra.mrb[0].mxu0 %v940
  %v1809 = vpop.f32.mrb[0].mxu0
  %v1810 = vadd.f32 0.0, %v1809
  %v1811 = vpop.f32.mrb[0].mxu0
  %v1812 = vpop.f32.mrb[0].mxu0
  %v1813 = vadd.f32 0.0, %v1812
  %v1814 = vpop.f32.mrb[0].mxu0
  %1815 = vmatprep.mubr.bf16.mxu0 %v1329
  %1816 = vmatmul.mubr.bf16.gmra.mrb[0].mxu0 %v942
  %v1817 = vpop.f32.mrb[0].mxu0
  %v1818 = vadd.f32 0.0, %v1817
  %v1819 = vpop.f32.mrb[0].mxu0
  %v1820 = vpop.f32.mrb[0].mxu0
  %v1821 = vadd.f32 0.0, %v1820
  %v1822 = vpop.f32.mrb[0].mxu0
  %1823 = vmatprep.mubr.bf16.mxu0 %v1332
  %1824 = vmatmul.mubr.bf16.gmra.mrb[0].mxu0 %v944
  %v1825 = vpop.f32.mrb[0].mxu0
  %v1826 = vadd.f32 0.0, %v1825
  %v1827 = vpop.f32.mrb[0].mxu0
  %v1828 = vpop.f32.mrb[0].mxu0
  %v1829 = vadd.f32 0.0, %v1828
  %v1830 = vpop.f32.mrb[0].mxu0
  %1831 = vmatprep.mubr.bf16.mxu0 %v1335
  %1832 = vmatmul.mubr.bf16.gmra.mrb[0].mxu0 %v946
  %v1833 = vpop.f32.mrb[0].mxu0
  %v1834 = vadd.f32 0.0, %v1833
  %v1835 = vpop.f32.mrb[0].mxu0
  %v1836 = vpop.f32.mrb[0].mxu0
  %v1837 = vadd.f32 0.0, %v1836
  %v1838 = vpop.f32.mrb[0].mxu0
  %1839 = vmatprep.mubr.bf16.mxu0 %v1338
  %1840 = vmatmul.mubr.bf16.gmra.mrb[0].mxu0 %v948
  %v1841 = vpop.f32.mrb[0].mxu0
  %v1842 = vadd.f32 0.0, %v1841
  %v1843 = vpop.f32.mrb[0].mxu0
  %v1844 = vpop.f32.mrb[0].mxu0
  %v1845 = vadd.f32 0.0, %v1844
  %v1846 = vpop.f32.mrb[0].mxu0
  %1847 = vmatprep.mubr.bf16.mxu0 %v1341
  %1848 = vmatmul.mubr.bf16.gmra.mrb[0].mxu0 %v950
  %v1849 = vpop.f32.mrb[0].mxu0
  %v1850 = vadd.f32 0.0, %v1849
  %v1851 = vpop.f32.mrb[0].mxu0
  %v1852 = vpop.f32.mrb[0].mxu0
  %v1853 = vadd.f32 0.0, %v1852
  %v1854 = vpop.f32.mrb[0].mxu0
  %1855 = vmatprep.mubr.bf16.mxu0 %v1344
  %1856 = vmatmul.mubr.bf16.gmra.mrb[0].mxu0 %v952
  %v1857 = vpop.f32.mrb[0].mxu0
  %v1858 = vadd.f32 0.0, %v1857
  %v1859 = vpop.f32.mrb[0].mxu0
  %v1860 = vpop.f32.mrb[0].mxu0
  %v1861 = vadd.f32 0.0, %v1860
  %v1862 = vpop.f32.mrb[0].mxu0
  %1863 = vmatprep.mubr.bf16.mxu0 %v1347
  %1864 = vmatmul.mubr.bf16.gmra.mrb[0].mxu0 %v954
  %v1865 = vpop.f32.mrb[0].mxu0
  %v1866 = vadd.f32 0.0, %v1865
  %v1867 = vpop.f32.mrb[0].mxu0
  %v1868 = vpop.f32.mrb[0].mxu0
  %v1869 = vadd.f32 0.0, %v1868
  %v1870 = vpop.f32.mrb[0].mxu0
  %1871 = vmatprep.mubr.bf16.mxu0 %v1350
  %1872 = vmatmul.mubr.bf16.gmra.mrb[0].mxu0 %v956
  %v1873 = vpop.f32.mrb[0].mxu0
  %v1874 = vadd.f32 0.0, %v1873
  %v1875 = vpop.f32.mrb[0].mxu0
  %v1876 = vpop.f32.mrb[0].mxu0
  %v1877 = vadd.f32 0.0, %v1876
  %v1878 = vpop.f32.mrb[0].mxu0
  %1879 = vmatprep.mubr.bf16.mxu0 %v1353
  %1880 = vmatmul.mubr.bf16.gmra.mrb[0].mxu0 %v958
  %v1881 = vpop.f32.mrb[0].mxu0
  %v1882 = vadd.f32 0.0, %v1881
  %v1883 = vpop.f32.mrb[0].mxu0
  %v1884 = vpop.f32.mrb[0].mxu0
  %v1885 = vadd.f32 0.0, %v1884
  %v1886 = vpop.f32.mrb[0].mxu0
  %1887 = vmatprep.mubr.bf16.mxu0 %v1356
  %1888 = vmatmul.mubr.bf16.gmra.mrb[0].mxu0 %v960
  %v1889 = vpop.f32.mrb[0].mxu0
  %v1890 = vadd.f32 0.0, %v1889
  %v1891 = vpop.f32.mrb[0].mxu0
  %v1892 = vpop.f32.mrb[0].mxu0
  %v1893 = vadd.f32 0.0, %v1892
  %v1894 = vpop.f32.mrb[0].mxu0
  %1895 = vmatprep.mubr.bf16.mxu0 %v1359
  %1896 = vmatmul.mubr.bf16.gmra.mrb[0].mxu0 %v962
  %v1897 = vpop.f32.mrb[0].mxu0
  %v1898 = vadd.f32 0.0, %v1897
  %v1899 = vpop.f32.mrb[0].mxu0
  %v1900 = vpop.f32.mrb[0].mxu0
  %v1901 = vadd.f32 0.0, %v1900
  %v1902 = vpop.f32.mrb[0].mxu0
  %1903 = vmatprep.mubr.bf16.mxu0 %v1362
  %1904 = vmatmul.mubr.bf16.gmra.mrb[0].mxu0 %v964
  %v1905 = vpop.f32.mrb[0].mxu0
  %v1906 = vadd.f32 0.0, %v1905
  %v1907 = vpop.f32.mrb[0].mxu0
  %v1908 = vpop.f32.mrb[0].mxu0
  %v1909 = vadd.f32 0.0, %v1908
  %v1910 = vpop.f32.mrb[0].mxu0
  %1911 = vmatprep.mubr.bf16.mxu0 %v1365
  %1912 = vmatmul.mubr.bf16.gmra.mrb[0].mxu0 %v966
  %v1913 = vpop.f32.mrb[0].mxu0
  %v1914 = vadd.f32 0.0, %v1913
  %v1915 = vpop.f32.mrb[0].mxu0
  %v1916 = vpop.f32.mrb[0].mxu0
  %v1917 = vadd.f32 0.0, %v1916
  %v1918 = vpop.f32.mrb[0].mxu0
  %1919 = vmatprep.mubr.bf16.mxu0 %v1368
  %1920 = vmatmul.mubr.bf16.gmra.mrb[0].mxu0 %v968
  %v1921 = vpop.f32.mrb[0].mxu0
  %v1922 = vadd.f32 0.0, %v1921
  %v1923 = vpop.f32.mrb[0].mxu0
  %v1924 = vpop.f32.mrb[0].mxu0
  %v1925 = vadd.f32 0.0, %v1924
  %v1926 = vpop.f32.mrb[0].mxu0
  %1927 = vmatprep.mubr.bf16.mxu0 %v1371
  %1928 = vmatmul.mubr.bf16.gmra.mrb[0].mxu0 %v970
  %v1929 = vpop.f32.mrb[0].mxu0
  %v1930 = vadd.f32 0.0, %v1929
  %v1931 = vpop.f32.mrb[0].mxu0
  %v1932 = vpop.f32.mrb[0].mxu0
  %v1933 = vadd.f32 0.0, %v1932
  %v1934 = vpop.f32.mrb[0].mxu0
  %1935 = vmatprep.mubr.bf16.mxu0 %v1374
  %1936 = vmatmul.mubr.bf16.gmra.mrb[0].mxu0 %v972
  %v1937 = vpop.f32.mrb[0].mxu0
  %v1938 = vadd.f32 0.0, %v1937
  %v1939 = vpop.f32.mrb[0].mxu0
  %v1940 = vpop.f32.mrb[0].mxu0
  %v1941 = vadd.f32 0.0, %v1940
  %v1942 = vpop.f32.mrb[0].mxu0
  %1943 = vmatprep.mubr.bf16.mxu0 %v1377
  %1944 = vmatmul.mubr.bf16.gmra.mrb[0].mxu0 %v974
  %v1945 = vpop.f32.mrb[0].mxu0
  %v1946 = vadd.f32 0.0, %v1945
  %v1947 = vpop.f32.mrb[0].mxu0
  %v1948 = vpop.f32.mrb[0].mxu0
  %v1949 = vadd.f32 0.0, %v1948
  %v1950 = vpop.f32.mrb[0].mxu0
  %1951 = vmatprep.mubr.bf16.mxu0 %v1380
  %1952 = vmatmul.mubr.bf16.gmra.mrb[0].mxu0 %v976
  %v1953 = vpop.f32.mrb[0].mxu0
  %v1954 = vadd.f32 0.0, %v1953
  %v1955 = vpop.f32.mrb[0].mxu0
  %v1956 = vpop.f32.mrb[0].mxu0
  %v1957 = vadd.f32 0.0, %v1956
  %v1958 = vpop.f32.mrb[0].mxu0
  %1959 = vmatprep.mubr.bf16.mxu0 %v1383
  %1960 = vmatmul.mubr.bf16.gmra.mrb[0].mxu0 %v978
  %v1961 = vpop.f32.mrb[0].mxu0
  %v1962 = vadd.f32 0.0, %v1961
  %v1963 = vpop.f32.mrb[0].mxu0
  %v1964 = vpop.f32.mrb[0].mxu0
  %v1965 = vadd.f32 0.0, %v1964
  %v1966 = vpop.f32.mrb[0].mxu0
  %1967 = vmatprep.mubr.bf16.mxu0 %v1386
  %1968 = vmatmul.mubr.bf16.gmra.mrb[0].mxu0 %v980
  %v1969 = vpop.f32.mrb[0].mxu0
  %v1970 = vadd.f32 0.0, %v1969
  %v1971 = vpop.f32.mrb[0].mxu0
  %v1972 = vpop.f32.mrb[0].mxu0
  %v1973 = vadd.f32 0.0, %v1972
  %v1974 = vpop.f32.mrb[0].mxu0
  %1975 = vmatprep.mubr.bf16.mxu0 %v1389
  %1976 = vmatmul.mubr.bf16.gmra.mrb[0].mxu0 %v982
  %v1977 = vpop.f32.mrb[0].mxu0
  %v1978 = vadd.f32 0.0, %v1977
  %v1979 = vpop.f32.mrb[0].mxu0
  %v1980 = vpop.f32.mrb[0].mxu0
  %v1981 = vadd.f32 0.0, %v1980
  %v1982 = vpop.f32.mrb[0].mxu0
  %1983 = vmatprep.mubr.bf16.mxu0 %v1392
  %1984 = vmatmul.mubr.bf16.gmra.mrb[0].mxu0 %v984
  %v1985 = vpop.f32.mrb[0].mxu0
  %v1986 = vadd.f32 0.0, %v1985
  %v1987 = vpop.f32.mrb[0].mxu0
  %v1988 = vpop.f32.mrb[0].mxu0
  %v1989 = vadd.f32 0.0, %v1988
  %v1990 = vpop.f32.mrb[0].mxu0
  %1991 = vmatprep.mubr.bf16.mxu0 %v1395
  %1992 = vmatmul.mubr.bf16.gmra.mrb[0].mxu0 %v986
  %v1993 = vpop.f32.mrb[0].mxu0
  %v1994 = vadd.f32 0.0, %v1993
  %v1995 = vpop.f32.mrb[0].mxu0
  %v1996 = vpop.f32.mrb[0].mxu0
  %v1997 = vadd.f32 0.0, %v1996
  %v1998 = vpop.f32.mrb[0].mxu0
  %1999 = vmatprep.mubr.bf16.mxu0 %v1398
  %2000 = vmatmul.mubr.bf16.gmra.mrb[0].mxu0 %v988
  %v2001 = vpop.f32.mrb[0].mxu0
  %v2002 = vadd.f32 0.0, %v2001
  %v2003 = vpop.f32.mrb[0].mxu0
  %v2004 = vpop.f32.mrb[0].mxu0
  %v2005 = vadd.f32 0.0, %v2004
  %v2006 = vpop.f32.mrb[0].mxu0
  %2007 = vmatprep.mubr.bf16.mxu0 %v1401
  %2008 = vmatmul.mubr.bf16.gmra.mrb[0].mxu0 %v990
  %v2009 = vpop.f32.mrb[0].mxu0
  %v2010 = vadd.f32 0.0, %v2009
  %v2011 = vpop.f32.mrb[0].mxu0
  %v2012 = vpop.f32.mrb[0].mxu0
  %v2013 = vadd.f32 0.0, %v2012
  %v2014 = vpop.f32.mrb[0].mxu0
  %2015 = vmatprep.mubr.bf16.mxu0 %v1404
  %2016 = vmatmul.mubr.bf16.gmra.mrb[0].mxu0 %v992
  %v2017 = vpop.f32.mrb[0].mxu0
  %v2018 = vadd.f32 0.0, %v2017
  %v2019 = vpop.f32.mrb[0].mxu0
  %v2020 = vpop.f32.mrb[0].mxu0
  %v2021 = vadd.f32 0.0, %v2020
  %v2022 = vpop.f32.mrb[0].mxu0
  %2023 = vmatprep.mubr.bf16.mxu0 %v1407
  %2024 = vmatmul.mubr.bf16.gmra.mrb[0].mxu0 %v994
  %v2025 = vpop.f32.mrb[0].mxu0
  %v2026 = vadd.f32 0.0, %v2025
  %v2027 = vpop.f32.mrb[0].mxu0
  %v2028 = vpop.f32.mrb[0].mxu0
  %v2029 = vadd.f32 0.0, %v2028
  %v2030 = vpop.f32.mrb[0].mxu0
  %2031 = vmatprep.mubr.bf16.mxu0 %v1410
  %2032 = vmatmul.mubr.bf16.gmra.mrb[0].mxu0 %v996
  %v2033 = vpop.f32.mrb[0].mxu0
  %v2034 = vadd.f32 0.0, %v2033
  %v2035 = vpop.f32.mrb[0].mxu0
  %v2036 = vpop.f32.mrb[0].mxu0
  %v2037 = vadd.f32 0.0, %v2036
  %v2038 = vpop.f32.mrb[0].mxu0
  %2039 = vmatprep.mubr.bf16.mxu0 %v1413
  %2040 = vmatmul.mubr.bf16.gmra.mrb[0].mxu0 %v998
  %v2041 = vpop.f32.mrb[0].mxu0
  %v2042 = vadd.f32 0.0, %v2041
  %v2043 = vpop.f32.mrb[0].mxu0
  %v2044 = vpop.f32.mrb[0].mxu0
  %v2045 = vadd.f32 0.0, %v2044
  %v2046 = vpop.f32.mrb[0].mxu0
  %2047 = vmatprep.mubr.bf16.mxu0 %v1416
  %2048 = vmatmul.mubr.bf16.gmra.mrb[0].mxu0 %v1000
  %v2049 = vpop.f32.mrb[0].mxu0
  %v2050 = vadd.f32 0.0, %v2049
  %v2051 = vpop.f32.mrb[0].mxu0
  %v2052 = vpop.f32.mrb[0].mxu0
  %v2053 = vadd.f32 0.0, %v2052
  %v2054 = vpop.f32.mrb[0].mxu0
  %2055 = vmatprep.mubr.bf16.mxu0 %v1419
  %2056 = vmatmul.mubr.bf16.gmra.mrb[0].mxu0 %v1002
  %v2057 = vpop.f32.mrb[0].mxu0
  %v2058 = vadd.f32 0.0, %v2057
  %v2059 = vpop.f32.mrb[0].mxu0
  %v2060 = vpop.f32.mrb[0].mxu0
  %v2061 = vadd.f32 0.0, %v2060
  %v2062 = vpop.f32.mrb[0].mxu0
  %2063 = vmatprep.mubr.bf16.mxu0 %v1422
  %2064 = vmatmul.mubr.bf16.gmra.mrb[0].mxu0 %v1004
  %v2065 = vpop.f32.mrb[0].mxu0
  %v2066 = vadd.f32 0.0, %v2065
  %v2067 = vpop.f32.mrb[0].mxu0
  %v2068 = vpop.f32.mrb[0].mxu0
  %v2069 = vadd.f32 0.0, %v2068
  %v2070 = vpop.f32.mrb[0].mxu0
  %2071 = vmatprep.mubr.bf16.mxu0 %v1425
  %2072 = vmatmul.mubr.bf16.gmra.mrb[0].mxu0 %v1006
  %v2073 = vpop.f32.mrb[0].mxu0
  %v2074 = vadd.f32 0.0, %v2073
  %v2075 = vpop.f32.mrb[0].mxu0
  %v2076 = vpop.f32.mrb[0].mxu0
  %v2077 = vadd.f32 0.0, %v2076
  %v2078 = vpop.f32.mrb[0].mxu0
  %2079 = vmatprep.mubr.bf16.mxu0 %v1428
  %2080 = vmatmul.mubr.bf16.gmra.mrb[0].mxu0 %v1008
  %v2081 = vpop.f32.mrb[0].mxu0
  %v2082 = vadd.f32 0.0, %v2081
  %v2083 = vpop.f32.mrb[0].mxu0
  %v2084 = vpop.f32.mrb[0].mxu0
  %v2085 = vadd.f32 0.0, %v2084
  %v2086 = vpop.f32.mrb[0].mxu0
  %2087 = vmatprep.mubr.bf16.mxu0 %v1431
  %2088 = vmatmul.mubr.bf16.gmra.mrb[0].mxu0 %v1010
  %v2089 = vpop.f32.mrb[0].mxu0
  %v2090 = vadd.f32 0.0, %v2089
  %v2091 = vpop.f32.mrb[0].mxu0
  %v2092 = vpop.f32.mrb[0].mxu0
  %v2093 = vadd.f32 0.0, %v2092
  %v2094 = vpop.f32.mrb[0].mxu0
  %2095 = vmatprep.mubr.bf16.mxu0 %v1434
  %2096 = vmatmul.mubr.bf16.gmra.mrb[0].mxu0 %v1012
  %v2097 = vpop.f32.mrb[0].mxu0
  %v2098 = vadd.f32 0.0, %v2097
  %v2099 = vpop.f32.mrb[0].mxu0
  %v2100 = vpop.f32.mrb[0].mxu0
  %v2101 = vadd.f32 0.0, %v2100
  %v2102 = vpop.f32.mrb[0].mxu0
  %2103 = vmatprep.mubr.bf16.mxu0 %v1437
  %2104 = vmatmul.mubr.bf16.gmra.mrb[0].mxu0 %v1014
  %v2105 = vpop.f32.mrb[0].mxu0
  %v2106 = vadd.f32 0.0, %v2105
  %v2107 = vpop.f32.mrb[0].mxu0
  %v2108 = vpop.f32.mrb[0].mxu0
  %v2109 = vadd.f32 0.0, %v2108
  %v2110 = vpop.f32.mrb[0].mxu0
  %2111 = vmatprep.mubr.bf16.mxu0 %v1440
  %2112 = vmatmul.mubr.bf16.gmra.mrb[0].mxu0 %v1016
  %v2113 = vpop.f32.mrb[0].mxu0
  %v2114 = vadd.f32 0.0, %v2113
  %v2115 = vpop.f32.mrb[0].mxu0
  %v2116 = vpop.f32.mrb[0].mxu0
  %v2117 = vadd.f32 0.0, %v2116
  %v2118 = vpop.f32.mrb[0].mxu0
  %2119 = vmatprep.mubr.bf16.mxu0 %v1443
  %2120 = vmatmul.mubr.bf16.gmra.mrb[0].mxu0 %v1018
  %v2121 = vpop.f32.mrb[0].mxu0
  %v2122 = vadd.f32 0.0, %v2121
  %v2123 = vpop.f32.mrb[0].mxu0
  %v2124 = vpop.f32.mrb[0].mxu0
  %v2125 = vadd.f32 0.0, %v2124
  %v2126 = vpop.f32.mrb[0].mxu0
  %2127 = vmatprep.mubr.bf16.mxu0 %v1446
  %2128 = vmatmul.mubr.bf16.gmra.mrb[0].mxu0 %v1020
  %v2129 = vpop.f32.mrb[0].mxu0
  %v2130 = vadd.f32 0.0, %v2129
  %v2131 = vpop.f32.mrb[0].mxu0
  %v2132 = vpop.f32.mrb[0].mxu0
  %v2133 = vadd.f32 0.0, %v2132
  %v2134 = vpop.f32.mrb[0].mxu0
  %2135 = vmatprep.mubr.bf16.mxu0 %v1449
  %2136 = vmatmul.mubr.bf16.gmra.mrb[0].mxu0 %v1022
  %v2137 = vpop.f32.mrb[0].mxu0
  %v2138 = vadd.f32 0.0, %v2137
  %v2139 = vpop.f32.mrb[0].mxu0
  %v2140 = vpop.f32.mrb[0].mxu0
  %v2141 = vadd.f32 0.0, %v2140
  %v2142 = vpop.f32.mrb[0].mxu0
  %2143 = vmatprep.mubr.bf16.mxu0 %v1452
  %2144 = vmatmul.mubr.bf16.gmra.mrb[0].mxu0 %v1024
  %v2145 = vpop.f32.mrb[0].mxu0
  %v2146 = vadd.f32 0.0, %v2145
  %v2147 = vpop.f32.mrb[0].mxu0
  %v2148 = vpop.f32.mrb[0].mxu0
  %v2149 = vadd.f32 0.0, %v2148
  %v2150 = vpop.f32.mrb[0].mxu0
  %2151 = vmatprep.mubr.bf16.mxu0 %v1455
  %2152 = vmatmul.mubr.bf16.gmra.mrb[0].mxu0 %v1026
  %v2153 = vpop.f32.mrb[0].mxu0
  %v2154 = vadd.f32 0.0, %v2153
  %v2155 = vpop.f32.mrb[0].mxu0
  %v2156 = vpop.f32.mrb[0].mxu0
  %v2157 = vadd.f32 0.0, %v2156
  %v2158 = vpop.f32.mrb[0].mxu0
  %2159 = vmatprep.mubr.bf16.mxu0 %v1458
  %2160 = vmatmul.mubr.bf16.gmra.mrb[0].mxu0 %v1028
  %v2161 = vpop.f32.mrb[0].mxu0
  %v2162 = vadd.f32 0.0, %v2161
  %v2163 = vpop.f32.mrb[0].mxu0
  %v2164 = vpop.f32.mrb[0].mxu0
  %v2165 = vadd.f32 0.0, %v2164
  %v2166 = vpop.f32.mrb[0].mxu0
  %2167 = vmatprep.mubr.bf16.mxu0 %v1461
  %2168 = vmatmul.mubr.bf16.gmra.mrb[0].mxu0 %v1030
  %v2169 = vpop.f32.mrb[0].mxu0
  %v2170 = vadd.f32 0.0, %v2169
  %v2171 = vpop.f32.mrb[0].mxu0
  %v2172 = vpop.f32.mrb[0].mxu0
  %v2173 = vadd.f32 0.0, %v2172
  %v2174 = vpop.f32.mrb[0].mxu0
  %2175 = vmatprep.mubr.bf16.mxu0 %v1464
  %2176 = vmatmul.mubr.bf16.gmra.mrb[0].mxu0 %v1032
  %v2177 = vpop.f32.mrb[0].mxu0
  %v2178 = vadd.f32 0.0, %v2177
  %v2179 = vpop.f32.mrb[0].mxu0
  %v2180 = vpop.f32.mrb[0].mxu0
  %v2181 = vadd.f32 0.0, %v2180
  %v2182 = vpop.f32.mrb[0].mxu0
  %2183 = vmatprep.mubr.bf16.mxu0 %v1467
  %2184 = vmatmul.mubr.bf16.gmra.mrb[0].mxu0 %v1034
  %v2185 = vpop.f32.mrb[0].mxu0
  %v2186 = vadd.f32 0.0, %v2185
  %v2187 = vpop.f32.mrb[0].mxu0
  %v2188 = vpop.f32.mrb[0].mxu0
  %v2189 = vadd.f32 0.0, %v2188
  %v2190 = vpop.f32.mrb[0].mxu0
  %2191 = vmatprep.mubr.bf16.mxu0 %v1470
  %2192 = vmatmul.mubr.bf16.gmra.mrb[0].mxu0 %v1036
  %v2193 = vpop.f32.mrb[0].mxu0
  %v2194 = vadd.f32 0.0, %v2193
  %v2195 = vpop.f32.mrb[0].mxu0
  %v2196 = vpop.f32.mrb[0].mxu0
  %v2197 = vadd.f32 0.0, %v2196
  %v2198 = vpop.f32.mrb[0].mxu0
  %2199 = vmatprep.mubr.bf16.mxu0 %v1473
  %2200 = vmatmul.mubr.bf16.gmra.mrb[0].mxu0 %v1038
  %v2201 = vpop.f32.mrb[0].mxu0
  %v2202 = vadd.f32 0.0, %v2201
  %v2203 = vpop.f32.mrb[0].mxu0
  %v2204 = vpop.f32.mrb[0].mxu0
  %v2205 = vadd.f32 0.0, %v2204
  %v2206 = vpop.f32.mrb[0].mxu0
  %2207 = vmatprep.mubr.bf16.mxu0 %v1476
  %2208 = vmatmul.mubr.bf16.gmra.mrb[0].mxu0 %v1040
  %v2209 = vpop.f32.mrb[0].mxu0
  %v2210 = vadd.f32 0.0, %v2209
  %v2211 = vpop.f32.mrb[0].mxu0
  %v2212 = vpop.f32.mrb[0].mxu0
  %v2213 = vadd.f32 0.0, %v2212
  %v2214 = vpop.f32.mrb[0].mxu0
  %2215 = vmatprep.mubr.bf16.mxu0 %v1479
  %2216 = vmatmul.mubr.bf16.gmra.mrb[0].mxu0 %v1042
  %v2217 = vpop.f32.mrb[0].mxu0
  %v2218 = vadd.f32 0.0, %v2217
  %v2219 = vpop.f32.mrb[0].mxu0
  %v2220 = vpop.f32.mrb[0].mxu0
  %v2221 = vadd.f32 0.0, %v2220
  %v2222 = vpop.f32.mrb[0].mxu0
  %2223 = vmatprep.mubr.bf16.mxu0 %v1482
  %2224 = vmatmul.mubr.bf16.gmra.mrb[0].mxu0 %v1044
  %v2225 = vpop.f32.mrb[0].mxu0
  %v2226 = vadd.f32 0.0, %v2225
  %v2227 = vpop.f32.mrb[0].mxu0
  %v2228 = vpop.f32.mrb[0].mxu0
  %v2229 = vadd.f32 0.0, %v2228
  %v2230 = vpop.f32.mrb[0].mxu0
  %2231 = vmatprep.mubr.bf16.mxu0 %v1485
  %2232 = vmatmul.mubr.bf16.gmra.mrb[0].mxu0 %v1046
  %v2233 = vpop.f32.mrb[0].mxu0
  %v2234 = vadd.f32 0.0, %v2233
  %v2235 = vpop.f32.mrb[0].mxu0
  %v2236 = vpop.f32.mrb[0].mxu0
  %v2237 = vadd.f32 0.0, %v2236
  %v2238 = vpop.f32.mrb[0].mxu0
  %2239 = vmatprep.mubr.bf16.mxu0 %v1488
  %2240 = vmatmul.mubr.bf16.gmra.mrb[0].mxu0 %v1048
  %v2241 = vpop.f32.mrb[0].mxu0
  %v2242 = vadd.f32 0.0, %v2241
  %v2243 = vpop.f32.mrb[0].mxu0
  %v2244 = vpop.f32.mrb[0].mxu0
  %v2245 = vadd.f32 0.0, %v2244
  %v2246 = vpop.f32.mrb[0].mxu0
  %2247 = vmatprep.mubr.bf16.mxu0 %v1491
  %2248 = vmatmul.mubr.bf16.gmra.mrb[0].mxu0 %v1050
  %v2249 = vpop.f32.mrb[0].mxu0
  %v2250 = vadd.f32 0.0, %v2249
  %v2251 = vpop.f32.mrb[0].mxu0
  %v2252 = vpop.f32.mrb[0].mxu0
  %v2253 = vadd.f32 0.0, %v2252
  %v2254 = vpop.f32.mrb[0].mxu0
  %2255 = vmatprep.mubr.bf16.mxu0 %v1494
  %2256 = vmatmul.mubr.bf16.gmra.mrb[0].mxu0 %v1052
  %v2257 = vpop.f32.mrb[0].mxu0
  %v2258 = vadd.f32 0.0, %v2257
  %v2259 = vpop.f32.mrb[0].mxu0
  %v2260 = vpop.f32.mrb[0].mxu0
  %v2261 = vadd.f32 0.0, %v2260
  %v2262 = vpop.f32.mrb[0].mxu0
  %2263 = vmatprep.mubr.bf16.mxu0 %v1497
  %2264 = vmatmul.mubr.bf16.gmra.mrb[0].mxu0 %v1054
  %v2265 = vpop.f32.mrb[0].mxu0
  %v2266 = vadd.f32 0.0, %v2265
  %v2267 = vpop.f32.mrb[0].mxu0
  %v2268 = vpop.f32.mrb[0].mxu0
  %v2269 = vadd.f32 0.0, %v2268
  %v2270 = vpop.f32.mrb[0].mxu0
  %2271 = vmatprep.mubr.bf16.mxu0 %v1500
  %2272 = vmatmul.mubr.bf16.gmra.mrb[0].mxu0 %v1056
  %v2273 = vpop.f32.mrb[0].mxu0
  %v2274 = vadd.f32 0.0, %v2273
  %v2275 = vpop.f32.mrb[0].mxu0
  %v2276 = vpop.f32.mrb[0].mxu0
  %v2277 = vadd.f32 0.0, %v2276
  %v2278 = vpop.f32.mrb[0].mxu0
  %2279 = vmatprep.mubr.bf16.mxu0 %v1503
  %2280 = vmatmul.mubr.bf16.gmra.mrb[0].mxu0 %v1058
  %v2281 = vpop.f32.mrb[0].mxu0
  %v2282 = vadd.f32 0.0, %v2281
  %v2283 = vpop.f32.mrb[0].mxu0
  %v2284 = vpop.f32.mrb[0].mxu0
  %v2285 = vadd.f32 0.0, %v2284
  %v2286 = vpop.f32.mrb[0].mxu0
  %2287 = vmatprep.mubr.bf16.mxu0 %v1506
  %2288 = vmatmul.mubr.bf16.gmra.mrb[0].mxu0 %v1060
  %v2289 = vpop.f32.mrb[0].mxu0
  %v2290 = vadd.f32 0.0, %v2289
  %v2291 = vpop.f32.mrb[0].mxu0
  %v2292 = vpop.f32.mrb[0].mxu0
  %v2293 = vadd.f32 0.0, %v2292
  %v2294 = vpop.f32.mrb[0].mxu0
  %2295 = vmatprep.mubr.bf16.mxu0 %v1509
  %2296 = vmatmul.mubr.bf16.gmra.mrb[0].mxu0 %v1062
  %v2297 = vpop.f32.mrb[0].mxu0
  %v2298 = vadd.f32 0.0, %v2297
  %v2299 = vpop.f32.mrb[0].mxu0
  %v2300 = vpop.f32.mrb[0].mxu0
  %v2301 = vadd.f32 0.0, %v2300
  %v2302 = vpop.f32.mrb[0].mxu0
  %2303 = vmatprep.mubr.bf16.mxu0 %v1512
  %2304 = vmatmul.mubr.bf16.gmra.mrb[0].mxu0 %v1064
  %v2305 = vpop.f32.mrb[0].mxu0
  %v2306 = vadd.f32 0.0, %v2305
  %v2307 = vpop.f32.mrb[0].mxu0
  %v2308 = vpop.f32.mrb[0].mxu0
  %v2309 = vadd.f32 0.0, %v2308
  %v2310 = vpop.f32.mrb[0].mxu0
  %2311 = vmatprep.mubr.bf16.mxu0 %v1515
  %2312 = vmatmul.mubr.bf16.gmra.mrb[0].mxu0 %v1066
  %v2313 = vpop.f32.mrb[0].mxu0
  %v2314 = vadd.f32 0.0, %v2313
  %v2315 = vpop.f32.mrb[0].mxu0
  %v2316 = vpop.f32.mrb[0].mxu0
  %v2317 = vadd.f32 0.0, %v2316
  %v2318 = vpop.f32.mrb[0].mxu0
  %2319 = vmatprep.mubr.bf16.mxu0 %v1518
  %2320 = vmatmul.mubr.bf16.gmra.mrb[0].mxu0 %v1068
  %v2321 = vpop.f32.mrb[0].mxu0
  %v2322 = vadd.f32 0.0, %v2321
  %v2323 = vpop.f32.mrb[0].mxu0
  %v2324 = vpop.f32.mrb[0].mxu0
  %v2325 = vadd.f32 0.0, %v2324
  %v2326 = vpop.f32.mrb[0].mxu0
  %2327 = vmatprep.mubr.bf16.mxu0 %v1521
  %2328 = vmatmul.mubr.bf16.gmra.mrb[0].mxu0 %v1070
  %v2329 = vpop.f32.mrb[0].mxu0
  %v2330 = vadd.f32 0.0, %v2329
  %v2331 = vpop.f32.mrb[0].mxu0
  %v2332 = vpop.f32.mrb[0].mxu0
  %v2333 = vadd.f32 0.0, %v2332
  %v2334 = vpop.f32.mrb[0].mxu0
  %2335 = vmatprep.mubr.bf16.mxu0 %v1524
  %2336 = vmatmul.mubr.bf16.gmra.mrb[0].mxu0 %v1072
  %v2337 = vpop.f32.mrb[0].mxu0
  %v2338 = vadd.f32 0.0, %v2337
  %v2339 = vpop.f32.mrb[0].mxu0
  %v2340 = vpop.f32.mrb[0].mxu0
  %v2341 = vadd.f32 0.0, %v2340
  %v2342 = vpop.f32.mrb[0].mxu0
  %2343 = vmatprep.mubr.bf16.mxu0 %v1527
  %2344 = vmatmul.mubr.bf16.gmra.mrb[0].mxu0 %v1074
  %v2345 = vpop.f32.mrb[0].mxu0
  %v2346 = vadd.f32 0.0, %v2345
  %v2347 = vpop.f32.mrb[0].mxu0
  %v2348 = vpop.f32.mrb[0].mxu0
  %v2349 = vadd.f32 0.0, %v2348
  %v2350 = vpop.f32.mrb[0].mxu0
  %2351 = vmatprep.mubr.bf16.mxu0 %v1530
  %2352 = vmatmul.mubr.bf16.gmra.mrb[0].mxu0 %v1076
  %v2353 = vpop.f32.mrb[0].mxu0
  %v2354 = vadd.f32 0.0, %v2353
  %v2355 = vpop.f32.mrb[0].mxu0
  %v2356 = vpop.f32.mrb[0].mxu0
  %v2357 = vadd.f32 0.0, %v2356
  %v2358 = vpop.f32.mrb[0].mxu0
  %2359 = vmatprep.mubr.bf16.mxu0 %v1533
  %2360 = vmatmul.mubr.bf16.gmra.mrb[0].mxu0 %v1078
  %v2361 = vpop.f32.mrb[0].mxu0
  %v2362 = vadd.f32 0.0, %v2361
  %v2363 = vpop.f32.mrb[0].mxu0
  %v2364 = vpop.f32.mrb[0].mxu0
  %v2365 = vadd.f32 0.0, %v2364
  %v2366 = vpop.f32.mrb[0].mxu0
  %2367 = vdwg.mxu0
  %v2368 = vmax.f32 %v1570, %v1770
  %v2369 = vmax.f32 %v1573, %v1773
  %v2370 = vmax.f32 %v1578, %v1778
  %v2371 = vmax.f32 %v1581, %v1781
  %v2372 = vmax.f32 %v1586, %v1786
  %v2373 = vmax.f32 %v1589, %v1789
  %v2374 = vmax.f32 %v1594, %v1794
  %v2375 = vmax.f32 %v1597, %v1797
  %v2376 = vmax.f32 %v1602, %v1802
  %v2377 = vmax.f32 %v1605, %v1805
  %v2378 = vmax.f32 %v1610, %v1810
  %v2379 = vmax.f32 %v1613, %v1813
  %v2380 = vmax.f32 %v1618, %v1818
  %v2381 = vmax.f32 %v1621, %v1821
  %v2382 = vmax.f32 %v1626, %v1826
  %v2383 = vmax.f32 %v1629, %v1829
  %v2384 = vmax.f32 %v1634, %v1834
  %v2385 = vmax.f32 %v1637, %v1837
  %v2386 = vmax.f32 %v1642, %v1842
  %v2387 = vmax.f32 %v1645, %v1845
  %v2388 = vmax.f32 %v1650, %v1850
  %v2389 = vmax.f32 %v1653, %v1853
  %v2390 = vmax.f32 %v1658, %v1858
  %v2391 = vmax.f32 %v1661, %v1861
  %v2392 = vmax.f32 %v1666, %v1866
  %v2393 = vmax.f32 %v1669, %v1869
  %v2394 = vmax.f32 %v1674, %v1874
  %v2395 = vmax.f32 %v1677, %v1877
  %v2396 = vmax.f32 %v1682, %v1882
  %v2397 = vmax.f32 %v1685, %v1885
  %v2398 = vmax.f32 %v1690, %v1890
  %v2399 = vmax.f32 %v1693, %v1893
  %v2400 = vmax.f32 %v1698, %v1898
  %v2401 = vmax.f32 %v1701, %v1901
  %v2402 = vmax.f32 %v1706, %v1906
  %v2403 = vmax.f32 %v1709, %v1909
  %v2404 = vmax.f32 %v1714, %v1914
  %v2405 = vmax.f32 %v1717, %v1917
  %v2406 = vmax.f32 %v1722, %v1922
  %v2407 = vmax.f32 %v1725, %v1925
  %v2408 = vmax.f32 %v1730, %v1930
  %v2409 = vmax.f32 %v1733, %v1933
  %v2410 = vmax.f32 %v1738, %v1938
  %v2411 = vmax.f32 %v1741, %v1941
  %v2412 = vmax.f32 %v1746, %v1946
  %v2413 = vmax.f32 %v1749, %v1949
  %v2414 = vmax.f32 %v1754, %v1954
  %v2415 = vmax.f32 %v1757, %v1957
  %v2416 = vmax.f32 %v1762, %v1962
  %v2417 = vmax.f32 %v1765, %v1965
  %v2418 = vmax.f32 %v1970, %v2170
  %v2419 = vmax.f32 %v1973, %v2173
  %v2420 = vmax.f32 %v1978, %v2178
  %v2421 = vmax.f32 %v1981, %v2181
  %v2422 = vmax.f32 %v1986, %v2186
  %v2423 = vmax.f32 %v1989, %v2189
  %v2424 = vmax.f32 %v1994, %v2194
  %v2425 = vmax.f32 %v1997, %v2197
  %v2426 = vmax.f32 %v2002, %v2202
  %v2427 = vmax.f32 %v2005, %v2205
  %v2428 = vmax.f32 %v2010, %v2210
  %v2429 = vmax.f32 %v2013, %v2213
  %v2430 = vmax.f32 %v2018, %v2218
  %v2431 = vmax.f32 %v2021, %v2221
  %v2432 = vmax.f32 %v2026, %v2226
  %v2433 = vmax.f32 %v2029, %v2229
  %v2434 = vmax.f32 %v2034, %v2234
  %v2435 = vmax.f32 %v2037, %v2237
  %v2436 = vmax.f32 %v2042, %v2242
  %v2437 = vmax.f32 %v2045, %v2245
  %v2438 = vmax.f32 %v2050, %v2250
  %v2439 = vmax.f32 %v2053, %v2253
  %v2440 = vmax.f32 %v2058, %v2258
  %v2441 = vmax.f32 %v2061, %v2261
  %v2442 = vmax.f32 %v2066, %v2266
  %v2443 = vmax.f32 %v2069, %v2269
  %v2444 = vmax.f32 %v2074, %v2274
  %v2445 = vmax.f32 %v2077, %v2277
  %v2446 = vmax.f32 %v2082, %v2282
  %v2447 = vmax.f32 %v2085, %v2285
  %v2448 = vmax.f32 %v2090, %v2290
  %v2449 = vmax.f32 %v2093, %v2293
  %v2450 = vmax.f32 %v2098, %v2298
  %v2451 = vmax.f32 %v2101, %v2301
  %v2452 = vmax.f32 %v2106, %v2306
  %v2453 = vmax.f32 %v2109, %v2309
  %v2454 = vmax.f32 %v2114, %v2314
  %v2455 = vmax.f32 %v2117, %v2317
  %v2456 = vmax.f32 %v2122, %v2322
  %v2457 = vmax.f32 %v2125, %v2325
  %v2458 = vmax.f32 %v2130, %v2330
  %v2459 = vmax.f32 %v2133, %v2333
  %v2460 = vmax.f32 %v2138, %v2338
  %v2461 = vmax.f32 %v2141, %v2341
  %v2462 = vmax.f32 %v2146, %v2346
  %v2463 = vmax.f32 %v2149, %v2349
  %v2464 = vmax.f32 %v2154, %v2354
  %v2465 = vmax.f32 %v2157, %v2357
  %v2466 = vmax.f32 %v2162, %v2362
  %v2467 = vmax.f32 %v2165, %v2365
  %v2468 = vmax.f32 %v2368, %v2418
  %v2469 = vmax.f32 %v2369, %v2419
  %v2470 = vmax.f32 %v2370, %v2420
  %v2471 = vmax.f32 %v2371, %v2421
  %v2472 = vmax.f32 %v2372, %v2422
  %v2473 = vmax.f32 %v2373, %v2423
  %v2474 = vmax.f32 %v2374, %v2424
  %v2475 = vmax.f32 %v2375, %v2425
  %v2476 = vmax.f32 %v2376, %v2426
  %v2477 = vmax.f32 %v2377, %v2427
  %v2478 = vmax.f32 %v2378, %v2428
  %v2479 = vmax.f32 %v2379, %v2429
  %v2480 = vmax.f32 %v2380, %v2430
  %v2481 = vmax.f32 %v2381, %v2431
  %v2482 = vmax.f32 %v2382, %v2432
  %v2483 = vmax.f32 %v2383, %v2433
  %v2484 = vmax.f32 %v2384, %v2434
  %v2485 = vmax.f32 %v2385, %v2435
  %v2486 = vmax.f32 %v2386, %v2436
  %v2487 = vmax.f32 %v2387, %v2437
  %v2488 = vmax.f32 %v2388, %v2438
  %v2489 = vmax.f32 %v2389, %v2439
  %v2490 = vmax.f32 %v2390, %v2440
  %v2491 = vmax.f32 %v2391, %v2441
  %v2492 = vmax.f32 %v2392, %v2442
  %v2493 = vmax.f32 %v2393, %v2443
  %v2494 = vmax.f32 %v2394, %v2444
  %v2495 = vmax.f32 %v2395, %v2445
  %v2496 = vmax.f32 %v2396, %v2446
  %v2497 = vmax.f32 %v2397, %v2447
  %v2498 = vmax.f32 %v2398, %v2448
  %v2499 = vmax.f32 %v2399, %v2449
  %v2500 = vmax.f32 %v2400, %v2450
  %v2501 = vmax.f32 %v2401, %v2451
  %v2502 = vmax.f32 %v2402, %v2452
  %v2503 = vmax.f32 %v2403, %v2453
  %v2504 = vmax.f32 %v2404, %v2454
  %v2505 = vmax.f32 %v2405, %v2455
  %v2506 = vmax.f32 %v2406, %v2456
  %v2507 = vmax.f32 %v2407, %v2457
  %v2508 = vmax.f32 %v2408, %v2458
  %v2509 = vmax.f32 %v2409, %v2459
  %v2510 = vmax.f32 %v2410, %v2460
  %v2511 = vmax.f32 %v2411, %v2461
  %v2512 = vmax.f32 %v2412, %v2462
  %v2513 = vmax.f32 %v2413, %v2463
  %v2514 = vmax.f32 %v2414, %v2464
  %v2515 = vmax.f32 %v2415, %v2465
  %v2516 = vmax.f32 %v2416, %v2466
  %v2517 = vmax.f32 %v2417, %v2467
  %v2518 = vld [vmem:[%s2] sm:$0x1]
  %v2520 = vlaneseq
  %v2521 = vshrl.u32 %v2520, 7
  %v2522 = vsub.s32 0, %v2521
  %v2523 = vrot.slane %v2518, %v2522
  %v2525 = vadd.f32 %v2468, %v2523
  %v2526 = vadd.f32 %v2469, %v2523
  %v2527 = vadd.f32 %v2470, %v2523
  %v2528 = vadd.f32 %v2471, %v2523
  %v2529 = vadd.f32 %v2472, %v2523
  %v2530 = vadd.f32 %v2473, %v2523
  %v2531 = vadd.f32 %v2474, %v2523
  %v2532 = vadd.f32 %v2475, %v2523
  %v2533 = vadd.f32 %v2476, %v2523
  %v2534 = vadd.f32 %v2477, %v2523
  %v2535 = vadd.f32 %v2478, %v2523
  %v2536 = vadd.f32 %v2479, %v2523
  %v2537 = vadd.f32 %v2480, %v2523
  %v2538 = vadd.f32 %v2481, %v2523
  %v2539 = vadd.f32 %v2482, %v2523
  %v2540 = vadd.f32 %v2483, %v2523
  %v2541 = vadd.f32 %v2484, %v2523
  %v2542 = vadd.f32 %v2485, %v2523
  %v2543 = vadd.f32 %v2486, %v2523
  %v2544 = vadd.f32 %v2487, %v2523
  %v2545 = vadd.f32 %v2488, %v2523
  %v2546 = vadd.f32 %v2489, %v2523
  %v2547 = vadd.f32 %v2490, %v2523
  %v2548 = vadd.f32 %v2491, %v2523
  %v2549 = vadd.f32 %v2492, %v2523
  %v2550 = vadd.f32 %v2493, %v2523
  %v2551 = vadd.f32 %v2494, %v2523
  %v2552 = vadd.f32 %v2495, %v2523
  %v2553 = vadd.f32 %v2496, %v2523
  %v2554 = vadd.f32 %v2497, %v2523
  %v2555 = vadd.f32 %v2498, %v2523
  %v2556 = vadd.f32 %v2499, %v2523
  %v2557 = vadd.f32 %v2500, %v2523
  %v2558 = vadd.f32 %v2501, %v2523
  %v2559 = vadd.f32 %v2502, %v2523
  %v2560 = vadd.f32 %v2503, %v2523
  %v2561 = vadd.f32 %v2504, %v2523
  %v2562 = vadd.f32 %v2505, %v2523
  %v2563 = vadd.f32 %v2506, %v2523
  %v2564 = vadd.f32 %v2507, %v2523
  %v2565 = vadd.f32 %v2508, %v2523
  %v2566 = vadd.f32 %v2509, %v2523
  %v2567 = vadd.f32 %v2510, %v2523
  %v2568 = vadd.f32 %v2511, %v2523
  %v2569 = vadd.f32 %v2512, %v2523
  %v2570 = vadd.f32 %v2513, %v2523
  %v2571 = vadd.f32 %v2514, %v2523
  %v2572 = vadd.f32 %v2515, %v2523
  %v2573 = vadd.f32 %v2516, %v2523
  %v2574 = vadd.f32 %v2517, %v2523
  %v2575 = vmax.f32 %v2525, 0.0
  %v2576 = vmax.f32 %v2526, 0.0
  %v2577 = vmax.f32 %v2527, 0.0
  %v2578 = vmax.f32 %v2528, 0.0
  %v2579 = vmax.f32 %v2529, 0.0
  %v2580 = vmax.f32 %v2530, 0.0
  %v2581 = vmax.f32 %v2531, 0.0
  %v2582 = vmax.f32 %v2532, 0.0
  %v2583 = vmax.f32 %v2533, 0.0
  %v2584 = vmax.f32 %v2534, 0.0
  %v2585 = vmax.f32 %v2535, 0.0
  %v2586 = vmax.f32 %v2536, 0.0
  %v2587 = vmax.f32 %v2537, 0.0
  %v2588 = vmax.f32 %v2538, 0.0
  %v2589 = vmax.f32 %v2539, 0.0
  %v2590 = vmax.f32 %v2540, 0.0
  %v2591 = vmax.f32 %v2541, 0.0
  %v2592 = vmax.f32 %v2542, 0.0
  %v2593 = vmax.f32 %v2543, 0.0
  %v2594 = vmax.f32 %v2544, 0.0
  %v2595 = vmax.f32 %v2545, 0.0
  %v2596 = vmax.f32 %v2546, 0.0
  %v2597 = vmax.f32 %v2547, 0.0
  %v2598 = vmax.f32 %v2548, 0.0
  %v2599 = vmax.f32 %v2549, 0.0
  %v2600 = vmax.f32 %v2550, 0.0
  %v2601 = vmax.f32 %v2551, 0.0
  %v2602 = vmax.f32 %v2552, 0.0
  %v2603 = vmax.f32 %v2553, 0.0
  %v2604 = vmax.f32 %v2554, 0.0
  %v2605 = vmax.f32 %v2555, 0.0
  %v2606 = vmax.f32 %v2556, 0.0
  %v2607 = vmax.f32 %v2557, 0.0
  %v2608 = vmax.f32 %v2558, 0.0
  %v2609 = vmax.f32 %v2559, 0.0
  %v2610 = vmax.f32 %v2560, 0.0
  %v2611 = vmax.f32 %v2561, 0.0
  %v2612 = vmax.f32 %v2562, 0.0
  %v2613 = vmax.f32 %v2563, 0.0
  %v2614 = vmax.f32 %v2564, 0.0
  %v2615 = vmax.f32 %v2565, 0.0
  %v2616 = vmax.f32 %v2566, 0.0
  %v2617 = vmax.f32 %v2567, 0.0
  %v2618 = vmax.f32 %v2568, 0.0
  %v2619 = vmax.f32 %v2569, 0.0
  %v2620 = vmax.f32 %v2570, 0.0
  %v2621 = vmax.f32 %v2571, 0.0
  %v2622 = vmax.f32 %v2572, 0.0
  %v2623 = vmax.f32 %v2573, 0.0
  %v2624 = vmax.f32 %v2574, 0.0
  %v2625 = vld [vmem:[%s3] sm:$0x1]
  %v2626 = vld [vmem:[%s4] sm:$0x1]
  %vm2627 = vcmask 261120
  %v2628 = vsel %vm2627, %v2575, 0.0
  %v2629 = vsel %vm2627, %v2576, 0.0
  %v2630 = vadd.f32 %v2628, %v2629
  %v2631 = vsel %vm2627, %v2577, 0.0
  %v2632 = vadd.f32 %v2630, %v2631
  %v2633 = vsel %vm2627, %v2578, 0.0
  %v2634 = vadd.f32 %v2632, %v2633
  %v2635 = vsel %vm2627, %v2579, 0.0
  %v2636 = vadd.f32 %v2634, %v2635
  %v2637 = vsel %vm2627, %v2580, 0.0
  %v2638 = vadd.f32 %v2636, %v2637
  %v2639 = vsel %vm2627, %v2581, 0.0
  %v2640 = vadd.f32 %v2638, %v2639
  %v2641 = vsel %vm2627, %v2582, 0.0
  %v2642 = vadd.f32 %v2640, %v2641
  %v2643 = vsel %vm2627, %v2583, 0.0
  %v2644 = vadd.f32 %v2642, %v2643
  %v2645 = vsel %vm2627, %v2584, 0.0
  %v2646 = vadd.f32 %v2644, %v2645
  %v2647 = vsel %vm2627, %v2585, 0.0
  %v2648 = vadd.f32 %v2646, %v2647
  %v2649 = vsel %vm2627, %v2586, 0.0
  %v2650 = vadd.f32 %v2648, %v2649
  %v2651 = vsel %vm2627, %v2587, 0.0
  %v2652 = vadd.f32 %v2650, %v2651
  %v2653 = vsel %vm2627, %v2588, 0.0
  %v2654 = vadd.f32 %v2652, %v2653
  %v2655 = vsel %vm2627, %v2589, 0.0
  %v2656 = vadd.f32 %v2654, %v2655
  %v2657 = vsel %vm2627, %v2590, 0.0
  %v2658 = vadd.f32 %v2656, %v2657
  %v2659 = vsel %vm2627, %v2591, 0.0
  %v2660 = vadd.f32 %v2658, %v2659
  %v2661 = vsel %vm2627, %v2592, 0.0
  %v2662 = vadd.f32 %v2660, %v2661
  %v2663 = vsel %vm2627, %v2593, 0.0
  %v2664 = vadd.f32 %v2662, %v2663
  %v2665 = vsel %vm2627, %v2594, 0.0
  %v2666 = vadd.f32 %v2664, %v2665
  %v2667 = vsel %vm2627, %v2595, 0.0
  %v2668 = vadd.f32 %v2666, %v2667
  %v2669 = vsel %vm2627, %v2596, 0.0
  %v2670 = vadd.f32 %v2668, %v2669
  %v2671 = vsel %vm2627, %v2597, 0.0
  %v2672 = vadd.f32 %v2670, %v2671
  %v2673 = vsel %vm2627, %v2598, 0.0
  %v2674 = vadd.f32 %v2672, %v2673
  %v2675 = vsel %vm2627, %v2599, 0.0
  %v2676 = vadd.f32 %v2674, %v2675
  %v2677 = vrot.slane %v2676, 4
  %v2678 = vadd.f32 %v2676, %v2677
  %v2679 = vrot.slane %v2678, 2
  %v2680 = vadd.f32 %v2678, %v2679
  %v2681 = vrot.slane %v2680, 1
  %v2682 = vadd.f32 %v2680, %v2681
  %v2683 = vmul.f32 %v2682, 0.005
  %v2684 = vmul.f32 %v2575, %v2575
  %v2685 = vmul.f32 %v2576, %v2576
  %v2686 = vmul.f32 %v2577, %v2577
  %v2687 = vmul.f32 %v2578, %v2578
  %v2688 = vmul.f32 %v2579, %v2579
  %v2689 = vmul.f32 %v2580, %v2580
  %v2690 = vmul.f32 %v2581, %v2581
  %v2691 = vmul.f32 %v2582, %v2582
  %v2692 = vmul.f32 %v2583, %v2583
  %v2693 = vmul.f32 %v2584, %v2584
  %v2694 = vmul.f32 %v2585, %v2585
  %v2695 = vmul.f32 %v2586, %v2586
  %v2696 = vmul.f32 %v2587, %v2587
  %v2697 = vmul.f32 %v2588, %v2588
  %v2698 = vmul.f32 %v2589, %v2589
  %v2699 = vmul.f32 %v2590, %v2590
  %v2700 = vmul.f32 %v2591, %v2591
  %v2701 = vmul.f32 %v2592, %v2592
  %v2702 = vmul.f32 %v2593, %v2593
  %v2703 = vmul.f32 %v2594, %v2594
  %v2704 = vmul.f32 %v2595, %v2595
  %v2705 = vmul.f32 %v2596, %v2596
  %v2706 = vmul.f32 %v2597, %v2597
  %v2707 = vmul.f32 %v2598, %v2598
  %v2708 = vmul.f32 %v2599, %v2599
  %v2709 = vsel %vm2627, %v2684, 0.0
  %v2710 = vsel %vm2627, %v2685, 0.0
  %v2711 = vadd.f32 %v2709, %v2710
  %v2712 = vsel %vm2627, %v2686, 0.0
  %v2713 = vadd.f32 %v2711, %v2712
  %v2714 = vsel %vm2627, %v2687, 0.0
  %v2715 = vadd.f32 %v2713, %v2714
  %v2716 = vsel %vm2627, %v2688, 0.0
  %v2717 = vadd.f32 %v2715, %v2716
  %v2718 = vsel %vm2627, %v2689, 0.0
  %v2719 = vadd.f32 %v2717, %v2718
  %v2720 = vsel %vm2627, %v2690, 0.0
  %v2721 = vadd.f32 %v2719, %v2720
  %v2722 = vsel %vm2627, %v2691, 0.0
  %v2723 = vadd.f32 %v2721, %v2722
  %v2724 = vsel %vm2627, %v2692, 0.0
  %v2725 = vadd.f32 %v2723, %v2724
  %v2726 = vsel %vm2627, %v2693, 0.0
  %v2727 = vadd.f32 %v2725, %v2726
  %v2728 = vsel %vm2627, %v2694, 0.0
  %v2729 = vadd.f32 %v2727, %v2728
  %v2730 = vsel %vm2627, %v2695, 0.0
  %v2731 = vadd.f32 %v2729, %v2730
  %v2732 = vsel %vm2627, %v2696, 0.0
  %v2733 = vadd.f32 %v2731, %v2732
  %v2734 = vsel %vm2627, %v2697, 0.0
  %v2735 = vadd.f32 %v2733, %v2734
  %v2736 = vsel %vm2627, %v2698, 0.0
  %v2737 = vadd.f32 %v2735, %v2736
  %v2738 = vsel %vm2627, %v2699, 0.0
  %v2739 = vadd.f32 %v2737, %v2738
  %v2740 = vsel %vm2627, %v2700, 0.0
  %v2741 = vadd.f32 %v2739, %v2740
  %v2742 = vsel %vm2627, %v2701, 0.0
  %v2743 = vadd.f32 %v2741, %v2742
  %v2744 = vsel %vm2627, %v2702, 0.0
  %v2745 = vadd.f32 %v2743, %v2744
  %v2746 = vsel %vm2627, %v2703, 0.0
  %v2747 = vadd.f32 %v2745, %v2746
  %v2748 = vsel %vm2627, %v2704, 0.0
  %v2749 = vadd.f32 %v2747, %v2748
  %v2750 = vsel %vm2627, %v2705, 0.0
  %v2751 = vadd.f32 %v2749, %v2750
  %v2752 = vsel %vm2627, %v2706, 0.0
  %v2753 = vadd.f32 %v2751, %v2752
  %v2754 = vsel %vm2627, %v2707, 0.0
  %v2755 = vadd.f32 %v2753, %v2754
  %v2756 = vsel %vm2627, %v2708, 0.0
  %v2757 = vadd.f32 %v2755, %v2756
  %v2758 = vrot.slane %v2757, 4
  %v2759 = vadd.f32 %v2757, %v2758
  %v2760 = vrot.slane %v2759, 2
  %v2761 = vadd.f32 %v2759, %v2760
  %v2762 = vrot.slane %v2761, 1
  %v2763 = vadd.f32 %v2761, %v2762
  %v2764 = vmul.f32 %v2763, 0.005
  %v2765 = vmul.f32 %v2683, %v2683
  %v2766 = vsub.f32 %v2764, %v2765
  %v2767 = vmax.f32 %v2766, 0.0
  %v2768 = vsub.f32 %v2575, %v2683
  %v2769 = vsub.f32 %v2576, %v2683
  %v2770 = vsub.f32 %v2577, %v2683
  %v2771 = vsub.f32 %v2578, %v2683
  %v2772 = vsub.f32 %v2579, %v2683
  %v2773 = vsub.f32 %v2580, %v2683
  %v2774 = vsub.f32 %v2581, %v2683
  %v2775 = vsub.f32 %v2582, %v2683
  %v2776 = vsub.f32 %v2583, %v2683
  %v2777 = vsub.f32 %v2584, %v2683
  %v2778 = vsub.f32 %v2585, %v2683
  %v2779 = vsub.f32 %v2586, %v2683
  %v2780 = vsub.f32 %v2587, %v2683
  %v2781 = vsub.f32 %v2588, %v2683
  %v2782 = vsub.f32 %v2589, %v2683
  %v2783 = vsub.f32 %v2590, %v2683
  %v2784 = vsub.f32 %v2591, %v2683
  %v2785 = vsub.f32 %v2592, %v2683
  %v2786 = vsub.f32 %v2593, %v2683
  %v2787 = vsub.f32 %v2594, %v2683
  %v2788 = vsub.f32 %v2595, %v2683
  %v2789 = vsub.f32 %v2596, %v2683
  %v2790 = vsub.f32 %v2597, %v2683
  %v2791 = vsub.f32 %v2598, %v2683
  %v2792 = vsub.f32 %v2599, %v2683
  %v2793 = vadd.f32 %v2767, 1e-05
  %v2794 = vrsqrt.pop %v2793
  %v2795 = vmul.f32 %v2768, %v2794
  %v2796 = vmul.f32 %v2769, %v2794
  %v2797 = vmul.f32 %v2770, %v2794
  %v2798 = vmul.f32 %v2771, %v2794
  %v2799 = vmul.f32 %v2772, %v2794
  %v2800 = vmul.f32 %v2773, %v2794
  %v2801 = vmul.f32 %v2774, %v2794
  %v2802 = vmul.f32 %v2775, %v2794
  %v2803 = vmul.f32 %v2776, %v2794
  %v2804 = vmul.f32 %v2777, %v2794
  %v2805 = vmul.f32 %v2778, %v2794
  %v2806 = vmul.f32 %v2779, %v2794
  %v2807 = vmul.f32 %v2780, %v2794
  %v2808 = vmul.f32 %v2781, %v2794
  %v2809 = vmul.f32 %v2782, %v2794
  %v2810 = vmul.f32 %v2783, %v2794
  %v2811 = vmul.f32 %v2784, %v2794
  %v2812 = vmul.f32 %v2785, %v2794
  %v2813 = vmul.f32 %v2786, %v2794
  %v2814 = vmul.f32 %v2787, %v2794
  %v2815 = vmul.f32 %v2788, %v2794
  %v2816 = vmul.f32 %v2789, %v2794
  %v2817 = vmul.f32 %v2790, %v2794
  %v2818 = vmul.f32 %v2791, %v2794
  %v2819 = vmul.f32 %v2792, %v2794
  %v2821 = vlaneseq
  %v2822 = vshrl.u32 %v2821, 7
  %v2823 = vsub.s32 0, %v2822
  %v2824 = vrot.slane %v2625, %v2823
  %v2826 = vmul.f32 %v2795, %v2824
  %v2827 = vmul.f32 %v2796, %v2824
  %v2828 = vmul.f32 %v2797, %v2824
  %v2829 = vmul.f32 %v2798, %v2824
  %v2830 = vmul.f32 %v2799, %v2824
  %v2831 = vmul.f32 %v2800, %v2824
  %v2832 = vmul.f32 %v2801, %v2824
  %v2833 = vmul.f32 %v2802, %v2824
  %v2834 = vmul.f32 %v2803, %v2824
  %v2835 = vmul.f32 %v2804, %v2824
  %v2836 = vmul.f32 %v2805, %v2824
  %v2837 = vmul.f32 %v2806, %v2824
  %v2838 = vmul.f32 %v2807, %v2824
  %v2839 = vmul.f32 %v2808, %v2824
  %v2840 = vmul.f32 %v2809, %v2824
  %v2841 = vmul.f32 %v2810, %v2824
  %v2842 = vmul.f32 %v2811, %v2824
  %v2843 = vmul.f32 %v2812, %v2824
  %v2844 = vmul.f32 %v2813, %v2824
  %v2845 = vmul.f32 %v2814, %v2824
  %v2846 = vmul.f32 %v2815, %v2824
  %v2847 = vmul.f32 %v2816, %v2824
  %v2848 = vmul.f32 %v2817, %v2824
  %v2849 = vmul.f32 %v2818, %v2824
  %v2850 = vmul.f32 %v2819, %v2824
  %v2852 = vlaneseq
  %v2853 = vshrl.u32 %v2852, 7
  %v2854 = vsub.s32 0, %v2853
  %v2855 = vrot.slane %v2626, %v2854
  %v2857 = vadd.f32 %v2826, %v2855
  %v2858 = vadd.f32 %v2827, %v2855
  %v2859 = vadd.f32 %v2828, %v2855
  %v2860 = vadd.f32 %v2829, %v2855
  %v2861 = vadd.f32 %v2830, %v2855
  %v2862 = vadd.f32 %v2831, %v2855
  %v2863 = vadd.f32 %v2832, %v2855
  %v2864 = vadd.f32 %v2833, %v2855
  %v2865 = vadd.f32 %v2834, %v2855
  %v2866 = vadd.f32 %v2835, %v2855
  %v2867 = vadd.f32 %v2836, %v2855
  %v2868 = vadd.f32 %v2837, %v2855
  %v2869 = vadd.f32 %v2838, %v2855
  %v2870 = vadd.f32 %v2839, %v2855
  %v2871 = vadd.f32 %v2840, %v2855
  %v2872 = vadd.f32 %v2841, %v2855
  %v2873 = vadd.f32 %v2842, %v2855
  %v2874 = vadd.f32 %v2843, %v2855
  %v2875 = vadd.f32 %v2844, %v2855
  %v2876 = vadd.f32 %v2845, %v2855
  %v2877 = vadd.f32 %v2846, %v2855
  %v2878 = vadd.f32 %v2847, %v2855
  %v2879 = vadd.f32 %v2848, %v2855
  %v2880 = vadd.f32 %v2849, %v2855
  %v2881 = vadd.f32 %v2850, %v2855
  %v2882 = vsel %vm2627, %v2600, 0.0
  %v2883 = vsel %vm2627, %v2601, 0.0
  %v2884 = vadd.f32 %v2882, %v2883
  %v2885 = vsel %vm2627, %v2602, 0.0
  %v2886 = vadd.f32 %v2884, %v2885
  %v2887 = vsel %vm2627, %v2603, 0.0
  %v2888 = vadd.f32 %v2886, %v2887
  %v2889 = vsel %vm2627, %v2604, 0.0
  %v2890 = vadd.f32 %v2888, %v2889
  %v2891 = vsel %vm2627, %v2605, 0.0
  %v2892 = vadd.f32 %v2890, %v2891
  %v2893 = vsel %vm2627, %v2606, 0.0
  %v2894 = vadd.f32 %v2892, %v2893
  %v2895 = vsel %vm2627, %v2607, 0.0
  %v2896 = vadd.f32 %v2894, %v2895
  %v2897 = vsel %vm2627, %v2608, 0.0
  %v2898 = vadd.f32 %v2896, %v2897
  %v2899 = vsel %vm2627, %v2609, 0.0
  %v2900 = vadd.f32 %v2898, %v2899
  %v2901 = vsel %vm2627, %v2610, 0.0
  %v2902 = vadd.f32 %v2900, %v2901
  %v2903 = vsel %vm2627, %v2611, 0.0
  %v2904 = vadd.f32 %v2902, %v2903
  %v2905 = vsel %vm2627, %v2612, 0.0
  %v2906 = vadd.f32 %v2904, %v2905
  %v2907 = vsel %vm2627, %v2613, 0.0
  %v2908 = vadd.f32 %v2906, %v2907
  %v2909 = vsel %vm2627, %v2614, 0.0
  %v2910 = vadd.f32 %v2908, %v2909
  %v2911 = vsel %vm2627, %v2615, 0.0
  %v2912 = vadd.f32 %v2910, %v2911
  %v2913 = vsel %vm2627, %v2616, 0.0
  %v2914 = vadd.f32 %v2912, %v2913
  %v2915 = vsel %vm2627, %v2617, 0.0
  %v2916 = vadd.f32 %v2914, %v2915
  %v2917 = vsel %vm2627, %v2618, 0.0
  %v2918 = vadd.f32 %v2916, %v2917
  %v2919 = vsel %vm2627, %v2619, 0.0
  %v2920 = vadd.f32 %v2918, %v2919
  %v2921 = vsel %vm2627, %v2620, 0.0
  %v2922 = vadd.f32 %v2920, %v2921
  %v2923 = vsel %vm2627, %v2621, 0.0
  %v2924 = vadd.f32 %v2922, %v2923
  %v2925 = vsel %vm2627, %v2622, 0.0
  %v2926 = vadd.f32 %v2924, %v2925
  %v2927 = vsel %vm2627, %v2623, 0.0
  %v2928 = vadd.f32 %v2926, %v2927
  %v2929 = vsel %vm2627, %v2624, 0.0
  %v2930 = vadd.f32 %v2928, %v2929
  %v2931 = vrot.slane %v2930, 4
  %v2932 = vadd.f32 %v2930, %v2931
  %v2933 = vrot.slane %v2932, 2
  %v2934 = vadd.f32 %v2932, %v2933
  %v2935 = vrot.slane %v2934, 1
  %v2936 = vadd.f32 %v2934, %v2935
  %v2937 = vmul.f32 %v2936, 0.005
  %v2938 = vmul.f32 %v2600, %v2600
  %v2939 = vmul.f32 %v2601, %v2601
  %v2940 = vmul.f32 %v2602, %v2602
  %v2941 = vmul.f32 %v2603, %v2603
  %v2942 = vmul.f32 %v2604, %v2604
  %v2943 = vmul.f32 %v2605, %v2605
  %v2944 = vmul.f32 %v2606, %v2606
  %v2945 = vmul.f32 %v2607, %v2607
  %v2946 = vmul.f32 %v2608, %v2608
  %v2947 = vmul.f32 %v2609, %v2609
  %v2948 = vmul.f32 %v2610, %v2610
  %v2949 = vmul.f32 %v2611, %v2611
  %v2950 = vmul.f32 %v2612, %v2612
  %v2951 = vmul.f32 %v2613, %v2613
  %v2952 = vmul.f32 %v2614, %v2614
  %v2953 = vmul.f32 %v2615, %v2615
  %v2954 = vmul.f32 %v2616, %v2616
  %v2955 = vmul.f32 %v2617, %v2617
  %v2956 = vmul.f32 %v2618, %v2618
  %v2957 = vmul.f32 %v2619, %v2619
  %v2958 = vmul.f32 %v2620, %v2620
  %v2959 = vmul.f32 %v2621, %v2621
  %v2960 = vmul.f32 %v2622, %v2622
  %v2961 = vmul.f32 %v2623, %v2623
  %v2962 = vmul.f32 %v2624, %v2624
  %v2963 = vsel %vm2627, %v2938, 0.0
  %v2964 = vsel %vm2627, %v2939, 0.0
  %v2965 = vadd.f32 %v2963, %v2964
  %v2966 = vsel %vm2627, %v2940, 0.0
  %v2967 = vadd.f32 %v2965, %v2966
  %v2968 = vsel %vm2627, %v2941, 0.0
  %v2969 = vadd.f32 %v2967, %v2968
  %v2970 = vsel %vm2627, %v2942, 0.0
  %v2971 = vadd.f32 %v2969, %v2970
  %v2972 = vsel %vm2627, %v2943, 0.0
  %v2973 = vadd.f32 %v2971, %v2972
  %v2974 = vsel %vm2627, %v2944, 0.0
  %v2975 = vadd.f32 %v2973, %v2974
  %v2976 = vsel %vm2627, %v2945, 0.0
  %v2977 = vadd.f32 %v2975, %v2976
  %v2978 = vsel %vm2627, %v2946, 0.0
  %v2979 = vadd.f32 %v2977, %v2978
  %v2980 = vsel %vm2627, %v2947, 0.0
  %v2981 = vadd.f32 %v2979, %v2980
  %v2982 = vsel %vm2627, %v2948, 0.0
  %v2983 = vadd.f32 %v2981, %v2982
  %v2984 = vsel %vm2627, %v2949, 0.0
  %v2985 = vadd.f32 %v2983, %v2984
  %v2986 = vsel %vm2627, %v2950, 0.0
  %v2987 = vadd.f32 %v2985, %v2986
  %v2988 = vsel %vm2627, %v2951, 0.0
  %v2989 = vadd.f32 %v2987, %v2988
  %v2990 = vsel %vm2627, %v2952, 0.0
  %v2991 = vadd.f32 %v2989, %v2990
  %v2992 = vsel %vm2627, %v2953, 0.0
  %v2993 = vadd.f32 %v2991, %v2992
  %v2994 = vsel %vm2627, %v2954, 0.0
  %v2995 = vadd.f32 %v2993, %v2994
  %v2996 = vsel %vm2627, %v2955, 0.0
  %v2997 = vadd.f32 %v2995, %v2996
  %v2998 = vsel %vm2627, %v2956, 0.0
  %v2999 = vadd.f32 %v2997, %v2998
  %v3000 = vsel %vm2627, %v2957, 0.0
  %v3001 = vadd.f32 %v2999, %v3000
  %v3002 = vsel %vm2627, %v2958, 0.0
  %v3003 = vadd.f32 %v3001, %v3002
  %v3004 = vsel %vm2627, %v2959, 0.0
  %v3005 = vadd.f32 %v3003, %v3004
  %v3006 = vsel %vm2627, %v2960, 0.0
  %v3007 = vadd.f32 %v3005, %v3006
  %v3008 = vsel %vm2627, %v2961, 0.0
  %v3009 = vadd.f32 %v3007, %v3008
  %v3010 = vsel %vm2627, %v2962, 0.0
  %v3011 = vadd.f32 %v3009, %v3010
  %v3012 = vrot.slane %v3011, 4
  %v3013 = vadd.f32 %v3011, %v3012
  %v3014 = vrot.slane %v3013, 2
  %v3015 = vadd.f32 %v3013, %v3014
  %v3016 = vrot.slane %v3015, 1
  %v3017 = vadd.f32 %v3015, %v3016
  %v3018 = vmul.f32 %v3017, 0.005
  %v3019 = vmul.f32 %v2937, %v2937
  %v3020 = vsub.f32 %v3018, %v3019
  %v3021 = vmax.f32 %v3020, 0.0
  %v3022 = vsub.f32 %v2600, %v2937
  %v3023 = vsub.f32 %v2601, %v2937
  %v3024 = vsub.f32 %v2602, %v2937
  %v3025 = vsub.f32 %v2603, %v2937
  %v3026 = vsub.f32 %v2604, %v2937
  %v3027 = vsub.f32 %v2605, %v2937
  %v3028 = vsub.f32 %v2606, %v2937
  %v3029 = vsub.f32 %v2607, %v2937
  %v3030 = vsub.f32 %v2608, %v2937
  %v3031 = vsub.f32 %v2609, %v2937
  %v3032 = vsub.f32 %v2610, %v2937
  %v3033 = vsub.f32 %v2611, %v2937
  %v3034 = vsub.f32 %v2612, %v2937
  %v3035 = vsub.f32 %v2613, %v2937
  %v3036 = vsub.f32 %v2614, %v2937
  %v3037 = vsub.f32 %v2615, %v2937
  %v3038 = vsub.f32 %v2616, %v2937
  %v3039 = vsub.f32 %v2617, %v2937
  %v3040 = vsub.f32 %v2618, %v2937
  %v3041 = vsub.f32 %v2619, %v2937
  %v3042 = vsub.f32 %v2620, %v2937
  %v3043 = vsub.f32 %v2621, %v2937
  %v3044 = vsub.f32 %v2622, %v2937
  %v3045 = vsub.f32 %v2623, %v2937
  %v3046 = vsub.f32 %v2624, %v2937
  %v3047 = vadd.f32 %v3021, 1e-05
  %v3048 = vrsqrt.pop %v3047
  %v3049 = vmul.f32 %v3022, %v3048
  %v3050 = vmul.f32 %v3023, %v3048
  %v3051 = vmul.f32 %v3024, %v3048
  %v3052 = vmul.f32 %v3025, %v3048
  %v3053 = vmul.f32 %v3026, %v3048
  %v3054 = vmul.f32 %v3027, %v3048
  %v3055 = vmul.f32 %v3028, %v3048
  %v3056 = vmul.f32 %v3029, %v3048
  %v3057 = vmul.f32 %v3030, %v3048
  %v3058 = vmul.f32 %v3031, %v3048
  %v3059 = vmul.f32 %v3032, %v3048
  %v3060 = vmul.f32 %v3033, %v3048
  %v3061 = vmul.f32 %v3034, %v3048
  %v3062 = vmul.f32 %v3035, %v3048
  %v3063 = vmul.f32 %v3036, %v3048
  %v3064 = vmul.f32 %v3037, %v3048
  %v3065 = vmul.f32 %v3038, %v3048
  %v3066 = vmul.f32 %v3039, %v3048
  %v3067 = vmul.f32 %v3040, %v3048
  %v3068 = vmul.f32 %v3041, %v3048
  %v3069 = vmul.f32 %v3042, %v3048
  %v3070 = vmul.f32 %v3043, %v3048
  %v3071 = vmul.f32 %v3044, %v3048
  %v3072 = vmul.f32 %v3045, %v3048
  %v3073 = vmul.f32 %v3046, %v3048
  %v3074 = vmul.f32 %v3049, %v2824
  %v3075 = vmul.f32 %v3050, %v2824
  %v3076 = vmul.f32 %v3051, %v2824
  %v3077 = vmul.f32 %v3052, %v2824
  %v3078 = vmul.f32 %v3053, %v2824
  %v3079 = vmul.f32 %v3054, %v2824
  %v3080 = vmul.f32 %v3055, %v2824
  %v3081 = vmul.f32 %v3056, %v2824
  %v3082 = vmul.f32 %v3057, %v2824
  %v3083 = vmul.f32 %v3058, %v2824
  %v3084 = vmul.f32 %v3059, %v2824
  %v3085 = vmul.f32 %v3060, %v2824
  %v3086 = vmul.f32 %v3061, %v2824
  %v3087 = vmul.f32 %v3062, %v2824
  %v3088 = vmul.f32 %v3063, %v2824
  %v3089 = vmul.f32 %v3064, %v2824
  %v3090 = vmul.f32 %v3065, %v2824
  %v3091 = vmul.f32 %v3066, %v2824
  %v3092 = vmul.f32 %v3067, %v2824
  %v3093 = vmul.f32 %v3068, %v2824
  %v3094 = vmul.f32 %v3069, %v2824
  %v3095 = vmul.f32 %v3070, %v2824
  %v3096 = vmul.f32 %v3071, %v2824
  %v3097 = vmul.f32 %v3072, %v2824
  %v3098 = vmul.f32 %v3073, %v2824
  %v3099 = vadd.f32 %v3074, %v2855
  %v3100 = vadd.f32 %v3075, %v2855
  %v3101 = vadd.f32 %v3076, %v2855
  %v3102 = vadd.f32 %v3077, %v2855
  %v3103 = vadd.f32 %v3078, %v2855
  %v3104 = vadd.f32 %v3079, %v2855
  %v3105 = vadd.f32 %v3080, %v2855
  %v3106 = vadd.f32 %v3081, %v2855
  %v3107 = vadd.f32 %v3082, %v2855
  %v3108 = vadd.f32 %v3083, %v2855
  %v3109 = vadd.f32 %v3084, %v2855
  %v3110 = vadd.f32 %v3085, %v2855
  %v3111 = vadd.f32 %v3086, %v2855
  %v3112 = vadd.f32 %v3087, %v2855
  %v3113 = vadd.f32 %v3088, %v2855
  %v3114 = vadd.f32 %v3089, %v2855
  %v3115 = vadd.f32 %v3090, %v2855
  %v3116 = vadd.f32 %v3091, %v2855
  %v3117 = vadd.f32 %v3092, %v2855
  %v3118 = vadd.f32 %v3093, %v2855
  %v3119 = vadd.f32 %v3094, %v2855
  %v3120 = vadd.f32 %v3095, %v2855
  %v3121 = vadd.f32 %v3096, %v2855
  %v3122 = vadd.f32 %v3097, %v2855
  %v3123 = vadd.f32 %v3098, %v2855
  %3124 = vst.msk [vmem:[#allocation2] sm:$0xff] %vm2627, %v2857
  %3126 = vrot.lane.b32.xlu0 %v2858, 32
  %v3127 = vpop.permute.xlu0 %3126
  %vm3129 = vcmask 523520
  %3130 = vst.msk [vmem:[#allocation2] sm:$0xff] %vm3129, %v3127
  %3132 = vrot.lane.b32.xlu0 %v2859, 64
  %v3133 = vpop.permute.xlu0 %3132
  %vm3135 = vcmask 785920
  %3136 = vst.msk [vmem:[#allocation2] sm:$0xff] %vm3135, %v3133
  %3138 = vrot.lane.b32.xlu0 %v2860, 96
  %v3139 = vpop.permute.xlu0 %3138
  %vm3141 = vcmask 1048320
  %3142 = vst.msk [vmem:[#allocation2] sm:$0xff] %vm3141, %v3139
  %3143 = vst.msk [vmem:[#allocation2 + $0x8] sm:$0xff] %vm2627, %v2861
  %3145 = vrot.lane.b32.xlu0 %v2862, 32
  %v3146 = vpop.permute.xlu0 %3145
  %3148 = vst.msk [vmem:[#allocation2 + $0x8] sm:$0xff] %vm3129, %v3146
  %3150 = vrot.lane.b32.xlu0 %v2863, 64
  %v3151 = vpop.permute.xlu0 %3150
  %3153 = vst.msk [vmem:[#allocation2 + $0x8] sm:$0xff] %vm3135, %v3151
  %3155 = vrot.lane.b32.xlu0 %v2864, 96
  %v3156 = vpop.permute.xlu0 %3155
  %3158 = vst.msk [vmem:[#allocation2 + $0x8] sm:$0xff] %vm3141, %v3156
  %3159 = vst.msk [vmem:[#allocation2 + $0x10] sm:$0xff] %vm2627, %v2865
  %3161 = vrot.lane.b32.xlu0 %v2866, 32
  %v3162 = vpop.permute.xlu0 %3161
  %3164 = vst.msk [vmem:[#allocation2 + $0x10] sm:$0xff] %vm3129, %v3162
  %3166 = vrot.lane.b32.xlu0 %v2867, 64
  %v3167 = vpop.permute.xlu0 %3166
  %3169 = vst.msk [vmem:[#allocation2 + $0x10] sm:$0xff] %vm3135, %v3167
  %3171 = vrot.lane.b32.xlu0 %v2868, 96
  %v3172 = vpop.permute.xlu0 %3171
  %3174 = vst.msk [vmem:[#allocation2 + $0x10] sm:$0xff] %vm3141, %v3172
  %3175 = vst.msk [vmem:[#allocation2 + $0x18] sm:$0xff] %vm2627, %v2869
  %3177 = vrot.lane.b32.xlu0 %v2870, 32
  %v3178 = vpop.permute.xlu0 %3177
  %3180 = vst.msk [vmem:[#allocation2 + $0x18] sm:$0xff] %vm3129, %v3178
  %3182 = vrot.lane.b32.xlu0 %v2871, 64
  %v3183 = vpop.permute.xlu0 %3182
  %3185 = vst.msk [vmem:[#allocation2 + $0x18] sm:$0xff] %vm3135, %v3183
  %3187 = vrot.lane.b32.xlu0 %v2872, 96
  %v3188 = vpop.permute.xlu0 %3187
  %3190 = vst.msk [vmem:[#allocation2 + $0x18] sm:$0xff] %vm3141, %v3188
  %3191 = vst.msk [vmem:[#allocation2 + $0x20] sm:$0xff] %vm2627, %v2873
  %3193 = vrot.lane.b32.xlu0 %v2874, 32
  %v3194 = vpop.permute.xlu0 %3193
  %3196 = vst.msk [vmem:[#allocation2 + $0x20] sm:$0xff] %vm3129, %v3194
  %3198 = vrot.lane.b32.xlu0 %v2875, 64
  %v3199 = vpop.permute.xlu0 %3198
  %3201 = vst.msk [vmem:[#allocation2 + $0x20] sm:$0xff] %vm3135, %v3199
  %3203 = vrot.lane.b32.xlu0 %v2876, 96
  %v3204 = vpop.permute.xlu0 %3203
  %3206 = vst.msk [vmem:[#allocation2 + $0x20] sm:$0xff] %vm3141, %v3204
  %3207 = vst.msk [vmem:[#allocation2 + $0x28] sm:$0xff] %vm2627, %v2877
  %3209 = vrot.lane.b32.xlu0 %v2878, 32
  %v3210 = vpop.permute.xlu0 %3209
  %3212 = vst.msk [vmem:[#allocation2 + $0x28] sm:$0xff] %vm3129, %v3210
  %3214 = vrot.lane.b32.xlu0 %v2879, 64
  %v3215 = vpop.permute.xlu0 %3214
  %3217 = vst.msk [vmem:[#allocation2 + $0x28] sm:$0xff] %vm3135, %v3215
  %3219 = vrot.lane.b32.xlu0 %v2880, 96
  %v3220 = vpop.permute.xlu0 %3219
  %3222 = vst.msk [vmem:[#allocation2 + $0x28] sm:$0xff] %vm3141, %v3220
  %3223 = vst.msk [vmem:[#allocation2 + $0x30] sm:$0xff] %vm2627, %v2881
  %3224 = vst.msk [vmem:[#allocation2 + $0x38] sm:$0xff] %vm2627, %v3099
  %3226 = vrot.lane.b32.xlu0 %v3100, 32
  %v3227 = vpop.permute.xlu0 %3226
  %3229 = vst.msk [vmem:[#allocation2 + $0x38] sm:$0xff] %vm3129, %v3227
  %3231 = vrot.lane.b32.xlu0 %v3101, 64
  %v3232 = vpop.permute.xlu0 %3231
  %3234 = vst.msk [vmem:[#allocation2 + $0x38] sm:$0xff] %vm3135, %v3232
  %3236 = vrot.lane.b32.xlu0 %v3102, 96
  %v3237 = vpop.permute.xlu0 %3236
  %3239 = vst.msk [vmem:[#allocation2 + $0x38] sm:$0xff] %vm3141, %v3237
  %3240 = vst.msk [vmem:[#allocation2 + $0x40] sm:$0xff] %vm2627, %v3103
  %3242 = vrot.lane.b32.xlu0 %v3104, 32
  %v3243 = vpop.permute.xlu0 %3242
  %3245 = vst.msk [vmem:[#allocation2 + $0x40] sm:$0xff] %vm3129, %v3243
  %3247 = vrot.lane.b32.xlu0 %v3105, 64
  %v3248 = vpop.permute.xlu0 %3247
  %3250 = vst.msk [vmem:[#allocation2 + $0x40] sm:$0xff] %vm3135, %v3248
  %3252 = vrot.lane.b32.xlu0 %v3106, 96
  %v3253 = vpop.permute.xlu0 %3252
  %3255 = vst.msk [vmem:[#allocation2 + $0x40] sm:$0xff] %vm3141, %v3253
  %3256 = vst.msk [vmem:[#allocation2 + $0x48] sm:$0xff] %vm2627, %v3107
  %3258 = vrot.lane.b32.xlu0 %v3108, 32
  %v3259 = vpop.permute.xlu0 %3258
  %3261 = vst.msk [vmem:[#allocation2 + $0x48] sm:$0xff] %vm3129, %v3259
  %3263 = vrot.lane.b32.xlu0 %v3109, 64
  %v3264 = vpop.permute.xlu0 %3263
  %3266 = vst.msk [vmem:[#allocation2 + $0x48] sm:$0xff] %vm3135, %v3264
  %3268 = vrot.lane.b32.xlu0 %v3110, 96
  %v3269 = vpop.permute.xlu0 %3268
  %3271 = vst.msk [vmem:[#allocation2 + $0x48] sm:$0xff] %vm3141, %v3269
  %3272 = vst.msk [vmem:[#allocation2 + $0x50] sm:$0xff] %vm2627, %v3111
  %3274 = vrot.lane.b32.xlu0 %v3112, 32
  %v3275 = vpop.permute.xlu0 %3274
  %3277 = vst.msk [vmem:[#allocation2 + $0x50] sm:$0xff] %vm3129, %v3275
  %3279 = vrot.lane.b32.xlu0 %v3113, 64
  %v3280 = vpop.permute.xlu0 %3279
  %3282 = vst.msk [vmem:[#allocation2 + $0x50] sm:$0xff] %vm3135, %v3280
  %3284 = vrot.lane.b32.xlu0 %v3114, 96
  %v3285 = vpop.permute.xlu0 %3284
  %3287 = vst.msk [vmem:[#allocation2 + $0x50] sm:$0xff] %vm3141, %v3285
  %3288 = vst.msk [vmem:[#allocation2 + $0x58] sm:$0xff] %vm2627, %v3115
  %3290 = vrot.lane.b32.xlu0 %v3116, 32
  %v3291 = vpop.permute.xlu0 %3290
  %3293 = vst.msk [vmem:[#allocation2 + $0x58] sm:$0xff] %vm3129, %v3291
  %3295 = vrot.lane.b32.xlu0 %v3117, 64
  %v3296 = vpop.permute.xlu0 %3295
  %3298 = vst.msk [vmem:[#allocation2 + $0x58] sm:$0xff] %vm3135, %v3296
  %3300 = vrot.lane.b32.xlu0 %v3118, 96
  %v3301 = vpop.permute.xlu0 %3300
  %3303 = vst.msk [vmem:[#allocation2 + $0x58] sm:$0xff] %vm3141, %v3301
  %3304 = vst.msk [vmem:[#allocation2 + $0x60] sm:$0xff] %vm2627, %v3119
  %3306 = vrot.lane.b32.xlu0 %v3120, 32
  %v3307 = vpop.permute.xlu0 %3306
  %3309 = vst.msk [vmem:[#allocation2 + $0x60] sm:$0xff] %vm3129, %v3307
  %3311 = vrot.lane.b32.xlu0 %v3121, 64
  %v3312 = vpop.permute.xlu0 %3311
  %3314 = vst.msk [vmem:[#allocation2 + $0x60] sm:$0xff] %vm3135, %v3312
  %3316 = vrot.lane.b32.xlu0 %v3122, 96
  %v3317 = vpop.permute.xlu0 %3316
  %3319 = vst.msk [vmem:[#allocation2 + $0x60] sm:$0xff] %vm3141, %v3317
  %3320 = vst.msk [vmem:[#allocation2 + $0x68] sm:$0xff] %vm2627, %v3123
  %v3321 = vld [vmem:[#allocation2] sm:$0xff]
  %v3322 = vld [vmem:[#allocation2 + $0x8] sm:$0xff]
  %v3323 = vld [vmem:[#allocation2 + $0x10] sm:$0xff]
  %v3324 = vld [vmem:[#allocation2 + $0x18] sm:$0xff]
  %v3325 = vld [vmem:[#allocation2 + $0x20] sm:$0xff]
  %v3326 = vld [vmem:[#allocation2 + $0x28] sm:$0xff]
  %v3327 = vld [vmem:[#allocation2 + $0x30] sm:$0xff]
  %v3328 = vld [vmem:[#allocation2 + $0x38] sm:$0xff]
  %v3329 = vld [vmem:[#allocation2 + $0x40] sm:$0xff]
  %v3330 = vld [vmem:[#allocation2 + $0x48] sm:$0xff]
  %v3331 = vld [vmem:[#allocation2 + $0x50] sm:$0xff]
  %v3332 = vld [vmem:[#allocation2 + $0x58] sm:$0xff]
  %v3333 = vld [vmem:[#allocation2 + $0x60] sm:$0xff]
  %v3334 = vld [vmem:[#allocation2 + $0x68] sm:$0xff]
  %v3335 = vpack.c.bf16 %v3328, %v3321
  %v3336 = vpack.c.bf16 %v3329, %v3322
  %v3337 = vpack.c.bf16 %v3330, %v3323
  %v3338 = vpack.c.bf16 %v3331, %v3324
  %v3339 = vpack.c.bf16 %v3332, %v3325
  %v3340 = vpack.c.bf16 %v3333, %v3326
  %v3341 = vpack.c.bf16 %v3334, %v3327
  %v3342 = vld [vmem:[%s5] sm:$0xf]
  %v3343 = vld [vmem:[%s5 + $0x4] sm:$0xf]
  %v3344 = vld [vmem:[%s5 + $0x8] sm:$0xf]
  %v3345 = vld [vmem:[%s5 + $0xc] sm:$0xf]
  %v3346 = vld [vmem:[%s5 + $0x10] sm:$0xf]
  %v3347 = vld [vmem:[%s5 + $0x14] sm:$0xf]
  %v3348 = vld [vmem:[%s5 + $0x18] sm:$0xf]
  %v3349 = vld [vmem:[%s5 + $0x1c] sm:$0xf]
  %v3350 = vld [vmem:[%s5 + $0x20] sm:$0xf]
  %v3351 = vld [vmem:[%s5 + $0x24] sm:$0xf]
  %v3352 = vld [vmem:[%s5 + $0x28] sm:$0xf]
  %v3353 = vld [vmem:[%s5 + $0x2c] sm:$0xf]
  %v3354 = vld [vmem:[%s5 + $0x30] sm:$0xf]
  %v3355 = vld [vmem:[%s5 + $0x34] sm:$0xf]
  %v3356 = vld [vmem:[%s5 + $0x38] sm:$0xf]
  %v3357 = vld [vmem:[%s5 + $0x3c] sm:$0xf]
  %v3358 = vld [vmem:[%s5 + $0x40] sm:$0xf]
  %v3359 = vld [vmem:[%s5 + $0x44] sm:$0xf]
  %v3360 = vld [vmem:[%s5 + $0x48] sm:$0xf]
  %v3361 = vld [vmem:[%s5 + $0x4c] sm:$0xf]
  %v3362 = vld [vmem:[%s5 + $0x50] sm:$0xf]
  %v3363 = vld [vmem:[%s5 + $0x54] sm:$0xf]
  %v3364 = vld [vmem:[%s5 + $0x58] sm:$0xf]
  %v3365 = vld [vmem:[%s5 + $0x5c] sm:$0xf]
  %v3366 = vld [vmem:[%s5 + $0x60] sm:$0xf]
  %v3367 = vld [vmem:[%s5 + $0x64] sm:$0xf]
  %v3368 = vld [vmem:[%s5 + $0x68] sm:$0xf]
  %v3369 = vld [vmem:[%s5 + $0x6c] sm:$0xf]
  %v3370 = vld [vmem:[%s5 + $0x70] sm:$0xf]
  %v3371 = vld [vmem:[%s5 + $0x74] sm:$0xf]
  %v3372 = vld [vmem:[%s5 + $0x78] sm:$0xf]
  %v3373 = vld [vmem:[%s5 + $0x7c] sm:$0xf]
  %v3374 = vld [vmem:[%s5 + $0x80] sm:$0xf]
  %v3375 = vld [vmem:[%s5 + $0x84] sm:$0xf]
  %v3376 = vld [vmem:[%s5 + $0x88] sm:$0xf]
  %v3377 = vld [vmem:[%s5 + $0x8c] sm:$0xf]
  %v3378 = vld [vmem:[%s5 + $0x90] sm:$0xf]
  %v3379 = vld [vmem:[%s5 + $0x94] sm:$0xf]
  %v3380 = vld [vmem:[%s5 + $0x98] sm:$0xf]
  %v3381 = vld [vmem:[%s5 + $0x9c] sm:$0xf]
  %v3382 = vld [vmem:[%s5 + $0xa0] sm:$0xf]
  %v3383 = vld [vmem:[%s5 + $0xa4] sm:$0xf]
  %v3384 = vld [vmem:[%s5 + $0xa8] sm:$0xf]
  %v3385 = vld [vmem:[%s5 + $0xac] sm:$0xf]
  %v3386 = vld [vmem:[%s5 + $0xb0] sm:$0xf]
  %v3387 = vld [vmem:[%s5 + $0xb4] sm:$0xf]
  %v3388 = vld [vmem:[%s5 + $0xb8] sm:$0xf]
  %v3389 = vld [vmem:[%s5 + $0xbc] sm:$0xf]
  %v3390 = vld [vmem:[%s5 + $0xc0] sm:$0xf]
  %v3391 = vld [vmem:[%s5 + $0xc4] sm:$0xf]
  %v3392 = vld [vmem:[%s5 + $0xc8] sm:$0xf]
  %v3393 = vld [vmem:[%s5 + $0xcc] sm:$0xf]
  %v3394 = vld [vmem:[%s5 + $0xd0] sm:$0xf]
  %v3395 = vld [vmem:[%s5 + $0xd4] sm:$0xf]
  %v3396 = vld [vmem:[%s5 + $0xd8] sm:$0xf]
  %v3397 = vld [vmem:[%s5 + $0xdc] sm:$0xf]
  %v3398 = vld [vmem:[%s5 + $0xe0] sm:$0xf]
  %v3399 = vld [vmem:[%s5 + $0xe4] sm:$0xf]
  %v3400 = vld [vmem:[%s5 + $0xe8] sm:$0xf]
  %v3401 = vld [vmem:[%s5 + $0xec] sm:$0xf]
  %v3402 = vld [vmem:[%s5 + $0xf0] sm:$0xf]
  %v3403 = vld [vmem:[%s5 + $0xf4] sm:$0xf]
  %v3404 = vld [vmem:[%s5 + $0xf8] sm:$0xf]
  %v3405 = vld [vmem:[%s5 + $0xfc] sm:$0xf]
  %v3406 = vld [vmem:[%s5 + $0x100] sm:$0xf]
  %v3407 = vld [vmem:[%s5 + $0x104] sm:$0xf]
  %v3408 = vld [vmem:[%s5 + $0x108] sm:$0xf]
  %v3409 = vld [vmem:[%s5 + $0x10c] sm:$0xf]
  %v3410 = vld [vmem:[%s5 + $0x110] sm:$0xf]
  %v3411 = vld [vmem:[%s5 + $0x114] sm:$0xf]
  %v3412 = vld [vmem:[%s5 + $0x118] sm:$0xf]
  %v3413 = vld [vmem:[%s5 + $0x11c] sm:$0xf]
  %v3414 = vld [vmem:[%s5 + $0x120] sm:$0xf]
  %v3415 = vld [vmem:[%s5 + $0x124] sm:$0xf]
  %v3416 = vld [vmem:[%s5 + $0x128] sm:$0xf]
  %v3417 = vld [vmem:[%s5 + $0x12c] sm:$0xf]
  %v3418 = vld [vmem:[%s5 + $0x130] sm:$0xf]
  %v3419 = vld [vmem:[%s5 + $0x134] sm:$0xf]
  %v3420 = vld [vmem:[%s5 + $0x138] sm:$0xf]
  %v3421 = vld [vmem:[%s5 + $0x13c] sm:$0xf]
  %v3422 = vld [vmem:[%s5 + $0x140] sm:$0xf]
  %v3423 = vld [vmem:[%s5 + $0x144] sm:$0xf]
  %v3424 = vld [vmem:[%s5 + $0x148] sm:$0xf]
  %v3425 = vld [vmem:[%s5 + $0x14c] sm:$0xf]
  %v3426 = vld [vmem:[%s5 + $0x150] sm:$0xf]
  %v3427 = vld [vmem:[%s5 + $0x154] sm:$0xf]
  %v3428 = vld [vmem:[%s5 + $0x158] sm:$0xf]
  %v3429 = vld [vmem:[%s5 + $0x15c] sm:$0xf]
  %v3430 = vld [vmem:[%s5 + $0x160] sm:$0xf]
  %v3431 = vld [vmem:[%s5 + $0x164] sm:$0xf]
  %v3432 = vld [vmem:[%s5 + $0x168] sm:$0xf]
  %v3433 = vld [vmem:[%s5 + $0x16c] sm:$0xf]
  %v3434 = vld [vmem:[%s5 + $0x170] sm:$0xf]
  %v3435 = vld [vmem:[%s5 + $0x174] sm:$0xf]
  %v3436 = vld [vmem:[%s5 + $0x178] sm:$0xf]
  %v3437 = vld [vmem:[%s5 + $0x17c] sm:$0xf]
  %v3438 = vld [vmem:[%s5 + $0x180] sm:$0xf]
  %v3439 = vld [vmem:[%s5 + $0x184] sm:$0xf]
  %v3440 = vld [vmem:[%s5 + $0x188] sm:$0xf]
  %v3441 = vld [vmem:[%s5 + $0x18c] sm:$0xf]
  %v3442 = vld [vmem:[%s6] sm:$0x1]
  %v3444 = vlaneseq
  %v3445 = vshrl.u32 %v3444, 7
  %v3446 = vsub.s32 0, %v3445
  %v3447 = vrot.slane %v3442, %v3446
  %v3549 = vunpack.c.l.b16 %v3342
  %v3550 = vunpack.c.l.b16 %v3343
  %v3551 = vunpack.c.l.b16 %v3344
  %v3552 = vunpack.c.l.b16 %v3345
  %v3553 = vunpack.c.l.b16 %v3346
  %v3554 = vunpack.c.l.b16 %v3347
  %v3555 = vunpack.c.l.b16 %v3348
  %v3556 = vunpack.c.l.b16 %v3349
  %v3557 = vunpack.c.l.b16 %v3350
  %v3558 = vunpack.c.l.b16 %v3351
  %v3559 = vunpack.c.l.b16 %v3352
  %v3560 = vunpack.c.l.b16 %v3353
  %v3561 = vunpack.c.l.b16 %v3354
  %v3562 = vunpack.c.l.b16 %v3355
  %v3563 = vunpack.c.l.b16 %v3356
  %v3564 = vunpack.c.l.b16 %v3357
  %v3565 = vunpack.c.l.b16 %v3358
  %v3566 = vunpack.c.l.b16 %v3359
  %v3567 = vunpack.c.l.b16 %v3360
  %v3568 = vunpack.c.l.b16 %v3361
  %v3569 = vunpack.c.l.b16 %v3362
  %v3570 = vunpack.c.l.b16 %v3363
  %v3571 = vunpack.c.l.b16 %v3364
  %v3572 = vunpack.c.l.b16 %v3365
  %v3573 = vunpack.c.l.b16 %v3366
  %v3574 = vunpack.c.l.b16 %v3367
  %v3575 = vunpack.c.l.b16 %v3368
  %v3576 = vunpack.c.l.b16 %v3369
  %v3577 = vunpack.c.l.b16 %v3370
  %v3578 = vunpack.c.l.b16 %v3371
  %v3579 = vunpack.c.l.b16 %v3372
  %v3580 = vunpack.c.l.b16 %v3373
  %v3581 = vunpack.c.l.b16 %v3374
  %v3582 = vunpack.c.l.b16 %v3375
  %v3583 = vunpack.c.l.b16 %v3376
  %v3584 = vunpack.c.l.b16 %v3377
  %v3585 = vunpack.c.l.b16 %v3378
  %v3586 = vunpack.c.l.b16 %v3379
  %v3587 = vunpack.c.l.b16 %v3380
  %v3588 = vunpack.c.l.b16 %v3381
  %v3589 = vunpack.c.l.b16 %v3382
  %v3590 = vunpack.c.l.b16 %v3383
  %v3591 = vunpack.c.l.b16 %v3384
  %v3592 = vunpack.c.l.b16 %v3385
  %v3593 = vunpack.c.l.b16 %v3386
  %v3594 = vunpack.c.l.b16 %v3387
  %v3595 = vunpack.c.l.b16 %v3388
  %v3596 = vunpack.c.l.b16 %v3389
  %v3597 = vunpack.c.l.b16 %v3390
  %v3598 = vunpack.c.l.b16 %v3391
  %v3599 = vunpack.c.l.b16 %v3392
  %v3600 = vunpack.c.l.b16 %v3393
  %v3601 = vunpack.c.l.b16 %v3394
  %v3602 = vunpack.c.l.b16 %v3395
  %v3603 = vunpack.c.l.b16 %v3396
  %v3604 = vunpack.c.l.b16 %v3397
  %v3605 = vunpack.c.l.b16 %v3398
  %v3606 = vunpack.c.l.b16 %v3399
  %v3607 = vunpack.c.l.b16 %v3400
  %v3608 = vunpack.c.l.b16 %v3401
  %v3609 = vunpack.c.l.b16 %v3402
  %v3610 = vunpack.c.l.b16 %v3403
  %v3611 = vunpack.c.l.b16 %v3404
  %v3612 = vunpack.c.l.b16 %v3405
  %v3613 = vunpack.c.l.b16 %v3406
  %v3614 = vunpack.c.l.b16 %v3407
  %v3615 = vunpack.c.l.b16 %v3408
  %v3616 = vunpack.c.l.b16 %v3409
  %v3617 = vunpack.c.l.b16 %v3410
  %v3618 = vunpack.c.l.b16 %v3411
  %v3619 = vunpack.c.l.b16 %v3412
  %v3620 = vunpack.c.l.b16 %v3413
  %v3621 = vunpack.c.l.b16 %v3414
  %v3622 = vunpack.c.l.b16 %v3415
  %v3623 = vunpack.c.l.b16 %v3416
  %v3624 = vunpack.c.l.b16 %v3417
  %v3625 = vunpack.c.l.b16 %v3418
  %v3626 = vunpack.c.l.b16 %v3419
  %v3627 = vunpack.c.l.b16 %v3420
  %v3628 = vunpack.c.l.b16 %v3421
  %v3629 = vunpack.c.l.b16 %v3422
  %v3630 = vunpack.c.l.b16 %v3423
  %v3631 = vunpack.c.l.b16 %v3424
  %v3632 = vunpack.c.l.b16 %v3425
  %v3633 = vunpack.c.l.b16 %v3426
  %v3634 = vunpack.c.l.b16 %v3427
  %v3635 = vunpack.c.l.b16 %v3428
  %v3636 = vunpack.c.l.b16 %v3429
  %v3637 = vunpack.c.l.b16 %v3430
  %v3638 = vunpack.c.l.b16 %v3431
  %v3639 = vunpack.c.l.b16 %v3432
  %v3640 = vunpack.c.l.b16 %v3433
  %v3641 = vunpack.c.l.b16 %v3434
  %v3642 = vunpack.c.l.b16 %v3435
  %v3643 = vunpack.c.l.b16 %v3436
  %v3644 = vunpack.c.l.b16 %v3437
  %v3645 = vunpack.c.l.b16 %v3438
  %v3646 = vunpack.c.l.b16 %v3439
  %v3647 = vunpack.c.l.b16 %v3440
  %v3648 = vunpack.c.l.b16 %v3441
  %v3649 = vpack.c.b16 %v3550, %v3549
  %v3650 = vpack.c.b16 %v3552, %v3551
  %v3651 = vpack.c.b16 %v3554, %v3553
  %v3652 = vpack.c.b16 %v3556, %v3555
  %v3653 = vpack.c.b16 %v3558, %v3557
  %v3654 = vpack.c.b16 %v3560, %v3559
  %v3655 = vpack.c.b16 %v3562, %v3561
  %v3656 = vpack.c.b16 %v3564, %v3563
  %v3657 = vpack.c.b16 %v3566, %v3565
  %v3658 = vpack.c.b16 %v3568, %v3567
  %v3659 = vpack.c.b16 %v3570, %v3569
  %v3660 = vpack.c.b16 %v3572, %v3571
  %v3661 = vpack.c.b16 %v3574, %v3573
  %v3662 = vpack.c.b16 %v3576, %v3575
  %v3663 = vpack.c.b16 %v3578, %v3577
  %v3664 = vpack.c.b16 %v3580, %v3579
  %v3665 = vpack.c.b16 %v3582, %v3581
  %v3666 = vpack.c.b16 %v3584, %v3583
  %v3667 = vpack.c.b16 %v3586, %v3585
  %v3668 = vpack.c.b16 %v3588, %v3587
  %v3669 = vpack.c.b16 %v3590, %v3589
  %v3670 = vpack.c.b16 %v3592, %v3591
  %v3671 = vpack.c.b16 %v3594, %v3593
  %v3672 = vpack.c.b16 %v3596, %v3595
  %v3673 = vpack.c.b16 %v3598, %v3597
  %v3674 = vpack.c.b16 %v3600, %v3599
  %v3675 = vpack.c.b16 %v3602, %v3601
  %v3676 = vpack.c.b16 %v3604, %v3603
  %v3677 = vpack.c.b16 %v3606, %v3605
  %v3678 = vpack.c.b16 %v3608, %v3607
  %v3679 = vpack.c.b16 %v3610, %v3609
  %v3680 = vpack.c.b16 %v3612, %v3611
  %v3681 = vpack.c.b16 %v3614, %v3613
  %v3682 = vpack.c.b16 %v3616, %v3615
  %v3683 = vpack.c.b16 %v3618, %v3617
  %v3684 = vpack.c.b16 %v3620, %v3619
  %v3685 = vpack.c.b16 %v3622, %v3621
  %v3686 = vpack.c.b16 %v3624, %v3623
  %v3687 = vpack.c.b16 %v3626, %v3625
  %v3688 = vpack.c.b16 %v3628, %v3627
  %v3689 = vpack.c.b16 %v3630, %v3629
  %v3690 = vpack.c.b16 %v3632, %v3631
  %v3691 = vpack.c.b16 %v3634, %v3633
  %v3692 = vpack.c.b16 %v3636, %v3635
  %v3693 = vpack.c.b16 %v3638, %v3637
  %v3694 = vpack.c.b16 %v3640, %v3639
  %v3695 = vpack.c.b16 %v3642, %v3641
  %v3696 = vpack.c.b16 %v3644, %v3643
  %v3697 = vpack.c.b16 %v3646, %v3645
  %v3698 = vpack.c.b16 %v3648, %v3647
  %v3750 = vsel %vm2627, %v3341, 0
  %3752 = vmatprep.subr.bf16.mxu0 0
  %3753 = vmatpush1.bf16.msra.mxu0 %v3649
  %3754 = vmatprep.subr.bf16.mxu0 0
  %3755 = vmatpush1.bf16.msra.mxu0 %v3650
  %3756 = vmatprep.subr.bf16.mxu0 0
  %3757 = vmatpush1.bf16.msra.mxu0 %v3651
  %3758 = vmatprep.subr.bf16.mxu0 0
  %3759 = vmatpush1.bf16.msra.mxu0 %v3652
  %3760 = vmatprep.subr.bf16.mxu0 0
  %3761 = vmatpush1.bf16.msra.mxu0 %v3653
  %3762 = vmatprep.subr.bf16.mxu0 0
  %3763 = vmatpush1.bf16.msra.mxu0 %v3654
  %3764 = vmatprep.subr.bf16.mxu0 0
  %3765 = vmatpush1.bf16.msra.mxu0 %v3655
  %3766 = vmatprep.subr.bf16.mxu0 0
  %3767 = vmatpush1.bf16.msra.mxu0 %v3656
  %3768 = vmatprep.subr.bf16.mxu0 0
  %3769 = vmatpush1.bf16.msra.mxu0 %v3657
  %3770 = vmatprep.subr.bf16.mxu0 0
  %3771 = vmatpush1.bf16.msra.mxu0 %v3658
  %3772 = vmatprep.subr.bf16.mxu0 0
  %3773 = vmatpush1.bf16.msra.mxu0 %v3659
  %3774 = vmatprep.subr.bf16.mxu0 0
  %3775 = vmatpush1.bf16.msra.mxu0 %v3660
  %3776 = vmatprep.subr.bf16.mxu0 0
  %3777 = vmatpush1.bf16.msra.mxu0 %v3661
  %3778 = vmatprep.subr.bf16.mxu0 0
  %3779 = vmatpush1.bf16.msra.mxu0 %v3662
  %3780 = vmatprep.subr.bf16.mxu0 0
  %3781 = vmatpush1.bf16.msra.mxu0 %v3663
  %3782 = vmatprep.subr.bf16.mxu0 0
  %3783 = vmatpush1.bf16.msra.mxu0 %v3664
  %3784 = vmatprep.mubr.bf16.mxu0 %v3336
  %3785 = vmatmul.mubr.bf16.gmra.mrb[0].mxu0 %v3335
  %v3786 = vpop.f32.mrb[0].mxu0
  %v3787 = vadd.f32 %v3447, %v3786
  %v3788 = vpop.f32.mrb[0].mxu0
  %v3789 = vpop.f32.mrb[0].mxu0
  %v3790 = vadd.f32 %v3447, %v3789
  %v3791 = vpop.f32.mrb[0].mxu0
  %3792 = vdwg.mxu0
  %3793 = vmatprep.subr.bf16.mxu0 0
  %3794 = vmatpush1.bf16.msra.mxu0 %v3665
  %3795 = vmatprep.subr.bf16.mxu0 0
  %3796 = vmatpush1.bf16.msra.mxu0 %v3666
  %3797 = vmatprep.subr.bf16.mxu0 0
  %3798 = vmatpush1.bf16.msra.mxu0 %v3667
  %3799 = vmatprep.subr.bf16.mxu0 0
  %3800 = vmatpush1.bf16.msra.mxu0 %v3668
  %3801 = vmatprep.subr.bf16.mxu0 0
  %3802 = vmatpush1.bf16.msra.mxu0 %v3669
  %3803 = vmatprep.subr.bf16.mxu0 0
  %3804 = vmatpush1.bf16.msra.mxu0 %v3670
  %3805 = vmatprep.subr.bf16.mxu0 0
  %3806 = vmatpush1.bf16.msra.mxu0 %v3671
  %3807 = vmatprep.subr.bf16.mxu0 0
  %3808 = vmatpush1.bf16.msra.mxu0 %v3672
  %3809 = vmatprep.subr.bf16.mxu0 0
  %3810 = vmatpush1.bf16.msra.mxu0 %v3673
  %3811 = vmatprep.subr.bf16.mxu0 0
  %3812 = vmatpush1.bf16.msra.mxu0 %v3674
  %3813 = vmatprep.subr.bf16.mxu0 0
  %3814 = vmatpush1.bf16.msra.mxu0 %v3675
  %3815 = vmatprep.subr.bf16.mxu0 0
  %3816 = vmatpush1.bf16.msra.mxu0 %v3676
  %3817 = vmatprep.subr.bf16.mxu0 0
  %3818 = vmatpush1.bf16.msra.mxu0 %v3677
  %3819 = vmatprep.subr.bf16.mxu0 0
  %3820 = vmatpush1.bf16.msra.mxu0 %v3678
  %3821 = vmatprep.subr.bf16.mxu0 0
  %3822 = vmatpush1.bf16.msra.mxu0 %v3679
  %3823 = vmatprep.subr.bf16.mxu0 0
  %3824 = vmatpush1.bf16.msra.mxu0 %v3680
  %3825 = vmatprep.mubr.bf16.mxu0 %v3338
  %3826 = vmatmul.mubr.bf16.gmra.mrb[0].mxu0 %v3337
  %v3827 = vpop.f32.mrb[0].mxu0
  %v3828 = vadd.f32 %v3787, %v3827
  %v3829 = vpop.f32.mrb[0].mxu0
  %v3830 = vpop.f32.mrb[0].mxu0
  %v3831 = vadd.f32 %v3790, %v3830
  %v3832 = vpop.f32.mrb[0].mxu0
  %3833 = vdwg.mxu0
  %3834 = vmatprep.subr.bf16.mxu0 0
  %3835 = vmatpush1.bf16.msra.mxu0 %v3681
  %3836 = vmatprep.subr.bf16.mxu0 0
  %3837 = vmatpush1.bf16.msra.mxu0 %v3682
  %3838 = vmatprep.subr.bf16.mxu0 0
  %3839 = vmatpush1.bf16.msra.mxu0 %v3683
  %3840 = vmatprep.subr.bf16.mxu0 0
  %3841 = vmatpush1.bf16.msra.mxu0 %v3684
  %3842 = vmatprep.subr.bf16.mxu0 0
  %3843 = vmatpush1.bf16.msra.mxu0 %v3685
  %3844 = vmatprep.subr.bf16.mxu0 0
  %3845 = vmatpush1.bf16.msra.mxu0 %v3686
  %3846 = vmatprep.subr.bf16.mxu0 0
  %3847 = vmatpush1.bf16.msra.mxu0 %v3687
  %3848 = vmatprep.subr.bf16.mxu0 0
  %3849 = vmatpush1.bf16.msra.mxu0 %v3688
  %3850 = vmatprep.subr.bf16.mxu0 0
  %3851 = vmatpush1.bf16.msra.mxu0 %v3689
  %3852 = vmatprep.subr.bf16.mxu0 0
  %3853 = vmatpush1.bf16.msra.mxu0 %v3690
  %3854 = vmatprep.subr.bf16.mxu0 0
  %3855 = vmatpush1.bf16.msra.mxu0 %v3691
  %3856 = vmatprep.subr.bf16.mxu0 0
  %3857 = vmatpush1.bf16.msra.mxu0 %v3692
  %3858 = vmatprep.subr.bf16.mxu0 0
  %3859 = vmatpush1.bf16.msra.mxu0 %v3693
  %3860 = vmatprep.subr.bf16.mxu0 0
  %3861 = vmatpush1.bf16.msra.mxu0 %v3694
  %3862 = vmatprep.subr.bf16.mxu0 0
  %3863 = vmatpush1.bf16.msra.mxu0 %v3695
  %3864 = vmatprep.subr.bf16.mxu0 0
  %3865 = vmatpush1.bf16.msra.mxu0 %v3696
  %3866 = vmatprep.mubr.bf16.mxu0 %v3340
  %3867 = vmatmul.mubr.bf16.gmra.mrb[0].mxu0 %v3339
  %v3868 = vpop.f32.mrb[0].mxu0
  %v3869 = vadd.f32 %v3828, %v3868
  %v3870 = vpop.f32.mrb[0].mxu0
  %v3871 = vpop.f32.mrb[0].mxu0
  %v3872 = vadd.f32 %v3831, %v3871
  %v3873 = vpop.f32.mrb[0].mxu0
  %3874 = vdwg.mxu0
  %3875 = vmatprep.subr.bf16.mxu0 0
  %3876 = vmatpush1.bf16.msra.mxu0 %v3697
  %3877 = vmatprep.subr.bf16.mxu0 0
  %3878 = vmatpush1.bf16.msra.mxu0 %v3698
  %3879 = vmatprep.subr.bf16.mxu0 0
  %3880 = vmatpush1.bf16.msra.mxu0 0
  %3881 = vmatprep.subr.bf16.mxu0 0
  %3882 = vmatpush1.bf16.msra.mxu0 0
  %3883 = vmatprep.subr.bf16.mxu0 0
  %3884 = vmatpush1.bf16.msra.mxu0 0
  %3885 = vmatprep.subr.bf16.mxu0 0
  %3886 = vmatpush1.bf16.msra.mxu0 0
  %3887 = vmatprep.subr.bf16.mxu0 0
  %3888 = vmatpush1.bf16.msra.mxu0 0
  %3889 = vmatprep.subr.bf16.mxu0 0
  %3890 = vmatpush1.bf16.msra.mxu0 0
  %3891 = vmatprep.subr.bf16.mxu0 0
  %3892 = vmatpush1.bf16.msra.mxu0 0
  %3893 = vmatprep.subr.bf16.mxu0 0
  %3894 = vmatpush1.bf16.msra.mxu0 0
  %3895 = vmatprep.subr.bf16.mxu0 0
  %3896 = vmatpush1.bf16.msra.mxu0 0
  %3897 = vmatprep.subr.bf16.mxu0 0
  %3898 = vmatpush1.bf16.msra.mxu0 0
  %3899 = vmatprep.subr.bf16.mxu0 0
  %3900 = vmatpush1.bf16.msra.mxu0 0
  %3901 = vmatprep.subr.bf16.mxu0 0
  %3902 = vmatpush1.bf16.msra.mxu0 0
  %3903 = vmatprep.subr.bf16.mxu0 0
  %3904 = vmatpush1.bf16.msra.mxu0 0
  %3905 = vmatprep.subr.bf16.mxu0 0
  %3906 = vmatpush1.bf16.msra.mxu0 0
  %3907 = vmatprep.mubr.bf16.mxu0 0
  %3908 = vmatmul.mubr.bf16.gmra.mrb[0].mxu0 %v3750
  %v3909 = vpop.f32.mrb[0].mxu0
  %v3910 = vadd.f32 %v3869, %v3909
  %v3911 = vpop.f32.mrb[0].mxu0
  %v3912 = vpop.f32.mrb[0].mxu0
  %v3913 = vadd.f32 %v3872, %v3912
  %v3914 = vpop.f32.mrb[0].mxu0
  %3915 = vdwg.mxu0
  %v3916 = vmax.f32 %v3910, 0.0
  %v3917 = vmax.f32 %v3913, 0.0
  %v3918 = vld [vmem:[%s7] sm:$0x1]
  %v3919 = vld [vmem:[%s8] sm:$0x1]
  %vm3920 = vcmask 818176
  %v3921 = vsel %vm3920, %v3916, 0.0
  %v3922 = vrot.slane %v3921, 4
  %v3923 = vadd.f32 %v3921, %v3922
  %v3924 = vrot.slane %v3923, 2
  %v3925 = vadd.f32 %v3923, %v3924
  %v3926 = vrot.slane %v3925, 1
  %v3927 = vadd.f32 %v3925, %v3926
  %v3928 = vmul.f32 %v3927, 0.125
  %v3929 = vmul.f32 %v3916, %v3916
  %v3930 = vsel %vm3920, %v3929, 0.0
  %v3931 = vrot.slane %v3930, 4
  %v3932 = vadd.f32 %v3930, %v3931
  %v3933 = vrot.slane %v3932, 2
  %v3934 = vadd.f32 %v3932, %v3933
  %v3935 = vrot.slane %v3934, 1
  %v3936 = vadd.f32 %v3934, %v3935
  %v3937 = vmul.f32 %v3936, 0.125
  %v3938 = vmul.f32 %v3928, %v3928
  %v3939 = vsub.f32 %v3937, %v3938
  %v3940 = vmax.f32 %v3939, 0.0
  %v3941 = vsub.f32 %v3916, %v3928
  %v3942 = vadd.f32 %v3940, 1e-05
  %v3943 = vrsqrt.pop %v3942
  %v3944 = vmul.f32 %v3941, %v3943
  %v3946 = vlaneseq
  %v3947 = vshrl.u32 %v3946, 7
  %v3948 = vsub.s32 0, %v3947
  %v3949 = vrot.slane %v3918, %v3948
  %v3951 = vmul.f32 %v3944, %v3949
  %v3953 = vlaneseq
  %v3954 = vshrl.u32 %v3953, 7
  %v3955 = vsub.s32 0, %v3954
  %v3956 = vrot.slane %v3919, %v3955
  %v3958 = vadd.f32 %v3951, %v3956
  %v3959 = vsel %vm3920, %v3917, 0.0
  %v3960 = vrot.slane %v3959, 4
  %v3961 = vadd.f32 %v3959, %v3960
  %v3962 = vrot.slane %v3961, 2
  %v3963 = vadd.f32 %v3961, %v3962
  %v3964 = vrot.slane %v3963, 1
  %v3965 = vadd.f32 %v3963, %v3964
  %v3966 = vmul.f32 %v3965, 0.125
  %v3967 = vmul.f32 %v3917, %v3917
  %v3968 = vsel %vm3920, %v3967, 0.0
  %v3969 = vrot.slane %v3968, 4
  %v3970 = vadd.f32 %v3968, %v3969
  %v3971 = vrot.slane %v3970, 2
  %v3972 = vadd.f32 %v3970, %v3971
  %v3973 = vrot.slane %v3972, 1
  %v3974 = vadd.f32 %v3972, %v3973
  %v3975 = vmul.f32 %v3974, 0.125
  %v3976 = vmul.f32 %v3966, %v3966
  %v3977 = vsub.f32 %v3975, %v3976
  %v3978 = vmax.f32 %v3977, 0.0
  %v3979 = vsub.f32 %v3917, %v3966
  %v3980 = vadd.f32 %v3978, 1e-05
  %v3981 = vrsqrt.pop %v3980
  %v3982 = vmul.f32 %v3979, %v3981
  %v3983 = vmul.f32 %v3982, %v3949
  %v3984 = vadd.f32 %v3983, %v3956
  %v3985 = vld [vmem:[%s9] sm:$0xff]
  %v3986 = vld [vmem:[%s9 + $0x8] sm:$0xff]
  %v3987 = vld [vmem:[%s9 + $0x10] sm:$0xff]
  %v3988 = vld [vmem:[%s9 + $0x18] sm:$0xff]
  %v3989 = vld [vmem:[%s9 + $0x20] sm:$0xff]
  %v3990 = vld [vmem:[%s9 + $0x28] sm:$0xff]
  %v3991 = vld [vmem:[%s9 + $0x30] sm:$0xff]
  %v3992 = vld [vmem:[%s9 + $0x38] sm:$0xff]
  %v3993 = vld [vmem:[%s9 + $0x40] sm:$0xff]
  %v3994 = vld [vmem:[%s9 + $0x48] sm:$0xff]
  %v3995 = vld [vmem:[%s9 + $0x50] sm:$0xff]
  %v3996 = vld [vmem:[%s9 + $0x58] sm:$0xff]
  %v3997 = vld [vmem:[%s9 + $0x60] sm:$0xf]
  %v3998 = vld [vmem:[%s10] sm:$0x1]
  %v4000 = vlaneseq
  %v4001 = vshrl.u32 %v4000, 7
  %v4002 = vsub.s32 0, %v4001
  %v4003 = vrot.slane %v3998, %v4002
  %v4006 = vsel %vm3920, %v3958, 0
  %vm4008 = vcmask 1043456
  %v4010 = vsel %vm4008, %v3997, 0
  %4012 = vmatprep.subr.mxu0 0.0
  %4013 = vmatpush1.msra.mxu0 %v3985
  %4014 = vmatprep.subr.mxu0 0.0
  %4015 = vmatpush1.msra.mxu0 %v3986
  %4016 = vmatprep.subr.mxu0 0.0
  %4017 = vmatpush1.msra.mxu0 %v3987
  %4018 = vmatprep.subr.mxu0 0.0
  %4019 = vmatpush1.msra.mxu0 %v3988
  %4020 = vmatprep.subr.mxu0 0.0
  %4021 = vmatpush1.msra.mxu0 %v3989
  %4022 = vmatprep.subr.mxu0 0.0
  %4023 = vmatpush1.msra.mxu0 %v3990
  %4024 = vmatprep.subr.mxu0 0.0
  %4025 = vmatpush1.msra.mxu0 %v3991
  %4026 = vmatprep.subr.mxu0 0.0
  %4027 = vmatpush1.msra.mxu0 %v3992
  %4028 = vmatprep.subr.mxu0 0.0
  %4029 = vmatpush1.msra.mxu0 %v3993
  %4030 = vmatprep.subr.mxu0 0.0
  %4031 = vmatpush1.msra.mxu0 %v3994
  %4032 = vmatprep.subr.mxu0 0.0
  %4033 = vmatpush1.msra.mxu0 %v3995
  %4034 = vmatprep.subr.mxu0 0.0
  %4035 = vmatpush1.msra.mxu0 %v3996
  %4036 = vmatprep.subr.mxu0 0.0
  %4037 = vmatpush1.msra.mxu0 %v4010
  %4038 = vmatprep.subr.mxu0 0.0
  %4039 = vmatpush1.msra.mxu0 0.0
  %4040 = vmatprep.subr.mxu0 0.0
  %4041 = vmatpush1.msra.mxu0 0.0
  %4042 = vmatprep.subr.mxu0 0.0
  %4043 = vmatpush1.msra.mxu0 0.0
  %4044 = vmatprep.subr.mxu0 0.0
  %4045 = vmatpush1.msra.mxu0 0.0
  %4046 = vmatprep.subr.mxu0 0.0
  %4047 = vmatpush1.msra.mxu0 0.0
  %4048 = vmatprep.subr.mxu0 0.0
  %4049 = vmatpush1.msra.mxu0 0.0
  %4050 = vmatprep.subr.mxu0 0.0
  %4051 = vmatpush1.msra.mxu0 0.0
  %4052 = vmatprep.subr.mxu0 0.0
  %4053 = vmatpush1.msra.mxu0 0.0
  %4054 = vmatprep.subr.mxu0 0.0
  %4055 = vmatpush1.msra.mxu0 0.0
  %4056 = vmatprep.subr.mxu0 0.0
  %4057 = vmatpush1.msra.mxu0 0.0
  %4058 = vmatprep.subr.mxu0 0.0
  %4059 = vmatpush1.msra.mxu0 0.0
  %4060 = vmatprep.subr.mxu0 0.0
  %4061 = vmatpush1.msra.mxu0 0.0
  %4062 = vmatprep.subr.mxu0 0.0
  %4063 = vmatpush1.msra.mxu0 0.0
  %4064 = vmatprep.subr.mxu0 0.0
  %4065 = vmatpush1.msra.mxu0 0.0
  %4066 = vmatprep.subr.mxu0 0.0
  %4067 = vmatpush1.msra.mxu0 0.0
  %4068 = vmatprep.subr.mxu0 0.0
  %4069 = vmatpush1.msra.mxu0 0.0
  %4070 = vmatprep.subr.mxu0 0.0
  %4071 = vmatpush1.msra.mxu0 0.0
  %4072 = vmatprep.subr.mxu0 0.0
  %4073 = vmatpush1.msra.mxu0 0.0
  %4074 = vmatprep.subr.mxu0 0.0
  %4075 = vmatpush1.msra.mxu0 0.0
  %4076 = vmatprep.mubr.f32.mxu0 0.0
  %4077 = vmatmul.mubr.f32.gmra.mrb[0].mxu0 %v4006
  %v4078 = vpop.f32.mrb[0].mxu0
  %v4079 = vadd.f32 %v4003, %v4078
  %v4080 = vpop.f32.mrb[0].mxu0
  %4081 = vdwg.mxu0
  %v4083 = vsel %vm3920, %v3984, 0
  %4085 = vmatprep.subr.mxu0 0.0
  %4086 = vmatpush1.msra.mxu0 %v3985
  %4087 = vmatprep.subr.mxu0 0.0
  %4088 = vmatpush1.msra.mxu0 %v3986
  %4089 = vmatprep.subr.mxu0 0.0
  %4090 = vmatpush1.msra.mxu0 %v3987
  %4091 = vmatprep.subr.mxu0 0.0
  %4092 = vmatpush1.msra.mxu0 %v3988
  %4093 = vmatprep.subr.mxu0 0.0
  %4094 = vmatpush1.msra.mxu0 %v3989
  %4095 = vmatprep.subr.mxu0 0.0
  %4096 = vmatpush1.msra.mxu0 %v3990
  %4097 = vmatprep.subr.mxu0 0.0
  %4098 = vmatpush1.msra.mxu0 %v3991
  %4099 = vmatprep.subr.mxu0 0.0
  %4100 = vmatpush1.msra.mxu0 %v3992
  %4101 = vmatprep.subr.mxu0 0.0
  %4102 = vmatpush1.msra.mxu0 %v3993
  %4103 = vmatprep.subr.mxu0 0.0
  %4104 = vmatpush1.msra.mxu0 %v3994
  %4105 = vmatprep.subr.mxu0 0.0
  %4106 = vmatpush1.msra.mxu0 %v3995
  %4107 = vmatprep.subr.mxu0 0.0
  %4108 = vmatpush1.msra.mxu0 %v3996
  %4109 = vmatprep.subr.mxu0 0.0
  %4110 = vmatpush1.msra.mxu0 %v4010
  %4111 = vmatprep.subr.mxu0 0.0
  %4112 = vmatpush1.msra.mxu0 0.0
  %4113 = vmatprep.subr.mxu0 0.0
  %4114 = vmatpush1.msra.mxu0 0.0
  %4115 = vmatprep.subr.mxu0 0.0
  %4116 = vmatpush1.msra.mxu0 0.0
  %4117 = vmatprep.subr.mxu0 0.0
  %4118 = vmatpush1.msra.mxu0 0.0
  %4119 = vmatprep.subr.mxu0 0.0
  %4120 = vmatpush1.msra.mxu0 0.0
  %4121 = vmatprep.subr.mxu0 0.0
  %4122 = vmatpush1.msra.mxu0 0.0
  %4123 = vmatprep.subr.mxu0 0.0
  %4124 = vmatpush1.msra.mxu0 0.0
  %4125 = vmatprep.subr.mxu0 0.0
  %4126 = vmatpush1.msra.mxu0 0.0
  %4127 = vmatprep.subr.mxu0 0.0
  %4128 = vmatpush1.msra.mxu0 0.0
  %4129 = vmatprep.subr.mxu0 0.0
  %4130 = vmatpush1.msra.mxu0 0.0
  %4131 = vmatprep.subr.mxu0 0.0
  %4132 = vmatpush1.msra.mxu0 0.0
  %4133 = vmatprep.subr.mxu0 0.0
  %4134 = vmatpush1.msra.mxu0 0.0
  %4135 = vmatprep.subr.mxu0 0.0
  %4136 = vmatpush1.msra.mxu0 0.0
  %4137 = vmatprep.subr.mxu0 0.0
  %4138 = vmatpush1.msra.mxu0 0.0
  %4139 = vmatprep.subr.mxu0 0.0
  %4140 = vmatpush1.msra.mxu0 0.0
  %4141 = vmatprep.subr.mxu0 0.0
  %4142 = vmatpush1.msra.mxu0 0.0
  %4143 = vmatprep.subr.mxu0 0.0
  %4144 = vmatpush1.msra.mxu0 0.0
  %4145 = vmatprep.subr.mxu0 0.0
  %4146 = vmatpush1.msra.mxu0 0.0
  %4147 = vmatprep.subr.mxu0 0.0
  %4148 = vmatpush1.msra.mxu0 0.0
  %4149 = vmatprep.mubr.f32.mxu0 0.0
  %4150 = vmatmul.mubr.f32.gmra.mrb[0].mxu0 %v4083
  %v4151 = vpop.f32.mrb[0].mxu0
  %v4152 = vadd.f32 %v4003, %v4151
  %v4153 = vpop.f32.mrb[0].mxu0
  %4154 = vdwg.mxu0
  %vm4155 = vcmask 80896
  %4156 = vst.msk [vmem:[%s18] sm:$0xff] %vm4155, %v4079
  %s4157 = scalar_lea.vmem %s18, 8
  %4158 = vst.msk [vmem:[%s4157] sm:$0xff] %vm4155, %v4152
  %v4159 = vld [vmem:[%s11] sm:$0xff]
  %v4160 = vld [vmem:[%s11 + $0x8] sm:$0x3]
  %v4161 = vld [vmem:[%s12] sm:$0xff]
  %v4162 = vld [vmem:[%s12 + $0x8] sm:$0x3]
  %v4164 = vsel %vm4155, %v4152, 0
  %vm4166 = vcmask 1041408
  %v4168 = vsel %vm4166, %v4162, 0
  %4170 = vmatprep.subr.mxu0 0.0
  %4171 = vmatpush1.msra.mxu0 %v4161
  %4172 = vmatprep.subr.mxu0 0.0
  %4173 = vmatpush1.msra.mxu0 %v4168
  %4174 = vmatprep.subr.mxu0 0.0
  %4175 = vmatpush1.msra.mxu0 0.0
  %4176 = vmatprep.subr.mxu0 0.0
  %4177 = vmatpush1.msra.mxu0 0.0
  %4178 = vmatprep.subr.mxu0 0.0
  %4179 = vmatpush1.msra.mxu0 0.0
  %4180 = vmatprep.subr.mxu0 0.0
  %4181 = vmatpush1.msra.mxu0 0.0
  %4182 = vmatprep.subr.mxu0 0.0
  %4183 = vmatpush1.msra.mxu0 0.0
  %4184 = vmatprep.subr.mxu0 0.0
  %4185 = vmatpush1.msra.mxu0 0.0
  %4186 = vmatprep.subr.mxu0 0.0
  %4187 = vmatpush1.msra.mxu0 0.0
  %4188 = vmatprep.subr.mxu0 0.0
  %4189 = vmatpush1.msra.mxu0 0.0
  %4190 = vmatprep.subr.mxu0 0.0
  %4191 = vmatpush1.msra.mxu0 0.0
  %4192 = vmatprep.subr.mxu0 0.0
  %4193 = vmatpush1.msra.mxu0 0.0
  %4194 = vmatprep.subr.mxu0 0.0
  %4195 = vmatpush1.msra.mxu0 0.0
  %4196 = vmatprep.subr.mxu0 0.0
  %4197 = vmatpush1.msra.mxu0 0.0
  %4198 = vmatprep.subr.mxu0 0.0
  %4199 = vmatpush1.msra.mxu0 0.0
  %4200 = vmatprep.subr.mxu0 0.0
  %4201 = vmatpush1.msra.mxu0 0.0
  %4202 = vmatprep.subr.mxu0 0.0
  %4203 = vmatpush1.msra.mxu0 0.0
  %4204 = vmatprep.subr.mxu0 0.0
  %4205 = vmatpush1.msra.mxu0 0.0
  %4206 = vmatprep.subr.mxu0 0.0
  %4207 = vmatpush1.msra.mxu0 0.0
  %4208 = vmatprep.subr.mxu0 0.0
  %4209 = vmatpush1.msra.mxu0 0.0
  %4210 = vmatprep.subr.mxu0 0.0
  %4211 = vmatpush1.msra.mxu0 0.0
  %4212 = vmatprep.subr.mxu0 0.0
  %4213 = vmatpush1.msra.mxu0 0.0
  %4214 = vmatprep.subr.mxu0 0.0
  %4215 = vmatpush1.msra.mxu0 0.0
  %4216 = vmatprep.subr.mxu0 0.0
  %4217 = vmatpush1.msra.mxu0 0.0
  %4218 = vmatprep.subr.mxu0 0.0
  %4219 = vmatpush1.msra.mxu0 0.0
  %4220 = vmatprep.subr.mxu0 0.0
  %4221 = vmatpush1.msra.mxu0 0.0
  %4222 = vmatprep.subr.mxu0 0.0
  %4223 = vmatpush1.msra.mxu0 0.0
  %4224 = vmatprep.subr.mxu0 0.0
  %4225 = vmatpush1.msra.mxu0 0.0
  %4226 = vmatprep.subr.mxu0 0.0
  %4227 = vmatpush1.msra.mxu0 0.0
  %4228 = vmatprep.subr.mxu0 0.0
  %4229 = vmatpush1.msra.mxu0 0.0
  %4230 = vmatprep.subr.mxu0 0.0
  %4231 = vmatpush1.msra.mxu0 0.0
  %4232 = vmatprep.subr.mxu0 0.0
  %4233 = vmatpush1.msra.mxu0 0.0
  %4234 = vmatprep.mubr.f32.mxu0 0.0
  %4235 = vmatmul.mubr.f32.gmra.mrb[0].mxu0 %v4164
  %v4236 = vpop.f32.mrb[0].mxu0
  %v4237 = vadd.f32 0.0, %v4236
  %v4238 = vpop.f32.mrb[0].mxu0
  %4239 = vdwg.mxu0
  %v4241 = vsel %vm4155, %v4079, 0
  %v4244 = vsel %vm4166, %v4160, 0
  %4246 = vmatprep.subr.mxu0 0.0
  %4247 = vmatpush1.msra.mxu0 %v4159
  %4248 = vmatprep.subr.mxu0 0.0
  %4249 = vmatpush1.msra.mxu0 %v4244
  %4250 = vmatprep.subr.mxu0 0.0
  %4251 = vmatpush1.msra.mxu0 0.0
  %4252 = vmatprep.subr.mxu0 0.0
  %4253 = vmatpush1.msra.mxu0 0.0
  %4254 = vmatprep.subr.mxu0 0.0
  %4255 = vmatpush1.msra.mxu0 0.0
  %4256 = vmatprep.subr.mxu0 0.0
  %4257 = vmatpush1.msra.mxu0 0.0
  %4258 = vmatprep.subr.mxu0 0.0
  %4259 = vmatpush1.msra.mxu0 0.0
  %4260 = vmatprep.subr.mxu0 0.0
  %4261 = vmatpush1.msra.mxu0 0.0
  %4262 = vmatprep.subr.mxu0 0.0
  %4263 = vmatpush1.msra.mxu0 0.0
  %4264 = vmatprep.subr.mxu0 0.0
  %4265 = vmatpush1.msra.mxu0 0.0
  %4266 = vmatprep.subr.mxu0 0.0
  %4267 = vmatpush1.msra.mxu0 0.0
  %4268 = vmatprep.subr.mxu0 0.0
  %4269 = vmatpush1.msra.mxu0 0.0
  %4270 = vmatprep.subr.mxu0 0.0
  %4271 = vmatpush1.msra.mxu0 0.0
  %4272 = vmatprep.subr.mxu0 0.0
  %4273 = vmatpush1.msra.mxu0 0.0
  %4274 = vmatprep.subr.mxu0 0.0
  %4275 = vmatpush1.msra.mxu0 0.0
  %4276 = vmatprep.subr.mxu0 0.0
  %4277 = vmatpush1.msra.mxu0 0.0
  %4278 = vmatprep.subr.mxu0 0.0
  %4279 = vmatpush1.msra.mxu0 0.0
  %4280 = vmatprep.subr.mxu0 0.0
  %4281 = vmatpush1.msra.mxu0 0.0
  %4282 = vmatprep.subr.mxu0 0.0
  %4283 = vmatpush1.msra.mxu0 0.0
  %4284 = vmatprep.subr.mxu0 0.0
  %4285 = vmatpush1.msra.mxu0 0.0
  %4286 = vmatprep.subr.mxu0 0.0
  %4287 = vmatpush1.msra.mxu0 0.0
  %4288 = vmatprep.subr.mxu0 0.0
  %4289 = vmatpush1.msra.mxu0 0.0
  %4290 = vmatprep.subr.mxu0 0.0
  %4291 = vmatpush1.msra.mxu0 0.0
  %4292 = vmatprep.subr.mxu0 0.0
  %4293 = vmatpush1.msra.mxu0 0.0
  %4294 = vmatprep.subr.mxu0 0.0
  %4295 = vmatpush1.msra.mxu0 0.0
  %4296 = vmatprep.subr.mxu0 0.0
  %4297 = vmatpush1.msra.mxu0 0.0
  %4298 = vmatprep.subr.mxu0 0.0
  %4299 = vmatpush1.msra.mxu0 0.0
  %4300 = vmatprep.subr.mxu0 0.0
  %4301 = vmatpush1.msra.mxu0 0.0
  %4302 = vmatprep.subr.mxu0 0.0
  %4303 = vmatpush1.msra.mxu0 0.0
  %4304 = vmatprep.subr.mxu0 0.0
  %4305 = vmatpush1.msra.mxu0 0.0
  %4306 = vmatprep.subr.mxu0 0.0
  %4307 = vmatpush1.msra.mxu0 0.0
  %4308 = vmatprep.subr.mxu0 0.0
  %4309 = vmatpush1.msra.mxu0 0.0
  %4310 = vmatprep.mubr.f32.mxu0 0.0
  %4311 = vmatmul.mubr.f32.gmra.mrb[0].mxu0 %v4241
  %v4312 = vpop.f32.mrb[0].mxu0
  %v4313 = vadd.f32 %v4237, %v4312
  %v4314 = vpop.f32.mrb[0].mxu0
  %4315 = vdwg.mxu0
  %v4316 = vld [vmem:[%s13] sm:$0x1]
  %v4318 = vlaneseq
  %v4319 = vshrl.u32 %v4318, 7
  %v4320 = vsub.s32 0, %v4319
  %v4321 = vrot.slane %v4316, %v4320
  %v4323 = vadd.f32 %v4313, %v4321
  %v4324 = vmax.f32 %v4323, 0.0
  %v4325 = vld [vmem:[%s14] sm:$0x1]
  %v4326 = vld [vmem:[%s15] sm:$0x1]
  %v4327 = vsel %vm3920, %v4324, 0.0
  %v4328 = vrot.slane %v4327, 4
  %v4329 = vadd.f32 %v4327, %v4328
  %v4330 = vrot.slane %v4329, 2
  %v4331 = vadd.f32 %v4329, %v4330
  %v4332 = vrot.slane %v4331, 1
  %v4333 = vadd.f32 %v4331, %v4332
  %v4334 = vmul.f32 %v4333, 0.125
  %v4335 = vmul.f32 %v4324, %v4324
  %v4336 = vsel %vm3920, %v4335, 0.0
  %v4337 = vrot.slane %v4336, 4
  %v4338 = vadd.f32 %v4336, %v4337
  %v4339 = vrot.slane %v4338, 2
  %v4340 = vadd.f32 %v4338, %v4339
  %v4341 = vrot.slane %v4340, 1
  %v4342 = vadd.f32 %v4340, %v4341
  %v4343 = vmul.f32 %v4342, 0.125
  %v4344 = vmul.f32 %v4334, %v4334
  %v4345 = vsub.f32 %v4343, %v4344
  %v4346 = vmax.f32 %v4345, 0.0
  %v4347 = vsub.f32 %v4324, %v4334
  %v4348 = vadd.f32 %v4346, 1e-05
  %v4349 = vrsqrt.pop %v4348
  %v4350 = vmul.f32 %v4347, %v4349
  %v4352 = vlaneseq
  %v4353 = vshrl.u32 %v4352, 7
  %v4354 = vsub.s32 0, %v4353
  %v4355 = vrot.slane %v4325, %v4354
  %v4357 = vmul.f32 %v4350, %v4355
  %v4359 = vlaneseq
  %v4360 = vshrl.u32 %v4359, 7
  %v4361 = vsub.s32 0, %v4360
  %v4362 = vrot.slane %v4326, %v4361
  %v4364 = vadd.f32 %v4357, %v4362
  %v4365 = vld [vmem:[%s16] sm:$0xff]
  %v4366 = vld [vmem:[%s16 + $0x8] sm:$0xff]
  %v4367 = vld [vmem:[%s16 + $0x10] sm:$0xff]
  %v4368 = vld [vmem:[%s16 + $0x18] sm:$0xff]
  %v4369 = vld [vmem:[%s16 + $0x20] sm:$0xff]
  %v4370 = vld [vmem:[%s16 + $0x28] sm:$0xff]
  %v4371 = vld [vmem:[%s16 + $0x30] sm:$0xff]
  %v4372 = vld [vmem:[%s16 + $0x38] sm:$0xff]
  %v4373 = vld [vmem:[%s16 + $0x40] sm:$0xff]
  %v4374 = vld [vmem:[%s16 + $0x48] sm:$0xff]
  %v4375 = vld [vmem:[%s16 + $0x50] sm:$0xff]
  %v4376 = vld [vmem:[%s16 + $0x58] sm:$0xff]
  %v4377 = vld [vmem:[%s16 + $0x60] sm:$0xf]
  %v4378 = vld [vmem:[%s17] sm:$0x1]
  %v4380 = vlaneseq
  %v4381 = vshrl.u32 %v4380, 7
  %v4382 = vsub.s32 0, %v4381
  %v4383 = vrot.slane %v4378, %v4382
  %v4386 = vsel %vm3920, %v4364, 0
  %v4389 = vsel %vm4008, %v4377, 0
  %4391 = vmatprep.subr.mxu0 0.0
  %4392 = vmatpush1.msra.mxu0 %v4365
  %4393 = vmatprep.subr.mxu0 0.0
  %4394 = vmatpush1.msra.mxu0 %v4366
  %4395 = vmatprep.subr.mxu0 0.0
  %4396 = vmatpush1.msra.mxu0 %v4367
  %4397 = vmatprep.subr.mxu0 0.0
  %4398 = vmatpush1.msra.mxu0 %v4368
  %4399 = vmatprep.subr.mxu0 0.0
  %4400 = vmatpush1.msra.mxu0 %v4369
  %4401 = vmatprep.subr.mxu0 0.0
  %4402 = vmatpush1.msra.mxu0 %v4370
  %4403 = vmatprep.subr.mxu0 0.0
  %4404 = vmatpush1.msra.mxu0 %v4371
  %4405 = vmatprep.subr.mxu0 0.0
  %4406 = vmatpush1.msra.mxu0 %v4372
  %4407 = vmatprep.subr.mxu0 0.0
  %4408 = vmatpush1.msra.mxu0 %v4373
  %4409 = vmatprep.subr.mxu0 0.0
  %4410 = vmatpush1.msra.mxu0 %v4374
  %4411 = vmatprep.subr.mxu0 0.0
  %4412 = vmatpush1.msra.mxu0 %v4375
  %4413 = vmatprep.subr.mxu0 0.0
  %4414 = vmatpush1.msra.mxu0 %v4376
  %4415 = vmatprep.subr.mxu0 0.0
  %4416 = vmatpush1.msra.mxu0 %v4389
  %4417 = vmatprep.subr.mxu0 0.0
  %4418 = vmatpush1.msra.mxu0 0.0
  %4419 = vmatprep.subr.mxu0 0.0
  %4420 = vmatpush1.msra.mxu0 0.0
  %4421 = vmatprep.subr.mxu0 0.0
  %4422 = vmatpush1.msra.mxu0 0.0
  %4423 = vmatprep.subr.mxu0 0.0
  %4424 = vmatpush1.msra.mxu0 0.0
  %4425 = vmatprep.subr.mxu0 0.0
  %4426 = vmatpush1.msra.mxu0 0.0
  %4427 = vmatprep.subr.mxu0 0.0
  %4428 = vmatpush1.msra.mxu0 0.0
  %4429 = vmatprep.subr.mxu0 0.0
  %4430 = vmatpush1.msra.mxu0 0.0
  %4431 = vmatprep.subr.mxu0 0.0
  %4432 = vmatpush1.msra.mxu0 0.0
  %4433 = vmatprep.subr.mxu0 0.0
  %4434 = vmatpush1.msra.mxu0 0.0
  %4435 = vmatprep.subr.mxu0 0.0
  %4436 = vmatpush1.msra.mxu0 0.0
  %4437 = vmatprep.subr.mxu0 0.0
  %4438 = vmatpush1.msra.mxu0 0.0
  %4439 = vmatprep.subr.mxu0 0.0
  %4440 = vmatpush1.msra.mxu0 0.0
  %4441 = vmatprep.subr.mxu0 0.0
  %4442 = vmatpush1.msra.mxu0 0.0
  %4443 = vmatprep.subr.mxu0 0.0
  %4444 = vmatpush1.msra.mxu0 0.0
  %4445 = vmatprep.subr.mxu0 0.0
  %4446 = vmatpush1.msra.mxu0 0.0
  %4447 = vmatprep.subr.mxu0 0.0
  %4448 = vmatpush1.msra.mxu0 0.0
  %4449 = vmatprep.subr.mxu0 0.0
  %4450 = vmatpush1.msra.mxu0 0.0
  %4451 = vmatprep.subr.mxu0 0.0
  %4452 = vmatpush1.msra.mxu0 0.0
  %4453 = vmatprep.subr.mxu0 0.0
  %4454 = vmatpush1.msra.mxu0 0.0
  %4455 = vmatprep.mubr.f32.mxu0 0.0
  %4456 = vmatmul.mubr.f32.gmra.mrb[0].mxu0 %v4386
  %v4457 = vpop.f32.mrb[0].mxu0
  %v4458 = vadd.f32 %v4383, %v4457
  %v4459 = vpop.f32.mrb[0].mxu0
  %4460 = vdwg.mxu0
  %vm4461 = vcmask 15360
  %4462 = vst.msk [vmem:[%s19] sm:$0xff] %vm4461, %v4458
  // Predicated region
  $region74: #{forward.3} parent=0 // pred_check
    _
  $region75: #{forward.3} parent=0 // pred_check_branch
    %4464 = sbr.rel (0) target = $region77
  $region76: #{forward.3} parent=0 // pred_region
    _
  $region77: #{forward.3} parent=0 // pred_fallthru
    _
  // Predicated region
  $region78: #{forward.3} parent=0 // pred_check
    _
  $region79: #{forward.3} parent=0 // pred_check_branch
    %4466 = sbr.rel (0) target = $region81
  $region80: #{forward.3} parent=0 // pred_region
    _
  $region81: #{forward.3} parent=0 // pred_fallthru
    _
  // Predicated region
  $region82: #{forward.3} parent=0 // pred_check
    _
  $region83: #{forward.3} parent=0 // pred_check_branch
    %4468 = sbr.rel (0) target = $region85
  $region84: #{forward.3} parent=0 // pred_region
    _
  $region85: #{forward.3} parent=0 // pred_fallthru
    _
  // Predicated region
  $region86: #{forward.3} parent=0 // pred_check
    _
  $region87: #{forward.3} parent=0 // pred_check_branch
    %4470 = sbr.rel (0) target = $region89
  $region88: #{forward.3} parent=0 // pred_region
    _
  $region89: #{forward.3} parent=0 // pred_fallthru
    _

</llo_original>
